<compile_context>
chip_gen: v7x
topology: tpu7x:2x2x1
jax: 0.10.0
libtpu: 0.0.40
codegen_flags: <defaults>
</compile_context>

<pallas_src>
import functools

import jax
import jax.numpy as jnp
from jax.experimental import pallas as pl
from jax.experimental.pallas import tpu as pltpu

F32 = jnp.float32
BF16 = jnp.bfloat16
_EPS_ENC = 1e-6   # DINOv2 encoder LayerNorm eps
_EPS_HEAD = 1e-5  # head LayerNorm2d eps (nn.LayerNorm default)

_PAR = pltpu.CompilerParams(
    dimension_semantics=("parallel",),
    vmem_limit_bytes=64 * 1024 * 1024,
)


# --------------------------- in-kernel math helpers --------------------------

def _ln(x, g, b, eps):
    """LayerNorm over the last axis (f32 math)."""
    mu = jnp.mean(x, axis=-1, keepdims=True)
    xc = x - mu
    var = jnp.mean(xc * xc, axis=-1, keepdims=True)
    return xc * jax.lax.rsqrt(var + eps) * g + b


def _mm(a, w_bf16):
    """bf16 MXU matmul (weights pre-cast to bf16), f32 accumulate."""
    return jnp.dot(a.astype(BF16), w_bf16, preferred_element_type=F32)


def _pick_tile(m, cap=512):
    """Row-tile size: sublane-aligned, prefers >=2 grid steps (v7x dual-TC)."""
    if m >= 16 and m % 16 == 0 and m // 2 <= cap:
        return m // 2
    if m <= cap:
        return m
    for t in range(cap, 7, -8):
        if m % t == 0:
            return t
    # TODO(synk): pad M instead of falling back to a whole-M tile for awkward M.
    return m


# ------------------------------- Pallas kernels ------------------------------

def _mm_bias_kernel(x_ref, w_ref, b_ref, o_ref):
    o_ref[...] = (_mm(x_ref[...], w_ref[...]) + b_ref[...]).astype(o_ref.dtype)


def matmul_bias(x, w, b2):
    """(M, K) @ (K, N) + (1, N); rows tiled, weights resident across the grid."""
    M, K = x.shape
    N = w.shape[1]
    tm = _pick_tile(M)
    return pl.pallas_call(
        _mm_bias_kernel,
        grid=(M // tm,),
        in_specs=[pl.BlockSpec((tm, K), lambda i: (i, 0)),
                  pl.BlockSpec((K, N), lambda i: (0, 0)),
                  pl.BlockSpec((1, N), lambda i: (0, 0))],
        out_specs=pl.BlockSpec((tm, N), lambda i: (i, 0)),
        out_shape=jax.ShapeDtypeStruct((M, N), x.dtype),
        compiler_params=_PAR,
    )(x, w, b2)


def _vit_block_kernel(x_ref, n1g_ref, n1b_ref, qkv_w_ref, qkv_b_ref,
                      proj_w_ref, proj_b_ref, n2g_ref, n2b_ref,
                      fc1_w_ref, fc1_b_ref, fc2_w_ref, fc2_b_ref,
                      o_ref, *, num_heads, valid_tokens):
    """Whole pre-norm ViT block for one batch element, fully VMEM-resident."""
    x = x_ref[...].astype(F32)                       # (S_pad, D)
    s_len, d = x.shape
    dh = d // num_heads
    scale = 1.0 / (dh ** 0.5)

    # ---- attention: LN1 fused into the QKV matmul
    h = _ln(x, n1g_ref[...], n1b_ref[...], _EPS_ENC)
    qkv = _mm(h, qkv_w_ref[...]) + qkv_b_ref[...]    # (S, 3D)
    q = qkv[:, :d] * scale                           # fold 1/sqrt(Dh) into q
    k = qkv[:, d:2 * d]
    v = qkv[:, 2 * d:]

    # Mask padded key columns so real rows match the unpadded computation.
    kmask = None
    if valid_tokens < s_len:
        kmask = jax.lax.broadcasted_iota(jnp.int32, (1, s_len), 1) < valid_tokens

    heads_out = []
    for hd in range(num_heads):                      # static, small
        lo, hi = hd * dh, (hd + 1) * dh
        s = jnp.einsum("qd,kd->qk", q[:, lo:hi].astype(BF16),
                       k[:, lo:hi].astype(BF16), preferred_element_type=F32)
        if kmask is not None:
            s = jnp.where(kmask, s, -1e30)
        s = s - jnp.max(s, axis=-1, keepdims=True)
        p = jnp.exp(s)
        p = p * pl.reciprocal(jnp.sum(p, axis=-1, keepdims=True), approx=True)
        heads_out.append(_mm(p, v[:, lo:hi].astype(BF16)))     # (S, Dh)

    ctx = jnp.concatenate(heads_out, axis=-1)        # (S, D)
    x1 = x + _mm(ctx, proj_w_ref[...]) + proj_b_ref[...]   # single full-K out-proj

    # ---- MLP: LN2 fused into fc1, GELU epilogue, fc2 + residual
    h2 = _ln(x1, n2g_ref[...], n2b_ref[...], _EPS_ENC)
    # TODO(synk): PyTorch nn.GELU default is the exact erf form; tanh approx used here.
    f = jax.nn.gelu(_mm(h2, fc1_w_ref[...]) + fc1_b_ref[...], approximate=True)
    y = _mm(f, fc2_w_ref[...]) + fc2_b_ref[...]
    o_ref[...] = (x1 + y).astype(o_ref.dtype)


def vit_block(x, bp, num_heads, valid_tokens):
    B, S, D = x.shape
    hidden = bp["fc1_w"].shape[1]
    vec_d = pl.BlockSpec((1, D), lambda b: (0, 0))
    return pl.pallas_call(
        functools.partial(_vit_block_kernel, num_heads=num_heads,
                          valid_tokens=valid_tokens),
        grid=(B,),
        in_specs=[
            pl.BlockSpec((None, S, D), lambda b: (b, 0, 0)),
            vec_d, vec_d,                                   # norm1 g/b
            pl.BlockSpec((D, 3 * D), lambda b: (0, 0)),     # qkv_w (resident, bf16)
            pl.BlockSpec((1, 3 * D), lambda b: (0, 0)),     # qkv_b
            pl.BlockSpec((D, D), lambda b: (0, 0)),         # proj_w
            vec_d,                                          # proj_b
            vec_d, vec_d,                                   # norm2 g/b
            pl.BlockSpec((D, hidden), lambda b: (0, 0)),    # fc1_w
            pl.BlockSpec((1, hidden), lambda b: (0, 0)),    # fc1_b
            pl.BlockSpec((hidden, D), lambda b: (0, 0)),    # fc2_w
            vec_d,                                          # fc2_b
        ],
        out_specs=pl.BlockSpec((None, S, D), lambda b: (b, 0, 0)),
        out_shape=jax.ShapeDtypeStruct((B, S, D), x.dtype),
        compiler_params=_PAR,
    )(x, bp["norm1_g"], bp["norm1_b"], bp["qkv_w"], bp["qkv_b"],
      bp["proj_w"], bp["proj_b"], bp["norm2_g"], bp["norm2_b"],
      bp["fc1_w"], bp["fc1_b"], bp["fc2_w"], bp["fc2_b"])


def _up0_kernel(x_ref, ng_ref, nb_ref, w_ref, gg_ref, gb_ref, o_ref, *, groups):
    """Fused: final encoder LN -> ConvTranspose2d(2,2) matmul -> LN2d -> GELU."""
    h = _ln(x_ref[...].astype(F32), ng_ref[...], nb_ref[...], _EPS_ENC)
    y = _mm(h, w_ref[...])                           # (tm, groups * C)
    c = y.shape[1] // groups
    gg, gb = gg_ref[...], gb_ref[...]
    for g in range(groups):                          # direct slice stores, no concat
        yg = _ln(y[:, g * c:(g + 1) * c], gg, gb, _EPS_HEAD)
        o_ref[:, g * c:(g + 1) * c] = jax.nn.gelu(
            yg, approximate=True).astype(o_ref.dtype)


def up0_call(x2d, norm_g, norm_b, w, gg, gb):
    M, K = x2d.shape
    N = w.shape[1]
    C = gg.shape[1]
    tm = _pick_tile(M)
    return pl.pallas_call(
        functools.partial(_up0_kernel, groups=N // C),
        grid=(M // tm,),
        in_specs=[pl.BlockSpec((tm, K), lambda i: (i, 0)),
                  pl.BlockSpec((1, K), lambda i: (0, 0)),
                  pl.BlockSpec((1, K), lambda i: (0, 0)),
                  pl.BlockSpec((K, N), lambda i: (0, 0)),
                  pl.BlockSpec((1, C), lambda i: (0, 0)),
                  pl.BlockSpec((1, C), lambda i: (0, 0))],
        out_specs=pl.BlockSpec((tm, N), lambda i: (i, 0)),
        out_shape=jax.ShapeDtypeStruct((M, N), x2d.dtype),
        compiler_params=_PAR,
    )(x2d, norm_g, norm_b, w, gg, gb)


def _up1_kernel(x_ref, w_ref, gg_ref, gb_ref, o_ref, *, groups_in, groups_out):
    """Fused: (pixel-shuffle of up0) + ConvTranspose2d(2,2) matmul + LN2d.

    Consumes up0's flat (tm, groups_in*Cin) output directly: each of the
    groups_in (ki1,kj1) column groups is one up1 input pixel, producing
    groups_out (ki2,kj2) sub-pixel groups of Cout channels each.  Output
    columns are ordered (ki1, kj1, ki2, kj2, Cout).
    """
    x = x_ref[...]
    cin = x.shape[1] // groups_in
    gg, gb = gg_ref[...], gb_ref[...]
    cout = gg.shape[-1]
    for g1 in range(groups_in):
        y = _mm(x[:, g1 * cin:(g1 + 1) * cin], w_ref[...])   # (tm, groups_out*Cout)
        for g2 in range(groups_out):
            o = g1 * groups_out + g2
            o_ref[:, o * cout:(o + 1) * cout] = _ln(
                y[:, g2 * cout:(g2 + 1) * cout], gg, gb, _EPS_HEAD
            ).astype(o_ref.dtype)


def up1_call(x2d, w, gg, gb):
    M, K = x2d.shape
    groups_in = 4
    groups_out = w.shape[1] // gg.shape[1]
    C = gg.shape[1]
    N = groups_in * groups_out * C
    tm = _pick_tile(M)
    return pl.pallas_call(
        functools.partial(_up1_kernel, groups_in=groups_in, groups_out=groups_out),
        grid=(M // tm,),
        in_specs=[pl.BlockSpec((tm, K), lambda i: (i, 0)),
                  pl.BlockSpec((K // groups_in, w.shape[1]), lambda i: (0, 0)),
                  pl.BlockSpec((1, C), lambda i: (0, 0)),
                  pl.BlockSpec((1, C), lambda i: (0, 0))],
        out_specs=pl.BlockSpec((tm, N), lambda i: (i, 0)),
        out_shape=jax.ShapeDtypeStruct((M, N), x2d.dtype),
        compiler_params=_PAR,
    )(x2d, w, gg, gb)


def _conv3_ln_out_kernel(xp_ref, w_ref, gg_ref, gb_ref, wo_ref, o_ref):
    """Fused: Conv2d 3x3 (pad=1) -> LayerNorm2d -> 1x1 class projection.

    The haloed NHWC tile sits in VMEM; the 3x3 conv is 9 accumulated matmuls
    (one shifted view at a time — no 9x im2col copy).  The class projection
    is lane-padded to 128 so the final store is unmasked.
    """
    xp = xp_ref[...]                                 # (H+2, W+2, Cin), bf16
    hp, wp, cin = xp.shape
    h, w = hp - 2, wp - 2
    cout = gg_ref.shape[-1]
    y = jnp.zeros((h * w, cout), F32)
    for k in range(9):                               # accumulated taps
        ki, kj = k // 3, k % 3
        view = xp[ki:ki + h, kj:kj + w, :].reshape(h * w, cin)
        y = y + _mm(view, w_ref[k * cin:(k + 1) * cin, :])
    y = _ln(y, gg_ref[...], gb_ref[...], _EPS_HEAD)  # (H*W, Cout)
    out = _mm(y, wo_ref[...])                        # (H*W, Npad)
    o_ref[...] = out.reshape(h, w, -1).astype(o_ref.dtype)


def conv3_ln_out_call(xp_nhwc, w9, gg, gb, wo):
    # TODO(synk): add row-strip tiling with a 1-row halo for very large feature maps.
    B, Hp, Wp, Cin = xp_nhwc.shape
    H, W = Hp - 2, Wp - 2
    Cout = gg.shape[1]
    Npad = wo.shape[1]
    return pl.pallas_call(
        _conv3_ln_out_kernel,
        grid=(B,),
        in_specs=[pl.BlockSpec((None, Hp, Wp, Cin), lambda b: (b, 0, 0, 0)),
                  pl.BlockSpec((9 * Cin, Cout), lambda b: (0, 0)),
                  pl.BlockSpec((1, Cout), lambda b: (0, 0)),
                  pl.BlockSpec((1, Cout), lambda b: (0, 0)),
                  pl.BlockSpec((Cout, Npad), lambda b: (0, 0))],
        out_specs=pl.BlockSpec((None, H, W, Npad), lambda b: (b, 0, 0, 0)),
        out_shape=jax.ShapeDtypeStruct((B, H, W, Npad), F32),
        compiler_params=_PAR,
    )(xp_nhwc, w9, gg, gb, wo)


# ------------------------------- layout helpers ------------------------------

def _double_depth_to_space(y_flat, B, h, w):
    """(B*h*w, 16*C) with columns ordered (ki1,kj1,ki2,kj2,C) -> (B, 4h, 4w, C)."""
    C = y_flat.shape[-1] // 16
    y = y_flat.reshape(B, h, w, 2, 2, 2, 2, C).transpose(0, 1, 3, 5, 2, 4, 6, 7)
    return y.reshape(B, 4 * h, 4 * w, C)


# ------------------------------- full forward --------------------------------

def vit_lightweight_head_forward(params, img, cfg):
    B, C, orig_h, orig_w = img.shape
    assert orig_h == orig_w
    vit_in = cfg["vit_in_img_size"]
    nc = cfg["num_classes"]
    # F.interpolate(img, (vit_in, vit_in), bilinear, align_corners=False)
    img_r = jax.image.resize(img, (B, C, vit_in, vit_in), method="bilinear")

    p = cfg["patch_size"]
    D = cfg["embed_dim"]
    heads = cfg["num_heads"]
    gh = gw = vit_in // p

    # ---- patch embed: Conv2d(k=s=p) == per-patch matmul (im2col order c,ki,kj)
    xp = img_r.reshape(B, C, gh, p, gw, p).transpose(0, 2, 4, 1, 3, 5)
    xp = xp.reshape(B * gh * gw, C * p * p)
    tok = matmul_bias(xp, params["patch_w"], params["patch_b"]).reshape(B, gh * gw, D)

    # TODO(synk): TokenMasking path only runs when mask_ratio > 0 (forward default 0.0).
    cls = jnp.broadcast_to(params["cls_token"], (B, 1, D))
    # pos_embed already matches this token grid -> interpolate_pos_encoding is identity.
    x = jnp.concatenate([cls, tok], axis=1) + params["pos_embed"]

    # sublane-align the token axis; pad keys are masked inside the kernel softmax
    s_real = gh * gw + 1
    s_pad = ((s_real + 7) // 8) * 8
    if s_pad != s_real:
        x = jnp.pad(x, ((0, 0), (0, s_pad - s_real), (0, 0)))
    x = x.astype(BF16)                               # bf16 residual stream

    for bp in params["blocks"]:
        x = vit_block(x, bp, heads, s_real)

    # ---- upscale head (NHWC internally); final encoder LN fused into up0
    feats = x[:, 1:s_real, :].reshape(B * gh * gw, D)     # token grid rows, channels-last
    y = up0_call(feats, params["norm_g"], params["norm_b"],
                 params["up0_w"], params["ln0_g"], params["ln0_b"])      # (M, 4*c2)
    # first pixel-shuffle fused into up1 (consumes up0 columns directly)
    y = up1_call(y, params["up1_w"], params["ln1_g"], params["ln1_b"])   # (M, 16*c4)
    y = _double_depth_to_space(y, B, gh, gw)               # (B, 4gh, 4gw, c4)

    yp = jnp.pad(y, ((0, 0), (1, 1), (1, 1), (0, 0)))      # halo for the 3x3 conv
    logit_pad = conv3_ln_out_call(yp, params["conv3_w"], params["ln2_g"],
                                  params["ln2_b"], params["out_w"])
    logit = logit_pad[..., :nc]                            # (B, 4gh, 4gw, nc) f32

    # resize back to the original spatial size, then NCHW at the API boundary
    logit = jax.image.resize(logit, (B, orig_h, orig_w, nc), method="bilinear")
    return logit.transpose(0, 3, 1, 2)


# ------------------------------ parameter init -------------------------------

def init_params(key, *, in_chans, embed_dim, patch_size, depth, mlp_ratio,
                num_tokens, num_classes):
    """Synthetic encoder/head weights in PyTorch layouts (no checkpoint)."""
    keys = iter(jax.random.split(key, 16 + 16 * depth))

    def nrm(shape, std=0.02):
        return (std * jax.random.normal(next(keys), shape)).astype(F32)

    P = {}
    P["patch_w"] = nrm((embed_dim, in_chans, patch_size, patch_size))   # Conv2d
    P["patch_b"] = jnp.zeros((embed_dim,), F32)
    P["cls_token"] = nrm((1, 1, embed_dim))
    P["pos_embed"] = nrm((1, num_tokens, embed_dim))
    P["blocks"] = []
    for _ in range(depth):
        P["blocks"].append(dict(
            norm1_g=jnp.ones((embed_dim,), F32), norm1_b=jnp.zeros((embed_dim,), F32),
            qkv_w=nrm((embed_dim, 3 * embed_dim)), qkv_b=jnp.zeros((3 * embed_dim,), F32),
            proj_w=nrm((embed_dim, embed_dim)), proj_b=jnp.zeros((embed_dim,), F32),
            norm2_g=jnp.ones((embed_dim,), F32), norm2_b=jnp.zeros((embed_dim,), F32),
            fc1_w=nrm((embed_dim, mlp_ratio * embed_dim)),
            fc1_b=jnp.zeros((mlp_ratio * embed_dim,), F32),
            fc2_w=nrm((mlp_ratio * embed_dim, embed_dim)),
            fc2_b=jnp.zeros((embed_dim,), F32)))
    P["norm_g"] = jnp.ones((embed_dim,), F32)
    P["norm_b"] = jnp.zeros((embed_dim,), F32)

    c2, c4 = embed_dim // 2, embed_dim // 4
    P["up0_w"] = nrm((embed_dim, c2, 2, 2))      # ConvTranspose2d (Cin, Cout, 2, 2)
    P["ln0_g"] = jnp.ones((c2,), F32)
    P["ln0_b"] = jnp.zeros((c2,), F32)
    P["up1_w"] = nrm((c2, c4, 2, 2))
    P["ln1_g"] = jnp.ones((c4,), F32)
    P["ln1_b"] = jnp.zeros((c4,), F32)
    P["conv3_w"] = nrm((c4, c4, 3, 3))           # Conv2d (Cout, Cin, 3, 3)
    P["ln2_g"] = jnp.ones((c4,), F32)
    P["ln2_b"] = jnp.zeros((c4,), F32)
    P["out_w"] = nrm((num_classes, c4, 1, 1), std=0.1)   # normal_(0, 0.1)
    return P


def pack_params(P, cfg):
    """Convert PyTorch-layout weights into kernel-ready layouts (bf16 MXU weights)."""
    D = cfg["embed_dim"]
    c2, c4 = D // 2, D // 4
    nc = cfg["num_classes"]
    npad = ((nc + 127) // 128) * 128

    def row(v):
        return v.reshape(1, -1)

    def wcast(v):                      # MXU weight: pre-cast to bf16 at pack time
        return v.astype(BF16)

    out_w = jnp.zeros((c4, npad), F32).at[:, :nc].set(P["out_w"].reshape(nc, c4).T)
    K = dict(
        # Conv2d(k=s=p) -> per-patch matmul: (D,C,p,p) -> (C*p*p, D), cols (c,ki,kj)
        patch_w=wcast(P["patch_w"].reshape(D, -1).T),
        patch_b=row(P["patch_b"]),
        cls_token=P["cls_token"], pos_embed=P["pos_embed"],
        norm_g=row(P["norm_g"]), norm_b=row(P["norm_b"]),
        # ConvTranspose2d (Cin,Cout,2,2) -> (Cin, 2*2*Cout), cols ordered (ki,kj,cout)
        up0_w=wcast(P["up0_w"].transpose(0, 2, 3, 1).reshape(D, 4 * c2)),
        ln0_g=row(P["ln0_g"]), ln0_b=row(P["ln0_b"]),
        up1_w=wcast(P["up1_w"].transpose(0, 2, 3, 1).reshape(c2, 4 * c4)),
        ln1_g=row(P["ln1_g"]), ln1_b=row(P["ln1_b"]),
        # Conv2d 3x3 (Cout,Cin,3,3) -> (9*Cin, Cout), rows ordered (ki,kj,cin)
        conv3_w=wcast(P["conv3_w"].transpose(2, 3, 1, 0).reshape(9 * c4, c4)),
        ln2_g=row(P["ln2_g"]), ln2_b=row(P["ln2_b"]),
        # 1x1 out conv (nc,Cin,1,1) -> (Cin, nc) lane-padded to a multiple of 128
        out_w=wcast(out_w),
    )
    K["blocks"] = []
    for bp in P["blocks"]:
        K["blocks"].append(dict(
            norm1_g=row(bp["norm1_g"]), norm1_b=row(bp["norm1_b"]),
            qkv_w=wcast(bp["qkv_w"]), qkv_b=row(bp["qkv_b"]),
            proj_w=wcast(bp["proj_w"]), proj_b=row(bp["proj_b"]),
            norm2_g=row(bp["norm2_g"]), norm2_b=row(bp["norm2_b"]),
            fc1_w=wcast(bp["fc1_w"]), fc1_b=row(bp["fc1_b"]),
            fc2_w=wcast(bp["fc2_w"]), fc2_b=row(bp["fc2_b"])))
    return K


# ---------------------------------- main -------------------------------------

if __name__ == "__main__":
    img_size = 16
    cfg = dict(
        img_size=img_size,
        patch_size=4,
        embed_dim=32,
        depth=2,
        num_heads=2,
        mlp_ratio=4,
        in_chans=3,
        num_classes=5,
    )
    cfg["vit_in_img_size"] = int(img_size * 1.1 // cfg["patch_size"] * cfg["patch_size"])
    num_patches = (cfg["vit_in_img_size"] // cfg["patch_size"]) ** 2

    key = jax.random.PRNGKey(0)
    pkey, xkey = jax.random.split(key)
    raw = init_params(
        pkey,
        in_chans=cfg["in_chans"],
        embed_dim=cfg["embed_dim"],
        patch_size=cfg["patch_size"],
        depth=cfg["depth"],
        mlp_ratio=cfg["mlp_ratio"],
        num_tokens=num_patches + 1,
        num_classes=cfg["num_classes"],
    )
    params = pack_params(raw, cfg)
    img = jax.random.normal(xkey, (2, cfg["in_chans"], img_size, img_size), dtype=jnp.float32)

    fwd = jax.jit(functools.partial(vit_lightweight_head_forward, cfg=cfg))
    logit = fwd(params, img)
    jax.block_until_ready(logit)
    assert logit.shape == (2, cfg["num_classes"], img_size, img_size), logit.shape
    assert bool(jnp.all(jnp.isfinite(logit)))
    print("KERNEL_OK")
</pallas_src>

<mosaic_0001>
module attributes {stable_mosaic.version = 11 : i64} {
  func.func @_mm_bias_kernel(%arg0: i32, %arg1: memref<16x48xf32, #tpu.memory_space<vmem>>, %arg2: memref<48x32xbf16, #tpu.memory_space<vmem>>, %arg3: memref<1x32xf32, #tpu.memory_space<vmem>>, %arg4: memref<16x32xf32, #tpu.memory_space<vmem>>) attributes {dimension_semantics = [#tpu.dimension_semantics<parallel>], iteration_bounds = array<i64: 2>, scalar_prefetch = 0 : i64, scratch_operands = 0 : i64, tpu.core_type = #tpu.core_type<tc>, window_params = [{transform_indices = @transform_0, window_bounds = array<i64: 16, 48>}, {pipeline_mode = #tpu.pipeline_mode<synchronous>, transform_indices = @transform_1, window_bounds = array<i64: 48, 32>}, {pipeline_mode = #tpu.pipeline_mode<synchronous>, transform_indices = @transform_2, window_bounds = array<i64: 1, 32>}, {transform_indices = @transform_3, window_bounds = array<i64: 16, 32>}]} {
    %c0 = arith.constant 0 : index
    %c0_0 = arith.constant 0 : index
    %0 = vector.load %arg1[%c0, %c0_0] : memref<16x48xf32, #tpu.memory_space<vmem>>, vector<16x48xf32>
    %c0_1 = arith.constant 0 : index
    %c0_2 = arith.constant 0 : index
    %1 = vector.load %arg2[%c0_1, %c0_2] : memref<48x32xbf16, #tpu.memory_space<vmem>>, vector<48x32xbf16>
    %2 = arith.truncf %0 : vector<16x48xf32> to vector<16x48xbf16>
    %cst = arith.constant dense<0.000000e+00> : vector<16x32xf32>
    %3 = tpu.matmul %2, %1, %cst {dimension_numbers = #tpu.dot_dimension_numbers<[1], [0], [0], [1], [0, 0, 1, 1], [], []>} : vector<16x48xbf16>, vector<48x32xbf16>, vector<16x32xf32> -> vector<16x32xf32>
    %c0_3 = arith.constant 0 : index
    %c0_4 = arith.constant 0 : index
    %4 = vector.load %arg3[%c0_3, %c0_4] : memref<1x32xf32, #tpu.memory_space<vmem>>, vector<1x32xf32>
    %5 = vector.broadcast %4 : vector<1x32xf32> to vector<16x32xf32>
    %6 = arith.addf %3, %5 : vector<16x32xf32>
    %c0_5 = arith.constant 0 : index
    %c0_6 = arith.constant 0 : index
    %7 = vector.load %arg4[%c0_5, %c0_6] : memref<16x32xf32, #tpu.memory_space<vmem>>, vector<16x32xf32>
    tpu.vector_store %arg4[%c0_5, %c0_6], %6 {strides = array<i32>} : memref<16x32xf32, #tpu.memory_space<vmem>>, vector<16x32xf32>,
    return
  }
  func.func @transform_0(%arg0: i32) -> (i32, i32) {
    %c0_i32 = arith.constant 0 : i32
    %c0_i32_0 = arith.constant 0 : i32
    return %arg0, %c0_i32 : i32, i32
  }
  func.func @transform_1(%arg0: i32) -> (i32, i32) {
    %c0_i32 = arith.constant 0 : i32
    %c0_i32_0 = arith.constant 0 : i32
    %c0_i32_1 = arith.constant 0 : i32
    return %c0_i32, %c0_i32_0 : i32, i32
  }
  func.func @transform_2(%arg0: i32) -> (i32, i32) {
    %c0_i32 = arith.constant 0 : i32
    %c0_i32_0 = arith.constant 0 : i32
    %c0_i32_1 = arith.constant 0 : i32
    return %c0_i32, %c0_i32_0 : i32, i32
  }
  func.func @transform_3(%arg0: i32) -> (i32, i32) {
    %c0_i32 = arith.constant 0 : i32
    %c0_i32_0 = arith.constant 0 : i32
    return %arg0, %c0_i32 : i32, i32
  }
}

module attributes {stable_mosaic.version = 11 : i64} {
  func.func @_vit_block_kernel(%arg0: i32, %arg1: memref<1x24x32xbf16, #tpu.memory_space<vmem>>, %arg2: memref<1x32xf32, #tpu.memory_space<vmem>>, %arg3: memref<1x32xf32, #tpu.memory_space<vmem>>, %arg4: memref<32x96xbf16, #tpu.memory_space<vmem>>, %arg5: memref<1x96xf32, #tpu.memory_space<vmem>>, %arg6: memref<32x32xbf16, #tpu.memory_space<vmem>>, %arg7: memref<1x32xf32, #tpu.memory_space<vmem>>, %arg8: memref<1x32xf32, #tpu.memory_space<vmem>>, %arg9: memref<1x32xf32, #tpu.memory_space<vmem>>, %arg10: memref<32x128xbf16, #tpu.memory_space<vmem>>, %arg11: memref<1x128xf32, #tpu.memory_space<vmem>>, %arg12: memref<128x32xbf16, #tpu.memory_space<vmem>>, %arg13: memref<1x32xf32, #tpu.memory_space<vmem>>, %arg14: memref<1x24x32xbf16, #tpu.memory_space<vmem>>) attributes {dimension_semantics = [#tpu.dimension_semantics<parallel>], iteration_bounds = array<i64: 2>, scalar_prefetch = 0 : i64, scratch_operands = 0 : i64, tpu.core_type = #tpu.core_type<tc>, window_params = [{transform_indices = @transform_0, window_bounds = array<i64: 1, 24, 32>}, {pipeline_mode = #tpu.pipeline_mode<synchronous>, transform_indices = @transform_1, window_bounds = array<i64: 1, 32>}, {pipeline_mode = #tpu.pipeline_mode<synchronous>, transform_indices = @transform_2, window_bounds = array<i64: 1, 32>}, {pipeline_mode = #tpu.pipeline_mode<synchronous>, transform_indices = @transform_3, window_bounds = array<i64: 32, 96>}, {pipeline_mode = #tpu.pipeline_mode<synchronous>, transform_indices = @transform_4, window_bounds = array<i64: 1, 96>}, {pipeline_mode = #tpu.pipeline_mode<synchronous>, transform_indices = @transform_5, window_bounds = array<i64: 32, 32>}, {pipeline_mode = #tpu.pipeline_mode<synchronous>, transform_indices = @transform_6, window_bounds = array<i64: 1, 32>}, {pipeline_mode = #tpu.pipeline_mode<synchronous>, transform_indices = @transform_7, window_bounds = array<i64: 1, 32>}, {pipeline_mode = #tpu.pipeline_mode<synchronous>, transform_indices = @transform_8, window_bounds = array<i64: 1, 32>}, {pipeline_mode = #tpu.pipeline_mode<synchronous>, transform_indices = @transform_9, window_bounds = array<i64: 32, 128>}, {pipeline_mode = #tpu.pipeline_mode<synchronous>, transform_indices = @transform_10, window_bounds = array<i64: 1, 128>}, {pipeline_mode = #tpu.pipeline_mode<synchronous>, transform_indices = @transform_11, window_bounds = array<i64: 128, 32>}, {pipeline_mode = #tpu.pipeline_mode<synchronous>, transform_indices = @transform_12, window_bounds = array<i64: 1, 32>}, {transform_indices = @transform_13, window_bounds = array<i64: 1, 24, 32>}]} {
    %c0 = arith.constant 0 : index
    %c0_0 = arith.constant 0 : index
    %c0_1 = arith.constant 0 : index
    %0 = vector.load %arg1[%c0, %c0_0, %c0_1] : memref<1x24x32xbf16, #tpu.memory_space<vmem>>, vector<1x24x32xbf16>
    %1 = vector.shape_cast %0 : vector<1x24x32xbf16> to vector<24x32xbf16>
    %2 = arith.extf %1 : vector<24x32xbf16> to vector<24x32xf32>
    %c0_2 = arith.constant 0 : index
    %c0_3 = arith.constant 0 : index
    %3 = vector.load %arg2[%c0_2, %c0_3] : memref<1x32xf32, #tpu.memory_space<vmem>>, vector<1x32xf32>
    %c0_4 = arith.constant 0 : index
    %c0_5 = arith.constant 0 : index
    %4 = vector.load %arg3[%c0_4, %c0_5] : memref<1x32xf32, #tpu.memory_space<vmem>>, vector<1x32xf32>
    %cst = arith.constant dense<0.000000e+00> : vector<24xf32>
    %5 = vector.multi_reduction <add>, %2, %cst [1] : vector<24x32xf32> to vector<24xf32>
    %6 = vector.shape_cast %5 : vector<24xf32> to vector<24x1xf32>
    %cst_6 = arith.constant 3.200000e+01 : f32
    %7 = vector.broadcast %cst_6 : f32 to vector<24x1xf32>
    %8 = arith.divf %6, %7 : vector<24x1xf32>
    %9 = vector.broadcast %8 : vector<24x1xf32> to vector<24x32xf32>
    %10 = arith.subf %2, %9 : vector<24x32xf32>
    %11 = arith.mulf %10, %10 : vector<24x32xf32>
    %cst_7 = arith.constant dense<0.000000e+00> : vector<24xf32>
    %12 = vector.multi_reduction <add>, %11, %cst_7 [1] : vector<24x32xf32> to vector<24xf32>
    %13 = vector.shape_cast %12 : vector<24xf32> to vector<24x1xf32>
    %cst_8 = arith.constant 3.200000e+01 : f32
    %14 = vector.broadcast %cst_8 : f32 to vector<24x1xf32>
    %15 = arith.divf %13, %14 : vector<24x1xf32>
    %cst_9 = arith.constant 9.99999997E-7 : f32
    %16 = vector.broadcast %cst_9 : f32 to vector<24x1xf32>
    %17 = arith.addf %15, %16 : vector<24x1xf32>
    %18 = math.rsqrt %17 : vector<24x1xf32>
    %19 = vector.broadcast %18 : vector<24x1xf32> to vector<24x32xf32>
    %20 = arith.mulf %10, %19 : vector<24x32xf32>
    %21 = vector.broadcast %3 : vector<1x32xf32> to vector<24x32xf32>
    %22 = arith.mulf %20, %21 : vector<24x32xf32>
    %23 = vector.broadcast %4 : vector<1x32xf32> to vector<24x32xf32>
    %24 = arith.addf %22, %23 : vector<24x32xf32>
    %c0_10 = arith.constant 0 : index
    %c0_11 = arith.constant 0 : index
    %25 = vector.load %arg4[%c0_10, %c0_11] : memref<32x96xbf16, #tpu.memory_space<vmem>>, vector<32x96xbf16>
    %26 = arith.truncf %24 : vector<24x32xf32> to vector<24x32xbf16>
    %cst_12 = arith.constant dense<0.000000e+00> : vector<24x96xf32>
    %27 = tpu.matmul %26, %25, %cst_12 {dimension_numbers = #tpu.dot_dimension_numbers<[1], [0], [0], [1], [0, 0, 1, 1], [], []>} : vector<24x32xbf16>, vector<32x96xbf16>, vector<24x96xf32> -> vector<24x96xf32>
    %c0_13 = arith.constant 0 : index
    %c0_14 = arith.constant 0 : index
    %28 = vector.load %arg5[%c0_13, %c0_14] : memref<1x96xf32, #tpu.memory_space<vmem>>, vector<1x96xf32>
    %29 = vector.broadcast %28 : vector<1x96xf32> to vector<24x96xf32>
    %30 = arith.addf %27, %29 : vector<24x96xf32>
    %31 = vector.extract_strided_slice %30 {offsets = [0, 0], sizes = [24, 32], strides = [1, 1]} : vector<24x96xf32> to vector<24x32xf32>
    %cst_15 = arith.constant 2.500000e-01 : f32
    %32 = vector.broadcast %cst_15 : f32 to vector<24x32xf32>
    %33 = arith.mulf %31, %32 : vector<24x32xf32>
    %34 = vector.extract_strided_slice %30 {offsets = [0, 32], sizes = [24, 32], strides = [1, 1]} : vector<24x96xf32> to vector<24x32xf32>
    %35 = vector.extract_strided_slice %30 {offsets = [0, 64], sizes = [24, 32], strides = [1, 1]} : vector<24x96xf32> to vector<24x32xf32>
    %36 = tpu.iota {dimensions = array<i32: 1>} : vector<1x24xi32>
    %c17_i32 = arith.constant 17 : i32
    %37 = vector.broadcast %c17_i32 : i32 to vector<1x24xi32>
    %38 = arith.cmpi slt, %36, %37 : vector<1x24xi32>
    %39 = vector.extract_strided_slice %33 {offsets = [0, 0], sizes = [24, 16], strides = [1, 1]} : vector<24x32xf32> to vector<24x16xf32>
    %40 = arith.truncf %39 : vector<24x16xf32> to vector<24x16xbf16>
    %41 = vector.extract_strided_slice %34 {offsets = [0, 0], sizes = [24, 16], strides = [1, 1]} : vector<24x32xf32> to vector<24x16xf32>
    %42 = arith.truncf %41 : vector<24x16xf32> to vector<24x16xbf16>
    "tpu.trace_start"() <{level = 10 : i32, message = "qd,kd->qk"}> : () -> ()
    %cst_16 = arith.constant dense<0.000000e+00> : vector<24x24xf32>
    %43 = tpu.matmul %40, %42, %cst_16 {dimension_numbers = #tpu.dot_dimension_numbers<[1], [1], [0], [0], [0, 0, 1, 0], [], []>} : vector<24x16xbf16>, vector<24x16xbf16>, vector<24x24xf32> -> vector<24x24xf32>
    %cst_17 = arith.constant -1.000000e+30 : f32
    "tpu.trace_stop"() : () -> ()
    %44 = vector.shape_cast %38 : vector<1x24xi1> to vector<1x24xi1>
    %45 = vector.broadcast %44 : vector<1x24xi1> to vector<24x24xi1>
    %46 = vector.broadcast %cst_17 : f32 to vector<24x24xf32>
    %47 = arith.select %45, %43, %46 : vector<24x24xi1>, vector<24x24xf32>
    %cst_18 = arith.constant dense<0xFF800000> : vector<24xf32>
    %48 = vector.multi_reduction <maximumf>, %47, %cst_18 [1] : vector<24x24xf32> to vector<24xf32>
    %49 = vector.shape_cast %48 : vector<24xf32> to vector<24x1xf32>
    %50 = vector.broadcast %49 : vector<24x1xf32> to vector<24x24xf32>
    %51 = arith.subf %47, %50 : vector<24x24xf32>
    %52 = math.exp %51 : vector<24x24xf32>
    %cst_19 = arith.constant dense<0.000000e+00> : vector<24xf32>
    %53 = vector.multi_reduction <add>, %52, %cst_19 [1] : vector<24x24xf32> to vector<24xf32>
    %54 = vector.shape_cast %53 : vector<24xf32> to vector<24x1xf32>
    %55 = tpu.reciprocal %54 {approx = true} : vector<24x1xf32> -> vector<24x1xf32>
    %56 = vector.broadcast %55 : vector<24x1xf32> to vector<24x24xf32>
    %57 = arith.mulf %52, %56 : vector<24x24xf32>
    %58 = vector.extract_strided_slice %35 {offsets = [0, 0], sizes = [24, 16], strides = [1, 1]} : vector<24x32xf32> to vector<24x16xf32>
    %59 = arith.truncf %58 : vector<24x16xf32> to vector<24x16xbf16>
    %60 = arith.truncf %57 : vector<24x24xf32> to vector<24x24xbf16>
    %cst_20 = arith.constant dense<0.000000e+00> : vector<24x16xf32>
    %61 = tpu.matmul %60, %59, %cst_20 {dimension_numbers = #tpu.dot_dimension_numbers<[1], [0], [0], [1], [0, 0, 1, 1], [], []>} : vector<24x24xbf16>, vector<24x16xbf16>, vector<24x16xf32> -> vector<24x16xf32>
    %62 = vector.extract_strided_slice %33 {offsets = [0, 16], sizes = [24, 16], strides = [1, 1]} : vector<24x32xf32> to vector<24x16xf32>
    %63 = arith.truncf %62 : vector<24x16xf32> to vector<24x16xbf16>
    %64 = vector.extract_strided_slice %34 {offsets = [0, 16], sizes = [24, 16], strides = [1, 1]} : vector<24x32xf32> to vector<24x16xf32>
    %65 = arith.truncf %64 : vector<24x16xf32> to vector<24x16xbf16>
    "tpu.trace_start"() <{level = 10 : i32, message = "qd,kd->qk"}> : () -> ()
    %cst_21 = arith.constant dense<0.000000e+00> : vector<24x24xf32>
    %66 = tpu.matmul %63, %65, %cst_21 {dimension_numbers = #tpu.dot_dimension_numbers<[1], [1], [0], [0], [0, 0, 1, 0], [], []>} : vector<24x16xbf16>, vector<24x16xbf16>, vector<24x24xf32> -> vector<24x24xf32>
    %cst_22 = arith.constant -1.000000e+30 : f32
    "tpu.trace_stop"() : () -> ()
    %67 = vector.shape_cast %38 : vector<1x24xi1> to vector<1x24xi1>
    %68 = vector.broadcast %67 : vector<1x24xi1> to vector<24x24xi1>
    %69 = vector.broadcast %cst_22 : f32 to vector<24x24xf32>
    %70 = arith.select %68, %66, %69 : vector<24x24xi1>, vector<24x24xf32>
    %cst_23 = arith.constant dense<0xFF800000> : vector<24xf32>
    %71 = vector.multi_reduction <maximumf>, %70, %cst_23 [1] : vector<24x24xf32> to vector<24xf32>
    %72 = vector.shape_cast %71 : vector<24xf32> to vector<24x1xf32>
    %73 = vector.broadcast %72 : vector<24x1xf32> to vector<24x24xf32>
    %74 = arith.subf %70, %73 : vector<24x24xf32>
    %75 = math.exp %74 : vector<24x24xf32>
    %cst_24 = arith.constant dense<0.000000e+00> : vector<24xf32>
    %76 = vector.multi_reduction <add>, %75, %cst_24 [1] : vector<24x24xf32> to vector<24xf32>
    %77 = vector.shape_cast %76 : vector<24xf32> to vector<24x1xf32>
    %78 = tpu.reciprocal %77 {approx = true} : vector<24x1xf32> -> vector<24x1xf32>
    %79 = vector.broadcast %78 : vector<24x1xf32> to vector<24x24xf32>
    %80 = arith.mulf %75, %79 : vector<24x24xf32>
    %81 = vector.extract_strided_slice %35 {offsets = [0, 16], sizes = [24, 16], strides = [1, 1]} : vector<24x32xf32> to vector<24x16xf32>
    %82 = arith.truncf %81 : vector<24x16xf32> to vector<24x16xbf16>
    %83 = arith.truncf %80 : vector<24x24xf32> to vector<24x24xbf16>
    %cst_25 = arith.constant dense<0.000000e+00> : vector<24x16xf32>
    %84 = tpu.matmul %83, %82, %cst_25 {dimension_numbers = #tpu.dot_dimension_numbers<[1], [0], [0], [1], [0, 0, 1, 1], [], []>} : vector<24x24xbf16>, vector<24x16xbf16>, vector<24x16xf32> -> vector<24x16xf32>
    %85 = tpu.concatenate %61, %84 in 1 : vector<24x16xf32>, vector<24x16xf32> -> vector<24x32xf32>
    %c0_26 = arith.constant 0 : index
    %c0_27 = arith.constant 0 : index
    %86 = vector.load %arg6[%c0_26, %c0_27] : memref<32x32xbf16, #tpu.memory_space<vmem>>, vector<32x32xbf16>
    %87 = arith.truncf %85 : vector<24x32xf32> to vector<24x32xbf16>
    %cst_28 = arith.constant dense<0.000000e+00> : vector<24x32xf32>
    %88 = tpu.matmul %87, %86, %cst_28 {dimension_numbers = #tpu.dot_dimension_numbers<[1], [0], [0], [1], [0, 0, 1, 1], [], []>} : vector<24x32xbf16>, vector<32x32xbf16>, vector<24x32xf32> -> vector<24x32xf32>
    %89 = arith.addf %2, %88 : vector<24x32xf32>
    %c0_29 = arith.constant 0 : index
    %c0_30 = arith.constant 0 : index
    %90 = vector.load %arg7[%c0_29, %c0_30] : memref<1x32xf32, #tpu.memory_space<vmem>>, vector<1x32xf32>
    %91 = vector.broadcast %90 : vector<1x32xf32> to vector<24x32xf32>
    %92 = arith.addf %89, %91 : vector<24x32xf32>
    %c0_31 = arith.constant 0 : index
    %c0_32 = arith.constant 0 : index
    %93 = vector.load %arg8[%c0_31, %c0_32] : memref<1x32xf32, #tpu.memory_space<vmem>>, vector<1x32xf32>
    %c0_33 = arith.constant 0 : index
    %c0_34 = arith.constant 0 : index
    %94 = vector.load %arg9[%c0_33, %c0_34] : memref<1x32xf32, #tpu.memory_space<vmem>>, vector<1x32xf32>
    %cst_35 = arith.constant dense<0.000000e+00> : vector<24xf32>
    %95 = vector.multi_reduction <add>, %92, %cst_35 [1] : vector<24x32xf32> to vector<24xf32>
    %96 = vector.shape_cast %95 : vector<24xf32> to vector<24x1xf32>
    %cst_36 = arith.constant 3.200000e+01 : f32
    %97 = vector.broadcast %cst_36 : f32 to vector<24x1xf32>
    %98 = arith.divf %96, %97 : vector<24x1xf32>
    %99 = vector.broadcast %98 : vector<24x1xf32> to vector<24x32xf32>
    %100 = arith.subf %92, %99 : vector<24x32xf32>
    %101 = arith.mulf %100, %100 : vector<24x32xf32>
    %cst_37 = arith.constant dense<0.000000e+00> : vector<24xf32>
    %102 = vector.multi_reduction <add>, %101, %cst_37 [1] : vector<24x32xf32> to vector<24xf32>
    %103 = vector.shape_cast %102 : vector<24xf32> to vector<24x1xf32>
    %cst_38 = arith.constant 3.200000e+01 : f32
    %104 = vector.broadcast %cst_38 : f32 to vector<24x1xf32>
    %105 = arith.divf %103, %104 : vector<24x1xf32>
    %cst_39 = arith.constant 9.99999997E-7 : f32
    %106 = vector.broadcast %cst_39 : f32 to vector<24x1xf32>
    %107 = arith.addf %105, %106 : vector<24x1xf32>
    %108 = math.rsqrt %107 : vector<24x1xf32>
    %109 = vector.broadcast %108 : vector<24x1xf32> to vector<24x32xf32>
    %110 = arith.mulf %100, %109 : vector<24x32xf32>
    %111 = vector.broadcast %93 : vector<1x32xf32> to vector<24x32xf32>
    %112 = arith.mulf %110, %111 : vector<24x32xf32>
    %113 = vector.broadcast %94 : vector<1x32xf32> to vector<24x32xf32>
    %114 = arith.addf %112, %113 : vector<24x32xf32>
    %c0_40 = arith.constant 0 : index
    %c0_41 = arith.constant 0 : index
    %115 = vector.load %arg10[%c0_40, %c0_41] : memref<32x128xbf16, #tpu.memory_space<vmem>>, vector<32x128xbf16>
    %116 = arith.truncf %114 : vector<24x32xf32> to vector<24x32xbf16>
    %cst_42 = arith.constant dense<0.000000e+00> : vector<24x128xf32>
    %117 = tpu.matmul %116, %115, %cst_42 {dimension_numbers = #tpu.dot_dimension_numbers<[1], [0], [0], [1], [0, 0, 1, 1], [], []>} : vector<24x32xbf16>, vector<32x128xbf16>, vector<24x128xf32> -> vector<24x128xf32>
    %c0_43 = arith.constant 0 : index
    %c0_44 = arith.constant 0 : index
    %118 = vector.load %arg11[%c0_43, %c0_44] : memref<1x128xf32, #tpu.memory_space<vmem>>, vector<1x128xf32>
    %119 = vector.broadcast %118 : vector<1x128xf32> to vector<24x128xf32>
    %120 = arith.addf %117, %119 : vector<24x128xf32>
    %121 = arith.mulf %120, %120 : vector<24x128xf32>
    %122 = arith.mulf %120, %121 : vector<24x128xf32>
    %cst_45 = arith.constant 4.471500e-02 : f32
    %123 = vector.broadcast %cst_45 : f32 to vector<24x128xf32>
    %124 = arith.mulf %123, %122 : vector<24x128xf32>
    %125 = arith.addf %120, %124 : vector<24x128xf32>
    %cst_46 = arith.constant 0.797884583 : f32
    %126 = vector.broadcast %cst_46 : f32 to vector<24x128xf32>
    %127 = arith.mulf %126, %125 : vector<24x128xf32>
    %128 = math.tanh %127 : vector<24x128xf32>
    %cst_47 = arith.constant 1.000000e+00 : f32
    %129 = vector.broadcast %cst_47 : f32 to vector<24x128xf32>
    %130 = arith.addf %129, %128 : vector<24x128xf32>
    %cst_48 = arith.constant 5.000000e-01 : f32
    %131 = vector.broadcast %cst_48 : f32 to vector<24x128xf32>
    %132 = arith.mulf %131, %130 : vector<24x128xf32>
    %133 = arith.mulf %120, %132 : vector<24x128xf32>
    %c0_49 = arith.constant 0 : index
    %c0_50 = arith.constant 0 : index
    %134 = vector.load %arg12[%c0_49, %c0_50] : memref<128x32xbf16, #tpu.memory_space<vmem>>, vector<128x32xbf16>
    %135 = arith.truncf %133 : vector<24x128xf32> to vector<24x128xbf16>
    %cst_51 = arith.constant dense<0.000000e+00> : vector<24x32xf32>
    %136 = tpu.matmul %135, %134, %cst_51 {dimension_numbers = #tpu.dot_dimension_numbers<[1], [0], [0], [1], [0, 0, 1, 1], [], []>} : vector<24x128xbf16>, vector<128x32xbf16>, vector<24x32xf32> -> vector<24x32xf32>
    %c0_52 = arith.constant 0 : index
    %c0_53 = arith.constant 0 : index
    %137 = vector.load %arg13[%c0_52, %c0_53] : memref<1x32xf32, #tpu.memory_space<vmem>>, vector<1x32xf32>
    %138 = vector.broadcast %137 : vector<1x32xf32> to vector<24x32xf32>
    %139 = arith.addf %136, %138 : vector<24x32xf32>
    %140 = arith.addf %92, %139 : vector<24x32xf32>
    %141 = arith.truncf %140 : vector<24x32xf32> to vector<24x32xbf16>
    %c0_54 = arith.constant 0 : index
    %c0_55 = arith.constant 0 : index
    %c0_56 = arith.constant 0 : index
    %142 = vector.load %arg14[%c0_54, %c0_55, %c0_56] : memref<1x24x32xbf16, #tpu.memory_space<vmem>>, vector<1x24x32xbf16>
    %143 = vector.shape_cast %142 : vector<1x24x32xbf16> to vector<24x32xbf16>
    %144 = vector.shape_cast %141 : vector<24x32xbf16> to vector<1x24x32xbf16>
    tpu.vector_store %arg14[%c0_54, %c0_55, %c0_56], %144 {strides = array<i32>} : memref<1x24x32xbf16, #tpu.memory_space<vmem>>, vector<1x24x32xbf16>,
    return
  }
  func.func @transform_0(%arg0: i32) -> (i32, i32, i32) {
    %c0_i32 = arith.constant 0 : i32
    %c0_i32_0 = arith.constant 0 : i32
    %c0_i32_1 = arith.constant 0 : i32
    return %arg0, %c0_i32, %c0_i32_0 : i32, i32, i32
  }
  func.func @transform_1(%arg0: i32) -> (i32, i32) {
    %c0_i32 = arith.constant 0 : i32
    %c0_i32_0 = arith.constant 0 : i32
    %c0_i32_1 = arith.constant 0 : i32
    return %c0_i32, %c0_i32_0 : i32, i32
  }
  func.func @transform_2(%arg0: i32) -> (i32, i32) {
    %c0_i32 = arith.constant 0 : i32
    %c0_i32_0 = arith.constant 0 : i32
    %c0_i32_1 = arith.constant 0 : i32
    return %c0_i32, %c0_i32_0 : i32, i32
  }
  func.func @transform_3(%arg0: i32) -> (i32, i32) {
    %c0_i32 = arith.constant 0 : i32
    %c0_i32_0 = arith.constant 0 : i32
    %c0_i32_1 = arith.constant 0 : i32
    return %c0_i32, %c0_i32_0 : i32, i32
  }
  func.func @transform_4(%arg0: i32) -> (i32, i32) {
    %c0_i32 = arith.constant 0 : i32
    %c0_i32_0 = arith.constant 0 : i32
    %c0_i32_1 = arith.constant 0 : i32
    return %c0_i32, %c0_i32_0 : i32, i32
  }
  func.func @transform_5(%arg0: i32) -> (i32, i32) {
    %c0_i32 = arith.constant 0 : i32
    %c0_i32_0 = arith.constant 0 : i32
    %c0_i32_1 = arith.constant 0 : i32
    return %c0_i32, %c0_i32_0 : i32, i32
  }
  func.func @transform_6(%arg0: i32) -> (i32, i32) {
    %c0_i32 = arith.constant 0 : i32
    %c0_i32_0 = arith.constant 0 : i32
    %c0_i32_1 = arith.constant 0 : i32
    return %c0_i32, %c0_i32_0 : i32, i32
  }
  func.func @transform_7(%arg0: i32) -> (i32, i32) {
    %c0_i32 = arith.constant 0 : i32
    %c0_i32_0 = arith.constant 0 : i32
    %c0_i32_1 = arith.constant 0 : i32
    return %c0_i32, %c0_i32_0 : i32, i32
  }
  func.func @transform_8(%arg0: i32) -> (i32, i32) {
    %c0_i32 = arith.constant 0 : i32
    %c0_i32_0 = arith.constant 0 : i32
    %c0_i32_1 = arith.constant 0 : i32
    return %c0_i32, %c0_i32_0 : i32, i32
  }
  func.func @transform_9(%arg0: i32) -> (i32, i32) {
    %c0_i32 = arith.constant 0 : i32
    %c0_i32_0 = arith.constant 0 : i32
    %c0_i32_1 = arith.constant 0 : i32
    return %c0_i32, %c0_i32_0 : i32, i32
  }
  func.func @transform_10(%arg0: i32) -> (i32, i32) {
    %c0_i32 = arith.constant 0 : i32
    %c0_i32_0 = arith.constant 0 : i32
    %c0_i32_1 = arith.constant 0 : i32
    return %c0_i32, %c0_i32_0 : i32, i32
  }
  func.func @transform_11(%arg0: i32) -> (i32, i32) {
    %c0_i32 = arith.constant 0 : i32
    %c0_i32_0 = arith.constant 0 : i32
    %c0_i32_1 = arith.constant 0 : i32
    return %c0_i32, %c0_i32_0 : i32, i32
  }
  func.func @transform_12(%arg0: i32) -> (i32, i32) {
    %c0_i32 = arith.constant 0 : i32
    %c0_i32_0 = arith.constant 0 : i32
    %c0_i32_1 = arith.constant 0 : i32
    return %c0_i32, %c0_i32_0 : i32, i32
  }
  func.func @transform_13(%arg0: i32) -> (i32, i32, i32) {
    %c0_i32 = arith.constant 0 : i32
    %c0_i32_0 = arith.constant 0 : i32
    %c0_i32_1 = arith.constant 0 : i32
    return %arg0, %c0_i32, %c0_i32_0 : i32, i32, i32
  }
}

module attributes {stable_mosaic.version = 11 : i64} {
  func.func @_up0_kernel(%arg0: i32, %arg1: memref<16x32xbf16, #tpu.memory_space<vmem>>, %arg2: memref<1x32xf32, #tpu.memory_space<vmem>>, %arg3: memref<1x32xf32, #tpu.memory_space<vmem>>, %arg4: memref<32x64xbf16, #tpu.memory_space<vmem>>, %arg5: memref<1x16xf32, #tpu.memory_space<vmem>>, %arg6: memref<1x16xf32, #tpu.memory_space<vmem>>, %arg7: memref<16x64xbf16, #tpu.memory_space<vmem>>) attributes {dimension_semantics = [#tpu.dimension_semantics<parallel>], iteration_bounds = array<i64: 2>, scalar_prefetch = 0 : i64, scratch_operands = 0 : i64, tpu.core_type = #tpu.core_type<tc>, window_params = [{transform_indices = @transform_0, window_bounds = array<i64: 16, 32>}, {pipeline_mode = #tpu.pipeline_mode<synchronous>, transform_indices = @transform_1, window_bounds = array<i64: 1, 32>}, {pipeline_mode = #tpu.pipeline_mode<synchronous>, transform_indices = @transform_2, window_bounds = array<i64: 1, 32>}, {pipeline_mode = #tpu.pipeline_mode<synchronous>, transform_indices = @transform_3, window_bounds = array<i64: 32, 64>}, {pipeline_mode = #tpu.pipeline_mode<synchronous>, transform_indices = @transform_4, window_bounds = array<i64: 1, 16>}, {pipeline_mode = #tpu.pipeline_mode<synchronous>, transform_indices = @transform_5, window_bounds = array<i64: 1, 16>}, {transform_indices = @transform_6, window_bounds = array<i64: 16, 64>}]} {
    %c0 = arith.constant 0 : index
    %c0_0 = arith.constant 0 : index
    %0 = vector.load %arg1[%c0, %c0_0] : memref<16x32xbf16, #tpu.memory_space<vmem>>, vector<16x32xbf16>
    %1 = arith.extf %0 : vector<16x32xbf16> to vector<16x32xf32>
    %c0_1 = arith.constant 0 : index
    %c0_2 = arith.constant 0 : index
    %2 = vector.load %arg2[%c0_1, %c0_2] : memref<1x32xf32, #tpu.memory_space<vmem>>, vector<1x32xf32>
    %c0_3 = arith.constant 0 : index
    %c0_4 = arith.constant 0 : index
    %3 = vector.load %arg3[%c0_3, %c0_4] : memref<1x32xf32, #tpu.memory_space<vmem>>, vector<1x32xf32>
    %cst = arith.constant dense<0.000000e+00> : vector<16xf32>
    %4 = vector.multi_reduction <add>, %1, %cst [1] : vector<16x32xf32> to vector<16xf32>
    %5 = vector.shape_cast %4 : vector<16xf32> to vector<16x1xf32>
    %cst_5 = arith.constant 3.200000e+01 : f32
    %6 = vector.broadcast %cst_5 : f32 to vector<16x1xf32>
    %7 = arith.divf %5, %6 : vector<16x1xf32>
    %8 = vector.broadcast %7 : vector<16x1xf32> to vector<16x32xf32>
    %9 = arith.subf %1, %8 : vector<16x32xf32>
    %10 = arith.mulf %9, %9 : vector<16x32xf32>
    %cst_6 = arith.constant dense<0.000000e+00> : vector<16xf32>
    %11 = vector.multi_reduction <add>, %10, %cst_6 [1] : vector<16x32xf32> to vector<16xf32>
    %12 = vector.shape_cast %11 : vector<16xf32> to vector<16x1xf32>
    %cst_7 = arith.constant 3.200000e+01 : f32
    %13 = vector.broadcast %cst_7 : f32 to vector<16x1xf32>
    %14 = arith.divf %12, %13 : vector<16x1xf32>
    %cst_8 = arith.constant 9.99999997E-7 : f32
    %15 = vector.broadcast %cst_8 : f32 to vector<16x1xf32>
    %16 = arith.addf %14, %15 : vector<16x1xf32>
    %17 = math.rsqrt %16 : vector<16x1xf32>
    %18 = vector.broadcast %17 : vector<16x1xf32> to vector<16x32xf32>
    %19 = arith.mulf %9, %18 : vector<16x32xf32>
    %20 = vector.broadcast %2 : vector<1x32xf32> to vector<16x32xf32>
    %21 = arith.mulf %19, %20 : vector<16x32xf32>
    %22 = vector.broadcast %3 : vector<1x32xf32> to vector<16x32xf32>
    %23 = arith.addf %21, %22 : vector<16x32xf32>
    %c0_9 = arith.constant 0 : index
    %c0_10 = arith.constant 0 : index
    %24 = vector.load %arg4[%c0_9, %c0_10] : memref<32x64xbf16, #tpu.memory_space<vmem>>, vector<32x64xbf16>
    %25 = arith.truncf %23 : vector<16x32xf32> to vector<16x32xbf16>
    %cst_11 = arith.constant dense<0.000000e+00> : vector<16x64xf32>
    %26 = tpu.matmul %25, %24, %cst_11 {dimension_numbers = #tpu.dot_dimension_numbers<[1], [0], [0], [1], [0, 0, 1, 1], [], []>} : vector<16x32xbf16>, vector<32x64xbf16>, vector<16x64xf32> -> vector<16x64xf32>
    %c0_12 = arith.constant 0 : index
    %c0_13 = arith.constant 0 : index
    %27 = vector.load %arg5[%c0_12, %c0_13] : memref<1x16xf32, #tpu.memory_space<vmem>>, vector<1x16xf32>
    %c0_14 = arith.constant 0 : index
    %c0_15 = arith.constant 0 : index
    %28 = vector.load %arg6[%c0_14, %c0_15] : memref<1x16xf32, #tpu.memory_space<vmem>>, vector<1x16xf32>
    %29 = vector.extract_strided_slice %26 {offsets = [0, 0], sizes = [16, 16], strides = [1, 1]} : vector<16x64xf32> to vector<16x16xf32>
    %cst_16 = arith.constant dense<0.000000e+00> : vector<16xf32>
    %30 = vector.multi_reduction <add>, %29, %cst_16 [1] : vector<16x16xf32> to vector<16xf32>
    %31 = vector.shape_cast %30 : vector<16xf32> to vector<16x1xf32>
    %cst_17 = arith.constant 1.600000e+01 : f32
    %32 = vector.broadcast %cst_17 : f32 to vector<16x1xf32>
    %33 = arith.divf %31, %32 : vector<16x1xf32>
    %34 = vector.broadcast %33 : vector<16x1xf32> to vector<16x16xf32>
    %35 = arith.subf %29, %34 : vector<16x16xf32>
    %36 = arith.mulf %35, %35 : vector<16x16xf32>
    %cst_18 = arith.constant dense<0.000000e+00> : vector<16xf32>
    %37 = vector.multi_reduction <add>, %36, %cst_18 [1] : vector<16x16xf32> to vector<16xf32>
    %38 = vector.shape_cast %37 : vector<16xf32> to vector<16x1xf32>
    %cst_19 = arith.constant 1.600000e+01 : f32
    %39 = vector.broadcast %cst_19 : f32 to vector<16x1xf32>
    %40 = arith.divf %38, %39 : vector<16x1xf32>
    %cst_20 = arith.constant 9.99999974E-6 : f32
    %41 = vector.broadcast %cst_20 : f32 to vector<16x1xf32>
    %42 = arith.addf %40, %41 : vector<16x1xf32>
    %43 = math.rsqrt %42 : vector<16x1xf32>
    %44 = vector.broadcast %43 : vector<16x1xf32> to vector<16x16xf32>
    %45 = arith.mulf %35, %44 : vector<16x16xf32>
    %46 = vector.broadcast %27 : vector<1x16xf32> to vector<16x16xf32>
    %47 = arith.mulf %45, %46 : vector<16x16xf32>
    %48 = vector.broadcast %28 : vector<1x16xf32> to vector<16x16xf32>
    %49 = arith.addf %47, %48 : vector<16x16xf32>
    %50 = arith.mulf %49, %49 : vector<16x16xf32>
    %51 = arith.mulf %49, %50 : vector<16x16xf32>
    %cst_21 = arith.constant 4.471500e-02 : f32
    %52 = vector.broadcast %cst_21 : f32 to vector<16x16xf32>
    %53 = arith.mulf %52, %51 : vector<16x16xf32>
    %54 = arith.addf %49, %53 : vector<16x16xf32>
    %cst_22 = arith.constant 0.797884583 : f32
    %55 = vector.broadcast %cst_22 : f32 to vector<16x16xf32>
    %56 = arith.mulf %55, %54 : vector<16x16xf32>
    %57 = math.tanh %56 : vector<16x16xf32>
    %cst_23 = arith.constant 1.000000e+00 : f32
    %58 = vector.broadcast %cst_23 : f32 to vector<16x16xf32>
    %59 = arith.addf %58, %57 : vector<16x16xf32>
    %cst_24 = arith.constant 5.000000e-01 : f32
    %60 = vector.broadcast %cst_24 : f32 to vector<16x16xf32>
    %61 = arith.mulf %60, %59 : vector<16x16xf32>
    %62 = arith.mulf %49, %61 : vector<16x16xf32>
    %63 = arith.truncf %62 : vector<16x16xf32> to vector<16x16xbf16>
    %c0_25 = arith.constant 0 : index
    %c0_26 = arith.constant 0 : index
    %64 = vector.load %arg7[%c0_25, %c0_26] : memref<16x64xbf16, #tpu.memory_space<vmem>>, vector<16x16xbf16>
    tpu.vector_store %arg7[%c0_25, %c0_26], %63 {strides = array<i32>} : memref<16x64xbf16, #tpu.memory_space<vmem>>, vector<16x16xbf16>,
    %65 = vector.extract_strided_slice %26 {offsets = [0, 16], sizes = [16, 16], strides = [1, 1]} : vector<16x64xf32> to vector<16x16xf32>
    %cst_27 = arith.constant dense<0.000000e+00> : vector<16xf32>
    %66 = vector.multi_reduction <add>, %65, %cst_27 [1] : vector<16x16xf32> to vector<16xf32>
    %67 = vector.shape_cast %66 : vector<16xf32> to vector<16x1xf32>
    %cst_28 = arith.constant 1.600000e+01 : f32
    %68 = vector.broadcast %cst_28 : f32 to vector<16x1xf32>
    %69 = arith.divf %67, %68 : vector<16x1xf32>
    %70 = vector.broadcast %69 : vector<16x1xf32> to vector<16x16xf32>
    %71 = arith.subf %65, %70 : vector<16x16xf32>
    %72 = arith.mulf %71, %71 : vector<16x16xf32>
    %cst_29 = arith.constant dense<0.000000e+00> : vector<16xf32>
    %73 = vector.multi_reduction <add>, %72, %cst_29 [1] : vector<16x16xf32> to vector<16xf32>
    %74 = vector.shape_cast %73 : vector<16xf32> to vector<16x1xf32>
    %cst_30 = arith.constant 1.600000e+01 : f32
    %75 = vector.broadcast %cst_30 : f32 to vector<16x1xf32>
    %76 = arith.divf %74, %75 : vector<16x1xf32>
    %cst_31 = arith.constant 9.99999974E-6 : f32
    %77 = vector.broadcast %cst_31 : f32 to vector<16x1xf32>
    %78 = arith.addf %76, %77 : vector<16x1xf32>
    %79 = math.rsqrt %78 : vector<16x1xf32>
    %80 = vector.broadcast %79 : vector<16x1xf32> to vector<16x16xf32>
    %81 = arith.mulf %71, %80 : vector<16x16xf32>
    %82 = vector.broadcast %27 : vector<1x16xf32> to vector<16x16xf32>
    %83 = arith.mulf %81, %82 : vector<16x16xf32>
    %84 = vector.broadcast %28 : vector<1x16xf32> to vector<16x16xf32>
    %85 = arith.addf %83, %84 : vector<16x16xf32>
    %86 = arith.mulf %85, %85 : vector<16x16xf32>
    %87 = arith.mulf %85, %86 : vector<16x16xf32>
    %cst_32 = arith.constant 4.471500e-02 : f32
    %88 = vector.broadcast %cst_32 : f32 to vector<16x16xf32>
    %89 = arith.mulf %88, %87 : vector<16x16xf32>
    %90 = arith.addf %85, %89 : vector<16x16xf32>
    %cst_33 = arith.constant 0.797884583 : f32
    %91 = vector.broadcast %cst_33 : f32 to vector<16x16xf32>
    %92 = arith.mulf %91, %90 : vector<16x16xf32>
    %93 = math.tanh %92 : vector<16x16xf32>
    %cst_34 = arith.constant 1.000000e+00 : f32
    %94 = vector.broadcast %cst_34 : f32 to vector<16x16xf32>
    %95 = arith.addf %94, %93 : vector<16x16xf32>
    %cst_35 = arith.constant 5.000000e-01 : f32
    %96 = vector.broadcast %cst_35 : f32 to vector<16x16xf32>
    %97 = arith.mulf %96, %95 : vector<16x16xf32>
    %98 = arith.mulf %85, %97 : vector<16x16xf32>
    %99 = arith.truncf %98 : vector<16x16xf32> to vector<16x16xbf16>
    %c0_36 = arith.constant 0 : index
    %c16 = arith.constant 16 : index
    %100 = vector.load %arg7[%c0_36, %c16] : memref<16x64xbf16, #tpu.memory_space<vmem>>, vector<16x16xbf16>
    tpu.vector_store %arg7[%c0_36, %c16], %99 {strides = array<i32>} : memref<16x64xbf16, #tpu.memory_space<vmem>>, vector<16x16xbf16>,
    %101 = vector.extract_strided_slice %26 {offsets = [0, 32], sizes = [16, 16], strides = [1, 1]} : vector<16x64xf32> to vector<16x16xf32>
    %cst_37 = arith.constant dense<0.000000e+00> : vector<16xf32>
    %102 = vector.multi_reduction <add>, %101, %cst_37 [1] : vector<16x16xf32> to vector<16xf32>
    %103 = vector.shape_cast %102 : vector<16xf32> to vector<16x1xf32>
    %cst_38 = arith.constant 1.600000e+01 : f32
    %104 = vector.broadcast %cst_38 : f32 to vector<16x1xf32>
    %105 = arith.divf %103, %104 : vector<16x1xf32>
    %106 = vector.broadcast %105 : vector<16x1xf32> to vector<16x16xf32>
    %107 = arith.subf %101, %106 : vector<16x16xf32>
    %108 = arith.mulf %107, %107 : vector<16x16xf32>
    %cst_39 = arith.constant dense<0.000000e+00> : vector<16xf32>
    %109 = vector.multi_reduction <add>, %108, %cst_39 [1] : vector<16x16xf32> to vector<16xf32>
    %110 = vector.shape_cast %109 : vector<16xf32> to vector<16x1xf32>
    %cst_40 = arith.constant 1.600000e+01 : f32
    %111 = vector.broadcast %cst_40 : f32 to vector<16x1xf32>
    %112 = arith.divf %110, %111 : vector<16x1xf32>
    %cst_41 = arith.constant 9.99999974E-6 : f32
    %113 = vector.broadcast %cst_41 : f32 to vector<16x1xf32>
    %114 = arith.addf %112, %113 : vector<16x1xf32>
    %115 = math.rsqrt %114 : vector<16x1xf32>
    %116 = vector.broadcast %115 : vector<16x1xf32> to vector<16x16xf32>
    %117 = arith.mulf %107, %116 : vector<16x16xf32>
    %118 = vector.broadcast %27 : vector<1x16xf32> to vector<16x16xf32>
    %119 = arith.mulf %117, %118 : vector<16x16xf32>
    %120 = vector.broadcast %28 : vector<1x16xf32> to vector<16x16xf32>
    %121 = arith.addf %119, %120 : vector<16x16xf32>
    %122 = arith.mulf %121, %121 : vector<16x16xf32>
    %123 = arith.mulf %121, %122 : vector<16x16xf32>
    %cst_42 = arith.constant 4.471500e-02 : f32
    %124 = vector.broadcast %cst_42 : f32 to vector<16x16xf32>
    %125 = arith.mulf %124, %123 : vector<16x16xf32>
    %126 = arith.addf %121, %125 : vector<16x16xf32>
    %cst_43 = arith.constant 0.797884583 : f32
    %127 = vector.broadcast %cst_43 : f32 to vector<16x16xf32>
    %128 = arith.mulf %127, %126 : vector<16x16xf32>
    %129 = math.tanh %128 : vector<16x16xf32>
    %cst_44 = arith.constant 1.000000e+00 : f32
    %130 = vector.broadcast %cst_44 : f32 to vector<16x16xf32>
    %131 = arith.addf %130, %129 : vector<16x16xf32>
    %cst_45 = arith.constant 5.000000e-01 : f32
    %132 = vector.broadcast %cst_45 : f32 to vector<16x16xf32>
    %133 = arith.mulf %132, %131 : vector<16x16xf32>
    %134 = arith.mulf %121, %133 : vector<16x16xf32>
    %135 = arith.truncf %134 : vector<16x16xf32> to vector<16x16xbf16>
    %c0_46 = arith.constant 0 : index
    %c32 = arith.constant 32 : index
    %136 = vector.load %arg7[%c0_46, %c32] : memref<16x64xbf16, #tpu.memory_space<vmem>>, vector<16x16xbf16>
    tpu.vector_store %arg7[%c0_46, %c32], %135 {strides = array<i32>} : memref<16x64xbf16, #tpu.memory_space<vmem>>, vector<16x16xbf16>,
    %137 = vector.extract_strided_slice %26 {offsets = [0, 48], sizes = [16, 16], strides = [1, 1]} : vector<16x64xf32> to vector<16x16xf32>
    %cst_47 = arith.constant dense<0.000000e+00> : vector<16xf32>
    %138 = vector.multi_reduction <add>, %137, %cst_47 [1] : vector<16x16xf32> to vector<16xf32>
    %139 = vector.shape_cast %138 : vector<16xf32> to vector<16x1xf32>
    %cst_48 = arith.constant 1.600000e+01 : f32
    %140 = vector.broadcast %cst_48 : f32 to vector<16x1xf32>
    %141 = arith.divf %139, %140 : vector<16x1xf32>
    %142 = vector.broadcast %141 : vector<16x1xf32> to vector<16x16xf32>
    %143 = arith.subf %137, %142 : vector<16x16xf32>
    %144 = arith.mulf %143, %143 : vector<16x16xf32>
    %cst_49 = arith.constant dense<0.000000e+00> : vector<16xf32>
    %145 = vector.multi_reduction <add>, %144, %cst_49 [1] : vector<16x16xf32> to vector<16xf32>
    %146 = vector.shape_cast %145 : vector<16xf32> to vector<16x1xf32>
    %cst_50 = arith.constant 1.600000e+01 : f32
    %147 = vector.broadcast %cst_50 : f32 to vector<16x1xf32>
    %148 = arith.divf %146, %147 : vector<16x1xf32>
    %cst_51 = arith.constant 9.99999974E-6 : f32
    %149 = vector.broadcast %cst_51 : f32 to vector<16x1xf32>
    %150 = arith.addf %148, %149 : vector<16x1xf32>
    %151 = math.rsqrt %150 : vector<16x1xf32>
    %152 = vector.broadcast %151 : vector<16x1xf32> to vector<16x16xf32>
    %153 = arith.mulf %143, %152 : vector<16x16xf32>
    %154 = vector.broadcast %27 : vector<1x16xf32> to vector<16x16xf32>
    %155 = arith.mulf %153, %154 : vector<16x16xf32>
    %156 = vector.broadcast %28 : vector<1x16xf32> to vector<16x16xf32>
    %157 = arith.addf %155, %156 : vector<16x16xf32>
    %158 = arith.mulf %157, %157 : vector<16x16xf32>
    %159 = arith.mulf %157, %158 : vector<16x16xf32>
    %cst_52 = arith.constant 4.471500e-02 : f32
    %160 = vector.broadcast %cst_52 : f32 to vector<16x16xf32>
    %161 = arith.mulf %160, %159 : vector<16x16xf32>
    %162 = arith.addf %157, %161 : vector<16x16xf32>
    %cst_53 = arith.constant 0.797884583 : f32
    %163 = vector.broadcast %cst_53 : f32 to vector<16x16xf32>
    %164 = arith.mulf %163, %162 : vector<16x16xf32>
    %165 = math.tanh %164 : vector<16x16xf32>
    %cst_54 = arith.constant 1.000000e+00 : f32
    %166 = vector.broadcast %cst_54 : f32 to vector<16x16xf32>
    %167 = arith.addf %166, %165 : vector<16x16xf32>
    %cst_55 = arith.constant 5.000000e-01 : f32
    %168 = vector.broadcast %cst_55 : f32 to vector<16x16xf32>
    %169 = arith.mulf %168, %167 : vector<16x16xf32>
    %170 = arith.mulf %157, %169 : vector<16x16xf32>
    %171 = arith.truncf %170 : vector<16x16xf32> to vector<16x16xbf16>
    %c0_56 = arith.constant 0 : index
    %c48 = arith.constant 48 : index
    %172 = vector.load %arg7[%c0_56, %c48] : memref<16x64xbf16, #tpu.memory_space<vmem>>, vector<16x16xbf16>
    tpu.vector_store %arg7[%c0_56, %c48], %171 {strides = array<i32>} : memref<16x64xbf16, #tpu.memory_space<vmem>>, vector<16x16xbf16>,
    return
  }
  func.func @transform_0(%arg0: i32) -> (i32, i32) {
    %c0_i32 = arith.constant 0 : i32
    %c0_i32_0 = arith.constant 0 : i32
    return %arg0, %c0_i32 : i32, i32
  }
  func.func @transform_1(%arg0: i32) -> (i32, i32) {
    %c0_i32 = arith.constant 0 : i32
    %c0_i32_0 = arith.constant 0 : i32
    %c0_i32_1 = arith.constant 0 : i32
    return %c0_i32, %c0_i32_0 : i32, i32
  }
  func.func @transform_2(%arg0: i32) -> (i32, i32) {
    %c0_i32 = arith.constant 0 : i32
    %c0_i32_0 = arith.constant 0 : i32
    %c0_i32_1 = arith.constant 0 : i32
    return %c0_i32, %c0_i32_0 : i32, i32
  }
  func.func @transform_3(%arg0: i32) -> (i32, i32) {
    %c0_i32 = arith.constant 0 : i32
    %c0_i32_0 = arith.constant 0 : i32
    %c0_i32_1 = arith.constant 0 : i32
    return %c0_i32, %c0_i32_0 : i32, i32
  }
  func.func @transform_4(%arg0: i32) -> (i32, i32) {
    %c0_i32 = arith.constant 0 : i32
    %c0_i32_0 = arith.constant 0 : i32
    %c0_i32_1 = arith.constant 0 : i32
    return %c0_i32, %c0_i32_0 : i32, i32
  }
  func.func @transform_5(%arg0: i32) -> (i32, i32) {
    %c0_i32 = arith.constant 0 : i32
    %c0_i32_0 = arith.constant 0 : i32
    %c0_i32_1 = arith.constant 0 : i32
    return %c0_i32, %c0_i32_0 : i32, i32
  }
  func.func @transform_6(%arg0: i32) -> (i32, i32) {
    %c0_i32 = arith.constant 0 : i32
    %c0_i32_0 = arith.constant 0 : i32
    return %arg0, %c0_i32 : i32, i32
  }
}

module attributes {stable_mosaic.version = 11 : i64} {
  func.func @_up1_kernel(%arg0: i32, %arg1: memref<16x64xbf16, #tpu.memory_space<vmem>>, %arg2: memref<16x32xbf16, #tpu.memory_space<vmem>>, %arg3: memref<1x8xf32, #tpu.memory_space<vmem>>, %arg4: memref<1x8xf32, #tpu.memory_space<vmem>>, %arg5: memref<16x128xbf16, #tpu.memory_space<vmem>>) attributes {dimension_semantics = [#tpu.dimension_semantics<parallel>], iteration_bounds = array<i64: 2>, scalar_prefetch = 0 : i64, scratch_operands = 0 : i64, tpu.core_type = #tpu.core_type<tc>, window_params = [{transform_indices = @transform_0, window_bounds = array<i64: 16, 64>}, {pipeline_mode = #tpu.pipeline_mode<synchronous>, transform_indices = @transform_1, window_bounds = array<i64: 16, 32>}, {pipeline_mode = #tpu.pipeline_mode<synchronous>, transform_indices = @transform_2, window_bounds = array<i64: 1, 8>}, {pipeline_mode = #tpu.pipeline_mode<synchronous>, transform_indices = @transform_3, window_bounds = array<i64: 1, 8>}, {transform_indices = @transform_4, window_bounds = array<i64: 16, 128>}]} {
    %c0 = arith.constant 0 : index
    %c0_0 = arith.constant 0 : index
    %0 = vector.load %arg1[%c0, %c0_0] : memref<16x64xbf16, #tpu.memory_space<vmem>>, vector<16x64xbf16>
    %c0_1 = arith.constant 0 : index
    %c0_2 = arith.constant 0 : index
    %1 = vector.load %arg3[%c0_1, %c0_2] : memref<1x8xf32, #tpu.memory_space<vmem>>, vector<1x8xf32>
    %c0_3 = arith.constant 0 : index
    %c0_4 = arith.constant 0 : index
    %2 = vector.load %arg4[%c0_3, %c0_4] : memref<1x8xf32, #tpu.memory_space<vmem>>, vector<1x8xf32>
    %3 = vector.extract_strided_slice %0 {offsets = [0, 0], sizes = [16, 16], strides = [1, 1]} : vector<16x64xbf16> to vector<16x16xbf16>
    %c0_5 = arith.constant 0 : index
    %c0_6 = arith.constant 0 : index
    %4 = vector.load %arg2[%c0_5, %c0_6] : memref<16x32xbf16, #tpu.memory_space<vmem>>, vector<16x32xbf16>
    %cst = arith.constant dense<0.000000e+00> : vector<16x32xf32>
    %5 = tpu.matmul %3, %4, %cst {dimension_numbers = #tpu.dot_dimension_numbers<[1], [0], [0], [1], [0, 0, 1, 1], [], []>} : vector<16x16xbf16>, vector<16x32xbf16>, vector<16x32xf32> -> vector<16x32xf32>
    %6 = vector.extract_strided_slice %5 {offsets = [0, 0], sizes = [16, 8], strides = [1, 1]} : vector<16x32xf32> to vector<16x8xf32>
    %cst_7 = arith.constant dense<0.000000e+00> : vector<16xf32>
    %7 = vector.multi_reduction <add>, %6, %cst_7 [1] : vector<16x8xf32> to vector<16xf32>
    %8 = vector.shape_cast %7 : vector<16xf32> to vector<16x1xf32>
    %cst_8 = arith.constant 8.000000e+00 : f32
    %9 = vector.broadcast %cst_8 : f32 to vector<16x1xf32>
    %10 = arith.divf %8, %9 : vector<16x1xf32>
    %11 = vector.broadcast %10 : vector<16x1xf32> to vector<16x8xf32>
    %12 = arith.subf %6, %11 : vector<16x8xf32>
    %13 = arith.mulf %12, %12 : vector<16x8xf32>
    %cst_9 = arith.constant dense<0.000000e+00> : vector<16xf32>
    %14 = vector.multi_reduction <add>, %13, %cst_9 [1] : vector<16x8xf32> to vector<16xf32>
    %15 = vector.shape_cast %14 : vector<16xf32> to vector<16x1xf32>
    %cst_10 = arith.constant 8.000000e+00 : f32
    %16 = vector.broadcast %cst_10 : f32 to vector<16x1xf32>
    %17 = arith.divf %15, %16 : vector<16x1xf32>
    %cst_11 = arith.constant 9.99999974E-6 : f32
    %18 = vector.broadcast %cst_11 : f32 to vector<16x1xf32>
    %19 = arith.addf %17, %18 : vector<16x1xf32>
    %20 = math.rsqrt %19 : vector<16x1xf32>
    %21 = vector.broadcast %20 : vector<16x1xf32> to vector<16x8xf32>
    %22 = arith.mulf %12, %21 : vector<16x8xf32>
    %23 = vector.broadcast %1 : vector<1x8xf32> to vector<16x8xf32>
    %24 = arith.mulf %22, %23 : vector<16x8xf32>
    %25 = vector.broadcast %2 : vector<1x8xf32> to vector<16x8xf32>
    %26 = arith.addf %24, %25 : vector<16x8xf32>
    %27 = arith.truncf %26 : vector<16x8xf32> to vector<16x8xbf16>
    %c0_12 = arith.constant 0 : index
    %c0_13 = arith.constant 0 : index
    %28 = vector.load %arg5[%c0_12, %c0_13] : memref<16x128xbf16, #tpu.memory_space<vmem>>, vector<16x8xbf16>
    tpu.vector_store %arg5[%c0_12, %c0_13], %27 {strides = array<i32>} : memref<16x128xbf16, #tpu.memory_space<vmem>>, vector<16x8xbf16>,
    %29 = vector.extract_strided_slice %5 {offsets = [0, 8], sizes = [16, 8], strides = [1, 1]} : vector<16x32xf32> to vector<16x8xf32>
    %cst_14 = arith.constant dense<0.000000e+00> : vector<16xf32>
    %30 = vector.multi_reduction <add>, %29, %cst_14 [1] : vector<16x8xf32> to vector<16xf32>
    %31 = vector.shape_cast %30 : vector<16xf32> to vector<16x1xf32>
    %cst_15 = arith.constant 8.000000e+00 : f32
    %32 = vector.broadcast %cst_15 : f32 to vector<16x1xf32>
    %33 = arith.divf %31, %32 : vector<16x1xf32>
    %34 = vector.broadcast %33 : vector<16x1xf32> to vector<16x8xf32>
    %35 = arith.subf %29, %34 : vector<16x8xf32>
    %36 = arith.mulf %35, %35 : vector<16x8xf32>
    %cst_16 = arith.constant dense<0.000000e+00> : vector<16xf32>
    %37 = vector.multi_reduction <add>, %36, %cst_16 [1] : vector<16x8xf32> to vector<16xf32>
    %38 = vector.shape_cast %37 : vector<16xf32> to vector<16x1xf32>
    %cst_17 = arith.constant 8.000000e+00 : f32
    %39 = vector.broadcast %cst_17 : f32 to vector<16x1xf32>
    %40 = arith.divf %38, %39 : vector<16x1xf32>
    %cst_18 = arith.constant 9.99999974E-6 : f32
    %41 = vector.broadcast %cst_18 : f32 to vector<16x1xf32>
    %42 = arith.addf %40, %41 : vector<16x1xf32>
    %43 = math.rsqrt %42 : vector<16x1xf32>
    %44 = vector.broadcast %43 : vector<16x1xf32> to vector<16x8xf32>
    %45 = arith.mulf %35, %44 : vector<16x8xf32>
    %46 = vector.broadcast %1 : vector<1x8xf32> to vector<16x8xf32>
    %47 = arith.mulf %45, %46 : vector<16x8xf32>
    %48 = vector.broadcast %2 : vector<1x8xf32> to vector<16x8xf32>
    %49 = arith.addf %47, %48 : vector<16x8xf32>
    %50 = arith.truncf %49 : vector<16x8xf32> to vector<16x8xbf16>
    %c0_19 = arith.constant 0 : index
    %c8 = arith.constant 8 : index
    %51 = vector.load %arg5[%c0_19, %c8] : memref<16x128xbf16, #tpu.memory_space<vmem>>, vector<16x8xbf16>
    tpu.vector_store %arg5[%c0_19, %c8], %50 {strides = array<i32>} : memref<16x128xbf16, #tpu.memory_space<vmem>>, vector<16x8xbf16>,
    %52 = vector.extract_strided_slice %5 {offsets = [0, 16], sizes = [16, 8], strides = [1, 1]} : vector<16x32xf32> to vector<16x8xf32>
    %cst_20 = arith.constant dense<0.000000e+00> : vector<16xf32>
    %53 = vector.multi_reduction <add>, %52, %cst_20 [1] : vector<16x8xf32> to vector<16xf32>
    %54 = vector.shape_cast %53 : vector<16xf32> to vector<16x1xf32>
    %cst_21 = arith.constant 8.000000e+00 : f32
    %55 = vector.broadcast %cst_21 : f32 to vector<16x1xf32>
    %56 = arith.divf %54, %55 : vector<16x1xf32>
    %57 = vector.broadcast %56 : vector<16x1xf32> to vector<16x8xf32>
    %58 = arith.subf %52, %57 : vector<16x8xf32>
    %59 = arith.mulf %58, %58 : vector<16x8xf32>
    %cst_22 = arith.constant dense<0.000000e+00> : vector<16xf32>
    %60 = vector.multi_reduction <add>, %59, %cst_22 [1] : vector<16x8xf32> to vector<16xf32>
    %61 = vector.shape_cast %60 : vector<16xf32> to vector<16x1xf32>
    %cst_23 = arith.constant 8.000000e+00 : f32
    %62 = vector.broadcast %cst_23 : f32 to vector<16x1xf32>
    %63 = arith.divf %61, %62 : vector<16x1xf32>
    %cst_24 = arith.constant 9.99999974E-6 : f32
    %64 = vector.broadcast %cst_24 : f32 to vector<16x1xf32>
    %65 = arith.addf %63, %64 : vector<16x1xf32>
    %66 = math.rsqrt %65 : vector<16x1xf32>
    %67 = vector.broadcast %66 : vector<16x1xf32> to vector<16x8xf32>
    %68 = arith.mulf %58, %67 : vector<16x8xf32>
    %69 = vector.broadcast %1 : vector<1x8xf32> to vector<16x8xf32>
    %70 = arith.mulf %68, %69 : vector<16x8xf32>
    %71 = vector.broadcast %2 : vector<1x8xf32> to vector<16x8xf32>
    %72 = arith.addf %70, %71 : vector<16x8xf32>
    %73 = arith.truncf %72 : vector<16x8xf32> to vector<16x8xbf16>
    %c0_25 = arith.constant 0 : index
    %c16 = arith.constant 16 : index
    %74 = vector.load %arg5[%c0_25, %c16] : memref<16x128xbf16, #tpu.memory_space<vmem>>, vector<16x8xbf16>
    tpu.vector_store %arg5[%c0_25, %c16], %73 {strides = array<i32>} : memref<16x128xbf16, #tpu.memory_space<vmem>>, vector<16x8xbf16>,
    %75 = vector.extract_strided_slice %5 {offsets = [0, 24], sizes = [16, 8], strides = [1, 1]} : vector<16x32xf32> to vector<16x8xf32>
    %cst_26 = arith.constant dense<0.000000e+00> : vector<16xf32>
    %76 = vector.multi_reduction <add>, %75, %cst_26 [1] : vector<16x8xf32> to vector<16xf32>
    %77 = vector.shape_cast %76 : vector<16xf32> to vector<16x1xf32>
    %cst_27 = arith.constant 8.000000e+00 : f32
    %78 = vector.broadcast %cst_27 : f32 to vector<16x1xf32>
    %79 = arith.divf %77, %78 : vector<16x1xf32>
    %80 = vector.broadcast %79 : vector<16x1xf32> to vector<16x8xf32>
    %81 = arith.subf %75, %80 : vector<16x8xf32>
    %82 = arith.mulf %81, %81 : vector<16x8xf32>
    %cst_28 = arith.constant dense<0.000000e+00> : vector<16xf32>
    %83 = vector.multi_reduction <add>, %82, %cst_28 [1] : vector<16x8xf32> to vector<16xf32>
    %84 = vector.shape_cast %83 : vector<16xf32> to vector<16x1xf32>
    %cst_29 = arith.constant 8.000000e+00 : f32
    %85 = vector.broadcast %cst_29 : f32 to vector<16x1xf32>
    %86 = arith.divf %84, %85 : vector<16x1xf32>
    %cst_30 = arith.constant 9.99999974E-6 : f32
    %87 = vector.broadcast %cst_30 : f32 to vector<16x1xf32>
    %88 = arith.addf %86, %87 : vector<16x1xf32>
    %89 = math.rsqrt %88 : vector<16x1xf32>
    %90 = vector.broadcast %89 : vector<16x1xf32> to vector<16x8xf32>
    %91 = arith.mulf %81, %90 : vector<16x8xf32>
    %92 = vector.broadcast %1 : vector<1x8xf32> to vector<16x8xf32>
    %93 = arith.mulf %91, %92 : vector<16x8xf32>
    %94 = vector.broadcast %2 : vector<1x8xf32> to vector<16x8xf32>
    %95 = arith.addf %93, %94 : vector<16x8xf32>
    %96 = arith.truncf %95 : vector<16x8xf32> to vector<16x8xbf16>
    %c0_31 = arith.constant 0 : index
    %c24 = arith.constant 24 : index
    %97 = vector.load %arg5[%c0_31, %c24] : memref<16x128xbf16, #tpu.memory_space<vmem>>, vector<16x8xbf16>
    tpu.vector_store %arg5[%c0_31, %c24], %96 {strides = array<i32>} : memref<16x128xbf16, #tpu.memory_space<vmem>>, vector<16x8xbf16>,
    %98 = vector.extract_strided_slice %0 {offsets = [0, 16], sizes = [16, 16], strides = [1, 1]} : vector<16x64xbf16> to vector<16x16xbf16>
    %c0_32 = arith.constant 0 : index
    %c0_33 = arith.constant 0 : index
    %99 = vector.load %arg2[%c0_32, %c0_33] : memref<16x32xbf16, #tpu.memory_space<vmem>>, vector<16x32xbf16>
    %cst_34 = arith.constant dense<0.000000e+00> : vector<16x32xf32>
    %100 = tpu.matmul %98, %99, %cst_34 {dimension_numbers = #tpu.dot_dimension_numbers<[1], [0], [0], [1], [0, 0, 1, 1], [], []>} : vector<16x16xbf16>, vector<16x32xbf16>, vector<16x32xf32> -> vector<16x32xf32>
    %101 = vector.extract_strided_slice %100 {offsets = [0, 0], sizes = [16, 8], strides = [1, 1]} : vector<16x32xf32> to vector<16x8xf32>
    %cst_35 = arith.constant dense<0.000000e+00> : vector<16xf32>
    %102 = vector.multi_reduction <add>, %101, %cst_35 [1] : vector<16x8xf32> to vector<16xf32>
    %103 = vector.shape_cast %102 : vector<16xf32> to vector<16x1xf32>
    %cst_36 = arith.constant 8.000000e+00 : f32
    %104 = vector.broadcast %cst_36 : f32 to vector<16x1xf32>
    %105 = arith.divf %103, %104 : vector<16x1xf32>
    %106 = vector.broadcast %105 : vector<16x1xf32> to vector<16x8xf32>
    %107 = arith.subf %101, %106 : vector<16x8xf32>
    %108 = arith.mulf %107, %107 : vector<16x8xf32>
    %cst_37 = arith.constant dense<0.000000e+00> : vector<16xf32>
    %109 = vector.multi_reduction <add>, %108, %cst_37 [1] : vector<16x8xf32> to vector<16xf32>
    %110 = vector.shape_cast %109 : vector<16xf32> to vector<16x1xf32>
    %cst_38 = arith.constant 8.000000e+00 : f32
    %111 = vector.broadcast %cst_38 : f32 to vector<16x1xf32>
    %112 = arith.divf %110, %111 : vector<16x1xf32>
    %cst_39 = arith.constant 9.99999974E-6 : f32
    %113 = vector.broadcast %cst_39 : f32 to vector<16x1xf32>
    %114 = arith.addf %112, %113 : vector<16x1xf32>
    %115 = math.rsqrt %114 : vector<16x1xf32>
    %116 = vector.broadcast %115 : vector<16x1xf32> to vector<16x8xf32>
    %117 = arith.mulf %107, %116 : vector<16x8xf32>
    %118 = vector.broadcast %1 : vector<1x8xf32> to vector<16x8xf32>
    %119 = arith.mulf %117, %118 : vector<16x8xf32>
    %120 = vector.broadcast %2 : vector<1x8xf32> to vector<16x8xf32>
    %121 = arith.addf %119, %120 : vector<16x8xf32>
    %122 = arith.truncf %121 : vector<16x8xf32> to vector<16x8xbf16>
    %c0_40 = arith.constant 0 : index
    %c32 = arith.constant 32 : index
    %123 = vector.load %arg5[%c0_40, %c32] : memref<16x128xbf16, #tpu.memory_space<vmem>>, vector<16x8xbf16>
    tpu.vector_store %arg5[%c0_40, %c32], %122 {strides = array<i32>} : memref<16x128xbf16, #tpu.memory_space<vmem>>, vector<16x8xbf16>,
    %124 = vector.extract_strided_slice %100 {offsets = [0, 8], sizes = [16, 8], strides = [1, 1]} : vector<16x32xf32> to vector<16x8xf32>
    %cst_41 = arith.constant dense<0.000000e+00> : vector<16xf32>
    %125 = vector.multi_reduction <add>, %124, %cst_41 [1] : vector<16x8xf32> to vector<16xf32>
    %126 = vector.shape_cast %125 : vector<16xf32> to vector<16x1xf32>
    %cst_42 = arith.constant 8.000000e+00 : f32
    %127 = vector.broadcast %cst_42 : f32 to vector<16x1xf32>
    %128 = arith.divf %126, %127 : vector<16x1xf32>
    %129 = vector.broadcast %128 : vector<16x1xf32> to vector<16x8xf32>
    %130 = arith.subf %124, %129 : vector<16x8xf32>
    %131 = arith.mulf %130, %130 : vector<16x8xf32>
    %cst_43 = arith.constant dense<0.000000e+00> : vector<16xf32>
    %132 = vector.multi_reduction <add>, %131, %cst_43 [1] : vector<16x8xf32> to vector<16xf32>
    %133 = vector.shape_cast %132 : vector<16xf32> to vector<16x1xf32>
    %cst_44 = arith.constant 8.000000e+00 : f32
    %134 = vector.broadcast %cst_44 : f32 to vector<16x1xf32>
    %135 = arith.divf %133, %134 : vector<16x1xf32>
    %cst_45 = arith.constant 9.99999974E-6 : f32
    %136 = vector.broadcast %cst_45 : f32 to vector<16x1xf32>
    %137 = arith.addf %135, %136 : vector<16x1xf32>
    %138 = math.rsqrt %137 : vector<16x1xf32>
    %139 = vector.broadcast %138 : vector<16x1xf32> to vector<16x8xf32>
    %140 = arith.mulf %130, %139 : vector<16x8xf32>
    %141 = vector.broadcast %1 : vector<1x8xf32> to vector<16x8xf32>
    %142 = arith.mulf %140, %141 : vector<16x8xf32>
    %143 = vector.broadcast %2 : vector<1x8xf32> to vector<16x8xf32>
    %144 = arith.addf %142, %143 : vector<16x8xf32>
    %145 = arith.truncf %144 : vector<16x8xf32> to vector<16x8xbf16>
    %c0_46 = arith.constant 0 : index
    %c40 = arith.constant 40 : index
    %146 = vector.load %arg5[%c0_46, %c40] : memref<16x128xbf16, #tpu.memory_space<vmem>>, vector<16x8xbf16>
    tpu.vector_store %arg5[%c0_46, %c40], %145 {strides = array<i32>} : memref<16x128xbf16, #tpu.memory_space<vmem>>, vector<16x8xbf16>,
    %147 = vector.extract_strided_slice %100 {offsets = [0, 16], sizes = [16, 8], strides = [1, 1]} : vector<16x32xf32> to vector<16x8xf32>
    %cst_47 = arith.constant dense<0.000000e+00> : vector<16xf32>
    %148 = vector.multi_reduction <add>, %147, %cst_47 [1] : vector<16x8xf32> to vector<16xf32>
    %149 = vector.shape_cast %148 : vector<16xf32> to vector<16x1xf32>
    %cst_48 = arith.constant 8.000000e+00 : f32
    %150 = vector.broadcast %cst_48 : f32 to vector<16x1xf32>
    %151 = arith.divf %149, %150 : vector<16x1xf32>
    %152 = vector.broadcast %151 : vector<16x1xf32> to vector<16x8xf32>
    %153 = arith.subf %147, %152 : vector<16x8xf32>
    %154 = arith.mulf %153, %153 : vector<16x8xf32>
    %cst_49 = arith.constant dense<0.000000e+00> : vector<16xf32>
    %155 = vector.multi_reduction <add>, %154, %cst_49 [1] : vector<16x8xf32> to vector<16xf32>
    %156 = vector.shape_cast %155 : vector<16xf32> to vector<16x1xf32>
    %cst_50 = arith.constant 8.000000e+00 : f32
    %157 = vector.broadcast %cst_50 : f32 to vector<16x1xf32>
    %158 = arith.divf %156, %157 : vector<16x1xf32>
    %cst_51 = arith.constant 9.99999974E-6 : f32
    %159 = vector.broadcast %cst_51 : f32 to vector<16x1xf32>
    %160 = arith.addf %158, %159 : vector<16x1xf32>
    %161 = math.rsqrt %160 : vector<16x1xf32>
    %162 = vector.broadcast %161 : vector<16x1xf32> to vector<16x8xf32>
    %163 = arith.mulf %153, %162 : vector<16x8xf32>
    %164 = vector.broadcast %1 : vector<1x8xf32> to vector<16x8xf32>
    %165 = arith.mulf %163, %164 : vector<16x8xf32>
    %166 = vector.broadcast %2 : vector<1x8xf32> to vector<16x8xf32>
    %167 = arith.addf %165, %166 : vector<16x8xf32>
    %168 = arith.truncf %167 : vector<16x8xf32> to vector<16x8xbf16>
    %c0_52 = arith.constant 0 : index
    %c48 = arith.constant 48 : index
    %169 = vector.load %arg5[%c0_52, %c48] : memref<16x128xbf16, #tpu.memory_space<vmem>>, vector<16x8xbf16>
    tpu.vector_store %arg5[%c0_52, %c48], %168 {strides = array<i32>} : memref<16x128xbf16, #tpu.memory_space<vmem>>, vector<16x8xbf16>,
    %170 = vector.extract_strided_slice %100 {offsets = [0, 24], sizes = [16, 8], strides = [1, 1]} : vector<16x32xf32> to vector<16x8xf32>
    %cst_53 = arith.constant dense<0.000000e+00> : vector<16xf32>
    %171 = vector.multi_reduction <add>, %170, %cst_53 [1] : vector<16x8xf32> to vector<16xf32>
    %172 = vector.shape_cast %171 : vector<16xf32> to vector<16x1xf32>
    %cst_54 = arith.constant 8.000000e+00 : f32
    %173 = vector.broadcast %cst_54 : f32 to vector<16x1xf32>
    %174 = arith.divf %172, %173 : vector<16x1xf32>
    %175 = vector.broadcast %174 : vector<16x1xf32> to vector<16x8xf32>
    %176 = arith.subf %170, %175 : vector<16x8xf32>
    %177 = arith.mulf %176, %176 : vector<16x8xf32>
    %cst_55 = arith.constant dense<0.000000e+00> : vector<16xf32>
    %178 = vector.multi_reduction <add>, %177, %cst_55 [1] : vector<16x8xf32> to vector<16xf32>
    %179 = vector.shape_cast %178 : vector<16xf32> to vector<16x1xf32>
    %cst_56 = arith.constant 8.000000e+00 : f32
    %180 = vector.broadcast %cst_56 : f32 to vector<16x1xf32>
    %181 = arith.divf %179, %180 : vector<16x1xf32>
    %cst_57 = arith.constant 9.99999974E-6 : f32
    %182 = vector.broadcast %cst_57 : f32 to vector<16x1xf32>
    %183 = arith.addf %181, %182 : vector<16x1xf32>
    %184 = math.rsqrt %183 : vector<16x1xf32>
    %185 = vector.broadcast %184 : vector<16x1xf32> to vector<16x8xf32>
    %186 = arith.mulf %176, %185 : vector<16x8xf32>
    %187 = vector.broadcast %1 : vector<1x8xf32> to vector<16x8xf32>
    %188 = arith.mulf %186, %187 : vector<16x8xf32>
    %189 = vector.broadcast %2 : vector<1x8xf32> to vector<16x8xf32>
    %190 = arith.addf %188, %189 : vector<16x8xf32>
    %191 = arith.truncf %190 : vector<16x8xf32> to vector<16x8xbf16>
    %c0_58 = arith.constant 0 : index
    %c56 = arith.constant 56 : index
    %192 = vector.load %arg5[%c0_58, %c56] : memref<16x128xbf16, #tpu.memory_space<vmem>>, vector<16x8xbf16>
    tpu.vector_store %arg5[%c0_58, %c56], %191 {strides = array<i32>} : memref<16x128xbf16, #tpu.memory_space<vmem>>, vector<16x8xbf16>,
    %193 = vector.extract_strided_slice %0 {offsets = [0, 32], sizes = [16, 16], strides = [1, 1]} : vector<16x64xbf16> to vector<16x16xbf16>
    %c0_59 = arith.constant 0 : index
    %c0_60 = arith.constant 0 : index
    %194 = vector.load %arg2[%c0_59, %c0_60] : memref<16x32xbf16, #tpu.memory_space<vmem>>, vector<16x32xbf16>
    %cst_61 = arith.constant dense<0.000000e+00> : vector<16x32xf32>
    %195 = tpu.matmul %193, %194, %cst_61 {dimension_numbers = #tpu.dot_dimension_numbers<[1], [0], [0], [1], [0, 0, 1, 1], [], []>} : vector<16x16xbf16>, vector<16x32xbf16>, vector<16x32xf32> -> vector<16x32xf32>
    %196 = vector.extract_strided_slice %195 {offsets = [0, 0], sizes = [16, 8], strides = [1, 1]} : vector<16x32xf32> to vector<16x8xf32>
    %cst_62 = arith.constant dense<0.000000e+00> : vector<16xf32>
    %197 = vector.multi_reduction <add>, %196, %cst_62 [1] : vector<16x8xf32> to vector<16xf32>
    %198 = vector.shape_cast %197 : vector<16xf32> to vector<16x1xf32>
    %cst_63 = arith.constant 8.000000e+00 : f32
    %199 = vector.broadcast %cst_63 : f32 to vector<16x1xf32>
    %200 = arith.divf %198, %199 : vector<16x1xf32>
    %201 = vector.broadcast %200 : vector<16x1xf32> to vector<16x8xf32>
    %202 = arith.subf %196, %201 : vector<16x8xf32>
    %203 = arith.mulf %202, %202 : vector<16x8xf32>
    %cst_64 = arith.constant dense<0.000000e+00> : vector<16xf32>
    %204 = vector.multi_reduction <add>, %203, %cst_64 [1] : vector<16x8xf32> to vector<16xf32>
    %205 = vector.shape_cast %204 : vector<16xf32> to vector<16x1xf32>
    %cst_65 = arith.constant 8.000000e+00 : f32
    %206 = vector.broadcast %cst_65 : f32 to vector<16x1xf32>
    %207 = arith.divf %205, %206 : vector<16x1xf32>
    %cst_66 = arith.constant 9.99999974E-6 : f32
    %208 = vector.broadcast %cst_66 : f32 to vector<16x1xf32>
    %209 = arith.addf %207, %208 : vector<16x1xf32>
    %210 = math.rsqrt %209 : vector<16x1xf32>
    %211 = vector.broadcast %210 : vector<16x1xf32> to vector<16x8xf32>
    %212 = arith.mulf %202, %211 : vector<16x8xf32>
    %213 = vector.broadcast %1 : vector<1x8xf32> to vector<16x8xf32>
    %214 = arith.mulf %212, %213 : vector<16x8xf32>
    %215 = vector.broadcast %2 : vector<1x8xf32> to vector<16x8xf32>
    %216 = arith.addf %214, %215 : vector<16x8xf32>
    %217 = arith.truncf %216 : vector<16x8xf32> to vector<16x8xbf16>
    %c0_67 = arith.constant 0 : index
    %c64 = arith.constant 64 : index
    %218 = vector.load %arg5[%c0_67, %c64] : memref<16x128xbf16, #tpu.memory_space<vmem>>, vector<16x8xbf16>
    tpu.vector_store %arg5[%c0_67, %c64], %217 {strides = array<i32>} : memref<16x128xbf16, #tpu.memory_space<vmem>>, vector<16x8xbf16>,
    %219 = vector.extract_strided_slice %195 {offsets = [0, 8], sizes = [16, 8], strides = [1, 1]} : vector<16x32xf32> to vector<16x8xf32>
    %cst_68 = arith.constant dense<0.000000e+00> : vector<16xf32>
    %220 = vector.multi_reduction <add>, %219, %cst_68 [1] : vector<16x8xf32> to vector<16xf32>
    %221 = vector.shape_cast %220 : vector<16xf32> to vector<16x1xf32>
    %cst_69 = arith.constant 8.000000e+00 : f32
    %222 = vector.broadcast %cst_69 : f32 to vector<16x1xf32>
    %223 = arith.divf %221, %222 : vector<16x1xf32>
    %224 = vector.broadcast %223 : vector<16x1xf32> to vector<16x8xf32>
    %225 = arith.subf %219, %224 : vector<16x8xf32>
    %226 = arith.mulf %225, %225 : vector<16x8xf32>
    %cst_70 = arith.constant dense<0.000000e+00> : vector<16xf32>
    %227 = vector.multi_reduction <add>, %226, %cst_70 [1] : vector<16x8xf32> to vector<16xf32>
    %228 = vector.shape_cast %227 : vector<16xf32> to vector<16x1xf32>
    %cst_71 = arith.constant 8.000000e+00 : f32
    %229 = vector.broadcast %cst_71 : f32 to vector<16x1xf32>
    %230 = arith.divf %228, %229 : vector<16x1xf32>
    %cst_72 = arith.constant 9.99999974E-6 : f32
    %231 = vector.broadcast %cst_72 : f32 to vector<16x1xf32>
    %232 = arith.addf %230, %231 : vector<16x1xf32>
    %233 = math.rsqrt %232 : vector<16x1xf32>
    %234 = vector.broadcast %233 : vector<16x1xf32> to vector<16x8xf32>
    %235 = arith.mulf %225, %234 : vector<16x8xf32>
    %236 = vector.broadcast %1 : vector<1x8xf32> to vector<16x8xf32>
    %237 = arith.mulf %235, %236 : vector<16x8xf32>
    %238 = vector.broadcast %2 : vector<1x8xf32> to vector<16x8xf32>
    %239 = arith.addf %237, %238 : vector<16x8xf32>
    %240 = arith.truncf %239 : vector<16x8xf32> to vector<16x8xbf16>
    %c0_73 = arith.constant 0 : index
    %c72 = arith.constant 72 : index
    %241 = vector.load %arg5[%c0_73, %c72] : memref<16x128xbf16, #tpu.memory_space<vmem>>, vector<16x8xbf16>
    tpu.vector_store %arg5[%c0_73, %c72], %240 {strides = array<i32>} : memref<16x128xbf16, #tpu.memory_space<vmem>>, vector<16x8xbf16>,
    %242 = vector.extract_strided_slice %195 {offsets = [0, 16], sizes = [16, 8], strides = [1, 1]} : vector<16x32xf32> to vector<16x8xf32>
    %cst_74 = arith.constant dense<0.000000e+00> : vector<16xf32>
    %243 = vector.multi_reduction <add>, %242, %cst_74 [1] : vector<16x8xf32> to vector<16xf32>
    %244 = vector.shape_cast %243 : vector<16xf32> to vector<16x1xf32>
    %cst_75 = arith.constant 8.000000e+00 : f32
    %245 = vector.broadcast %cst_75 : f32 to vector<16x1xf32>
    %246 = arith.divf %244, %245 : vector<16x1xf32>
    %247 = vector.broadcast %246 : vector<16x1xf32> to vector<16x8xf32>
    %248 = arith.subf %242, %247 : vector<16x8xf32>
    %249 = arith.mulf %248, %248 : vector<16x8xf32>
    %cst_76 = arith.constant dense<0.000000e+00> : vector<16xf32>
    %250 = vector.multi_reduction <add>, %249, %cst_76 [1] : vector<16x8xf32> to vector<16xf32>
    %251 = vector.shape_cast %250 : vector<16xf32> to vector<16x1xf32>
    %cst_77 = arith.constant 8.000000e+00 : f32
    %252 = vector.broadcast %cst_77 : f32 to vector<16x1xf32>
    %253 = arith.divf %251, %252 : vector<16x1xf32>
    %cst_78 = arith.constant 9.99999974E-6 : f32
    %254 = vector.broadcast %cst_78 : f32 to vector<16x1xf32>
    %255 = arith.addf %253, %254 : vector<16x1xf32>
    %256 = math.rsqrt %255 : vector<16x1xf32>
    %257 = vector.broadcast %256 : vector<16x1xf32> to vector<16x8xf32>
    %258 = arith.mulf %248, %257 : vector<16x8xf32>
    %259 = vector.broadcast %1 : vector<1x8xf32> to vector<16x8xf32>
    %260 = arith.mulf %258, %259 : vector<16x8xf32>
    %261 = vector.broadcast %2 : vector<1x8xf32> to vector<16x8xf32>
    %262 = arith.addf %260, %261 : vector<16x8xf32>
    %263 = arith.truncf %262 : vector<16x8xf32> to vector<16x8xbf16>
    %c0_79 = arith.constant 0 : index
    %c80 = arith.constant 80 : index
    %264 = vector.load %arg5[%c0_79, %c80] : memref<16x128xbf16, #tpu.memory_space<vmem>>, vector<16x8xbf16>
    tpu.vector_store %arg5[%c0_79, %c80], %263 {strides = array<i32>} : memref<16x128xbf16, #tpu.memory_space<vmem>>, vector<16x8xbf16>,
    %265 = vector.extract_strided_slice %195 {offsets = [0, 24], sizes = [16, 8], strides = [1, 1]} : vector<16x32xf32> to vector<16x8xf32>
    %cst_80 = arith.constant dense<0.000000e+00> : vector<16xf32>
    %266 = vector.multi_reduction <add>, %265, %cst_80 [1] : vector<16x8xf32> to vector<16xf32>
    %267 = vector.shape_cast %266 : vector<16xf32> to vector<16x1xf32>
    %cst_81 = arith.constant 8.000000e+00 : f32
    %268 = vector.broadcast %cst_81 : f32 to vector<16x1xf32>
    %269 = arith.divf %267, %268 : vector<16x1xf32>
    %270 = vector.broadcast %269 : vector<16x1xf32> to vector<16x8xf32>
    %271 = arith.subf %265, %270 : vector<16x8xf32>
    %272 = arith.mulf %271, %271 : vector<16x8xf32>
    %cst_82 = arith.constant dense<0.000000e+00> : vector<16xf32>
    %273 = vector.multi_reduction <add>, %272, %cst_82 [1] : vector<16x8xf32> to vector<16xf32>
    %274 = vector.shape_cast %273 : vector<16xf32> to vector<16x1xf32>
    %cst_83 = arith.constant 8.000000e+00 : f32
    %275 = vector.broadcast %cst_83 : f32 to vector<16x1xf32>
    %276 = arith.divf %274, %275 : vector<16x1xf32>
    %cst_84 = arith.constant 9.99999974E-6 : f32
    %277 = vector.broadcast %cst_84 : f32 to vector<16x1xf32>
    %278 = arith.addf %276, %277 : vector<16x1xf32>
    %279 = math.rsqrt %278 : vector<16x1xf32>
    %280 = vector.broadcast %279 : vector<16x1xf32> to vector<16x8xf32>
    %281 = arith.mulf %271, %280 : vector<16x8xf32>
    %282 = vector.broadcast %1 : vector<1x8xf32> to vector<16x8xf32>
    %283 = arith.mulf %281, %282 : vector<16x8xf32>
    %284 = vector.broadcast %2 : vector<1x8xf32> to vector<16x8xf32>
    %285 = arith.addf %283, %284 : vector<16x8xf32>
    %286 = arith.truncf %285 : vector<16x8xf32> to vector<16x8xbf16>
    %c0_85 = arith.constant 0 : index
    %c88 = arith.constant 88 : index
    %287 = vector.load %arg5[%c0_85, %c88] : memref<16x128xbf16, #tpu.memory_space<vmem>>, vector<16x8xbf16>
    tpu.vector_store %arg5[%c0_85, %c88], %286 {strides = array<i32>} : memref<16x128xbf16, #tpu.memory_space<vmem>>, vector<16x8xbf16>,
    %288 = vector.extract_strided_slice %0 {offsets = [0, 48], sizes = [16, 16], strides = [1, 1]} : vector<16x64xbf16> to vector<16x16xbf16>
    %c0_86 = arith.constant 0 : index
    %c0_87 = arith.constant 0 : index
    %289 = vector.load %arg2[%c0_86, %c0_87] : memref<16x32xbf16, #tpu.memory_space<vmem>>, vector<16x32xbf16>
    %cst_88 = arith.constant dense<0.000000e+00> : vector<16x32xf32>
    %290 = tpu.matmul %288, %289, %cst_88 {dimension_numbers = #tpu.dot_dimension_numbers<[1], [0], [0], [1], [0, 0, 1, 1], [], []>} : vector<16x16xbf16>, vector<16x32xbf16>, vector<16x32xf32> -> vector<16x32xf32>
    %291 = vector.extract_strided_slice %290 {offsets = [0, 0], sizes = [16, 8], strides = [1, 1]} : vector<16x32xf32> to vector<16x8xf32>
    %cst_89 = arith.constant dense<0.000000e+00> : vector<16xf32>
    %292 = vector.multi_reduction <add>, %291, %cst_89 [1] : vector<16x8xf32> to vector<16xf32>
    %293 = vector.shape_cast %292 : vector<16xf32> to vector<16x1xf32>
    %cst_90 = arith.constant 8.000000e+00 : f32
    %294 = vector.broadcast %cst_90 : f32 to vector<16x1xf32>
    %295 = arith.divf %293, %294 : vector<16x1xf32>
    %296 = vector.broadcast %295 : vector<16x1xf32> to vector<16x8xf32>
    %297 = arith.subf %291, %296 : vector<16x8xf32>
    %298 = arith.mulf %297, %297 : vector<16x8xf32>
    %cst_91 = arith.constant dense<0.000000e+00> : vector<16xf32>
    %299 = vector.multi_reduction <add>, %298, %cst_91 [1] : vector<16x8xf32> to vector<16xf32>
    %300 = vector.shape_cast %299 : vector<16xf32> to vector<16x1xf32>
    %cst_92 = arith.constant 8.000000e+00 : f32
    %301 = vector.broadcast %cst_92 : f32 to vector<16x1xf32>
    %302 = arith.divf %300, %301 : vector<16x1xf32>
    %cst_93 = arith.constant 9.99999974E-6 : f32
    %303 = vector.broadcast %cst_93 : f32 to vector<16x1xf32>
    %304 = arith.addf %302, %303 : vector<16x1xf32>
    %305 = math.rsqrt %304 : vector<16x1xf32>
    %306 = vector.broadcast %305 : vector<16x1xf32> to vector<16x8xf32>
    %307 = arith.mulf %297, %306 : vector<16x8xf32>
    %308 = vector.broadcast %1 : vector<1x8xf32> to vector<16x8xf32>
    %309 = arith.mulf %307, %308 : vector<16x8xf32>
    %310 = vector.broadcast %2 : vector<1x8xf32> to vector<16x8xf32>
    %311 = arith.addf %309, %310 : vector<16x8xf32>
    %312 = arith.truncf %311 : vector<16x8xf32> to vector<16x8xbf16>
    %c0_94 = arith.constant 0 : index
    %c96 = arith.constant 96 : index
    %313 = vector.load %arg5[%c0_94, %c96] : memref<16x128xbf16, #tpu.memory_space<vmem>>, vector<16x8xbf16>
    tpu.vector_store %arg5[%c0_94, %c96], %312 {strides = array<i32>} : memref<16x128xbf16, #tpu.memory_space<vmem>>, vector<16x8xbf16>,
    %314 = vector.extract_strided_slice %290 {offsets = [0, 8], sizes = [16, 8], strides = [1, 1]} : vector<16x32xf32> to vector<16x8xf32>
    %cst_95 = arith.constant dense<0.000000e+00> : vector<16xf32>
    %315 = vector.multi_reduction <add>, %314, %cst_95 [1] : vector<16x8xf32> to vector<16xf32>
    %316 = vector.shape_cast %315 : vector<16xf32> to vector<16x1xf32>
    %cst_96 = arith.constant 8.000000e+00 : f32
    %317 = vector.broadcast %cst_96 : f32 to vector<16x1xf32>
    %318 = arith.divf %316, %317 : vector<16x1xf32>
    %319 = vector.broadcast %318 : vector<16x1xf32> to vector<16x8xf32>
    %320 = arith.subf %314, %319 : vector<16x8xf32>
    %321 = arith.mulf %320, %320 : vector<16x8xf32>
    %cst_97 = arith.constant dense<0.000000e+00> : vector<16xf32>
    %322 = vector.multi_reduction <add>, %321, %cst_97 [1] : vector<16x8xf32> to vector<16xf32>
    %323 = vector.shape_cast %322 : vector<16xf32> to vector<16x1xf32>
    %cst_98 = arith.constant 8.000000e+00 : f32
    %324 = vector.broadcast %cst_98 : f32 to vector<16x1xf32>
    %325 = arith.divf %323, %324 : vector<16x1xf32>
    %cst_99 = arith.constant 9.99999974E-6 : f32
    %326 = vector.broadcast %cst_99 : f32 to vector<16x1xf32>
    %327 = arith.addf %325, %326 : vector<16x1xf32>
    %328 = math.rsqrt %327 : vector<16x1xf32>
    %329 = vector.broadcast %328 : vector<16x1xf32> to vector<16x8xf32>
    %330 = arith.mulf %320, %329 : vector<16x8xf32>
    %331 = vector.broadcast %1 : vector<1x8xf32> to vector<16x8xf32>
    %332 = arith.mulf %330, %331 : vector<16x8xf32>
    %333 = vector.broadcast %2 : vector<1x8xf32> to vector<16x8xf32>
    %334 = arith.addf %332, %333 : vector<16x8xf32>
    %335 = arith.truncf %334 : vector<16x8xf32> to vector<16x8xbf16>
    %c0_100 = arith.constant 0 : index
    %c104 = arith.constant 104 : index
    %336 = vector.load %arg5[%c0_100, %c104] : memref<16x128xbf16, #tpu.memory_space<vmem>>, vector<16x8xbf16>
    tpu.vector_store %arg5[%c0_100, %c104], %335 {strides = array<i32>} : memref<16x128xbf16, #tpu.memory_space<vmem>>, vector<16x8xbf16>,
    %337 = vector.extract_strided_slice %290 {offsets = [0, 16], sizes = [16, 8], strides = [1, 1]} : vector<16x32xf32> to vector<16x8xf32>
    %cst_101 = arith.constant dense<0.000000e+00> : vector<16xf32>
    %338 = vector.multi_reduction <add>, %337, %cst_101 [1] : vector<16x8xf32> to vector<16xf32>
    %339 = vector.shape_cast %338 : vector<16xf32> to vector<16x1xf32>
    %cst_102 = arith.constant 8.000000e+00 : f32
    %340 = vector.broadcast %cst_102 : f32 to vector<16x1xf32>
    %341 = arith.divf %339, %340 : vector<16x1xf32>
    %342 = vector.broadcast %341 : vector<16x1xf32> to vector<16x8xf32>
    %343 = arith.subf %337, %342 : vector<16x8xf32>
    %344 = arith.mulf %343, %343 : vector<16x8xf32>
    %cst_103 = arith.constant dense<0.000000e+00> : vector<16xf32>
    %345 = vector.multi_reduction <add>, %344, %cst_103 [1] : vector<16x8xf32> to vector<16xf32>
    %346 = vector.shape_cast %345 : vector<16xf32> to vector<16x1xf32>
    %cst_104 = arith.constant 8.000000e+00 : f32
    %347 = vector.broadcast %cst_104 : f32 to vector<16x1xf32>
    %348 = arith.divf %346, %347 : vector<16x1xf32>
    %cst_105 = arith.constant 9.99999974E-6 : f32
    %349 = vector.broadcast %cst_105 : f32 to vector<16x1xf32>
    %350 = arith.addf %348, %349 : vector<16x1xf32>
    %351 = math.rsqrt %350 : vector<16x1xf32>
    %352 = vector.broadcast %351 : vector<16x1xf32> to vector<16x8xf32>
    %353 = arith.mulf %343, %352 : vector<16x8xf32>
    %354 = vector.broadcast %1 : vector<1x8xf32> to vector<16x8xf32>
    %355 = arith.mulf %353, %354 : vector<16x8xf32>
    %356 = vector.broadcast %2 : vector<1x8xf32> to vector<16x8xf32>
    %357 = arith.addf %355, %356 : vector<16x8xf32>
    %358 = arith.truncf %357 : vector<16x8xf32> to vector<16x8xbf16>
    %c0_106 = arith.constant 0 : index
    %c112 = arith.constant 112 : index
    %359 = vector.load %arg5[%c0_106, %c112] : memref<16x128xbf16, #tpu.memory_space<vmem>>, vector<16x8xbf16>
    tpu.vector_store %arg5[%c0_106, %c112], %358 {strides = array<i32>} : memref<16x128xbf16, #tpu.memory_space<vmem>>, vector<16x8xbf16>,
    %360 = vector.extract_strided_slice %290 {offsets = [0, 24], sizes = [16, 8], strides = [1, 1]} : vector<16x32xf32> to vector<16x8xf32>
    %cst_107 = arith.constant dense<0.000000e+00> : vector<16xf32>
    %361 = vector.multi_reduction <add>, %360, %cst_107 [1] : vector<16x8xf32> to vector<16xf32>
    %362 = vector.shape_cast %361 : vector<16xf32> to vector<16x1xf32>
    %cst_108 = arith.constant 8.000000e+00 : f32
    %363 = vector.broadcast %cst_108 : f32 to vector<16x1xf32>
    %364 = arith.divf %362, %363 : vector<16x1xf32>
    %365 = vector.broadcast %364 : vector<16x1xf32> to vector<16x8xf32>
    %366 = arith.subf %360, %365 : vector<16x8xf32>
    %367 = arith.mulf %366, %366 : vector<16x8xf32>
    %cst_109 = arith.constant dense<0.000000e+00> : vector<16xf32>
    %368 = vector.multi_reduction <add>, %367, %cst_109 [1] : vector<16x8xf32> to vector<16xf32>
    %369 = vector.shape_cast %368 : vector<16xf32> to vector<16x1xf32>
    %cst_110 = arith.constant 8.000000e+00 : f32
    %370 = vector.broadcast %cst_110 : f32 to vector<16x1xf32>
    %371 = arith.divf %369, %370 : vector<16x1xf32>
    %cst_111 = arith.constant 9.99999974E-6 : f32
    %372 = vector.broadcast %cst_111 : f32 to vector<16x1xf32>
    %373 = arith.addf %371, %372 : vector<16x1xf32>
    %374 = math.rsqrt %373 : vector<16x1xf32>
    %375 = vector.broadcast %374 : vector<16x1xf32> to vector<16x8xf32>
    %376 = arith.mulf %366, %375 : vector<16x8xf32>
    %377 = vector.broadcast %1 : vector<1x8xf32> to vector<16x8xf32>
    %378 = arith.mulf %376, %377 : vector<16x8xf32>
    %379 = vector.broadcast %2 : vector<1x8xf32> to vector<16x8xf32>
    %380 = arith.addf %378, %379 : vector<16x8xf32>
    %381 = arith.truncf %380 : vector<16x8xf32> to vector<16x8xbf16>
    %c0_112 = arith.constant 0 : index
    %c120 = arith.constant 120 : index
    %382 = vector.load %arg5[%c0_112, %c120] : memref<16x128xbf16, #tpu.memory_space<vmem>>, vector<16x8xbf16>
    tpu.vector_store %arg5[%c0_112, %c120], %381 {strides = array<i32>} : memref<16x128xbf16, #tpu.memory_space<vmem>>, vector<16x8xbf16>,
    return
  }
  func.func @transform_0(%arg0: i32) -> (i32, i32) {
    %c0_i32 = arith.constant 0 : i32
    %c0_i32_0 = arith.constant 0 : i32
    return %arg0, %c0_i32 : i32, i32
  }
  func.func @transform_1(%arg0: i32) -> (i32, i32) {
    %c0_i32 = arith.constant 0 : i32
    %c0_i32_0 = arith.constant 0 : i32
    %c0_i32_1 = arith.constant 0 : i32
    return %c0_i32, %c0_i32_0 : i32, i32
  }
  func.func @transform_2(%arg0: i32) -> (i32, i32) {
    %c0_i32 = arith.constant 0 : i32
    %c0_i32_0 = arith.constant 0 : i32
    %c0_i32_1 = arith.constant 0 : i32
    return %c0_i32, %c0_i32_0 : i32, i32
  }
  func.func @transform_3(%arg0: i32) -> (i32, i32) {
    %c0_i32 = arith.constant 0 : i32
    %c0_i32_0 = arith.constant 0 : i32
    %c0_i32_1 = arith.constant 0 : i32
    return %c0_i32, %c0_i32_0 : i32, i32
  }
  func.func @transform_4(%arg0: i32) -> (i32, i32) {
    %c0_i32 = arith.constant 0 : i32
    %c0_i32_0 = arith.constant 0 : i32
    return %arg0, %c0_i32 : i32, i32
  }
}

module attributes {stable_mosaic.version = 11 : i64} {
  func.func @_conv3_ln_out_kernel(%arg0: i32, %arg1: memref<1x18x18x8xbf16, #tpu.memory_space<vmem>>, %arg2: memref<72x8xbf16, #tpu.memory_space<vmem>>, %arg3: memref<1x8xf32, #tpu.memory_space<vmem>>, %arg4: memref<1x8xf32, #tpu.memory_space<vmem>>, %arg5: memref<8x128xbf16, #tpu.memory_space<vmem>>, %arg6: memref<1x16x16x128xf32, #tpu.memory_space<vmem>>) attributes {dimension_semantics = [#tpu.dimension_semantics<parallel>], iteration_bounds = array<i64: 2>, scalar_prefetch = 0 : i64, scratch_operands = 0 : i64, tpu.core_type = #tpu.core_type<tc>, window_params = [{transform_indices = @transform_0, window_bounds = array<i64: 1, 18, 18, 8>}, {pipeline_mode = #tpu.pipeline_mode<synchronous>, transform_indices = @transform_1, window_bounds = array<i64: 72, 8>}, {pipeline_mode = #tpu.pipeline_mode<synchronous>, transform_indices = @transform_2, window_bounds = array<i64: 1, 8>}, {pipeline_mode = #tpu.pipeline_mode<synchronous>, transform_indices = @transform_3, window_bounds = array<i64: 1, 8>}, {pipeline_mode = #tpu.pipeline_mode<synchronous>, transform_indices = @transform_4, window_bounds = array<i64: 8, 128>}, {transform_indices = @transform_5, window_bounds = array<i64: 1, 16, 16, 128>}]} {
    %c0 = arith.constant 0 : index
    %c0_0 = arith.constant 0 : index
    %c0_1 = arith.constant 0 : index
    %c0_2 = arith.constant 0 : index
    %0 = vector.load %arg1[%c0, %c0_0, %c0_1, %c0_2] : memref<1x18x18x8xbf16, #tpu.memory_space<vmem>>, vector<1x18x18x8xbf16>
    %1 = vector.shape_cast %0 : vector<1x18x18x8xbf16> to vector<18x18x8xbf16>
    %cst = arith.constant 0.000000e+00 : f32
    %2 = vector.broadcast %cst : f32 to vector<256x8xf32>
    %3 = vector.extract_strided_slice %1 {offsets = [0, 0, 0], sizes = [16, 16, 8], strides = [1, 1, 1]} : vector<18x18x8xbf16> to vector<16x16x8xbf16>
    %4 = vector.shape_cast %3 : vector<16x16x8xbf16> to vector<256x8xbf16>
    %c0_3 = arith.constant 0 : index
    %c0_4 = arith.constant 0 : index
    %5 = vector.load %arg2[%c0_3, %c0_4] : memref<72x8xbf16, #tpu.memory_space<vmem>>, vector<8x8xbf16>
    %cst_5 = arith.constant dense<0.000000e+00> : vector<256x8xf32>
    %6 = tpu.matmul %4, %5, %cst_5 {dimension_numbers = #tpu.dot_dimension_numbers<[1], [0], [0], [1], [0, 0, 1, 1], [], []>} : vector<256x8xbf16>, vector<8x8xbf16>, vector<256x8xf32> -> vector<256x8xf32>
    %7 = arith.addf %2, %6 : vector<256x8xf32>
    %8 = vector.extract_strided_slice %1 {offsets = [0, 1, 0], sizes = [16, 16, 8], strides = [1, 1, 1]} : vector<18x18x8xbf16> to vector<16x16x8xbf16>
    %9 = vector.shape_cast %8 : vector<16x16x8xbf16> to vector<256x8xbf16>
    %c8 = arith.constant 8 : index
    %c0_6 = arith.constant 0 : index
    %10 = vector.load %arg2[%c8, %c0_6] : memref<72x8xbf16, #tpu.memory_space<vmem>>, vector<8x8xbf16>
    %cst_7 = arith.constant dense<0.000000e+00> : vector<256x8xf32>
    %11 = tpu.matmul %9, %10, %cst_7 {dimension_numbers = #tpu.dot_dimension_numbers<[1], [0], [0], [1], [0, 0, 1, 1], [], []>} : vector<256x8xbf16>, vector<8x8xbf16>, vector<256x8xf32> -> vector<256x8xf32>
    %12 = arith.addf %7, %11 : vector<256x8xf32>
    %13 = vector.extract_strided_slice %1 {offsets = [0, 2, 0], sizes = [16, 16, 8], strides = [1, 1, 1]} : vector<18x18x8xbf16> to vector<16x16x8xbf16>
    %14 = vector.shape_cast %13 : vector<16x16x8xbf16> to vector<256x8xbf16>
    %c16 = arith.constant 16 : index
    %c0_8 = arith.constant 0 : index
    %15 = vector.load %arg2[%c16, %c0_8] : memref<72x8xbf16, #tpu.memory_space<vmem>>, vector<8x8xbf16>
    %cst_9 = arith.constant dense<0.000000e+00> : vector<256x8xf32>
    %16 = tpu.matmul %14, %15, %cst_9 {dimension_numbers = #tpu.dot_dimension_numbers<[1], [0], [0], [1], [0, 0, 1, 1], [], []>} : vector<256x8xbf16>, vector<8x8xbf16>, vector<256x8xf32> -> vector<256x8xf32>
    %17 = arith.addf %12, %16 : vector<256x8xf32>
    %18 = vector.extract_strided_slice %1 {offsets = [1, 0, 0], sizes = [16, 16, 8], strides = [1, 1, 1]} : vector<18x18x8xbf16> to vector<16x16x8xbf16>
    %19 = vector.shape_cast %18 : vector<16x16x8xbf16> to vector<256x8xbf16>
    %c24 = arith.constant 24 : index
    %c0_10 = arith.constant 0 : index
    %20 = vector.load %arg2[%c24, %c0_10] : memref<72x8xbf16, #tpu.memory_space<vmem>>, vector<8x8xbf16>
    %cst_11 = arith.constant dense<0.000000e+00> : vector<256x8xf32>
    %21 = tpu.matmul %19, %20, %cst_11 {dimension_numbers = #tpu.dot_dimension_numbers<[1], [0], [0], [1], [0, 0, 1, 1], [], []>} : vector<256x8xbf16>, vector<8x8xbf16>, vector<256x8xf32> -> vector<256x8xf32>
    %22 = arith.addf %17, %21 : vector<256x8xf32>
    %23 = vector.extract_strided_slice %1 {offsets = [1, 1, 0], sizes = [16, 16, 8], strides = [1, 1, 1]} : vector<18x18x8xbf16> to vector<16x16x8xbf16>
    %24 = vector.shape_cast %23 : vector<16x16x8xbf16> to vector<256x8xbf16>
    %c32 = arith.constant 32 : index
    %c0_12 = arith.constant 0 : index
    %25 = vector.load %arg2[%c32, %c0_12] : memref<72x8xbf16, #tpu.memory_space<vmem>>, vector<8x8xbf16>
    %cst_13 = arith.constant dense<0.000000e+00> : vector<256x8xf32>
    %26 = tpu.matmul %24, %25, %cst_13 {dimension_numbers = #tpu.dot_dimension_numbers<[1], [0], [0], [1], [0, 0, 1, 1], [], []>} : vector<256x8xbf16>, vector<8x8xbf16>, vector<256x8xf32> -> vector<256x8xf32>
    %27 = arith.addf %22, %26 : vector<256x8xf32>
    %28 = vector.extract_strided_slice %1 {offsets = [1, 2, 0], sizes = [16, 16, 8], strides = [1, 1, 1]} : vector<18x18x8xbf16> to vector<16x16x8xbf16>
    %29 = vector.shape_cast %28 : vector<16x16x8xbf16> to vector<256x8xbf16>
    %c40 = arith.constant 40 : index
    %c0_14 = arith.constant 0 : index
    %30 = vector.load %arg2[%c40, %c0_14] : memref<72x8xbf16, #tpu.memory_space<vmem>>, vector<8x8xbf16>
    %cst_15 = arith.constant dense<0.000000e+00> : vector<256x8xf32>
    %31 = tpu.matmul %29, %30, %cst_15 {dimension_numbers = #tpu.dot_dimension_numbers<[1], [0], [0], [1], [0, 0, 1, 1], [], []>} : vector<256x8xbf16>, vector<8x8xbf16>, vector<256x8xf32> -> vector<256x8xf32>
    %32 = arith.addf %27, %31 : vector<256x8xf32>
    %33 = vector.extract_strided_slice %1 {offsets = [2, 0, 0], sizes = [16, 16, 8], strides = [1, 1, 1]} : vector<18x18x8xbf16> to vector<16x16x8xbf16>
    %34 = vector.shape_cast %33 : vector<16x16x8xbf16> to vector<256x8xbf16>
    %c48 = arith.constant 48 : index
    %c0_16 = arith.constant 0 : index
    %35 = vector.load %arg2[%c48, %c0_16] : memref<72x8xbf16, #tpu.memory_space<vmem>>, vector<8x8xbf16>
    %cst_17 = arith.constant dense<0.000000e+00> : vector<256x8xf32>
    %36 = tpu.matmul %34, %35, %cst_17 {dimension_numbers = #tpu.dot_dimension_numbers<[1], [0], [0], [1], [0, 0, 1, 1], [], []>} : vector<256x8xbf16>, vector<8x8xbf16>, vector<256x8xf32> -> vector<256x8xf32>
    %37 = arith.addf %32, %36 : vector<256x8xf32>
    %38 = vector.extract_strided_slice %1 {offsets = [2, 1, 0], sizes = [16, 16, 8], strides = [1, 1, 1]} : vector<18x18x8xbf16> to vector<16x16x8xbf16>
    %39 = vector.shape_cast %38 : vector<16x16x8xbf16> to vector<256x8xbf16>
    %c56 = arith.constant 56 : index
    %c0_18 = arith.constant 0 : index
    %40 = vector.load %arg2[%c56, %c0_18] : memref<72x8xbf16, #tpu.memory_space<vmem>>, vector<8x8xbf16>
    %cst_19 = arith.constant dense<0.000000e+00> : vector<256x8xf32>
    %41 = tpu.matmul %39, %40, %cst_19 {dimension_numbers = #tpu.dot_dimension_numbers<[1], [0], [0], [1], [0, 0, 1, 1], [], []>} : vector<256x8xbf16>, vector<8x8xbf16>, vector<256x8xf32> -> vector<256x8xf32>
    %42 = arith.addf %37, %41 : vector<256x8xf32>
    %43 = vector.extract_strided_slice %1 {offsets = [2, 2, 0], sizes = [16, 16, 8], strides = [1, 1, 1]} : vector<18x18x8xbf16> to vector<16x16x8xbf16>
    %44 = vector.shape_cast %43 : vector<16x16x8xbf16> to vector<256x8xbf16>
    %c64 = arith.constant 64 : index
    %c0_20 = arith.constant 0 : index
    %45 = vector.load %arg2[%c64, %c0_20] : memref<72x8xbf16, #tpu.memory_space<vmem>>, vector<8x8xbf16>
    %cst_21 = arith.constant dense<0.000000e+00> : vector<256x8xf32>
    %46 = tpu.matmul %44, %45, %cst_21 {dimension_numbers = #tpu.dot_dimension_numbers<[1], [0], [0], [1], [0, 0, 1, 1], [], []>} : vector<256x8xbf16>, vector<8x8xbf16>, vector<256x8xf32> -> vector<256x8xf32>
    %47 = arith.addf %42, %46 : vector<256x8xf32>
    %c0_22 = arith.constant 0 : index
    %c0_23 = arith.constant 0 : index
    %48 = vector.load %arg3[%c0_22, %c0_23] : memref<1x8xf32, #tpu.memory_space<vmem>>, vector<1x8xf32>
    %c0_24 = arith.constant 0 : index
    %c0_25 = arith.constant 0 : index
    %49 = vector.load %arg4[%c0_24, %c0_25] : memref<1x8xf32, #tpu.memory_space<vmem>>, vector<1x8xf32>
    %cst_26 = arith.constant dense<0.000000e+00> : vector<256xf32>
    %50 = vector.multi_reduction <add>, %47, %cst_26 [1] : vector<256x8xf32> to vector<256xf32>
    %51 = vector.shape_cast %50 : vector<256xf32> to vector<256x1xf32>
    %cst_27 = arith.constant 8.000000e+00 : f32
    %52 = vector.broadcast %cst_27 : f32 to vector<256x1xf32>
    %53 = arith.divf %51, %52 : vector<256x1xf32>
    %54 = vector.broadcast %53 : vector<256x1xf32> to vector<256x8xf32>
    %55 = arith.subf %47, %54 : vector<256x8xf32>
    %56 = arith.mulf %55, %55 : vector<256x8xf32>
    %cst_28 = arith.constant dense<0.000000e+00> : vector<256xf32>
    %57 = vector.multi_reduction <add>, %56, %cst_28 [1] : vector<256x8xf32> to vector<256xf32>
    %58 = vector.shape_cast %57 : vector<256xf32> to vector<256x1xf32>
    %cst_29 = arith.constant 8.000000e+00 : f32
    %59 = vector.broadcast %cst_29 : f32 to vector<256x1xf32>
    %60 = arith.divf %58, %59 : vector<256x1xf32>
    %cst_30 = arith.constant 9.99999974E-6 : f32
    %61 = vector.broadcast %cst_30 : f32 to vector<256x1xf32>
    %62 = arith.addf %60, %61 : vector<256x1xf32>
    %63 = math.rsqrt %62 : vector<256x1xf32>
    %64 = vector.broadcast %63 : vector<256x1xf32> to vector<256x8xf32>
    %65 = arith.mulf %55, %64 : vector<256x8xf32>
    %66 = vector.broadcast %48 : vector<1x8xf32> to vector<256x8xf32>
    %67 = arith.mulf %65, %66 : vector<256x8xf32>
    %68 = vector.broadcast %49 : vector<1x8xf32> to vector<256x8xf32>
    %69 = arith.addf %67, %68 : vector<256x8xf32>
    %c0_31 = arith.constant 0 : index
    %c0_32 = arith.constant 0 : index
    %70 = vector.load %arg5[%c0_31, %c0_32] : memref<8x128xbf16, #tpu.memory_space<vmem>>, vector<8x128xbf16>
    %71 = arith.truncf %69 : vector<256x8xf32> to vector<256x8xbf16>
    %cst_33 = arith.constant dense<0.000000e+00> : vector<256x128xf32>
    %72 = tpu.matmul %71, %70, %cst_33 {dimension_numbers = #tpu.dot_dimension_numbers<[1], [0], [0], [1], [0, 0, 1, 1], [], []>} : vector<256x8xbf16>, vector<8x128xbf16>, vector<256x128xf32> -> vector<256x128xf32>
    %73 = vector.shape_cast %72 : vector<256x128xf32> to vector<16x16x128xf32>
    %c0_34 = arith.constant 0 : index
    %c0_35 = arith.constant 0 : index
    %c0_36 = arith.constant 0 : index
    %c0_37 = arith.constant 0 : index
    %74 = vector.load %arg6[%c0_34, %c0_35, %c0_36, %c0_37] : memref<1x16x16x128xf32, #tpu.memory_space<vmem>>, vector<1x16x16x128xf32>
    %75 = vector.shape_cast %74 : vector<1x16x16x128xf32> to vector<16x16x128xf32>
    %76 = vector.shape_cast %73 : vector<16x16x128xf32> to vector<1x16x16x128xf32>
    tpu.vector_store %arg6[%c0_34, %c0_35, %c0_36, %c0_37], %76 {strides = array<i32>} : memref<1x16x16x128xf32, #tpu.memory_space<vmem>>, vector<1x16x16x128xf32>,
    return
  }
  func.func @transform_0(%arg0: i32) -> (i32, i32, i32, i32) {
    %c0_i32 = arith.constant 0 : i32
    %c0_i32_0 = arith.constant 0 : i32
    %c0_i32_1 = arith.constant 0 : i32
    %c0_i32_2 = arith.constant 0 : i32
    return %arg0, %c0_i32, %c0_i32_0, %c0_i32_1 : i32, i32, i32, i32
  }
  func.func @transform_1(%arg0: i32) -> (i32, i32) {
    %c0_i32 = arith.constant 0 : i32
    %c0_i32_0 = arith.constant 0 : i32
    %c0_i32_1 = arith.constant 0 : i32
    return %c0_i32, %c0_i32_0 : i32, i32
  }
  func.func @transform_2(%arg0: i32) -> (i32, i32) {
    %c0_i32 = arith.constant 0 : i32
    %c0_i32_0 = arith.constant 0 : i32
    %c0_i32_1 = arith.constant 0 : i32
    return %c0_i32, %c0_i32_0 : i32, i32
  }
  func.func @transform_3(%arg0: i32) -> (i32, i32) {
    %c0_i32 = arith.constant 0 : i32
    %c0_i32_0 = arith.constant 0 : i32
    %c0_i32_1 = arith.constant 0 : i32
    return %c0_i32, %c0_i32_0 : i32, i32
  }
  func.func @transform_4(%arg0: i32) -> (i32, i32) {
    %c0_i32 = arith.constant 0 : i32
    %c0_i32_0 = arith.constant 0 : i32
    %c0_i32_1 = arith.constant 0 : i32
    return %c0_i32, %c0_i32_0 : i32, i32
  }
  func.func @transform_5(%arg0: i32) -> (i32, i32, i32, i32) {
    %c0_i32 = arith.constant 0 : i32
    %c0_i32_0 = arith.constant 0 : i32
    %c0_i32_1 = arith.constant 0 : i32
    %c0_i32_2 = arith.constant 0 : i32
    return %arg0, %c0_i32, %c0_i32_0, %c0_i32_1 : i32, i32, i32, i32
  }
}

</mosaic_0001>

<llo_original>
// kernel: vit_lightweight_head_forward.6
$region0: #{vit_lightweight_head_forward.6}
  #allocation0 [shape = 'u32[]', space=smem, size = 0x4, offset = 0x4, fixed_abs, tag = 'smem constant byte address 0x4 - core index']
  #allocation1 [shape = 'u32[144,128]{1,0:T(1,128)}', space=vmem, size = 0x12000, scoped, tag = 'internal scratch']
  %s0 = inlined_call_operand.hbm [shape: f32[32,48], index: 0, kind: input, shape index: {}]
  %s1 = inlined_call_operand.hbm [shape: bf16[48,32], index: 1, kind: input, shape index: {}]
  %s2 = inlined_call_operand.hbm [shape: f32[1,32], index: 2, kind: input, shape index: {}]
  %s3 = inlined_call_operand.hbm [shape: f32[32,32], index: 3, kind: output, shape index: {}]
  %s4 = sld [smem:[#allocation0]]
  $region57: #{vit_lightweight_head_forward.6} parent=0
    _
  %s6 = ssub.s32 1, %s4
  %s7 = scalar_select 0, %s6, %s4
  $region1: #{vit_lightweight_head_forward.6} parent=0
    #allocation2 [shape = 'u8[16384]{0}', space=vmem, size = 0x4000, scoped, tag = 'input window, operand 0']
    #allocation3 [shape = 's32[2]{0}', space=sflag, size = 0x8, scoped, tag = 'scoped memory for vit_lightweight_head_forward.6']
    #allocation4 [shape = 's32[2]{0}', space=sflag, size = 0x8, scoped, tag = 'scoped memory for vit_lightweight_head_forward.6']
    #allocation5 [shape = 'u8[12288]{0}', space=vmem, size = 0x3000, scoped, tag = 'input window, operand 1, single buffered']
    #allocation6 [shape = 's32[1]{0}', space=sflag, size = 0x4, scoped, tag = 'scoped memory for vit_lightweight_head_forward.6']
    #allocation7 [shape = 'u8[512]{0}', space=vmem, size = 0x400, scoped, tag = 'input window, operand 2, single buffered']
    #allocation8 [shape = 'u8[16384]{0}', space=vmem, size = 0x4000, scoped, tag = 'output window, operand 0']
    %8 = vsyncpa [#allocation3], 0
    %s9 = scalar_lea.sflag [#allocation3], 1
    %10 = vsyncpa %s9, 0
    %11 = vsyncpa [#allocation6], 0
    %12 = vsyncpa [#allocation4], 0
    %s13 = scalar_lea.sflag [#allocation4], 1
    %14 = vsyncpa %s13, 0
    loop: start=0, step=1, limit=4
    $region2: #{vit_lightweight_head_forward.6} parent=1 // loop_pre_header
      _
    $region3: #{vit_lightweight_head_forward.6} parent=1 // loop_header
      %s16 = sphi 0, %s20
      %p17 = scmp.ge.s32.totalorder %s16, 4
      %s26 = sphi 0, %s28
      %s29 = sphi 0, %s26
      %s30 = sphi 0, %s29
      %s46 = sphi 0, %s30
      %s50 = sphi 0, %s50
      %s52 = sphi 0, %s50
      %s53 = sphi 0, %s52
      %s67 = sphi 0, %s53
      %s71 = sphi 0, %s71
      %s73 = sphi 0, %s71
      %s74 = sphi 0, %s73
      %s88 = sphi 0, %s74
      %s94 = sphi 0, %s96
      %s97 = sphi 0, %s94
      %s98 = sphi 0, %s97
      %s114 = sphi 0, %s98
    $region4: #{vit_lightweight_head_forward.6} parent=1 // loop_header_branch
      %19 = sbr.rel (%p17) target = $region8
    $region5: #{vit_lightweight_head_forward.6} parent=1 // loop_body
      %s21 = ssub.s32 %s16, 1
      %s22 = ssub.s32 %s16, 2
      %s23 = sadd.s32 %s16, 1
      %s24 = ssub.s32 %s16, %s23
      %p25 = scmp.eq.s32.totalorder %s24, 0
      %s27 = sadd.s32 %s26, 1
      %s28 = scalar_select %p25, %s26, %s27
      %p31 = pneg %p25
      %p32 = scmp.eq.s32.totalorder %s16, 1
      %p33 = por %p31, %p32
      %p34 = scmp.ne.s32.totalorder %s26, %s29
      %p35 = scmp.eq.s32.totalorder %s16, 0
      %p36 = por %p34, %p35
      %p37 = scmp.ne.s32.totalorder %s26, %s29
      %p38 = scmp.eq.s32.totalorder %s21, 1
      %p39 = por %p37, %p38
      %p40 = scmp.ne.s32.totalorder %s29, %s30
      %p41 = scmp.eq.s32.totalorder %s21, 0
      %p42 = por %p40, %p41
      %p43 = scmp.ne.s32.totalorder %s29, %s30
      %p44 = scmp.eq.s32.totalorder %s22, 1
      %p45 = por %p43, %p44
      %p47 = scmp.ne.s32.totalorder %s30, %s46
      %p48 = scmp.eq.s32.totalorder %s22, 0
      %p49 = por %p47, %p48
      %s51 = sadd.s32 %s50, 1
      %p54 = scmp.eq.s32.totalorder %s16, 1
      %p55 = scmp.ne.s32.totalorder %s50, %s52
      %p56 = scmp.eq.s32.totalorder %s16, 0
      %p57 = por %p55, %p56
      %p58 = scmp.ne.s32.totalorder %s50, %s52
      %p59 = scmp.eq.s32.totalorder %s21, 1
      %p60 = por %p58, %p59
      %p61 = scmp.ne.s32.totalorder %s52, %s53
      %p62 = scmp.eq.s32.totalorder %s21, 0
      %p63 = por %p61, %p62
      %p64 = scmp.ne.s32.totalorder %s52, %s53
      %p65 = scmp.eq.s32.totalorder %s22, 1
      %p66 = por %p64, %p65
      %p68 = scmp.ne.s32.totalorder %s53, %s67
      %p69 = scmp.eq.s32.totalorder %s22, 0
      %p70 = por %p68, %p69
      %s72 = sadd.s32 %s71, 1
      %p75 = scmp.eq.s32.totalorder %s16, 1
      %p76 = scmp.ne.s32.totalorder %s71, %s73
      %p77 = scmp.eq.s32.totalorder %s16, 0
      %p78 = por %p76, %p77
      %p79 = scmp.ne.s32.totalorder %s71, %s73
      %p80 = scmp.eq.s32.totalorder %s21, 1
      %p81 = por %p79, %p80
      %p82 = scmp.ne.s32.totalorder %s73, %s74
      %p83 = scmp.eq.s32.totalorder %s21, 0
      %p84 = por %p82, %p83
      %p85 = scmp.ne.s32.totalorder %s73, %s74
      %p86 = scmp.eq.s32.totalorder %s22, 1
      %p87 = por %p85, %p86
      %p89 = scmp.ne.s32.totalorder %s74, %s88
      %p90 = scmp.eq.s32.totalorder %s22, 0
      %p91 = por %p89, %p90
      %s92 = ssub.s32 %s16, %s23
      %p93 = scmp.eq.s32.totalorder %s92, 0
      %s95 = sadd.s32 %s94, 1
      %s96 = scalar_select %p93, %s94, %s95
      %p99 = pneg %p93
      %p100 = scmp.eq.s32.totalorder %s16, 1
      %p101 = por %p99, %p100
      %p102 = scmp.ne.s32.totalorder %s94, %s97
      %p103 = scmp.eq.s32.totalorder %s16, 0
      %p104 = por %p102, %p103
      %p105 = scmp.ne.s32.totalorder %s94, %s97
      %p106 = scmp.eq.s32.totalorder %s21, 1
      %p107 = por %p105, %p106
      %p108 = scmp.ne.s32.totalorder %s97, %s98
      %p109 = scmp.eq.s32.totalorder %s21, 0
      %p110 = por %p108, %p109
      %p111 = scmp.ne.s32.totalorder %s97, %s98
      %p112 = scmp.eq.s32.totalorder %s22, 1
      %p113 = por %p111, %p112
      %p115 = scmp.ne.s32.totalorder %s98, %s114
      %p116 = scmp.eq.s32.totalorder %s22, 0
      %p117 = por %p115, %p116
      %p118 = scmp.le.s32.totalorder 1, %s16
      %p119 = scmp.lt.s32.totalorder %s16, 3
      %p120 = pnand %p118, %p119
      %p121 = pneg %p120
      // Predicated region
      $region9: #{vit_lightweight_head_forward.6} parent=5 // pred_check
        _
      $region10: #{vit_lightweight_head_forward.6} parent=5 // pred_check_branch
        %123 = sbr.rel (%p120) target = $region12
      $region11: #{vit_lightweight_head_forward.6} parent=5 // pred_region
        %s124 = ssub.s32 %s16, 1
        // Predicated region
        $region13: #{vit_lightweight_head_forward.6} parent=11 // pred_check
          %p125 = pneg %p63
        $region14: #{vit_lightweight_head_forward.6} parent=11 // pred_check_branch
          %127 = sbr.rel (%p125) target = $region16
        $region15: #{vit_lightweight_head_forward.6} parent=11 // pred_region
          %s129 = ssub.s32 384, 384
          %130 = vsyncadd [#allocation6], %s129
          %s131 = sshll.u32 [#allocation5], 4
          %s132 = int_to_ptr.vmem [resolvable:$true] %s131
          %137 = dma.hbm_to_vmem [thread:$0]  %s1, 384, %s132, [#allocation6], 64, 64, 4
        $region16: #{vit_lightweight_head_forward.6} parent=11 // pred_fallthru
          _
        // Predicated region
        $region17: #{vit_lightweight_head_forward.6} parent=11 // pred_check
          %p138 = pneg %p84
        $region18: #{vit_lightweight_head_forward.6} parent=11 // pred_check_branch
          %140 = sbr.rel (%p138) target = $region20
        $region19: #{vit_lightweight_head_forward.6} parent=11 // pred_region
          %s142 = ssub.s32 16, 16
          %143 = vsyncadd [#allocation6], %s142
          %s145 = sshll.u32 [#allocation7], 4
          %s146 = int_to_ptr.vmem [resolvable:$true] %s145
          %148 = dma.hbm_to_vmem [thread:$0]  %s2, 16, %s146, [#allocation6]
        $region20: #{vit_lightweight_head_forward.6} parent=11 // pred_fallthru
          _
      $region12: #{vit_lightweight_head_forward.6} parent=5 // pred_fallthru
        _
      %p149 = scmp.lt.s32.totalorder %s16, 2
      // Predicated region
      $region21: #{vit_lightweight_head_forward.6} parent=5 // pred_check
        %p150 = pneg %p149
      $region22: #{vit_lightweight_head_forward.6} parent=5 // pred_check_branch
        %152 = sbr.rel (%p150) target = $region24
      $region23: #{vit_lightweight_head_forward.6} parent=5 // pred_region
        // Predicated region
        $region25: #{vit_lightweight_head_forward.6} parent=23 // pred_check
          %p153 = pneg %p36
        $region26: #{vit_lightweight_head_forward.6} parent=23 // pred_check_branch
          %155 = sbr.rel (%p153) target = $region28
        $region27: #{vit_lightweight_head_forward.6} parent=23 // pred_region
          %s156 = sand.u32 %s26, 1
          %s157 = scalar_lea.sflag [#allocation3], %s156
          %s158 = sand.u32 %s26, 1
          %s159 = smul.addr %s158, 16
          %s160 = scalar_lea.vmem [#allocation2], %s159
          %s161 = smul.u32 2, %s16
          %s163 = ssub.s32 256, 256
          %164 = vsyncadd %s157, %s163
          %s165 = smul.addr %s161, 128
          %s166 = scalar_lea.hbm %s0, %s165
          %s167 = sshll.u32 %s160, 4
          %s168 = int_to_ptr.vmem [resolvable:$true] %s167
          %173 = dma.hbm_to_vmem [thread:$0]  %s166, 256, %s168, %s157, 128, 128, 8
        $region28: #{vit_lightweight_head_forward.6} parent=23 // pred_fallthru
          _
      $region24: #{vit_lightweight_head_forward.6} parent=5 // pred_fallthru
        _
      %p174 = scmp.le.s32.totalorder 1, %s16
      %p175 = scmp.lt.s32.totalorder %s16, 3
      %p176 = pnand %p174, %p175
      %p177 = pneg %p176
      // Predicated region
      $region29: #{vit_lightweight_head_forward.6} parent=5 // pred_check
        _
      $region30: #{vit_lightweight_head_forward.6} parent=5 // pred_check_branch
        %179 = sbr.rel (%p176) target = $region32
      $region31: #{vit_lightweight_head_forward.6} parent=5 // pred_region
        %s180 = ssub.s32 %s16, 1
        %s181 = sand.u32 %s29, 1
        %s182 = scalar_lea.sflag [#allocation3], %s181
        %s183 = sand.u32 %s29, 1
        %s184 = smul.addr %s183, 16
        %s185 = scalar_lea.vmem [#allocation2], %s184
        // Predicated region
        $region33: #{vit_lightweight_head_forward.6} parent=31 // pred_check
          %p186 = pneg %p42
        $region34: #{vit_lightweight_head_forward.6} parent=31 // pred_check_branch
          %188 = sbr.rel (%p186) target = $region36
        $region35: #{vit_lightweight_head_forward.6} parent=31 // pred_region
          %189 = dma.done %s182, 256
        $region36: #{vit_lightweight_head_forward.6} parent=31 // pred_fallthru
          _
        // Predicated region
        $region37: #{vit_lightweight_head_forward.6} parent=31 // pred_check
          %p190 = pneg %p63
        $region38: #{vit_lightweight_head_forward.6} parent=31 // pred_check_branch
          %192 = sbr.rel (%p190) target = $region40
        $region39: #{vit_lightweight_head_forward.6} parent=31 // pred_region
          %193 = dma.done [#allocation6], 384
        $region40: #{vit_lightweight_head_forward.6} parent=31 // pred_fallthru
          _
        // Predicated region
        $region41: #{vit_lightweight_head_forward.6} parent=31 // pred_check
          %p194 = pneg %p84
        $region42: #{vit_lightweight_head_forward.6} parent=31 // pred_check_branch
          %196 = sbr.rel (%p194) target = $region44
        $region43: #{vit_lightweight_head_forward.6} parent=31 // pred_region
          %197 = dma.done [#allocation6], 16
        $region44: #{vit_lightweight_head_forward.6} parent=31 // pred_fallthru
          _
        %s198 = sand.u32 %s29, 1
        %s199 = scalar_lea.sflag [#allocation3], %s198
        %s200 = sand.u32 %s29, 1
        %s201 = smul.addr %s200, 16
        %s202 = scalar_lea.vmem [#allocation2], %s201
        %p203 = pneg %p42
        %p204 = pneg %p39
        %p205 = pneg %p63
        %p206 = pneg %p60
        %p207 = pneg %p84
        %p208 = pneg %p81
        %p209 = pneg %p110
        %p210 = pneg %p107
        %s211 = sand.u32 %s97, 1
        %s212 = scalar_lea.sflag [#allocation4], %s211
        %s213 = sand.u32 %s97, 1
        %s214 = smul.addr %s213, 16
        %s215 = scalar_lea.vmem [#allocation8], %s214
        %s216 = smul.u32 2, %s21
        %s217 = smul.u32 2, %s21
        %v219 = vld [vmem:[%s185] sm:$0xff]
        %v220 = vld [vmem:[%s185 + $0x8] sm:$0xff]
        %v221 = vld [vmem:[#allocation5] sm:$0xf]
        %v222 = vld [vmem:[#allocation5 + $0x4] sm:$0xf]
        %v223 = vld [vmem:[#allocation5 + $0x8] sm:$0xf]
        %v224 = vld [vmem:[#allocation5 + $0xc] sm:$0xf]
        %v225 = vld [vmem:[#allocation5 + $0x10] sm:$0xf]
        %v226 = vld [vmem:[#allocation5 + $0x14] sm:$0xf]
        %v227 = vpack.c.bf16 %v220, %v219
        %v228 = vld [vmem:[#allocation7] sm:$0x1]
        %v230 = vlaneseq
        %v231 = vshrl.u32 %v230, 7
        %v232 = vsub.s32 0, %v231
        %v233 = vrot.slane %v228, %v232
        %v241 = vunpack.c.l.b16 %v221
        %v242 = vunpack.c.l.b16 %v222
        %v243 = vunpack.c.l.b16 %v223
        %v244 = vunpack.c.l.b16 %v224
        %v245 = vunpack.c.l.b16 %v225
        %v246 = vunpack.c.l.b16 %v226
        %v247 = vpack.c.b16 %v242, %v241
        %v248 = vpack.c.b16 %v244, %v243
        %v249 = vpack.c.b16 %v246, %v245
        %vm253 = vcmask 392192
        %v255 = vsel %vm253, %v227, 0
        %257 = vmatprep.subr.bf16.mxu0 0
        %258 = vmatpush1.bf16.msra.mxu0 %v247
        %259 = vmatprep.subr.bf16.mxu0 0
        %260 = vmatpush1.bf16.msra.mxu0 %v248
        %261 = vmatprep.subr.bf16.mxu0 0
        %262 = vmatpush1.bf16.msra.mxu0 %v249
        %263 = vmatprep.subr.bf16.mxu0 0
        %264 = vmatpush1.bf16.msra.mxu0 0
        %265 = vmatprep.subr.bf16.mxu0 0
        %266 = vmatpush1.bf16.msra.mxu0 0
        %267 = vmatprep.subr.bf16.mxu0 0
        %268 = vmatpush1.bf16.msra.mxu0 0
        %269 = vmatprep.subr.bf16.mxu0 0
        %270 = vmatpush1.bf16.msra.mxu0 0
        %271 = vmatprep.subr.bf16.mxu0 0
        %272 = vmatpush1.bf16.msra.mxu0 0
        %273 = vmatprep.subr.bf16.mxu0 0
        %274 = vmatpush1.bf16.msra.mxu0 0
        %275 = vmatprep.subr.bf16.mxu0 0
        %276 = vmatpush1.bf16.msra.mxu0 0
        %277 = vmatprep.subr.bf16.mxu0 0
        %278 = vmatpush1.bf16.msra.mxu0 0
        %279 = vmatprep.subr.bf16.mxu0 0
        %280 = vmatpush1.bf16.msra.mxu0 0
        %281 = vmatprep.subr.bf16.mxu0 0
        %282 = vmatpush1.bf16.msra.mxu0 0
        %283 = vmatprep.subr.bf16.mxu0 0
        %284 = vmatpush1.bf16.msra.mxu0 0
        %285 = vmatprep.subr.bf16.mxu0 0
        %286 = vmatpush1.bf16.msra.mxu0 0
        %287 = vmatprep.subr.bf16.mxu0 0
        %288 = vmatpush1.bf16.msra.mxu0 0
        %289 = vmatprep.mubr.bf16.mxu0 0
        %290 = vmatmul.mubr.bf16.gmra.mrb[0].mxu0 %v255
        %v291 = vpop.f32.mrb[0].mxu0
        %v292 = vadd.f32 %v233, %v291
        %v293 = vpop.f32.mrb[0].mxu0
        %v294 = vpop.f32.mrb[0].mxu0
        %v295 = vadd.f32 %v233, %v294
        %v296 = vpop.f32.mrb[0].mxu0
        %297 = vdwg.mxu0
        %vm298 = vcmask 261120
        %299 = vst.msk [vmem:[%s215] sm:$0xff] %vm298, %v292
        %300 = vst.msk [vmem:[%s215 + $0x8] sm:$0xff] %vm298, %v295
        %s301 = sand.u32 %s97, 1
        %s302 = scalar_lea.sflag [#allocation4], %s301
        %s303 = sand.u32 %s97, 1
        %s304 = smul.addr %s303, 16
        %s305 = scalar_lea.vmem [#allocation8], %s304
        // Predicated region
        $region45: #{vit_lightweight_head_forward.6} parent=31 // pred_check
          %p306 = pneg %p107
        $region46: #{vit_lightweight_head_forward.6} parent=31 // pred_check_branch
          %308 = sbr.rel (%p306) target = $region48
        $region47: #{vit_lightweight_head_forward.6} parent=31 // pred_region
          %s309 = smul.u32 2, %s21
          %s311 = ssub.s32 256, 256
          %312 = vsyncadd %s302, %s311
          %s313 = smul.addr %s309, 128
          %s314 = scalar_lea.hbm %s3, %s313
          %s315 = sshll.u32 %s305, 4
          %s316 = int_to_ptr.vmem [resolvable:$true] %s315
          %321 = dma.vmem_to_hbm [thread:$0]  %s316, 256, %s314, %s302, 128, 128, 8
        $region48: #{vit_lightweight_head_forward.6} parent=31 // pred_fallthru
          _
      $region32: #{vit_lightweight_head_forward.6} parent=5 // pred_fallthru
        _
      %p322 = scmp.le.s32.totalorder 2, %s16
      // Predicated region
      $region49: #{vit_lightweight_head_forward.6} parent=5 // pred_check
        %p323 = pneg %p322
      $region50: #{vit_lightweight_head_forward.6} parent=5 // pred_check_branch
        %325 = sbr.rel (%p323) target = $region52
      $region51: #{vit_lightweight_head_forward.6} parent=5 // pred_region
        %s326 = ssub.s32 %s16, 2
        // Predicated region
        $region53: #{vit_lightweight_head_forward.6} parent=51 // pred_check
          %p327 = pneg %p113
        $region54: #{vit_lightweight_head_forward.6} parent=51 // pred_check_branch
          %329 = sbr.rel (%p327) target = $region56
        $region55: #{vit_lightweight_head_forward.6} parent=51 // pred_region
          %s330 = sand.u32 %s98, 1
          %s331 = scalar_lea.sflag [#allocation4], %s330
          %s332 = sand.u32 %s98, 1
          %s333 = smul.addr %s332, 16
          %s334 = scalar_lea.vmem [#allocation8], %s333
          %335 = dma.done %s331, 256
        $region56: #{vit_lightweight_head_forward.6} parent=51 // pred_fallthru
          _
      $region52: #{vit_lightweight_head_forward.6} parent=5 // pred_fallthru
        _
    $region6: #{vit_lightweight_head_forward.6} parent=1 // loop_footer
      %s20 = sadd.s32 1, %s16
    $region7: #{vit_lightweight_head_forward.6} parent=1 // loop_footer_branch
      %15 = sbr.rel target = $region3
    $region8: #{vit_lightweight_head_forward.6} parent=1 // loop_exit
      _
    %336 = vsyncpa [#allocation3], 1
    %s337 = scalar_lea.sflag [#allocation3], 1
    %338 = vsyncpa %s337, 1
    %339 = vsyncpa [#allocation6], 1
    %340 = vsyncpa [#allocation4], 1
    %s341 = scalar_lea.sflag [#allocation4], 1
    %342 = vsyncpa %s341, 1

// kernel: vit_lightweight_head_forward.9
$region0: #{vit_lightweight_head_forward.9}
  #allocation0 [shape = 'u32[]', space=smem, size = 0x4, offset = 0x4, fixed_abs, tag = 'smem constant byte address 0x4 - core index']
  #allocation1 [shape = 'u32[144,128]{1,0:T(1,128)}', space=vmem, size = 0x12000, scoped, tag = 'internal scratch']
  %s0 = inlined_call_operand.hbm [shape: bf16[32,32], index: 0, kind: input, shape index: {}]
  %s1 = inlined_call_operand.hbm [shape: f32[1,32], index: 1, kind: input, shape index: {}]
  %s2 = inlined_call_operand.hbm [shape: f32[1,32], index: 2, kind: input, shape index: {}]
  %s3 = inlined_call_operand.hbm [shape: bf16[32,64], index: 3, kind: input, shape index: {}]
  %s4 = inlined_call_operand.hbm [shape: f32[1,16], index: 4, kind: input, shape index: {}]
  %s5 = inlined_call_operand.hbm [shape: f32[1,16], index: 5, kind: input, shape index: {}]
  %s6 = inlined_call_operand.hbm [shape: bf16[32,64], index: 6, kind: output, shape index: {}]
  %s7 = sld [smem:[#allocation0]]
  $region81: #{vit_lightweight_head_forward.9} parent=0
    _
  %s9 = ssub.s32 1, %s7
  %s10 = scalar_select 0, %s9, %s7
  $region1: #{vit_lightweight_head_forward.9} parent=0
    #allocation2 [shape = 'u8[8192]{0}', space=vmem, size = 0x2000, scoped, tag = 'input window, operand 0']
    #allocation3 [shape = 's32[2]{0}', space=sflag, size = 0x8, scoped, tag = 'scoped memory for vit_lightweight_head_forward.9']
    #allocation4 [shape = 's32[2]{0}', space=sflag, size = 0x8, scoped, tag = 'scoped memory for vit_lightweight_head_forward.9']
    #allocation5 [shape = 'u8[512]{0}', space=vmem, size = 0x400, scoped, tag = 'input window, operand 1, single buffered']
    #allocation6 [shape = 's32[1]{0}', space=sflag, size = 0x4, scoped, tag = 'scoped memory for vit_lightweight_head_forward.9']
    #allocation7 [shape = 'u8[512]{0}', space=vmem, size = 0x400, scoped, tag = 'input window, operand 2, single buffered']
    #allocation8 [shape = 'u8[8192]{0}', space=vmem, size = 0x2000, scoped, tag = 'input window, operand 3, single buffered']
    #allocation9 [shape = 's32[1]{0}', space=sflag, size = 0x4, scoped, tag = 'scoped memory for vit_lightweight_head_forward.9']
    #allocation10 [shape = 'u8[512]{0}', space=vmem, size = 0x400, scoped, tag = 'input window, operand 4, single buffered']
    #allocation11 [shape = 'u8[512]{0}', space=vmem, size = 0x400, scoped, tag = 'input window, operand 5, single buffered']
    #allocation12 [shape = 's32[1]{0}', space=sflag, size = 0x4, scoped, tag = 'scoped memory for vit_lightweight_head_forward.9']
    #allocation13 [shape = 'u8[8192]{0}', space=vmem, size = 0x2000, scoped, tag = 'output window, operand 0']
    %11 = vsyncpa [#allocation3], 0
    %s12 = scalar_lea.sflag [#allocation3], 1
    %13 = vsyncpa %s12, 0
    %14 = vsyncpa [#allocation6], 0
    %15 = vsyncpa [#allocation9], 0
    %16 = vsyncpa [#allocation12], 0
    %17 = vsyncpa [#allocation4], 0
    %s18 = scalar_lea.sflag [#allocation4], 1
    %19 = vsyncpa %s18, 0
    loop: start=0, step=1, limit=4
    $region2: #{vit_lightweight_head_forward.9} parent=1 // loop_pre_header
      _
    $region3: #{vit_lightweight_head_forward.9} parent=1 // loop_header
      %s21 = sphi 0, %s25
      %p22 = scmp.ge.s32.totalorder %s21, 4
      %s31 = sphi 0, %s33
      %s34 = sphi 0, %s31
      %s35 = sphi 0, %s34
      %s51 = sphi 0, %s35
      %s55 = sphi 0, %s55
      %s57 = sphi 0, %s55
      %s58 = sphi 0, %s57
      %s72 = sphi 0, %s58
      %s76 = sphi 0, %s76
      %s78 = sphi 0, %s76
      %s79 = sphi 0, %s78
      %s93 = sphi 0, %s79
      %s97 = sphi 0, %s97
      %s99 = sphi 0, %s97
      %s100 = sphi 0, %s99
      %s114 = sphi 0, %s100
      %s118 = sphi 0, %s118
      %s120 = sphi 0, %s118
      %s121 = sphi 0, %s120
      %s135 = sphi 0, %s121
      %s139 = sphi 0, %s139
      %s141 = sphi 0, %s139
      %s142 = sphi 0, %s141
      %s156 = sphi 0, %s142
      %s162 = sphi 0, %s164
      %s165 = sphi 0, %s162
      %s166 = sphi 0, %s165
      %s182 = sphi 0, %s166
    $region4: #{vit_lightweight_head_forward.9} parent=1 // loop_header_branch
      %24 = sbr.rel (%p22) target = $region8
    $region5: #{vit_lightweight_head_forward.9} parent=1 // loop_body
      %s26 = ssub.s32 %s21, 1
      %s27 = ssub.s32 %s21, 2
      %s28 = sadd.s32 %s21, 1
      %s29 = ssub.s32 %s21, %s28
      %p30 = scmp.eq.s32.totalorder %s29, 0
      %s32 = sadd.s32 %s31, 1
      %s33 = scalar_select %p30, %s31, %s32
      %p36 = pneg %p30
      %p37 = scmp.eq.s32.totalorder %s21, 1
      %p38 = por %p36, %p37
      %p39 = scmp.ne.s32.totalorder %s31, %s34
      %p40 = scmp.eq.s32.totalorder %s21, 0
      %p41 = por %p39, %p40
      %p42 = scmp.ne.s32.totalorder %s31, %s34
      %p43 = scmp.eq.s32.totalorder %s26, 1
      %p44 = por %p42, %p43
      %p45 = scmp.ne.s32.totalorder %s34, %s35
      %p46 = scmp.eq.s32.totalorder %s26, 0
      %p47 = por %p45, %p46
      %p48 = scmp.ne.s32.totalorder %s34, %s35
      %p49 = scmp.eq.s32.totalorder %s27, 1
      %p50 = por %p48, %p49
      %p52 = scmp.ne.s32.totalorder %s35, %s51
      %p53 = scmp.eq.s32.totalorder %s27, 0
      %p54 = por %p52, %p53
      %s56 = sadd.s32 %s55, 1
      %p59 = scmp.eq.s32.totalorder %s21, 1
      %p60 = scmp.ne.s32.totalorder %s55, %s57
      %p61 = scmp.eq.s32.totalorder %s21, 0
      %p62 = por %p60, %p61
      %p63 = scmp.ne.s32.totalorder %s55, %s57
      %p64 = scmp.eq.s32.totalorder %s26, 1
      %p65 = por %p63, %p64
      %p66 = scmp.ne.s32.totalorder %s57, %s58
      %p67 = scmp.eq.s32.totalorder %s26, 0
      %p68 = por %p66, %p67
      %p69 = scmp.ne.s32.totalorder %s57, %s58
      %p70 = scmp.eq.s32.totalorder %s27, 1
      %p71 = por %p69, %p70
      %p73 = scmp.ne.s32.totalorder %s58, %s72
      %p74 = scmp.eq.s32.totalorder %s27, 0
      %p75 = por %p73, %p74
      %s77 = sadd.s32 %s76, 1
      %p80 = scmp.eq.s32.totalorder %s21, 1
      %p81 = scmp.ne.s32.totalorder %s76, %s78
      %p82 = scmp.eq.s32.totalorder %s21, 0
      %p83 = por %p81, %p82
      %p84 = scmp.ne.s32.totalorder %s76, %s78
      %p85 = scmp.eq.s32.totalorder %s26, 1
      %p86 = por %p84, %p85
      %p87 = scmp.ne.s32.totalorder %s78, %s79
      %p88 = scmp.eq.s32.totalorder %s26, 0
      %p89 = por %p87, %p88
      %p90 = scmp.ne.s32.totalorder %s78, %s79
      %p91 = scmp.eq.s32.totalorder %s27, 1
      %p92 = por %p90, %p91
      %p94 = scmp.ne.s32.totalorder %s79, %s93
      %p95 = scmp.eq.s32.totalorder %s27, 0
      %p96 = por %p94, %p95
      %s98 = sadd.s32 %s97, 1
      %p101 = scmp.eq.s32.totalorder %s21, 1
      %p102 = scmp.ne.s32.totalorder %s97, %s99
      %p103 = scmp.eq.s32.totalorder %s21, 0
      %p104 = por %p102, %p103
      %p105 = scmp.ne.s32.totalorder %s97, %s99
      %p106 = scmp.eq.s32.totalorder %s26, 1
      %p107 = por %p105, %p106
      %p108 = scmp.ne.s32.totalorder %s99, %s100
      %p109 = scmp.eq.s32.totalorder %s26, 0
      %p110 = por %p108, %p109
      %p111 = scmp.ne.s32.totalorder %s99, %s100
      %p112 = scmp.eq.s32.totalorder %s27, 1
      %p113 = por %p111, %p112
      %p115 = scmp.ne.s32.totalorder %s100, %s114
      %p116 = scmp.eq.s32.totalorder %s27, 0
      %p117 = por %p115, %p116
      %s119 = sadd.s32 %s118, 1
      %p122 = scmp.eq.s32.totalorder %s21, 1
      %p123 = scmp.ne.s32.totalorder %s118, %s120
      %p124 = scmp.eq.s32.totalorder %s21, 0
      %p125 = por %p123, %p124
      %p126 = scmp.ne.s32.totalorder %s118, %s120
      %p127 = scmp.eq.s32.totalorder %s26, 1
      %p128 = por %p126, %p127
      %p129 = scmp.ne.s32.totalorder %s120, %s121
      %p130 = scmp.eq.s32.totalorder %s26, 0
      %p131 = por %p129, %p130
      %p132 = scmp.ne.s32.totalorder %s120, %s121
      %p133 = scmp.eq.s32.totalorder %s27, 1
      %p134 = por %p132, %p133
      %p136 = scmp.ne.s32.totalorder %s121, %s135
      %p137 = scmp.eq.s32.totalorder %s27, 0
      %p138 = por %p136, %p137
      %s140 = sadd.s32 %s139, 1
      %p143 = scmp.eq.s32.totalorder %s21, 1
      %p144 = scmp.ne.s32.totalorder %s139, %s141
      %p145 = scmp.eq.s32.totalorder %s21, 0
      %p146 = por %p144, %p145
      %p147 = scmp.ne.s32.totalorder %s139, %s141
      %p148 = scmp.eq.s32.totalorder %s26, 1
      %p149 = por %p147, %p148
      %p150 = scmp.ne.s32.totalorder %s141, %s142
      %p151 = scmp.eq.s32.totalorder %s26, 0
      %p152 = por %p150, %p151
      %p153 = scmp.ne.s32.totalorder %s141, %s142
      %p154 = scmp.eq.s32.totalorder %s27, 1
      %p155 = por %p153, %p154
      %p157 = scmp.ne.s32.totalorder %s142, %s156
      %p158 = scmp.eq.s32.totalorder %s27, 0
      %p159 = por %p157, %p158
      %s160 = ssub.s32 %s21, %s28
      %p161 = scmp.eq.s32.totalorder %s160, 0
      %s163 = sadd.s32 %s162, 1
      %s164 = scalar_select %p161, %s162, %s163
      %p167 = pneg %p161
      %p168 = scmp.eq.s32.totalorder %s21, 1
      %p169 = por %p167, %p168
      %p170 = scmp.ne.s32.totalorder %s162, %s165
      %p171 = scmp.eq.s32.totalorder %s21, 0
      %p172 = por %p170, %p171
      %p173 = scmp.ne.s32.totalorder %s162, %s165
      %p174 = scmp.eq.s32.totalorder %s26, 1
      %p175 = por %p173, %p174
      %p176 = scmp.ne.s32.totalorder %s165, %s166
      %p177 = scmp.eq.s32.totalorder %s26, 0
      %p178 = por %p176, %p177
      %p179 = scmp.ne.s32.totalorder %s165, %s166
      %p180 = scmp.eq.s32.totalorder %s27, 1
      %p181 = por %p179, %p180
      %p183 = scmp.ne.s32.totalorder %s166, %s182
      %p184 = scmp.eq.s32.totalorder %s27, 0
      %p185 = por %p183, %p184
      %p186 = scmp.le.s32.totalorder 1, %s21
      %p187 = scmp.lt.s32.totalorder %s21, 3
      %p188 = pnand %p186, %p187
      %p189 = pneg %p188
      // Predicated region
      $region9: #{vit_lightweight_head_forward.9} parent=5 // pred_check
        _
      $region10: #{vit_lightweight_head_forward.9} parent=5 // pred_check_branch
        %191 = sbr.rel (%p188) target = $region12
      $region11: #{vit_lightweight_head_forward.9} parent=5 // pred_region
        %s192 = ssub.s32 %s21, 1
        // Predicated region
        $region13: #{vit_lightweight_head_forward.9} parent=11 // pred_check
          %p193 = pneg %p68
        $region14: #{vit_lightweight_head_forward.9} parent=11 // pred_check_branch
          %195 = sbr.rel (%p193) target = $region16
        $region15: #{vit_lightweight_head_forward.9} parent=11 // pred_region
          %s197 = ssub.s32 16, 16
          %198 = vsyncadd [#allocation6], %s197
          %s200 = sshll.u32 [#allocation5], 4
          %s201 = int_to_ptr.vmem [resolvable:$true] %s200
          %203 = dma.hbm_to_vmem [thread:$0]  %s1, 16, %s201, [#allocation6]
        $region16: #{vit_lightweight_head_forward.9} parent=11 // pred_fallthru
          _
        // Predicated region
        $region17: #{vit_lightweight_head_forward.9} parent=11 // pred_check
          %p204 = pneg %p89
        $region18: #{vit_lightweight_head_forward.9} parent=11 // pred_check_branch
          %206 = sbr.rel (%p204) target = $region20
        $region19: #{vit_lightweight_head_forward.9} parent=11 // pred_region
          %s208 = ssub.s32 16, 16
          %209 = vsyncadd [#allocation6], %s208
          %s211 = sshll.u32 [#allocation7], 4
          %s212 = int_to_ptr.vmem [resolvable:$true] %s211
          %214 = dma.hbm_to_vmem [thread:$0]  %s2, 16, %s212, [#allocation6]
        $region20: #{vit_lightweight_head_forward.9} parent=11 // pred_fallthru
          _
        // Predicated region
        $region21: #{vit_lightweight_head_forward.9} parent=11 // pred_check
          %p215 = pneg %p110
        $region22: #{vit_lightweight_head_forward.9} parent=11 // pred_check_branch
          %217 = sbr.rel (%p215) target = $region24
        $region23: #{vit_lightweight_head_forward.9} parent=11 // pred_region
          %s219 = ssub.s32 256, 256
          %220 = vsyncadd [#allocation9], %s219
          %s221 = sshll.u32 [#allocation8], 4
          %s222 = int_to_ptr.vmem [resolvable:$true] %s221
          %227 = dma.hbm_to_vmem [thread:$0]  %s3, 256, %s222, [#allocation9], 64, 64, 4
        $region24: #{vit_lightweight_head_forward.9} parent=11 // pred_fallthru
          _
        // Predicated region
        $region25: #{vit_lightweight_head_forward.9} parent=11 // pred_check
          %p228 = pneg %p131
        $region26: #{vit_lightweight_head_forward.9} parent=11 // pred_check_branch
          %230 = sbr.rel (%p228) target = $region28
        $region27: #{vit_lightweight_head_forward.9} parent=11 // pred_region
          %s232 = ssub.s32 16, 16
          %233 = vsyncadd [#allocation9], %s232
          %s235 = sshll.u32 [#allocation10], 4
          %s236 = int_to_ptr.vmem [resolvable:$true] %s235
          %238 = dma.hbm_to_vmem [thread:$0]  %s4, 16, %s236, [#allocation9]
        $region28: #{vit_lightweight_head_forward.9} parent=11 // pred_fallthru
          _
        // Predicated region
        $region29: #{vit_lightweight_head_forward.9} parent=11 // pred_check
          %p239 = pneg %p152
        $region30: #{vit_lightweight_head_forward.9} parent=11 // pred_check_branch
          %241 = sbr.rel (%p239) target = $region32
        $region31: #{vit_lightweight_head_forward.9} parent=11 // pred_region
          %s243 = ssub.s32 16, 16
          %244 = vsyncadd [#allocation12], %s243
          %s246 = sshll.u32 [#allocation11], 4
          %s247 = int_to_ptr.vmem [resolvable:$true] %s246
          %249 = dma.hbm_to_vmem [thread:$0]  %s5, 16, %s247, [#allocation12]
        $region32: #{vit_lightweight_head_forward.9} parent=11 // pred_fallthru
          _
      $region12: #{vit_lightweight_head_forward.9} parent=5 // pred_fallthru
        _
      %p250 = scmp.lt.s32.totalorder %s21, 2
      // Predicated region
      $region33: #{vit_lightweight_head_forward.9} parent=5 // pred_check
        %p251 = pneg %p250
      $region34: #{vit_lightweight_head_forward.9} parent=5 // pred_check_branch
        %253 = sbr.rel (%p251) target = $region36
      $region35: #{vit_lightweight_head_forward.9} parent=5 // pred_region
        // Predicated region
        $region37: #{vit_lightweight_head_forward.9} parent=35 // pred_check
          %p254 = pneg %p41
        $region38: #{vit_lightweight_head_forward.9} parent=35 // pred_check_branch
          %256 = sbr.rel (%p254) target = $region40
        $region39: #{vit_lightweight_head_forward.9} parent=35 // pred_region
          %s257 = sand.u32 %s31, 1
          %s258 = scalar_lea.sflag [#allocation3], %s257
          %s259 = sand.u32 %s31, 1
          %s260 = smul.addr %s259, 8
          %s261 = scalar_lea.vmem [#allocation2], %s260
          %s262 = smul.u32 2, %s21
          %s264 = ssub.s32 128, 128
          %265 = vsyncadd %s258, %s264
          %s266 = smul.addr %s262, 64
          %s267 = scalar_lea.hbm %s0, %s266
          %s268 = sshll.u32 %s261, 4
          %s269 = int_to_ptr.vmem [resolvable:$true] %s268
          %274 = dma.hbm_to_vmem [thread:$0]  %s267, 128, %s269, %s258, 64, 64, 4
        $region40: #{vit_lightweight_head_forward.9} parent=35 // pred_fallthru
          _
      $region36: #{vit_lightweight_head_forward.9} parent=5 // pred_fallthru
        _
      %p275 = scmp.le.s32.totalorder 1, %s21
      %p276 = scmp.lt.s32.totalorder %s21, 3
      %p277 = pnand %p275, %p276
      %p278 = pneg %p277
      // Predicated region
      $region41: #{vit_lightweight_head_forward.9} parent=5 // pred_check
        _
      $region42: #{vit_lightweight_head_forward.9} parent=5 // pred_check_branch
        %280 = sbr.rel (%p277) target = $region44
      $region43: #{vit_lightweight_head_forward.9} parent=5 // pred_region
        %s281 = ssub.s32 %s21, 1
        %s282 = sand.u32 %s34, 1
        %s283 = scalar_lea.sflag [#allocation3], %s282
        %s284 = sand.u32 %s34, 1
        %s285 = smul.addr %s284, 8
        %s286 = scalar_lea.vmem [#allocation2], %s285
        // Predicated region
        $region45: #{vit_lightweight_head_forward.9} parent=43 // pred_check
          %p287 = pneg %p47
        $region46: #{vit_lightweight_head_forward.9} parent=43 // pred_check_branch
          %289 = sbr.rel (%p287) target = $region48
        $region47: #{vit_lightweight_head_forward.9} parent=43 // pred_region
          %290 = dma.done %s283, 128
        $region48: #{vit_lightweight_head_forward.9} parent=43 // pred_fallthru
          _
        // Predicated region
        $region49: #{vit_lightweight_head_forward.9} parent=43 // pred_check
          %p291 = pneg %p68
        $region50: #{vit_lightweight_head_forward.9} parent=43 // pred_check_branch
          %293 = sbr.rel (%p291) target = $region52
        $region51: #{vit_lightweight_head_forward.9} parent=43 // pred_region
          %294 = dma.done [#allocation6], 16
        $region52: #{vit_lightweight_head_forward.9} parent=43 // pred_fallthru
          _
        // Predicated region
        $region53: #{vit_lightweight_head_forward.9} parent=43 // pred_check
          %p295 = pneg %p89
        $region54: #{vit_lightweight_head_forward.9} parent=43 // pred_check_branch
          %297 = sbr.rel (%p295) target = $region56
        $region55: #{vit_lightweight_head_forward.9} parent=43 // pred_region
          %298 = dma.done [#allocation6], 16
        $region56: #{vit_lightweight_head_forward.9} parent=43 // pred_fallthru
          _
        // Predicated region
        $region57: #{vit_lightweight_head_forward.9} parent=43 // pred_check
          %p299 = pneg %p110
        $region58: #{vit_lightweight_head_forward.9} parent=43 // pred_check_branch
          %301 = sbr.rel (%p299) target = $region60
        $region59: #{vit_lightweight_head_forward.9} parent=43 // pred_region
          %302 = dma.done [#allocation9], 256
        $region60: #{vit_lightweight_head_forward.9} parent=43 // pred_fallthru
          _
        // Predicated region
        $region61: #{vit_lightweight_head_forward.9} parent=43 // pred_check
          %p303 = pneg %p131
        $region62: #{vit_lightweight_head_forward.9} parent=43 // pred_check_branch
          %305 = sbr.rel (%p303) target = $region64
        $region63: #{vit_lightweight_head_forward.9} parent=43 // pred_region
          %306 = dma.done [#allocation9], 16
        $region64: #{vit_lightweight_head_forward.9} parent=43 // pred_fallthru
          _
        // Predicated region
        $region65: #{vit_lightweight_head_forward.9} parent=43 // pred_check
          %p307 = pneg %p152
        $region66: #{vit_lightweight_head_forward.9} parent=43 // pred_check_branch
          %309 = sbr.rel (%p307) target = $region68
        $region67: #{vit_lightweight_head_forward.9} parent=43 // pred_region
          %310 = dma.done [#allocation12], 16
        $region68: #{vit_lightweight_head_forward.9} parent=43 // pred_fallthru
          _
        %s311 = sand.u32 %s34, 1
        %s312 = scalar_lea.sflag [#allocation3], %s311
        %s313 = sand.u32 %s34, 1
        %s314 = smul.addr %s313, 8
        %s315 = scalar_lea.vmem [#allocation2], %s314
        %p316 = pneg %p47
        %p317 = pneg %p44
        %p318 = pneg %p68
        %p319 = pneg %p65
        %p320 = pneg %p89
        %p321 = pneg %p86
        %p322 = pneg %p110
        %p323 = pneg %p107
        %p324 = pneg %p131
        %p325 = pneg %p128
        %p326 = pneg %p152
        %p327 = pneg %p149
        %p328 = pneg %p178
        %p329 = pneg %p175
        %s330 = sand.u32 %s165, 1
        %s331 = scalar_lea.sflag [#allocation4], %s330
        %s332 = sand.u32 %s165, 1
        %s333 = smul.addr %s332, 8
        %s334 = scalar_lea.vmem [#allocation13], %s333
        %s335 = smul.u32 2, %s26
        %s336 = smul.u32 2, %s26
        %v338 = vld [vmem:[%s286] sm:$0xf]
        %v339 = vld [vmem:[%s286 + $0x4] sm:$0xf]
        %v340 = vunpack.c.l.bf16 %v338
        %v341 = vunpack.c.l.bf16 %v339
        %v342 = vld [vmem:[#allocation5] sm:$0x1]
        %v343 = vld [vmem:[#allocation7] sm:$0x1]
        %vm344 = vcmask 261120
        %v345 = vsel %vm344, %v340, 0.0
        %346 = vadd.xlane.f32.xlu0 %v345
        %v347 = vpop.xlane.xlu0 %346
        %v348 = vsel %vm344, %v341, 0.0
        %349 = vadd.xlane.f32.xlu0 %v348
        %v350 = vpop.xlane.xlu0 %349
        %v351 = vrcp.pop 32.0
        %v352 = vmul.f32 %v347, %v351
        %v353 = vmul.f32 %v350, %v351
        %v354 = vsub.f32 %v340, %v352
        %v355 = vsub.f32 %v341, %v353
        %v356 = vmul.f32 %v354, %v354
        %v357 = vmul.f32 %v355, %v355
        %v358 = vsel %vm344, %v356, 0.0
        %359 = vadd.xlane.f32.xlu0 %v358
        %v360 = vpop.xlane.xlu0 %359
        %v361 = vsel %vm344, %v357, 0.0
        %362 = vadd.xlane.f32.xlu0 %v361
        %v363 = vpop.xlane.xlu0 %362
        %v364 = vmul.f32 %v360, %v351
        %v365 = vmul.f32 %v363, %v351
        %v366 = vadd.f32 %v364, 1e-06
        %v367 = vadd.f32 %v365, 1e-06
        %v368 = vrsqrt.pop %v366
        %v369 = vrsqrt.pop %v367
        %v370 = vmul.f32 %v354, %v368
        %v371 = vmul.f32 %v355, %v369
        %v373 = vlaneseq
        %v374 = vshrl.u32 %v373, 7
        %v375 = vsub.s32 0, %v374
        %v376 = vrot.slane %v342, %v375
        %v378 = vmul.f32 %v370, %v376
        %v379 = vmul.f32 %v371, %v376
        %v381 = vlaneseq
        %v382 = vshrl.u32 %v381, 7
        %v383 = vsub.s32 0, %v382
        %v384 = vrot.slane %v343, %v383
        %v386 = vadd.f32 %v378, %v384
        %v387 = vadd.f32 %v379, %v384
        %v388 = vld [vmem:[#allocation8] sm:$0xf]
        %v389 = vld [vmem:[#allocation8 + $0x4] sm:$0xf]
        %v390 = vld [vmem:[#allocation8 + $0x8] sm:$0xf]
        %v391 = vld [vmem:[#allocation8 + $0xc] sm:$0xf]
        %v392 = vpack.c.bf16 %v387, %v386
        %v397 = vunpack.c.l.b16 %v388
        %v398 = vunpack.c.l.b16 %v389
        %v399 = vunpack.c.l.b16 %v390
        %v400 = vunpack.c.l.b16 %v391
        %v401 = vpack.c.b16 %v398, %v397
        %v402 = vpack.c.b16 %v400, %v399
        %v406 = vsel %vm344, %v392, 0
        %408 = vmatprep.subr.bf16.mxu0 0
        %409 = vmatpush1.bf16.msra.mxu0 %v401
        %410 = vmatprep.subr.bf16.mxu0 0
        %411 = vmatpush1.bf16.msra.mxu0 %v402
        %412 = vmatprep.subr.bf16.mxu0 0
        %413 = vmatpush1.bf16.msra.mxu0 0
        %414 = vmatprep.subr.bf16.mxu0 0
        %415 = vmatpush1.bf16.msra.mxu0 0
        %416 = vmatprep.subr.bf16.mxu0 0
        %417 = vmatpush1.bf16.msra.mxu0 0
        %418 = vmatprep.subr.bf16.mxu0 0
        %419 = vmatpush1.bf16.msra.mxu0 0
        %420 = vmatprep.subr.bf16.mxu0 0
        %421 = vmatpush1.bf16.msra.mxu0 0
        %422 = vmatprep.subr.bf16.mxu0 0
        %423 = vmatpush1.bf16.msra.mxu0 0
        %424 = vmatprep.subr.bf16.mxu0 0
        %425 = vmatpush1.bf16.msra.mxu0 0
        %426 = vmatprep.subr.bf16.mxu0 0
        %427 = vmatpush1.bf16.msra.mxu0 0
        %428 = vmatprep.subr.bf16.mxu0 0
        %429 = vmatpush1.bf16.msra.mxu0 0
        %430 = vmatprep.subr.bf16.mxu0 0
        %431 = vmatpush1.bf16.msra.mxu0 0
        %432 = vmatprep.subr.bf16.mxu0 0
        %433 = vmatpush1.bf16.msra.mxu0 0
        %434 = vmatprep.subr.bf16.mxu0 0
        %435 = vmatpush1.bf16.msra.mxu0 0
        %436 = vmatprep.subr.bf16.mxu0 0
        %437 = vmatpush1.bf16.msra.mxu0 0
        %438 = vmatprep.subr.bf16.mxu0 0
        %439 = vmatpush1.bf16.msra.mxu0 0
        %440 = vmatprep.mubr.bf16.mxu0 0
        %441 = vmatmul.mubr.bf16.gmra.mrb[0].mxu0 %v406
        %v442 = vpop.f32.mrb[0].mxu0
        %v443 = vadd.f32 0.0, %v442
        %v444 = vpop.f32.mrb[0].mxu0
        %v445 = vpop.f32.mrb[0].mxu0
        %v446 = vadd.f32 0.0, %v445
        %v447 = vpop.f32.mrb[0].mxu0
        %448 = vdwg.mxu0
        %v449 = vld [vmem:[#allocation10] sm:$0x1]
        %v450 = vld [vmem:[#allocation11] sm:$0x1]
        %vm451 = vcmask 130048
        %v452 = vsel %vm451, %v443, 0.0
        %453 = vadd.xlane.f32.xlu0 %v452
        %v454 = vpop.xlane.xlu0 %453
        %v455 = vsel %vm451, %v446, 0.0
        %456 = vadd.xlane.f32.xlu0 %v455
        %v457 = vpop.xlane.xlu0 %456
        %v458 = vrcp.pop 16.0
        %v459 = vmul.f32 %v454, %v458
        %v460 = vmul.f32 %v457, %v458
        %v461 = vsub.f32 %v443, %v459
        %v462 = vsub.f32 %v446, %v460
        %v463 = vmul.f32 %v461, %v461
        %v464 = vmul.f32 %v462, %v462
        %v465 = vsel %vm451, %v463, 0.0
        %466 = vadd.xlane.f32.xlu0 %v465
        %v467 = vpop.xlane.xlu0 %466
        %v468 = vsel %vm451, %v464, 0.0
        %469 = vadd.xlane.f32.xlu0 %v468
        %v470 = vpop.xlane.xlu0 %469
        %v471 = vmul.f32 %v467, %v458
        %v472 = vmul.f32 %v470, %v458
        %v473 = vadd.f32 %v471, 1e-05
        %v474 = vadd.f32 %v472, 1e-05
        %v475 = vrsqrt.pop %v473
        %v476 = vrsqrt.pop %v474
        %v477 = vmul.f32 %v461, %v475
        %v478 = vmul.f32 %v462, %v476
        %v480 = vlaneseq
        %v481 = vshrl.u32 %v480, 7
        %v482 = vsub.s32 0, %v481
        %v483 = vrot.slane %v449, %v482
        %v485 = vmul.f32 %v477, %v483
        %v486 = vmul.f32 %v478, %v483
        %v488 = vlaneseq
        %v489 = vshrl.u32 %v488, 7
        %v490 = vsub.s32 0, %v489
        %v491 = vrot.slane %v450, %v490
        %v493 = vadd.f32 %v485, %v491
        %v494 = vadd.f32 %v486, %v491
        %v495 = vmul.f32 %v493, %v493
        %v496 = vmul.f32 %v494, %v494
        %v497 = vmul.f32 %v493, %v495
        %v498 = vmul.f32 %v494, %v496
        %v499 = vmul.f32 %v497, 0.044715
        %v500 = vmul.f32 %v498, 0.044715
        %v501 = vadd.f32 %v493, %v499
        %v502 = vadd.f32 %v494, %v500
        %v503 = vmul.f32 %v501, 0.7978846
        %v504 = vmul.f32 %v502, 0.7978846
        %v505 = vtanh.pop %v503
        %v506 = vtanh.pop %v504
        %v507 = vadd.f32 %v505, 1.0
        %v508 = vadd.f32 %v506, 1.0
        %v509 = vmul.f32 %v507, 0.5
        %v510 = vmul.f32 %v508, 0.5
        %v511 = vmul.f32 %v493, %v509
        %v512 = vmul.f32 %v494, %v510
        %v513 = vpack.c.bf16 %v512, %v511
        %v515 = vunpack.c.l.b16 %v513
        %v516 = vunpack.c.h.b16 %v513
        %v517 = vpack.c.b16 %v515, %v515
        %v518 = vpack.c.b16 %v516, %v516
        %vm521 = vcmask 125952
        %522 = vst.msk [vmem:[%s334] sm:$0xf] %vm521, %v517
        %523 = vst.msk [vmem:[%s334 + $0x4] sm:$0xf] %vm521, %v518
        %526 = vrot.lane.b32.xlu0 %v443, 112
        %v527 = vpop.permute.xlu0 %526
        %528 = vrot.lane.b32.xlu0 %v446, 112
        %v529 = vpop.permute.xlu0 %528
        %v532 = vsel %vm451, %v527, 0.0
        %533 = vadd.xlane.f32.xlu0 %v532
        %v534 = vpop.xlane.xlu0 %533
        %v535 = vsel %vm451, %v529, 0.0
        %536 = vadd.xlane.f32.xlu0 %v535
        %v537 = vpop.xlane.xlu0 %536
        %v538 = vmul.f32 %v534, %v458
        %v539 = vmul.f32 %v537, %v458
        %v540 = vsub.f32 %v443, %v538
        %v541 = vsub.f32 %v446, %v539
        %v542 = vmul.f32 %v540, %v540
        %v543 = vmul.f32 %v541, %v541
        %546 = vrot.lane.b32.xlu0 %v542, 112
        %v547 = vpop.permute.xlu0 %546
        %548 = vrot.lane.b32.xlu0 %v543, 112
        %v549 = vpop.permute.xlu0 %548
        %v552 = vsel %vm451, %v547, 0.0
        %553 = vadd.xlane.f32.xlu0 %v552
        %v554 = vpop.xlane.xlu0 %553
        %v555 = vsel %vm451, %v549, 0.0
        %556 = vadd.xlane.f32.xlu0 %v555
        %v557 = vpop.xlane.xlu0 %556
        %v558 = vmul.f32 %v554, %v458
        %v559 = vmul.f32 %v557, %v458
        %v560 = vadd.f32 %v558, 1e-05
        %v561 = vadd.f32 %v559, 1e-05
        %v562 = vrsqrt.pop %v560
        %v563 = vrsqrt.pop %v561
        %v564 = vmul.f32 %v540, %v562
        %v565 = vmul.f32 %v541, %v563
        %566 = vrot.lane.b32.xlu0 %v483, 16
        %v567 = vpop.permute.xlu0 %566
        %v569 = vmul.f32 %v564, %v567
        %v570 = vmul.f32 %v565, %v567
        %571 = vrot.lane.b32.xlu0 %v491, 16
        %v572 = vpop.permute.xlu0 %571
        %v574 = vadd.f32 %v569, %v572
        %v575 = vadd.f32 %v570, %v572
        %v576 = vmul.f32 %v574, %v574
        %v577 = vmul.f32 %v575, %v575
        %v578 = vmul.f32 %v574, %v576
        %v579 = vmul.f32 %v575, %v577
        %v580 = vmul.f32 %v578, 0.044715
        %v581 = vmul.f32 %v579, 0.044715
        %v582 = vadd.f32 %v574, %v580
        %v583 = vadd.f32 %v575, %v581
        %v584 = vmul.f32 %v582, 0.7978846
        %v585 = vmul.f32 %v583, 0.7978846
        %v586 = vtanh.pop %v584
        %v587 = vtanh.pop %v585
        %v588 = vadd.f32 %v586, 1.0
        %v589 = vadd.f32 %v587, 1.0
        %v590 = vmul.f32 %v588, 0.5
        %v591 = vmul.f32 %v589, 0.5
        %v592 = vmul.f32 %v574, %v590
        %v593 = vmul.f32 %v575, %v591
        %v594 = vpack.c.bf16 %v593, %v592
        %v596 = vunpack.c.l.b16 %v594
        %v597 = vunpack.c.h.b16 %v594
        %v598 = vpack.c.b16 %v596, %v596
        %v599 = vpack.c.b16 %v597, %v597
        %vm602 = vcmask 257152
        %603 = vst.msk [vmem:[%s334] sm:$0xf] %vm602, %v598
        %604 = vst.msk [vmem:[%s334 + $0x4] sm:$0xf] %vm602, %v599
        %605 = vrot.lane.b32.xlu0 %v443, 96
        %v606 = vpop.permute.xlu0 %605
        %607 = vrot.lane.b32.xlu0 %v446, 96
        %v608 = vpop.permute.xlu0 %607
        %v611 = vsel %vm451, %v606, 0.0
        %612 = vadd.xlane.f32.xlu0 %v611
        %v613 = vpop.xlane.xlu0 %612
        %v614 = vsel %vm451, %v608, 0.0
        %615 = vadd.xlane.f32.xlu0 %v614
        %v616 = vpop.xlane.xlu0 %615
        %v617 = vmul.f32 %v613, %v458
        %v618 = vmul.f32 %v616, %v458
        %v619 = vsub.f32 %v443, %v617
        %v620 = vsub.f32 %v446, %v618
        %v621 = vmul.f32 %v619, %v619
        %v622 = vmul.f32 %v620, %v620
        %625 = vrot.lane.b32.xlu0 %v621, 96
        %v626 = vpop.permute.xlu0 %625
        %627 = vrot.lane.b32.xlu0 %v622, 96
        %v628 = vpop.permute.xlu0 %627
        %v631 = vsel %vm451, %v626, 0.0
        %632 = vadd.xlane.f32.xlu0 %v631
        %v633 = vpop.xlane.xlu0 %632
        %v634 = vsel %vm451, %v628, 0.0
        %635 = vadd.xlane.f32.xlu0 %v634
        %v636 = vpop.xlane.xlu0 %635
        %v637 = vmul.f32 %v633, %v458
        %v638 = vmul.f32 %v636, %v458
        %v639 = vadd.f32 %v637, 1e-05
        %v640 = vadd.f32 %v638, 1e-05
        %v641 = vrsqrt.pop %v639
        %v642 = vrsqrt.pop %v640
        %v643 = vmul.f32 %v619, %v641
        %v644 = vmul.f32 %v620, %v642
        %645 = vrot.lane.b32.xlu0 %v483, 32
        %v646 = vpop.permute.xlu0 %645
        %v648 = vmul.f32 %v643, %v646
        %v649 = vmul.f32 %v644, %v646
        %650 = vrot.lane.b32.xlu0 %v491, 32
        %v651 = vpop.permute.xlu0 %650
        %v653 = vadd.f32 %v648, %v651
        %v654 = vadd.f32 %v649, %v651
        %v655 = vmul.f32 %v653, %v653
        %v656 = vmul.f32 %v654, %v654
        %v657 = vmul.f32 %v653, %v655
        %v658 = vmul.f32 %v654, %v656
        %v659 = vmul.f32 %v657, 0.044715
        %v660 = vmul.f32 %v658, 0.044715
        %v661 = vadd.f32 %v653, %v659
        %v662 = vadd.f32 %v654, %v660
        %v663 = vmul.f32 %v661, 0.7978846
        %v664 = vmul.f32 %v662, 0.7978846
        %v665 = vtanh.pop %v663
        %v666 = vtanh.pop %v664
        %v667 = vadd.f32 %v665, 1.0
        %v668 = vadd.f32 %v666, 1.0
        %v669 = vmul.f32 %v667, 0.5
        %v670 = vmul.f32 %v668, 0.5
        %v671 = vmul.f32 %v653, %v669
        %v672 = vmul.f32 %v654, %v670
        %v673 = vpack.c.bf16 %v672, %v671
        %v675 = vunpack.c.l.b16 %v673
        %v676 = vunpack.c.h.b16 %v673
        %v677 = vpack.c.b16 %v675, %v675
        %v678 = vpack.c.b16 %v676, %v676
        %vm681 = vcmask 388352
        %682 = vst.msk [vmem:[%s334] sm:$0xf] %vm681, %v677
        %683 = vst.msk [vmem:[%s334 + $0x4] sm:$0xf] %vm681, %v678
        %684 = vrot.lane.b32.xlu0 %v443, 80
        %v685 = vpop.permute.xlu0 %684
        %686 = vrot.lane.b32.xlu0 %v446, 80
        %v687 = vpop.permute.xlu0 %686
        %v690 = vsel %vm451, %v685, 0.0
        %691 = vadd.xlane.f32.xlu0 %v690
        %v692 = vpop.xlane.xlu0 %691
        %v693 = vsel %vm451, %v687, 0.0
        %694 = vadd.xlane.f32.xlu0 %v693
        %v695 = vpop.xlane.xlu0 %694
        %v696 = vmul.f32 %v692, %v458
        %v697 = vmul.f32 %v695, %v458
        %v698 = vsub.f32 %v443, %v696
        %v699 = vsub.f32 %v446, %v697
        %v700 = vmul.f32 %v698, %v698
        %v701 = vmul.f32 %v699, %v699
        %704 = vrot.lane.b32.xlu0 %v700, 80
        %v705 = vpop.permute.xlu0 %704
        %706 = vrot.lane.b32.xlu0 %v701, 80
        %v707 = vpop.permute.xlu0 %706
        %v710 = vsel %vm451, %v705, 0.0
        %711 = vadd.xlane.f32.xlu0 %v710
        %v712 = vpop.xlane.xlu0 %711
        %v713 = vsel %vm451, %v707, 0.0
        %714 = vadd.xlane.f32.xlu0 %v713
        %v715 = vpop.xlane.xlu0 %714
        %v716 = vmul.f32 %v712, %v458
        %v717 = vmul.f32 %v715, %v458
        %v718 = vadd.f32 %v716, 1e-05
        %v719 = vadd.f32 %v717, 1e-05
        %v720 = vrsqrt.pop %v718
        %v721 = vrsqrt.pop %v719
        %v722 = vmul.f32 %v698, %v720
        %v723 = vmul.f32 %v699, %v721
        %724 = vrot.lane.b32.xlu0 %v483, 48
        %v725 = vpop.permute.xlu0 %724
        %v727 = vmul.f32 %v722, %v725
        %v728 = vmul.f32 %v723, %v725
        %729 = vrot.lane.b32.xlu0 %v491, 48
        %v730 = vpop.permute.xlu0 %729
        %v732 = vadd.f32 %v727, %v730
        %v733 = vadd.f32 %v728, %v730
        %v734 = vmul.f32 %v732, %v732
        %v735 = vmul.f32 %v733, %v733
        %v736 = vmul.f32 %v732, %v734
        %v737 = vmul.f32 %v733, %v735
        %v738 = vmul.f32 %v736, 0.044715
        %v739 = vmul.f32 %v737, 0.044715
        %v740 = vadd.f32 %v732, %v738
        %v741 = vadd.f32 %v733, %v739
        %v742 = vmul.f32 %v740, 0.7978846
        %v743 = vmul.f32 %v741, 0.7978846
        %v744 = vtanh.pop %v742
        %v745 = vtanh.pop %v743
        %v746 = vadd.f32 %v744, 1.0
        %v747 = vadd.f32 %v745, 1.0
        %v748 = vmul.f32 %v746, 0.5
        %v749 = vmul.f32 %v747, 0.5
        %v750 = vmul.f32 %v732, %v748
        %v751 = vmul.f32 %v733, %v749
        %v752 = vpack.c.bf16 %v751, %v750
        %v754 = vunpack.c.l.b16 %v752
        %v755 = vunpack.c.h.b16 %v752
        %v756 = vpack.c.b16 %v754, %v754
        %v757 = vpack.c.b16 %v755, %v755
        %vm760 = vcmask 519552
        %761 = vst.msk [vmem:[%s334] sm:$0xf] %vm760, %v756
        %762 = vst.msk [vmem:[%s334 + $0x4] sm:$0xf] %vm760, %v757
        %s763 = sand.u32 %s165, 1
        %s764 = scalar_lea.sflag [#allocation4], %s763
        %s765 = sand.u32 %s165, 1
        %s766 = smul.addr %s765, 8
        %s767 = scalar_lea.vmem [#allocation13], %s766
        // Predicated region
        $region69: #{vit_lightweight_head_forward.9} parent=43 // pred_check
          %p768 = pneg %p175
        $region70: #{vit_lightweight_head_forward.9} parent=43 // pred_check_branch
          %770 = sbr.rel (%p768) target = $region72
        $region71: #{vit_lightweight_head_forward.9} parent=43 // pred_region
          %s771 = smul.u32 2, %s26
          %s773 = ssub.s32 128, 128
          %774 = vsyncadd %s764, %s773
          %s775 = smul.addr %s771, 64
          %s776 = scalar_lea.hbm %s6, %s775
          %s777 = sshll.u32 %s767, 4
          %s778 = int_to_ptr.vmem [resolvable:$true] %s777
          %783 = dma.vmem_to_hbm [thread:$0]  %s778, 128, %s776, %s764, 64, 64, 4
        $region72: #{vit_lightweight_head_forward.9} parent=43 // pred_fallthru
          _
      $region44: #{vit_lightweight_head_forward.9} parent=5 // pred_fallthru
        _
      %p784 = scmp.le.s32.totalorder 2, %s21
      // Predicated region
      $region73: #{vit_lightweight_head_forward.9} parent=5 // pred_check
        %p785 = pneg %p784
      $region74: #{vit_lightweight_head_forward.9} parent=5 // pred_check_branch
        %787 = sbr.rel (%p785) target = $region76
      $region75: #{vit_lightweight_head_forward.9} parent=5 // pred_region
        %s788 = ssub.s32 %s21, 2
        // Predicated region
        $region77: #{vit_lightweight_head_forward.9} parent=75 // pred_check
          %p789 = pneg %p181
        $region78: #{vit_lightweight_head_forward.9} parent=75 // pred_check_branch
          %791 = sbr.rel (%p789) target = $region80
        $region79: #{vit_lightweight_head_forward.9} parent=75 // pred_region
          %s792 = sand.u32 %s166, 1
          %s793 = scalar_lea.sflag [#allocation4], %s792
          %s794 = sand.u32 %s166, 1
          %s795 = smul.addr %s794, 8
          %s796 = scalar_lea.vmem [#allocation13], %s795
          %797 = dma.done %s793, 128
        $region80: #{vit_lightweight_head_forward.9} parent=75 // pred_fallthru
          _
      $region76: #{vit_lightweight_head_forward.9} parent=5 // pred_fallthru
        _
    $region6: #{vit_lightweight_head_forward.9} parent=1 // loop_footer
      %s25 = sadd.s32 1, %s21
    $region7: #{vit_lightweight_head_forward.9} parent=1 // loop_footer_branch
      %20 = sbr.rel target = $region3
    $region8: #{vit_lightweight_head_forward.9} parent=1 // loop_exit
      _
    %798 = vsyncpa [#allocation3], 1
    %s799 = scalar_lea.sflag [#allocation3], 1
    %800 = vsyncpa %s799, 1
    %801 = vsyncpa [#allocation6], 1
    %802 = vsyncpa [#allocation9], 1
    %803 = vsyncpa [#allocation12], 1
    %804 = vsyncpa [#allocation4], 1
    %s805 = scalar_lea.sflag [#allocation4], 1
    %806 = vsyncpa %s805, 1

// kernel: vit_lightweight_head_forward.7
$region0: #{vit_lightweight_head_forward.7}
  #allocation0 [shape = 'u32[]', space=smem, size = 0x4, offset = 0x4, fixed_abs, tag = 'smem constant byte address 0x4 - core index']
  #allocation1 [shape = 'u32[144,128]{1,0:T(1,128)}', space=vmem, size = 0x12000, scoped, tag = 'internal scratch']
  %s0 = inlined_call_operand.hbm [shape: bf16[2,24,32], index: 0, kind: input, shape index: {}]
  %s1 = inlined_call_operand.hbm [shape: f32[1,32], index: 1, kind: input, shape index: {}]
  %s2 = inlined_call_operand.hbm [shape: f32[1,32], index: 2, kind: input, shape index: {}]
  %s3 = inlined_call_operand.hbm [shape: bf16[32,96], index: 3, kind: input, shape index: {}]
  %s4 = inlined_call_operand.hbm [shape: f32[1,96], index: 4, kind: input, shape index: {}]
  %s5 = inlined_call_operand.hbm [shape: bf16[32,32], index: 5, kind: input, shape index: {}]
  %s6 = inlined_call_operand.hbm [shape: f32[1,32], index: 6, kind: input, shape index: {}]
  %s7 = inlined_call_operand.hbm [shape: f32[1,32], index: 7, kind: input, shape index: {}]
  %s8 = inlined_call_operand.hbm [shape: f32[1,32], index: 8, kind: input, shape index: {}]
  %s9 = inlined_call_operand.hbm [shape: bf16[32,128], index: 9, kind: input, shape index: {}]
  %s10 = inlined_call_operand.hbm [shape: f32[1,128], index: 10, kind: input, shape index: {}]
  %s11 = inlined_call_operand.hbm [shape: bf16[128,32], index: 11, kind: input, shape index: {}]
  %s12 = inlined_call_operand.hbm [shape: f32[1,32], index: 12, kind: input, shape index: {}]
  %s13 = inlined_call_operand.hbm [shape: bf16[2,24,32], index: 13, kind: output, shape index: {}]
  %s14 = sld [smem:[#allocation0]]
  $region137: #{vit_lightweight_head_forward.7} parent=0
    _
  %s16 = ssub.s32 1, %s14
  %s17 = scalar_select 0, %s16, %s14
  $region1: #{vit_lightweight_head_forward.7} parent=0
    #allocation2 [shape = 'u8[12288]{0}', space=vmem, size = 0x3000, scoped, tag = 'input window, operand 0']
    #allocation3 [shape = 's32[2]{0}', space=sflag, size = 0x8, scoped, tag = 'scoped memory for vit_lightweight_head_forward.7']
    #allocation4 [shape = 's32[2]{0}', space=sflag, size = 0x8, scoped, tag = 'scoped memory for vit_lightweight_head_forward.7']
    #allocation5 [shape = 'u8[512]{0}', space=vmem, size = 0x400, scoped, tag = 'input window, operand 1, single buffered']
    #allocation6 [shape = 's32[1]{0}', space=sflag, size = 0x4, scoped, tag = 'scoped memory for vit_lightweight_head_forward.7']
    #allocation7 [shape = 'u8[512]{0}', space=vmem, size = 0x400, scoped, tag = 'input window, operand 2, single buffered']
    #allocation8 [shape = 'u8[8192]{0}', space=vmem, size = 0x2000, scoped, tag = 'input window, operand 3, single buffered']
    #allocation9 [shape = 's32[1]{0}', space=sflag, size = 0x4, scoped, tag = 'scoped memory for vit_lightweight_head_forward.7']
    #allocation10 [shape = 'u8[512]{0}', space=vmem, size = 0x400, scoped, tag = 'input window, operand 4, single buffered']
    #allocation11 [shape = 'u8[8192]{0}', space=vmem, size = 0x2000, scoped, tag = 'input window, operand 5, single buffered']
    #allocation12 [shape = 's32[1]{0}', space=sflag, size = 0x4, scoped, tag = 'scoped memory for vit_lightweight_head_forward.7']
    #allocation13 [shape = 'u8[512]{0}', space=vmem, size = 0x400, scoped, tag = 'input window, operand 6, single buffered']
    #allocation14 [shape = 'u8[512]{0}', space=vmem, size = 0x400, scoped, tag = 'input window, operand 7, single buffered']
    #allocation15 [shape = 's32[1]{0}', space=sflag, size = 0x4, scoped, tag = 'scoped memory for vit_lightweight_head_forward.7']
    #allocation16 [shape = 'u8[512]{0}', space=vmem, size = 0x400, scoped, tag = 'input window, operand 8, single buffered']
    #allocation17 [shape = 'u8[8192]{0}', space=vmem, size = 0x2000, scoped, tag = 'input window, operand 9, single buffered']
    #allocation18 [shape = 's32[1]{0}', space=sflag, size = 0x4, scoped, tag = 'scoped memory for vit_lightweight_head_forward.7']
    #allocation19 [shape = 'u8[512]{0}', space=vmem, size = 0x400, scoped, tag = 'input window, operand 10, single buffered']
    #allocation20 [shape = 'u8[32768]{0}', space=vmem, size = 0x8000, scoped, tag = 'input window, operand 11, single buffered']
    #allocation21 [shape = 's32[1]{0}', space=sflag, size = 0x4, scoped, tag = 'scoped memory for vit_lightweight_head_forward.7']
    #allocation22 [shape = 'u8[512]{0}', space=vmem, size = 0x400, scoped, tag = 'input window, operand 12, single buffered']
    #allocation23 [shape = 'u8[12288]{0}', space=vmem, size = 0x3000, scoped, tag = 'output window, operand 0']
    %18 = vsyncpa [#allocation3], 0
    %s19 = scalar_lea.sflag [#allocation3], 1
    %20 = vsyncpa %s19, 0
    %21 = vsyncpa [#allocation6], 0
    %22 = vsyncpa [#allocation9], 0
    %23 = vsyncpa [#allocation12], 0
    %24 = vsyncpa [#allocation15], 0
    %25 = vsyncpa [#allocation18], 0
    %26 = vsyncpa [#allocation21], 0
    %27 = vsyncpa [#allocation4], 0
    %s28 = scalar_lea.sflag [#allocation4], 1
    %29 = vsyncpa %s28, 0
    loop: start=0, step=1, limit=4
    $region2: #{vit_lightweight_head_forward.7} parent=1 // loop_pre_header
      _
    $region3: #{vit_lightweight_head_forward.7} parent=1 // loop_header
      %s31 = sphi 0, %s35
      %p32 = scmp.ge.s32.totalorder %s31, 4
      %s41 = sphi 0, %s43
      %s44 = sphi 0, %s41
      %s45 = sphi 0, %s44
      %s61 = sphi 0, %s45
      %s65 = sphi 0, %s65
      %s67 = sphi 0, %s65
      %s68 = sphi 0, %s67
      %s82 = sphi 0, %s68
      %s86 = sphi 0, %s86
      %s88 = sphi 0, %s86
      %s89 = sphi 0, %s88
      %s103 = sphi 0, %s89
      %s107 = sphi 0, %s107
      %s109 = sphi 0, %s107
      %s110 = sphi 0, %s109
      %s124 = sphi 0, %s110
      %s128 = sphi 0, %s128
      %s130 = sphi 0, %s128
      %s131 = sphi 0, %s130
      %s145 = sphi 0, %s131
      %s149 = sphi 0, %s149
      %s151 = sphi 0, %s149
      %s152 = sphi 0, %s151
      %s166 = sphi 0, %s152
      %s170 = sphi 0, %s170
      %s172 = sphi 0, %s170
      %s173 = sphi 0, %s172
      %s187 = sphi 0, %s173
      %s191 = sphi 0, %s191
      %s193 = sphi 0, %s191
      %s194 = sphi 0, %s193
      %s208 = sphi 0, %s194
      %s212 = sphi 0, %s212
      %s214 = sphi 0, %s212
      %s215 = sphi 0, %s214
      %s229 = sphi 0, %s215
      %s233 = sphi 0, %s233
      %s235 = sphi 0, %s233
      %s236 = sphi 0, %s235
      %s250 = sphi 0, %s236
      %s254 = sphi 0, %s254
      %s256 = sphi 0, %s254
      %s257 = sphi 0, %s256
      %s271 = sphi 0, %s257
      %s275 = sphi 0, %s275
      %s277 = sphi 0, %s275
      %s278 = sphi 0, %s277
      %s292 = sphi 0, %s278
      %s296 = sphi 0, %s296
      %s298 = sphi 0, %s296
      %s299 = sphi 0, %s298
      %s313 = sphi 0, %s299
      %s319 = sphi 0, %s321
      %s322 = sphi 0, %s319
      %s323 = sphi 0, %s322
      %s339 = sphi 0, %s323
    $region4: #{vit_lightweight_head_forward.7} parent=1 // loop_header_branch
      %34 = sbr.rel (%p32) target = $region8
    $region5: #{vit_lightweight_head_forward.7} parent=1 // loop_body
      %s36 = ssub.s32 %s31, 1
      %s37 = ssub.s32 %s31, 2
      %s38 = sadd.s32 %s31, 1
      %s39 = ssub.s32 %s31, %s38
      %p40 = scmp.eq.s32.totalorder %s39, 0
      %s42 = sadd.s32 %s41, 1
      %s43 = scalar_select %p40, %s41, %s42
      %p46 = pneg %p40
      %p47 = scmp.eq.s32.totalorder %s31, 1
      %p48 = por %p46, %p47
      %p49 = scmp.ne.s32.totalorder %s41, %s44
      %p50 = scmp.eq.s32.totalorder %s31, 0
      %p51 = por %p49, %p50
      %p52 = scmp.ne.s32.totalorder %s41, %s44
      %p53 = scmp.eq.s32.totalorder %s36, 1
      %p54 = por %p52, %p53
      %p55 = scmp.ne.s32.totalorder %s44, %s45
      %p56 = scmp.eq.s32.totalorder %s36, 0
      %p57 = por %p55, %p56
      %p58 = scmp.ne.s32.totalorder %s44, %s45
      %p59 = scmp.eq.s32.totalorder %s37, 1
      %p60 = por %p58, %p59
      %p62 = scmp.ne.s32.totalorder %s45, %s61
      %p63 = scmp.eq.s32.totalorder %s37, 0
      %p64 = por %p62, %p63
      %s66 = sadd.s32 %s65, 1
      %p69 = scmp.eq.s32.totalorder %s31, 1
      %p70 = scmp.ne.s32.totalorder %s65, %s67
      %p71 = scmp.eq.s32.totalorder %s31, 0
      %p72 = por %p70, %p71
      %p73 = scmp.ne.s32.totalorder %s65, %s67
      %p74 = scmp.eq.s32.totalorder %s36, 1
      %p75 = por %p73, %p74
      %p76 = scmp.ne.s32.totalorder %s67, %s68
      %p77 = scmp.eq.s32.totalorder %s36, 0
      %p78 = por %p76, %p77
      %p79 = scmp.ne.s32.totalorder %s67, %s68
      %p80 = scmp.eq.s32.totalorder %s37, 1
      %p81 = por %p79, %p80
      %p83 = scmp.ne.s32.totalorder %s68, %s82
      %p84 = scmp.eq.s32.totalorder %s37, 0
      %p85 = por %p83, %p84
      %s87 = sadd.s32 %s86, 1
      %p90 = scmp.eq.s32.totalorder %s31, 1
      %p91 = scmp.ne.s32.totalorder %s86, %s88
      %p92 = scmp.eq.s32.totalorder %s31, 0
      %p93 = por %p91, %p92
      %p94 = scmp.ne.s32.totalorder %s86, %s88
      %p95 = scmp.eq.s32.totalorder %s36, 1
      %p96 = por %p94, %p95
      %p97 = scmp.ne.s32.totalorder %s88, %s89
      %p98 = scmp.eq.s32.totalorder %s36, 0
      %p99 = por %p97, %p98
      %p100 = scmp.ne.s32.totalorder %s88, %s89
      %p101 = scmp.eq.s32.totalorder %s37, 1
      %p102 = por %p100, %p101
      %p104 = scmp.ne.s32.totalorder %s89, %s103
      %p105 = scmp.eq.s32.totalorder %s37, 0
      %p106 = por %p104, %p105
      %s108 = sadd.s32 %s107, 1
      %p111 = scmp.eq.s32.totalorder %s31, 1
      %p112 = scmp.ne.s32.totalorder %s107, %s109
      %p113 = scmp.eq.s32.totalorder %s31, 0
      %p114 = por %p112, %p113
      %p115 = scmp.ne.s32.totalorder %s107, %s109
      %p116 = scmp.eq.s32.totalorder %s36, 1
      %p117 = por %p115, %p116
      %p118 = scmp.ne.s32.totalorder %s109, %s110
      %p119 = scmp.eq.s32.totalorder %s36, 0
      %p120 = por %p118, %p119
      %p121 = scmp.ne.s32.totalorder %s109, %s110
      %p122 = scmp.eq.s32.totalorder %s37, 1
      %p123 = por %p121, %p122
      %p125 = scmp.ne.s32.totalorder %s110, %s124
      %p126 = scmp.eq.s32.totalorder %s37, 0
      %p127 = por %p125, %p126
      %s129 = sadd.s32 %s128, 1
      %p132 = scmp.eq.s32.totalorder %s31, 1
      %p133 = scmp.ne.s32.totalorder %s128, %s130
      %p134 = scmp.eq.s32.totalorder %s31, 0
      %p135 = por %p133, %p134
      %p136 = scmp.ne.s32.totalorder %s128, %s130
      %p137 = scmp.eq.s32.totalorder %s36, 1
      %p138 = por %p136, %p137
      %p139 = scmp.ne.s32.totalorder %s130, %s131
      %p140 = scmp.eq.s32.totalorder %s36, 0
      %p141 = por %p139, %p140
      %p142 = scmp.ne.s32.totalorder %s130, %s131
      %p143 = scmp.eq.s32.totalorder %s37, 1
      %p144 = por %p142, %p143
      %p146 = scmp.ne.s32.totalorder %s131, %s145
      %p147 = scmp.eq.s32.totalorder %s37, 0
      %p148 = por %p146, %p147
      %s150 = sadd.s32 %s149, 1
      %p153 = scmp.eq.s32.totalorder %s31, 1
      %p154 = scmp.ne.s32.totalorder %s149, %s151
      %p155 = scmp.eq.s32.totalorder %s31, 0
      %p156 = por %p154, %p155
      %p157 = scmp.ne.s32.totalorder %s149, %s151
      %p158 = scmp.eq.s32.totalorder %s36, 1
      %p159 = por %p157, %p158
      %p160 = scmp.ne.s32.totalorder %s151, %s152
      %p161 = scmp.eq.s32.totalorder %s36, 0
      %p162 = por %p160, %p161
      %p163 = scmp.ne.s32.totalorder %s151, %s152
      %p164 = scmp.eq.s32.totalorder %s37, 1
      %p165 = por %p163, %p164
      %p167 = scmp.ne.s32.totalorder %s152, %s166
      %p168 = scmp.eq.s32.totalorder %s37, 0
      %p169 = por %p167, %p168
      %s171 = sadd.s32 %s170, 1
      %p174 = scmp.eq.s32.totalorder %s31, 1
      %p175 = scmp.ne.s32.totalorder %s170, %s172
      %p176 = scmp.eq.s32.totalorder %s31, 0
      %p177 = por %p175, %p176
      %p178 = scmp.ne.s32.totalorder %s170, %s172
      %p179 = scmp.eq.s32.totalorder %s36, 1
      %p180 = por %p178, %p179
      %p181 = scmp.ne.s32.totalorder %s172, %s173
      %p182 = scmp.eq.s32.totalorder %s36, 0
      %p183 = por %p181, %p182
      %p184 = scmp.ne.s32.totalorder %s172, %s173
      %p185 = scmp.eq.s32.totalorder %s37, 1
      %p186 = por %p184, %p185
      %p188 = scmp.ne.s32.totalorder %s173, %s187
      %p189 = scmp.eq.s32.totalorder %s37, 0
      %p190 = por %p188, %p189
      %s192 = sadd.s32 %s191, 1
      %p195 = scmp.eq.s32.totalorder %s31, 1
      %p196 = scmp.ne.s32.totalorder %s191, %s193
      %p197 = scmp.eq.s32.totalorder %s31, 0
      %p198 = por %p196, %p197
      %p199 = scmp.ne.s32.totalorder %s191, %s193
      %p200 = scmp.eq.s32.totalorder %s36, 1
      %p201 = por %p199, %p200
      %p202 = scmp.ne.s32.totalorder %s193, %s194
      %p203 = scmp.eq.s32.totalorder %s36, 0
      %p204 = por %p202, %p203
      %p205 = scmp.ne.s32.totalorder %s193, %s194
      %p206 = scmp.eq.s32.totalorder %s37, 1
      %p207 = por %p205, %p206
      %p209 = scmp.ne.s32.totalorder %s194, %s208
      %p210 = scmp.eq.s32.totalorder %s37, 0
      %p211 = por %p209, %p210
      %s213 = sadd.s32 %s212, 1
      %p216 = scmp.eq.s32.totalorder %s31, 1
      %p217 = scmp.ne.s32.totalorder %s212, %s214
      %p218 = scmp.eq.s32.totalorder %s31, 0
      %p219 = por %p217, %p218
      %p220 = scmp.ne.s32.totalorder %s212, %s214
      %p221 = scmp.eq.s32.totalorder %s36, 1
      %p222 = por %p220, %p221
      %p223 = scmp.ne.s32.totalorder %s214, %s215
      %p224 = scmp.eq.s32.totalorder %s36, 0
      %p225 = por %p223, %p224
      %p226 = scmp.ne.s32.totalorder %s214, %s215
      %p227 = scmp.eq.s32.totalorder %s37, 1
      %p228 = por %p226, %p227
      %p230 = scmp.ne.s32.totalorder %s215, %s229
      %p231 = scmp.eq.s32.totalorder %s37, 0
      %p232 = por %p230, %p231
      %s234 = sadd.s32 %s233, 1
      %p237 = scmp.eq.s32.totalorder %s31, 1
      %p238 = scmp.ne.s32.totalorder %s233, %s235
      %p239 = scmp.eq.s32.totalorder %s31, 0
      %p240 = por %p238, %p239
      %p241 = scmp.ne.s32.totalorder %s233, %s235
      %p242 = scmp.eq.s32.totalorder %s36, 1
      %p243 = por %p241, %p242
      %p244 = scmp.ne.s32.totalorder %s235, %s236
      %p245 = scmp.eq.s32.totalorder %s36, 0
      %p246 = por %p244, %p245
      %p247 = scmp.ne.s32.totalorder %s235, %s236
      %p248 = scmp.eq.s32.totalorder %s37, 1
      %p249 = por %p247, %p248
      %p251 = scmp.ne.s32.totalorder %s236, %s250
      %p252 = scmp.eq.s32.totalorder %s37, 0
      %p253 = por %p251, %p252
      %s255 = sadd.s32 %s254, 1
      %p258 = scmp.eq.s32.totalorder %s31, 1
      %p259 = scmp.ne.s32.totalorder %s254, %s256
      %p260 = scmp.eq.s32.totalorder %s31, 0
      %p261 = por %p259, %p260
      %p262 = scmp.ne.s32.totalorder %s254, %s256
      %p263 = scmp.eq.s32.totalorder %s36, 1
      %p264 = por %p262, %p263
      %p265 = scmp.ne.s32.totalorder %s256, %s257
      %p266 = scmp.eq.s32.totalorder %s36, 0
      %p267 = por %p265, %p266
      %p268 = scmp.ne.s32.totalorder %s256, %s257
      %p269 = scmp.eq.s32.totalorder %s37, 1
      %p270 = por %p268, %p269
      %p272 = scmp.ne.s32.totalorder %s257, %s271
      %p273 = scmp.eq.s32.totalorder %s37, 0
      %p274 = por %p272, %p273
      %s276 = sadd.s32 %s275, 1
      %p279 = scmp.eq.s32.totalorder %s31, 1
      %p280 = scmp.ne.s32.totalorder %s275, %s277
      %p281 = scmp.eq.s32.totalorder %s31, 0
      %p282 = por %p280, %p281
      %p283 = scmp.ne.s32.totalorder %s275, %s277
      %p284 = scmp.eq.s32.totalorder %s36, 1
      %p285 = por %p283, %p284
      %p286 = scmp.ne.s32.totalorder %s277, %s278
      %p287 = scmp.eq.s32.totalorder %s36, 0
      %p288 = por %p286, %p287
      %p289 = scmp.ne.s32.totalorder %s277, %s278
      %p290 = scmp.eq.s32.totalorder %s37, 1
      %p291 = por %p289, %p290
      %p293 = scmp.ne.s32.totalorder %s278, %s292
      %p294 = scmp.eq.s32.totalorder %s37, 0
      %p295 = por %p293, %p294
      %s297 = sadd.s32 %s296, 1
      %p300 = scmp.eq.s32.totalorder %s31, 1
      %p301 = scmp.ne.s32.totalorder %s296, %s298
      %p302 = scmp.eq.s32.totalorder %s31, 0
      %p303 = por %p301, %p302
      %p304 = scmp.ne.s32.totalorder %s296, %s298
      %p305 = scmp.eq.s32.totalorder %s36, 1
      %p306 = por %p304, %p305
      %p307 = scmp.ne.s32.totalorder %s298, %s299
      %p308 = scmp.eq.s32.totalorder %s36, 0
      %p309 = por %p307, %p308
      %p310 = scmp.ne.s32.totalorder %s298, %s299
      %p311 = scmp.eq.s32.totalorder %s37, 1
      %p312 = por %p310, %p311
      %p314 = scmp.ne.s32.totalorder %s299, %s313
      %p315 = scmp.eq.s32.totalorder %s37, 0
      %p316 = por %p314, %p315
      %s317 = ssub.s32 %s31, %s38
      %p318 = scmp.eq.s32.totalorder %s317, 0
      %s320 = sadd.s32 %s319, 1
      %s321 = scalar_select %p318, %s319, %s320
      %p324 = pneg %p318
      %p325 = scmp.eq.s32.totalorder %s31, 1
      %p326 = por %p324, %p325
      %p327 = scmp.ne.s32.totalorder %s319, %s322
      %p328 = scmp.eq.s32.totalorder %s31, 0
      %p329 = por %p327, %p328
      %p330 = scmp.ne.s32.totalorder %s319, %s322
      %p331 = scmp.eq.s32.totalorder %s36, 1
      %p332 = por %p330, %p331
      %p333 = scmp.ne.s32.totalorder %s322, %s323
      %p334 = scmp.eq.s32.totalorder %s36, 0
      %p335 = por %p333, %p334
      %p336 = scmp.ne.s32.totalorder %s322, %s323
      %p337 = scmp.eq.s32.totalorder %s37, 1
      %p338 = por %p336, %p337
      %p340 = scmp.ne.s32.totalorder %s323, %s339
      %p341 = scmp.eq.s32.totalorder %s37, 0
      %p342 = por %p340, %p341
      %p343 = scmp.le.s32.totalorder 1, %s31
      %p344 = scmp.lt.s32.totalorder %s31, 3
      %p345 = pnand %p343, %p344
      %p346 = pneg %p345
      // Predicated region
      $region9: #{vit_lightweight_head_forward.7} parent=5 // pred_check
        _
      $region10: #{vit_lightweight_head_forward.7} parent=5 // pred_check_branch
        %348 = sbr.rel (%p345) target = $region12
      $region11: #{vit_lightweight_head_forward.7} parent=5 // pred_region
        %s349 = ssub.s32 %s31, 1
        // Predicated region
        $region13: #{vit_lightweight_head_forward.7} parent=11 // pred_check
          %p350 = pneg %p78
        $region14: #{vit_lightweight_head_forward.7} parent=11 // pred_check_branch
          %352 = sbr.rel (%p350) target = $region16
        $region15: #{vit_lightweight_head_forward.7} parent=11 // pred_region
          %s354 = ssub.s32 16, 16
          %355 = vsyncadd [#allocation6], %s354
          %s357 = sshll.u32 [#allocation5], 4
          %s358 = int_to_ptr.vmem [resolvable:$true] %s357
          %360 = dma.hbm_to_vmem [thread:$0]  %s1, 16, %s358, [#allocation6]
        $region16: #{vit_lightweight_head_forward.7} parent=11 // pred_fallthru
          _
        // Predicated region
        $region17: #{vit_lightweight_head_forward.7} parent=11 // pred_check
          %p361 = pneg %p99
        $region18: #{vit_lightweight_head_forward.7} parent=11 // pred_check_branch
          %363 = sbr.rel (%p361) target = $region20
        $region19: #{vit_lightweight_head_forward.7} parent=11 // pred_region
          %s365 = ssub.s32 16, 16
          %366 = vsyncadd [#allocation6], %s365
          %s368 = sshll.u32 [#allocation7], 4
          %s369 = int_to_ptr.vmem [resolvable:$true] %s368
          %371 = dma.hbm_to_vmem [thread:$0]  %s2, 16, %s369, [#allocation6]
        $region20: #{vit_lightweight_head_forward.7} parent=11 // pred_fallthru
          _
        // Predicated region
        $region21: #{vit_lightweight_head_forward.7} parent=11 // pred_check
          %p372 = pneg %p120
        $region22: #{vit_lightweight_head_forward.7} parent=11 // pred_check_branch
          %374 = sbr.rel (%p372) target = $region24
        $region23: #{vit_lightweight_head_forward.7} parent=11 // pred_region
          %s376 = ssub.s32 256, 256
          %377 = vsyncadd [#allocation9], %s376
          %s378 = sshll.u32 [#allocation8], 4
          %s379 = int_to_ptr.vmem [resolvable:$true] %s378
          %384 = dma.hbm_to_vmem [thread:$0]  %s3, 256, %s379, [#allocation9], 64, 64, 4
        $region24: #{vit_lightweight_head_forward.7} parent=11 // pred_fallthru
          _
        // Predicated region
        $region25: #{vit_lightweight_head_forward.7} parent=11 // pred_check
          %p385 = pneg %p141
        $region26: #{vit_lightweight_head_forward.7} parent=11 // pred_check_branch
          %387 = sbr.rel (%p385) target = $region28
        $region27: #{vit_lightweight_head_forward.7} parent=11 // pred_region
          %s389 = ssub.s32 16, 16
          %390 = vsyncadd [#allocation9], %s389
          %s392 = sshll.u32 [#allocation10], 4
          %s393 = int_to_ptr.vmem [resolvable:$true] %s392
          %395 = dma.hbm_to_vmem [thread:$0]  %s4, 16, %s393, [#allocation9]
        $region28: #{vit_lightweight_head_forward.7} parent=11 // pred_fallthru
          _
        // Predicated region
        $region29: #{vit_lightweight_head_forward.7} parent=11 // pred_check
          %p396 = pneg %p162
        $region30: #{vit_lightweight_head_forward.7} parent=11 // pred_check_branch
          %398 = sbr.rel (%p396) target = $region32
        $region31: #{vit_lightweight_head_forward.7} parent=11 // pred_region
          %s400 = ssub.s32 256, 256
          %401 = vsyncadd [#allocation12], %s400
          %s402 = sshll.u32 [#allocation11], 4
          %s403 = int_to_ptr.vmem [resolvable:$true] %s402
          %408 = dma.hbm_to_vmem [thread:$0]  %s5, 256, %s403, [#allocation12], 64, 64, 4
        $region32: #{vit_lightweight_head_forward.7} parent=11 // pred_fallthru
          _
        // Predicated region
        $region33: #{vit_lightweight_head_forward.7} parent=11 // pred_check
          %p409 = pneg %p183
        $region34: #{vit_lightweight_head_forward.7} parent=11 // pred_check_branch
          %411 = sbr.rel (%p409) target = $region36
        $region35: #{vit_lightweight_head_forward.7} parent=11 // pred_region
          %s413 = ssub.s32 16, 16
          %414 = vsyncadd [#allocation12], %s413
          %s416 = sshll.u32 [#allocation13], 4
          %s417 = int_to_ptr.vmem [resolvable:$true] %s416
          %419 = dma.hbm_to_vmem [thread:$0]  %s6, 16, %s417, [#allocation12]
        $region36: #{vit_lightweight_head_forward.7} parent=11 // pred_fallthru
          _
        // Predicated region
        $region37: #{vit_lightweight_head_forward.7} parent=11 // pred_check
          %p420 = pneg %p204
        $region38: #{vit_lightweight_head_forward.7} parent=11 // pred_check_branch
          %422 = sbr.rel (%p420) target = $region40
        $region39: #{vit_lightweight_head_forward.7} parent=11 // pred_region
          %s424 = ssub.s32 16, 16
          %425 = vsyncadd [#allocation15], %s424
          %s427 = sshll.u32 [#allocation14], 4
          %s428 = int_to_ptr.vmem [resolvable:$true] %s427
          %430 = dma.hbm_to_vmem [thread:$0]  %s7, 16, %s428, [#allocation15]
        $region40: #{vit_lightweight_head_forward.7} parent=11 // pred_fallthru
          _
        // Predicated region
        $region41: #{vit_lightweight_head_forward.7} parent=11 // pred_check
          %p431 = pneg %p225
        $region42: #{vit_lightweight_head_forward.7} parent=11 // pred_check_branch
          %433 = sbr.rel (%p431) target = $region44
        $region43: #{vit_lightweight_head_forward.7} parent=11 // pred_region
          %s435 = ssub.s32 16, 16
          %436 = vsyncadd [#allocation15], %s435
          %s438 = sshll.u32 [#allocation16], 4
          %s439 = int_to_ptr.vmem [resolvable:$true] %s438
          %441 = dma.hbm_to_vmem [thread:$0]  %s8, 16, %s439, [#allocation15]
        $region44: #{vit_lightweight_head_forward.7} parent=11 // pred_fallthru
          _
        // Predicated region
        $region45: #{vit_lightweight_head_forward.7} parent=11 // pred_check
          %p442 = pneg %p246
        $region46: #{vit_lightweight_head_forward.7} parent=11 // pred_check_branch
          %444 = sbr.rel (%p442) target = $region48
        $region47: #{vit_lightweight_head_forward.7} parent=11 // pred_region
          %s446 = ssub.s32 256, 256
          %447 = vsyncadd [#allocation18], %s446
          %s448 = sshll.u32 [#allocation17], 4
          %s449 = int_to_ptr.vmem [resolvable:$true] %s448
          %454 = dma.hbm_to_vmem [thread:$0]  %s9, 256, %s449, [#allocation18], 64, 64, 4
        $region48: #{vit_lightweight_head_forward.7} parent=11 // pred_fallthru
          _
        // Predicated region
        $region49: #{vit_lightweight_head_forward.7} parent=11 // pred_check
          %p455 = pneg %p267
        $region50: #{vit_lightweight_head_forward.7} parent=11 // pred_check_branch
          %457 = sbr.rel (%p455) target = $region52
        $region51: #{vit_lightweight_head_forward.7} parent=11 // pred_region
          %s459 = ssub.s32 16, 16
          %460 = vsyncadd [#allocation18], %s459
          %s462 = sshll.u32 [#allocation19], 4
          %s463 = int_to_ptr.vmem [resolvable:$true] %s462
          %465 = dma.hbm_to_vmem [thread:$0]  %s10, 16, %s463, [#allocation18]
        $region52: #{vit_lightweight_head_forward.7} parent=11 // pred_fallthru
          _
        // Predicated region
        $region53: #{vit_lightweight_head_forward.7} parent=11 // pred_check
          %p466 = pneg %p288
        $region54: #{vit_lightweight_head_forward.7} parent=11 // pred_check_branch
          %468 = sbr.rel (%p466) target = $region56
        $region55: #{vit_lightweight_head_forward.7} parent=11 // pred_region
          %s470 = ssub.s32 1024, 1024
          %471 = vsyncadd [#allocation21], %s470
          %s472 = sshll.u32 [#allocation20], 4
          %s473 = int_to_ptr.vmem [resolvable:$true] %s472
          %478 = dma.hbm_to_vmem [thread:$0]  %s11, 1024, %s473, [#allocation21], 64, 64, 4
        $region56: #{vit_lightweight_head_forward.7} parent=11 // pred_fallthru
          _
        // Predicated region
        $region57: #{vit_lightweight_head_forward.7} parent=11 // pred_check
          %p479 = pneg %p309
        $region58: #{vit_lightweight_head_forward.7} parent=11 // pred_check_branch
          %481 = sbr.rel (%p479) target = $region60
        $region59: #{vit_lightweight_head_forward.7} parent=11 // pred_region
          %s483 = ssub.s32 16, 16
          %484 = vsyncadd [#allocation21], %s483
          %s486 = sshll.u32 [#allocation22], 4
          %s487 = int_to_ptr.vmem [resolvable:$true] %s486
          %489 = dma.hbm_to_vmem [thread:$0]  %s12, 16, %s487, [#allocation21]
        $region60: #{vit_lightweight_head_forward.7} parent=11 // pred_fallthru
          _
      $region12: #{vit_lightweight_head_forward.7} parent=5 // pred_fallthru
        _
      %p490 = scmp.lt.s32.totalorder %s31, 2
      // Predicated region
      $region61: #{vit_lightweight_head_forward.7} parent=5 // pred_check
        %p491 = pneg %p490
      $region62: #{vit_lightweight_head_forward.7} parent=5 // pred_check_branch
        %493 = sbr.rel (%p491) target = $region64
      $region63: #{vit_lightweight_head_forward.7} parent=5 // pred_region
        // Predicated region
        $region65: #{vit_lightweight_head_forward.7} parent=63 // pred_check
          %p494 = pneg %p51
        $region66: #{vit_lightweight_head_forward.7} parent=63 // pred_check_branch
          %496 = sbr.rel (%p494) target = $region68
        $region67: #{vit_lightweight_head_forward.7} parent=63 // pred_region
          %s497 = sand.u32 %s41, 1
          %s498 = scalar_lea.sflag [#allocation3], %s497
          %s499 = sand.u32 %s41, 1
          %s500 = smul.addr %s499, 12
          %s501 = scalar_lea.vmem [#allocation2], %s500
          %s503 = ssub.s32 192, 192
          %504 = vsyncadd %s498, %s503
          %s505 = smul.addr %s31, 3
          %s506 = smul.addr %s505, 64
          %s507 = scalar_lea.hbm %s0, %s506
          %s508 = sshll.u32 %s501, 4
          %s509 = int_to_ptr.vmem [resolvable:$true] %s508
          %514 = dma.hbm_to_vmem [thread:$0]  %s507, 192, %s509, %s498, 64, 64, 4
        $region68: #{vit_lightweight_head_forward.7} parent=63 // pred_fallthru
          _
      $region64: #{vit_lightweight_head_forward.7} parent=5 // pred_fallthru
        _
      %p515 = scmp.le.s32.totalorder 1, %s31
      %p516 = scmp.lt.s32.totalorder %s31, 3
      %p517 = pnand %p515, %p516
      %p518 = pneg %p517
      // Predicated region
      $region69: #{vit_lightweight_head_forward.7} parent=5 // pred_check
        _
      $region70: #{vit_lightweight_head_forward.7} parent=5 // pred_check_branch
        %520 = sbr.rel (%p517) target = $region72
      $region71: #{vit_lightweight_head_forward.7} parent=5 // pred_region
        %s521 = ssub.s32 %s31, 1
        %s522 = sand.u32 %s44, 1
        %s523 = scalar_lea.sflag [#allocation3], %s522
        %s524 = sand.u32 %s44, 1
        %s525 = smul.addr %s524, 12
        %s526 = scalar_lea.vmem [#allocation2], %s525
        // Predicated region
        $region73: #{vit_lightweight_head_forward.7} parent=71 // pred_check
          %p527 = pneg %p57
        $region74: #{vit_lightweight_head_forward.7} parent=71 // pred_check_branch
          %529 = sbr.rel (%p527) target = $region76
        $region75: #{vit_lightweight_head_forward.7} parent=71 // pred_region
          %530 = dma.done %s523, 192
        $region76: #{vit_lightweight_head_forward.7} parent=71 // pred_fallthru
          _
        // Predicated region
        $region77: #{vit_lightweight_head_forward.7} parent=71 // pred_check
          %p531 = pneg %p78
        $region78: #{vit_lightweight_head_forward.7} parent=71 // pred_check_branch
          %533 = sbr.rel (%p531) target = $region80
        $region79: #{vit_lightweight_head_forward.7} parent=71 // pred_region
          %534 = dma.done [#allocation6], 16
        $region80: #{vit_lightweight_head_forward.7} parent=71 // pred_fallthru
          _
        // Predicated region
        $region81: #{vit_lightweight_head_forward.7} parent=71 // pred_check
          %p535 = pneg %p99
        $region82: #{vit_lightweight_head_forward.7} parent=71 // pred_check_branch
          %537 = sbr.rel (%p535) target = $region84
        $region83: #{vit_lightweight_head_forward.7} parent=71 // pred_region
          %538 = dma.done [#allocation6], 16
        $region84: #{vit_lightweight_head_forward.7} parent=71 // pred_fallthru
          _
        // Predicated region
        $region85: #{vit_lightweight_head_forward.7} parent=71 // pred_check
          %p539 = pneg %p120
        $region86: #{vit_lightweight_head_forward.7} parent=71 // pred_check_branch
          %541 = sbr.rel (%p539) target = $region88
        $region87: #{vit_lightweight_head_forward.7} parent=71 // pred_region
          %542 = dma.done [#allocation9], 256
        $region88: #{vit_lightweight_head_forward.7} parent=71 // pred_fallthru
          _
        // Predicated region
        $region89: #{vit_lightweight_head_forward.7} parent=71 // pred_check
          %p543 = pneg %p141
        $region90: #{vit_lightweight_head_forward.7} parent=71 // pred_check_branch
          %545 = sbr.rel (%p543) target = $region92
        $region91: #{vit_lightweight_head_forward.7} parent=71 // pred_region
          %546 = dma.done [#allocation9], 16
        $region92: #{vit_lightweight_head_forward.7} parent=71 // pred_fallthru
          _
        // Predicated region
        $region93: #{vit_lightweight_head_forward.7} parent=71 // pred_check
          %p547 = pneg %p162
        $region94: #{vit_lightweight_head_forward.7} parent=71 // pred_check_branch
          %549 = sbr.rel (%p547) target = $region96
        $region95: #{vit_lightweight_head_forward.7} parent=71 // pred_region
          %550 = dma.done [#allocation12], 256
        $region96: #{vit_lightweight_head_forward.7} parent=71 // pred_fallthru
          _
        // Predicated region
        $region97: #{vit_lightweight_head_forward.7} parent=71 // pred_check
          %p551 = pneg %p183
        $region98: #{vit_lightweight_head_forward.7} parent=71 // pred_check_branch
          %553 = sbr.rel (%p551) target = $region100
        $region99: #{vit_lightweight_head_forward.7} parent=71 // pred_region
          %554 = dma.done [#allocation12], 16
        $region100: #{vit_lightweight_head_forward.7} parent=71 // pred_fallthru
          _
        // Predicated region
        $region101: #{vit_lightweight_head_forward.7} parent=71 // pred_check
          %p555 = pneg %p204
        $region102: #{vit_lightweight_head_forward.7} parent=71 // pred_check_branch
          %557 = sbr.rel (%p555) target = $region104
        $region103: #{vit_lightweight_head_forward.7} parent=71 // pred_region
          %558 = dma.done [#allocation15], 16
        $region104: #{vit_lightweight_head_forward.7} parent=71 // pred_fallthru
          _
        // Predicated region
        $region105: #{vit_lightweight_head_forward.7} parent=71 // pred_check
          %p559 = pneg %p225
        $region106: #{vit_lightweight_head_forward.7} parent=71 // pred_check_branch
          %561 = sbr.rel (%p559) target = $region108
        $region107: #{vit_lightweight_head_forward.7} parent=71 // pred_region
          %562 = dma.done [#allocation15], 16
        $region108: #{vit_lightweight_head_forward.7} parent=71 // pred_fallthru
          _
        // Predicated region
        $region109: #{vit_lightweight_head_forward.7} parent=71 // pred_check
          %p563 = pneg %p246
        $region110: #{vit_lightweight_head_forward.7} parent=71 // pred_check_branch
          %565 = sbr.rel (%p563) target = $region112
        $region111: #{vit_lightweight_head_forward.7} parent=71 // pred_region
          %566 = dma.done [#allocation18], 256
        $region112: #{vit_lightweight_head_forward.7} parent=71 // pred_fallthru
          _
        // Predicated region
        $region113: #{vit_lightweight_head_forward.7} parent=71 // pred_check
          %p567 = pneg %p267
        $region114: #{vit_lightweight_head_forward.7} parent=71 // pred_check_branch
          %569 = sbr.rel (%p567) target = $region116
        $region115: #{vit_lightweight_head_forward.7} parent=71 // pred_region
          %570 = dma.done [#allocation18], 16
        $region116: #{vit_lightweight_head_forward.7} parent=71 // pred_fallthru
          _
        // Predicated region
        $region117: #{vit_lightweight_head_forward.7} parent=71 // pred_check
          %p571 = pneg %p288
        $region118: #{vit_lightweight_head_forward.7} parent=71 // pred_check_branch
          %573 = sbr.rel (%p571) target = $region120
        $region119: #{vit_lightweight_head_forward.7} parent=71 // pred_region
          %574 = dma.done [#allocation21], 1024
        $region120: #{vit_lightweight_head_forward.7} parent=71 // pred_fallthru
          _
        // Predicated region
        $region121: #{vit_lightweight_head_forward.7} parent=71 // pred_check
          %p575 = pneg %p309
        $region122: #{vit_lightweight_head_forward.7} parent=71 // pred_check_branch
          %577 = sbr.rel (%p575) target = $region124
        $region123: #{vit_lightweight_head_forward.7} parent=71 // pred_region
          %578 = dma.done [#allocation21], 16
        $region124: #{vit_lightweight_head_forward.7} parent=71 // pred_fallthru
          _
        %s579 = sand.u32 %s44, 1
        %s580 = scalar_lea.sflag [#allocation3], %s579
        %s581 = sand.u32 %s44, 1
        %s582 = smul.addr %s581, 12
        %s583 = scalar_lea.vmem [#allocation2], %s582
        %p584 = pneg %p57
        %p585 = pneg %p54
        %p586 = pneg %p78
        %p587 = pneg %p75
        %p588 = pneg %p99
        %p589 = pneg %p96
        %p590 = pneg %p120
        %p591 = pneg %p117
        %p592 = pneg %p141
        %p593 = pneg %p138
        %p594 = pneg %p162
        %p595 = pneg %p159
        %p596 = pneg %p183
        %p597 = pneg %p180
        %p598 = pneg %p204
        %p599 = pneg %p201
        %p600 = pneg %p225
        %p601 = pneg %p222
        %p602 = pneg %p246
        %p603 = pneg %p243
        %p604 = pneg %p267
        %p605 = pneg %p264
        %p606 = pneg %p288
        %p607 = pneg %p285
        %p608 = pneg %p309
        %p609 = pneg %p306
        %p610 = pneg %p335
        %p611 = pneg %p332
        %s612 = sand.u32 %s322, 1
        %s613 = scalar_lea.sflag [#allocation4], %s612
        %s614 = sand.u32 %s322, 1
        %s615 = smul.addr %s614, 12
        %s616 = scalar_lea.vmem [#allocation23], %s615
        %v618 = vld [vmem:[%s526] sm:$0xf]
        %v619 = vld [vmem:[%s526 + $0x4] sm:$0xf]
        %v620 = vld [vmem:[%s526 + $0x8] sm:$0xf]
        %v621 = vunpack.c.l.bf16 %v618
        %v622 = vunpack.c.l.bf16 %v619
        %v623 = vunpack.c.l.bf16 %v620
        %v624 = vld [vmem:[#allocation5] sm:$0x1]
        %v625 = vld [vmem:[#allocation7] sm:$0x1]
        %vm626 = vcmask 261120
        %v627 = vsel %vm626, %v621, 0.0
        %628 = vadd.xlane.f32.xlu0 %v627
        %v629 = vpop.xlane.xlu0 %628
        %v630 = vsel %vm626, %v622, 0.0
        %631 = vadd.xlane.f32.xlu0 %v630
        %v632 = vpop.xlane.xlu0 %631
        %v633 = vsel %vm626, %v623, 0.0
        %634 = vadd.xlane.f32.xlu0 %v633
        %v635 = vpop.xlane.xlu0 %634
        %v636 = vrcp.pop 32.0
        %v637 = vmul.f32 %v629, %v636
        %v638 = vmul.f32 %v632, %v636
        %v639 = vmul.f32 %v635, %v636
        %v640 = vsub.f32 %v621, %v637
        %v641 = vsub.f32 %v622, %v638
        %v642 = vsub.f32 %v623, %v639
        %v643 = vmul.f32 %v640, %v640
        %v644 = vmul.f32 %v641, %v641
        %v645 = vmul.f32 %v642, %v642
        %v646 = vsel %vm626, %v643, 0.0
        %647 = vadd.xlane.f32.xlu0 %v646
        %v648 = vpop.xlane.xlu0 %647
        %v649 = vsel %vm626, %v644, 0.0
        %650 = vadd.xlane.f32.xlu0 %v649
        %v651 = vpop.xlane.xlu0 %650
        %v652 = vsel %vm626, %v645, 0.0
        %653 = vadd.xlane.f32.xlu0 %v652
        %v654 = vpop.xlane.xlu0 %653
        %v655 = vmul.f32 %v648, %v636
        %v656 = vmul.f32 %v651, %v636
        %v657 = vmul.f32 %v654, %v636
        %v658 = vadd.f32 %v655, 1e-06
        %v659 = vadd.f32 %v656, 1e-06
        %v660 = vadd.f32 %v657, 1e-06
        %v661 = vrsqrt.pop %v658
        %v662 = vrsqrt.pop %v659
        %v663 = vrsqrt.pop %v660
        %v664 = vmul.f32 %v640, %v661
        %v665 = vmul.f32 %v641, %v662
        %v666 = vmul.f32 %v642, %v663
        %v668 = vlaneseq
        %v669 = vshrl.u32 %v668, 7
        %v670 = vsub.s32 0, %v669
        %v671 = vrot.slane %v624, %v670
        %v673 = vmul.f32 %v664, %v671
        %v674 = vmul.f32 %v665, %v671
        %v675 = vmul.f32 %v666, %v671
        %v677 = vlaneseq
        %v678 = vshrl.u32 %v677, 7
        %v679 = vsub.s32 0, %v678
        %v680 = vrot.slane %v625, %v679
        %v682 = vadd.f32 %v673, %v680
        %v683 = vadd.f32 %v674, %v680
        %v684 = vadd.f32 %v675, %v680
        %v685 = vld [vmem:[#allocation8] sm:$0xf]
        %v686 = vld [vmem:[#allocation8 + $0x4] sm:$0xf]
        %v687 = vld [vmem:[#allocation8 + $0x8] sm:$0xf]
        %v688 = vld [vmem:[#allocation8 + $0xc] sm:$0xf]
        %v689 = vpack.c.bf16 %v683, %v682
        %v690 = vpack.c.bf16 %v684, %v684
        %v691 = vld [vmem:[#allocation10] sm:$0x1]
        %v693 = vlaneseq
        %v694 = vshrl.u32 %v693, 7
        %v695 = vsub.s32 0, %v694
        %v696 = vrot.slane %v691, %v695
        %v702 = vunpack.c.l.b16 %v685
        %v703 = vunpack.c.l.b16 %v686
        %v704 = vunpack.c.l.b16 %v687
        %v705 = vunpack.c.l.b16 %v688
        %v706 = vpack.c.b16 %v703, %v702
        %v707 = vpack.c.b16 %v705, %v704
        %v711 = vsel %vm626, %v689, 0
        %v714 = vsel %vm626, %v690, 0
        %716 = vmatprep.subr.bf16.mxu0 0
        %717 = vmatpush1.bf16.msra.mxu0 %v706
        %718 = vmatprep.subr.bf16.mxu0 0
        %719 = vmatpush1.bf16.msra.mxu0 %v707
        %720 = vmatprep.subr.bf16.mxu0 0
        %721 = vmatpush1.bf16.msra.mxu0 0
        %722 = vmatprep.subr.bf16.mxu0 0
        %723 = vmatpush1.bf16.msra.mxu0 0
        %724 = vmatprep.subr.bf16.mxu0 0
        %725 = vmatpush1.bf16.msra.mxu0 0
        %726 = vmatprep.subr.bf16.mxu0 0
        %727 = vmatpush1.bf16.msra.mxu0 0
        %728 = vmatprep.subr.bf16.mxu0 0
        %729 = vmatpush1.bf16.msra.mxu0 0
        %730 = vmatprep.subr.bf16.mxu0 0
        %731 = vmatpush1.bf16.msra.mxu0 0
        %732 = vmatprep.subr.bf16.mxu0 0
        %733 = vmatpush1.bf16.msra.mxu0 0
        %734 = vmatprep.subr.bf16.mxu0 0
        %735 = vmatpush1.bf16.msra.mxu0 0
        %736 = vmatprep.subr.bf16.mxu0 0
        %737 = vmatpush1.bf16.msra.mxu0 0
        %738 = vmatprep.subr.bf16.mxu0 0
        %739 = vmatpush1.bf16.msra.mxu0 0
        %740 = vmatprep.subr.bf16.mxu0 0
        %741 = vmatpush1.bf16.msra.mxu0 0
        %742 = vmatprep.subr.bf16.mxu0 0
        %743 = vmatpush1.bf16.msra.mxu0 0
        %744 = vmatprep.subr.bf16.mxu0 0
        %745 = vmatpush1.bf16.msra.mxu0 0
        %746 = vmatprep.subr.bf16.mxu0 0
        %747 = vmatpush1.bf16.msra.mxu0 0
        %748 = vmatprep.mubr.bf16.mxu0 0
        %749 = vmatmul.mubr.bf16.gmra.mrb[0].mxu0 %v711
        %v750 = vpop.f32.mrb[0].mxu0
        %v751 = vadd.f32 %v696, %v750
        %v752 = vpop.f32.mrb[0].mxu0
        %v753 = vpop.f32.mrb[0].mxu0
        %v754 = vadd.f32 %v696, %v753
        %v755 = vpop.f32.mrb[0].mxu0
        %756 = vmatprep.mubr.bf16.mxu0 0
        %757 = vmatmul.mubr.bf16.gmra.mrb[0].mxu0 %v714
        %v758 = vpop.f32.mrb[0].mxu0
        %v759 = vadd.f32 %v696, %v758
        %v760 = vpop.f32.mrb[0].mxu0
        %v761 = vpop.f32.mrb[0].mxu0
        %v762 = vpop.f32.mrb[0].mxu0
        %763 = vdwg.mxu0
        %v764 = vmul.f32 %v751, 0.25
        %v765 = vmul.f32 %v754, 0.25
        %v766 = vmul.f32 %v759, 0.25
        %v767 = vlaneseq
        %v768 = vand.u32 %v767, 127
        %vm769 = vcmp.lt.s32.totalorder %v768, 17
        %v770 = vpack.c.bf16 %v765, %v764
        %v771 = vpack.c.bf16 %v766, %v766
        %v772 = vpack.c.bf16 %v754, %v751
        %v773 = vpack.c.bf16 %v759, %v759
        %776 = vrot.lane.b32.xlu0 %v772, 96
        %v777 = vpop.permute.xlu0 %776
        %778 = vrot.lane.b32.xlu0 %v773, 96
        %v779 = vpop.permute.xlu0 %778
        %vm780 = vcmask 130048
        %v782 = vsel %vm780, %v770, 0
        %v785 = vsel %vm780, %v771, 0
        %v788 = vsel %vm780, %v777, 0
        %v791 = vsel %vm780, %v779, 0
        %793 = vmatprep.subr.bf16.mxu0 0
        %794 = vmatpush1.bf16.xpose.msra.mxu0 %v788
        %795 = vmatprep.subr.bf16.mxu0 0
        %796 = vmatpush1.bf16.xpose.msra.mxu0 %v791
        %797 = vmatprep.subr.bf16.mxu0 0
        %798 = vmatpush1.bf16.xpose.msra.mxu0 0
        %799 = vmatprep.subr.bf16.mxu0 0
        %800 = vmatpush1.bf16.xpose.msra.mxu0 0
        %801 = vmatprep.subr.bf16.mxu0 0
        %802 = vmatpush1.bf16.xpose.msra.mxu0 0
        %803 = vmatprep.subr.bf16.mxu0 0
        %804 = vmatpush1.bf16.xpose.msra.mxu0 0
        %805 = vmatprep.subr.bf16.mxu0 0
        %806 = vmatpush1.bf16.xpose.msra.mxu0 0
        %807 = vmatprep.subr.bf16.mxu0 0
        %808 = vmatpush1.bf16.xpose.msra.mxu0 0
        %809 = vmatprep.subr.bf16.mxu0 0
        %810 = vmatpush1.bf16.xpose.msra.mxu0 0
        %811 = vmatprep.subr.bf16.mxu0 0
        %812 = vmatpush1.bf16.xpose.msra.mxu0 0
        %813 = vmatprep.subr.bf16.mxu0 0
        %814 = vmatpush1.bf16.xpose.msra.mxu0 0
        %815 = vmatprep.subr.bf16.mxu0 0
        %816 = vmatpush1.bf16.xpose.msra.mxu0 0
        %817 = vmatprep.subr.bf16.mxu0 0
        %818 = vmatpush1.bf16.xpose.msra.mxu0 0
        %819 = vmatprep.subr.bf16.mxu0 0
        %820 = vmatpush1.bf16.xpose.msra.mxu0 0
        %821 = vmatprep.subr.bf16.mxu0 0
        %822 = vmatpush1.bf16.xpose.msra.mxu0 0
        %823 = vmatprep.subr.bf16.mxu0 0
        %824 = vmatpush1.bf16.xpose.msra.mxu0 0
        %825 = vmatprep.mubr.bf16.mxu0 0
        %826 = vmatmul.mubr.bf16.gmra.mrb[0].mxu0 %v782
        %v827 = vpop.f32.mrb[0].mxu0
        %v828 = vadd.f32 0.0, %v827
        %v829 = vpop.f32.mrb[0].mxu0
        %v830 = vpop.f32.mrb[0].mxu0
        %v831 = vadd.f32 0.0, %v830
        %v832 = vpop.f32.mrb[0].mxu0
        %833 = vmatprep.mubr.bf16.mxu0 0
        %834 = vmatmul.mubr.bf16.gmra.mrb[0].mxu0 %v785
        %v835 = vpop.f32.mrb[0].mxu0
        %v836 = vadd.f32 0.0, %v835
        %v837 = vpop.f32.mrb[0].mxu0
        %v838 = vpop.f32.mrb[0].mxu0
        %v839 = vpop.f32.mrb[0].mxu0
        %840 = vdwg.mxu0
        %v841 = vsel %vm769, 1, 0
        %vm842 = vcmp.eq.s32.totalorder %v841, 1
        %v843 = vsel %vm842, %v828, -1e+30
        %v844 = vsel %vm842, %v831, -1e+30
        %v845 = vsel %vm842, %v836, -1e+30
        %vm846 = vcmask 195584
        %v847 = vsel %vm846, %v843, -inf
        %848 = vmax.xlane.f32.xlu0 %v847
        %v849 = vpop.xlane.xlu0 %848
        %v850 = vsel %vm846, %v844, -inf
        %851 = vmax.xlane.f32.xlu0 %v850
        %v852 = vpop.xlane.xlu0 %851
        %v853 = vsel %vm846, %v845, -inf
        %854 = vmax.xlane.f32.xlu0 %v853
        %v855 = vpop.xlane.xlu0 %854
        %v856 = vsub.f32 %v843, %v849
        %v857 = vsub.f32 %v844, %v852
        %v858 = vsub.f32 %v845, %v855
        %v859 = vmul.f32 %v856, 1.442695
        %v860 = vpow.pop %v859
        %v861 = vmul.f32 %v857, 1.442695
        %v862 = vpow.pop %v861
        %v863 = vmul.f32 %v858, 1.442695
        %v864 = vpow.pop %v863
        %v865 = vsel %vm846, %v860, 0.0
        %866 = vadd.xlane.f32.xlu0 %v865
        %v867 = vpop.xlane.xlu0 %866
        %v868 = vsel %vm846, %v862, 0.0
        %869 = vadd.xlane.f32.xlu0 %v868
        %v870 = vpop.xlane.xlu0 %869
        %v871 = vsel %vm846, %v864, 0.0
        %872 = vadd.xlane.f32.xlu0 %v871
        %v873 = vpop.xlane.xlu0 %872
        %v874 = vrcp.pop %v867
        %v875 = vrcp.pop %v870
        %v876 = vrcp.pop %v873
        %v877 = vmul.f32 %v860, %v874
        %v878 = vmul.f32 %v862, %v875
        %v879 = vmul.f32 %v864, %v876
        %v880 = vpack.c.bf16 %v878, %v877
        %v881 = vpack.c.bf16 %v879, %v879
        %882 = vrot.lane.b32.xlu0 %v772, 64
        %v883 = vpop.permute.xlu0 %882
        %884 = vrot.lane.b32.xlu0 %v773, 64
        %v885 = vpop.permute.xlu0 %884
        %v888 = vsel %vm846, %v880, 0
        %v891 = vsel %vm846, %v881, 0
        %vm893 = vcmask 1043456
        %v895 = vsel %vm893, %v885, 0
        %897 = vmatprep.subr.bf16.mxu0 0
        %898 = vmatpush1.bf16.msra.mxu0 %v883
        %899 = vmatprep.subr.bf16.mxu0 0
        %900 = vmatpush1.bf16.msra.mxu0 %v895
        %901 = vmatprep.subr.bf16.mxu0 0
        %902 = vmatpush1.bf16.msra.mxu0 0
        %903 = vmatprep.subr.bf16.mxu0 0
        %904 = vmatpush1.bf16.msra.mxu0 0
        %905 = vmatprep.subr.bf16.mxu0 0
        %906 = vmatpush1.bf16.msra.mxu0 0
        %907 = vmatprep.subr.bf16.mxu0 0
        %908 = vmatpush1.bf16.msra.mxu0 0
        %909 = vmatprep.subr.bf16.mxu0 0
        %910 = vmatpush1.bf16.msra.mxu0 0
        %911 = vmatprep.subr.bf16.mxu0 0
        %912 = vmatpush1.bf16.msra.mxu0 0
        %913 = vmatprep.subr.bf16.mxu0 0
        %914 = vmatpush1.bf16.msra.mxu0 0
        %915 = vmatprep.subr.bf16.mxu0 0
        %916 = vmatpush1.bf16.msra.mxu0 0
        %917 = vmatprep.subr.bf16.mxu0 0
        %918 = vmatpush1.bf16.msra.mxu0 0
        %919 = vmatprep.subr.bf16.mxu0 0
        %920 = vmatpush1.bf16.msra.mxu0 0
        %921 = vmatprep.subr.bf16.mxu0 0
        %922 = vmatpush1.bf16.msra.mxu0 0
        %923 = vmatprep.subr.bf16.mxu0 0
        %924 = vmatpush1.bf16.msra.mxu0 0
        %925 = vmatprep.subr.bf16.mxu0 0
        %926 = vmatpush1.bf16.msra.mxu0 0
        %927 = vmatprep.subr.bf16.mxu0 0
        %928 = vmatpush1.bf16.msra.mxu0 0
        %929 = vmatprep.mubr.bf16.mxu0 0
        %930 = vmatmul.mubr.bf16.gmra.mrb[0].mxu0 %v888
        %v931 = vpop.f32.mrb[0].mxu0
        %v932 = vadd.f32 0.0, %v931
        %v933 = vpop.f32.mrb[0].mxu0
        %v934 = vpop.f32.mrb[0].mxu0
        %v935 = vadd.f32 0.0, %v934
        %v936 = vpop.f32.mrb[0].mxu0
        %937 = vmatprep.mubr.bf16.mxu0 0
        %938 = vmatmul.mubr.bf16.gmra.mrb[0].mxu0 %v891
        %v939 = vpop.f32.mrb[0].mxu0
        %v940 = vadd.f32 0.0, %v939
        %v941 = vpop.f32.mrb[0].mxu0
        %v942 = vpop.f32.mrb[0].mxu0
        %v943 = vpop.f32.mrb[0].mxu0
        %944 = vdwg.mxu0
        %947 = vrot.lane.b32.xlu0 %v770, 112
        %v948 = vpop.permute.xlu0 %947
        %949 = vrot.lane.b32.xlu0 %v771, 112
        %v950 = vpop.permute.xlu0 %949
        %951 = vrot.lane.b32.xlu0 %v772, 80
        %v952 = vpop.permute.xlu0 %951
        %953 = vrot.lane.b32.xlu0 %v773, 80
        %v954 = vpop.permute.xlu0 %953
        %v956 = vsel %vm780, %v948, 0
        %v959 = vsel %vm780, %v950, 0
        %v962 = vsel %vm780, %v952, 0
        %v965 = vsel %vm780, %v954, 0
        %967 = vmatprep.subr.bf16.mxu0 0
        %968 = vmatpush1.bf16.xpose.msra.mxu0 %v962
        %969 = vmatprep.subr.bf16.mxu0 0
        %970 = vmatpush1.bf16.xpose.msra.mxu0 %v965
        %971 = vmatprep.subr.bf16.mxu0 0
        %972 = vmatpush1.bf16.xpose.msra.mxu0 0
        %973 = vmatprep.subr.bf16.mxu0 0
        %974 = vmatpush1.bf16.xpose.msra.mxu0 0
        %975 = vmatprep.subr.bf16.mxu0 0
        %976 = vmatpush1.bf16.xpose.msra.mxu0 0
        %977 = vmatprep.subr.bf16.mxu0 0
        %978 = vmatpush1.bf16.xpose.msra.mxu0 0
        %979 = vmatprep.subr.bf16.mxu0 0
        %980 = vmatpush1.bf16.xpose.msra.mxu0 0
        %981 = vmatprep.subr.bf16.mxu0 0
        %982 = vmatpush1.bf16.xpose.msra.mxu0 0
        %983 = vmatprep.subr.bf16.mxu0 0
        %984 = vmatpush1.bf16.xpose.msra.mxu0 0
        %985 = vmatprep.subr.bf16.mxu0 0
        %986 = vmatpush1.bf16.xpose.msra.mxu0 0
        %987 = vmatprep.subr.bf16.mxu0 0
        %988 = vmatpush1.bf16.xpose.msra.mxu0 0
        %989 = vmatprep.subr.bf16.mxu0 0
        %990 = vmatpush1.bf16.xpose.msra.mxu0 0
        %991 = vmatprep.subr.bf16.mxu0 0
        %992 = vmatpush1.bf16.xpose.msra.mxu0 0
        %993 = vmatprep.subr.bf16.mxu0 0
        %994 = vmatpush1.bf16.xpose.msra.mxu0 0
        %995 = vmatprep.subr.bf16.mxu0 0
        %996 = vmatpush1.bf16.xpose.msra.mxu0 0
        %997 = vmatprep.subr.bf16.mxu0 0
        %998 = vmatpush1.bf16.xpose.msra.mxu0 0
        %999 = vmatprep.mubr.bf16.mxu0 0
        %1000 = vmatmul.mubr.bf16.gmra.mrb[0].mxu0 %v956
        %v1001 = vpop.f32.mrb[0].mxu0
        %v1002 = vadd.f32 0.0, %v1001
        %v1003 = vpop.f32.mrb[0].mxu0
        %v1004 = vpop.f32.mrb[0].mxu0
        %v1005 = vadd.f32 0.0, %v1004
        %v1006 = vpop.f32.mrb[0].mxu0
        %1007 = vmatprep.mubr.bf16.mxu0 0
        %1008 = vmatmul.mubr.bf16.gmra.mrb[0].mxu0 %v959
        %v1009 = vpop.f32.mrb[0].mxu0
        %v1010 = vadd.f32 0.0, %v1009
        %v1011 = vpop.f32.mrb[0].mxu0
        %v1012 = vpop.f32.mrb[0].mxu0
        %v1013 = vpop.f32.mrb[0].mxu0
        %1014 = vdwg.mxu0
        %v1015 = vsel %vm842, %v1002, -1e+30
        %v1016 = vsel %vm842, %v1005, -1e+30
        %v1017 = vsel %vm842, %v1010, -1e+30
        %v1018 = vsel %vm846, %v1015, -inf
        %1019 = vmax.xlane.f32.xlu0 %v1018
        %v1020 = vpop.xlane.xlu0 %1019
        %v1021 = vsel %vm846, %v1016, -inf
        %1022 = vmax.xlane.f32.xlu0 %v1021
        %v1023 = vpop.xlane.xlu0 %1022
        %v1024 = vsel %vm846, %v1017, -inf
        %1025 = vmax.xlane.f32.xlu0 %v1024
        %v1026 = vpop.xlane.xlu0 %1025
        %v1027 = vsub.f32 %v1015, %v1020
        %v1028 = vsub.f32 %v1016, %v1023
        %v1029 = vsub.f32 %v1017, %v1026
        %v1030 = vmul.f32 %v1027, 1.442695
        %v1031 = vpow.pop %v1030
        %v1032 = vmul.f32 %v1028, 1.442695
        %v1033 = vpow.pop %v1032
        %v1034 = vmul.f32 %v1029, 1.442695
        %v1035 = vpow.pop %v1034
        %v1036 = vsel %vm846, %v1031, 0.0
        %1037 = vadd.xlane.f32.xlu0 %v1036
        %v1038 = vpop.xlane.xlu0 %1037
        %v1039 = vsel %vm846, %v1033, 0.0
        %1040 = vadd.xlane.f32.xlu0 %v1039
        %v1041 = vpop.xlane.xlu0 %1040
        %v1042 = vsel %vm846, %v1035, 0.0
        %1043 = vadd.xlane.f32.xlu0 %v1042
        %v1044 = vpop.xlane.xlu0 %1043
        %v1045 = vrcp.pop %v1038
        %v1046 = vrcp.pop %v1041
        %v1047 = vrcp.pop %v1044
        %v1048 = vmul.f32 %v1031, %v1045
        %v1049 = vmul.f32 %v1033, %v1046
        %v1050 = vmul.f32 %v1035, %v1047
        %v1051 = vpack.c.bf16 %v1049, %v1048
        %v1052 = vpack.c.bf16 %v1050, %v1050
        %1053 = vrot.lane.b32.xlu0 %v772, 48
        %v1054 = vpop.permute.xlu0 %1053
        %1055 = vrot.lane.b32.xlu0 %v773, 48
        %v1056 = vpop.permute.xlu0 %1055
        %v1059 = vsel %vm846, %v1051, 0
        %v1062 = vsel %vm846, %v1052, 0
        %v1065 = vsel %vm893, %v1056, 0
        %1067 = vmatprep.subr.bf16.mxu0 0
        %1068 = vmatpush1.bf16.msra.mxu0 %v1054
        %1069 = vmatprep.subr.bf16.mxu0 0
        %1070 = vmatpush1.bf16.msra.mxu0 %v1065
        %1071 = vmatprep.subr.bf16.mxu0 0
        %1072 = vmatpush1.bf16.msra.mxu0 0
        %1073 = vmatprep.subr.bf16.mxu0 0
        %1074 = vmatpush1.bf16.msra.mxu0 0
        %1075 = vmatprep.subr.bf16.mxu0 0
        %1076 = vmatpush1.bf16.msra.mxu0 0
        %1077 = vmatprep.subr.bf16.mxu0 0
        %1078 = vmatpush1.bf16.msra.mxu0 0
        %1079 = vmatprep.subr.bf16.mxu0 0
        %1080 = vmatpush1.bf16.msra.mxu0 0
        %1081 = vmatprep.subr.bf16.mxu0 0
        %1082 = vmatpush1.bf16.msra.mxu0 0
        %1083 = vmatprep.subr.bf16.mxu0 0
        %1084 = vmatpush1.bf16.msra.mxu0 0
        %1085 = vmatprep.subr.bf16.mxu0 0
        %1086 = vmatpush1.bf16.msra.mxu0 0
        %1087 = vmatprep.subr.bf16.mxu0 0
        %1088 = vmatpush1.bf16.msra.mxu0 0
        %1089 = vmatprep.subr.bf16.mxu0 0
        %1090 = vmatpush1.bf16.msra.mxu0 0
        %1091 = vmatprep.subr.bf16.mxu0 0
        %1092 = vmatpush1.bf16.msra.mxu0 0
        %1093 = vmatprep.subr.bf16.mxu0 0
        %1094 = vmatpush1.bf16.msra.mxu0 0
        %1095 = vmatprep.subr.bf16.mxu0 0
        %1096 = vmatpush1.bf16.msra.mxu0 0
        %1097 = vmatprep.subr.bf16.mxu0 0
        %1098 = vmatpush1.bf16.msra.mxu0 0
        %1099 = vmatprep.mubr.bf16.mxu0 0
        %1100 = vmatmul.mubr.bf16.gmra.mrb[0].mxu0 %v1059
        %v1101 = vpop.f32.mrb[0].mxu0
        %v1102 = vadd.f32 0.0, %v1101
        %v1103 = vpop.f32.mrb[0].mxu0
        %v1104 = vpop.f32.mrb[0].mxu0
        %v1105 = vadd.f32 0.0, %v1104
        %v1106 = vpop.f32.mrb[0].mxu0
        %1107 = vmatprep.mubr.bf16.mxu0 0
        %1108 = vmatmul.mubr.bf16.gmra.mrb[0].mxu0 %v1062
        %v1109 = vpop.f32.mrb[0].mxu0
        %v1110 = vadd.f32 0.0, %v1109
        %v1111 = vpop.f32.mrb[0].mxu0
        %v1112 = vpop.f32.mrb[0].mxu0
        %v1113 = vpop.f32.mrb[0].mxu0
        %1114 = vdwg.mxu0
        %1118 = vrot.lane.b32.xlu0 %v1102, 16
        %v1119 = vpop.permute.xlu0 %1118
        %1120 = vrot.lane.b32.xlu0 %v1105, 16
        %v1121 = vpop.permute.xlu0 %1120
        %1122 = vrot.lane.b32.xlu0 %v1110, 16
        %v1123 = vpop.permute.xlu0 %1122
        %v1127 = vsel %vm780, %v932, %v1119
        %v1128 = vsel %vm780, %v935, %v1121
        %v1129 = vsel %vm780, %v940, %v1123
        %v1130 = vld [vmem:[#allocation11] sm:$0xf]
        %v1131 = vld [vmem:[#allocation11 + $0x4] sm:$0xf]
        %v1132 = vld [vmem:[#allocation11 + $0x8] sm:$0xf]
        %v1133 = vld [vmem:[#allocation11 + $0xc] sm:$0xf]
        %v1134 = vpack.c.bf16 %v1128, %v1127
        %v1135 = vpack.c.bf16 %v1129, %v1129
        %v1140 = vunpack.c.l.b16 %v1130
        %v1141 = vunpack.c.l.b16 %v1131
        %v1142 = vunpack.c.l.b16 %v1132
        %v1143 = vunpack.c.l.b16 %v1133
        %v1144 = vpack.c.b16 %v1141, %v1140
        %v1145 = vpack.c.b16 %v1143, %v1142
        %v1149 = vsel %vm626, %v1134, 0
        %v1152 = vsel %vm626, %v1135, 0
        %1154 = vmatprep.subr.bf16.mxu0 0
        %1155 = vmatpush1.bf16.msra.mxu0 %v1144
        %1156 = vmatprep.subr.bf16.mxu0 0
        %1157 = vmatpush1.bf16.msra.mxu0 %v1145
        %1158 = vmatprep.subr.bf16.mxu0 0
        %1159 = vmatpush1.bf16.msra.mxu0 0
        %1160 = vmatprep.subr.bf16.mxu0 0
        %1161 = vmatpush1.bf16.msra.mxu0 0
        %1162 = vmatprep.subr.bf16.mxu0 0
        %1163 = vmatpush1.bf16.msra.mxu0 0
        %1164 = vmatprep.subr.bf16.mxu0 0
        %1165 = vmatpush1.bf16.msra.mxu0 0
        %1166 = vmatprep.subr.bf16.mxu0 0
        %1167 = vmatpush1.bf16.msra.mxu0 0
        %1168 = vmatprep.subr.bf16.mxu0 0
        %1169 = vmatpush1.bf16.msra.mxu0 0
        %1170 = vmatprep.subr.bf16.mxu0 0
        %1171 = vmatpush1.bf16.msra.mxu0 0
        %1172 = vmatprep.subr.bf16.mxu0 0
        %1173 = vmatpush1.bf16.msra.mxu0 0
        %1174 = vmatprep.subr.bf16.mxu0 0
        %1175 = vmatpush1.bf16.msra.mxu0 0
        %1176 = vmatprep.subr.bf16.mxu0 0
        %1177 = vmatpush1.bf16.msra.mxu0 0
        %1178 = vmatprep.subr.bf16.mxu0 0
        %1179 = vmatpush1.bf16.msra.mxu0 0
        %1180 = vmatprep.subr.bf16.mxu0 0
        %1181 = vmatpush1.bf16.msra.mxu0 0
        %1182 = vmatprep.subr.bf16.mxu0 0
        %1183 = vmatpush1.bf16.msra.mxu0 0
        %1184 = vmatprep.subr.bf16.mxu0 0
        %1185 = vmatpush1.bf16.msra.mxu0 0
        %1186 = vmatprep.mubr.bf16.mxu0 0
        %1187 = vmatmul.mubr.bf16.gmra.mrb[0].mxu0 %v1149
        %v1188 = vpop.f32.mrb[0].mxu0
        %v1189 = vadd.f32 0.0, %v1188
        %v1190 = vpop.f32.mrb[0].mxu0
        %v1191 = vpop.f32.mrb[0].mxu0
        %v1192 = vadd.f32 0.0, %v1191
        %v1193 = vpop.f32.mrb[0].mxu0
        %1194 = vmatprep.mubr.bf16.mxu0 0
        %1195 = vmatmul.mubr.bf16.gmra.mrb[0].mxu0 %v1152
        %v1196 = vpop.f32.mrb[0].mxu0
        %v1197 = vadd.f32 0.0, %v1196
        %v1198 = vpop.f32.mrb[0].mxu0
        %v1199 = vpop.f32.mrb[0].mxu0
        %v1200 = vpop.f32.mrb[0].mxu0
        %1201 = vdwg.mxu0
        %v1202 = vadd.f32 %v621, %v1189
        %v1203 = vadd.f32 %v622, %v1192
        %v1204 = vadd.f32 %v623, %v1197
        %v1205 = vld [vmem:[#allocation13] sm:$0x1]
        %v1207 = vlaneseq
        %v1208 = vshrl.u32 %v1207, 7
        %v1209 = vsub.s32 0, %v1208
        %v1210 = vrot.slane %v1205, %v1209
        %v1212 = vadd.f32 %v1202, %v1210
        %v1213 = vadd.f32 %v1203, %v1210
        %v1214 = vadd.f32 %v1204, %v1210
        %v1215 = vld [vmem:[#allocation14] sm:$0x1]
        %v1216 = vld [vmem:[#allocation16] sm:$0x1]
        %v1217 = vsel %vm626, %v1212, 0.0
        %1218 = vadd.xlane.f32.xlu0 %v1217
        %v1219 = vpop.xlane.xlu0 %1218
        %v1220 = vsel %vm626, %v1213, 0.0
        %1221 = vadd.xlane.f32.xlu0 %v1220
        %v1222 = vpop.xlane.xlu0 %1221
        %v1223 = vsel %vm626, %v1214, 0.0
        %1224 = vadd.xlane.f32.xlu0 %v1223
        %v1225 = vpop.xlane.xlu0 %1224
        %v1226 = vmul.f32 %v1219, %v636
        %v1227 = vmul.f32 %v1222, %v636
        %v1228 = vmul.f32 %v1225, %v636
        %v1229 = vsub.f32 %v1212, %v1226
        %v1230 = vsub.f32 %v1213, %v1227
        %v1231 = vsub.f32 %v1214, %v1228
        %v1232 = vmul.f32 %v1229, %v1229
        %v1233 = vmul.f32 %v1230, %v1230
        %v1234 = vmul.f32 %v1231, %v1231
        %v1235 = vsel %vm626, %v1232, 0.0
        %1236 = vadd.xlane.f32.xlu0 %v1235
        %v1237 = vpop.xlane.xlu0 %1236
        %v1238 = vsel %vm626, %v1233, 0.0
        %1239 = vadd.xlane.f32.xlu0 %v1238
        %v1240 = vpop.xlane.xlu0 %1239
        %v1241 = vsel %vm626, %v1234, 0.0
        %1242 = vadd.xlane.f32.xlu0 %v1241
        %v1243 = vpop.xlane.xlu0 %1242
        %v1244 = vmul.f32 %v1237, %v636
        %v1245 = vmul.f32 %v1240, %v636
        %v1246 = vmul.f32 %v1243, %v636
        %v1247 = vadd.f32 %v1244, 1e-06
        %v1248 = vadd.f32 %v1245, 1e-06
        %v1249 = vadd.f32 %v1246, 1e-06
        %v1250 = vrsqrt.pop %v1247
        %v1251 = vrsqrt.pop %v1248
        %v1252 = vrsqrt.pop %v1249
        %v1253 = vmul.f32 %v1229, %v1250
        %v1254 = vmul.f32 %v1230, %v1251
        %v1255 = vmul.f32 %v1231, %v1252
        %v1257 = vlaneseq
        %v1258 = vshrl.u32 %v1257, 7
        %v1259 = vsub.s32 0, %v1258
        %v1260 = vrot.slane %v1215, %v1259
        %v1262 = vmul.f32 %v1253, %v1260
        %v1263 = vmul.f32 %v1254, %v1260
        %v1264 = vmul.f32 %v1255, %v1260
        %v1266 = vlaneseq
        %v1267 = vshrl.u32 %v1266, 7
        %v1268 = vsub.s32 0, %v1267
        %v1269 = vrot.slane %v1216, %v1268
        %v1271 = vadd.f32 %v1262, %v1269
        %v1272 = vadd.f32 %v1263, %v1269
        %v1273 = vadd.f32 %v1264, %v1269
        %v1274 = vld [vmem:[#allocation17] sm:$0xf]
        %v1275 = vld [vmem:[#allocation17 + $0x4] sm:$0xf]
        %v1276 = vld [vmem:[#allocation17 + $0x8] sm:$0xf]
        %v1277 = vld [vmem:[#allocation17 + $0xc] sm:$0xf]
        %v1278 = vpack.c.bf16 %v1272, %v1271
        %v1279 = vpack.c.bf16 %v1273, %v1273
        %v1280 = vld [vmem:[#allocation19] sm:$0x1]
        %v1282 = vlaneseq
        %v1283 = vshrl.u32 %v1282, 7
        %v1284 = vsub.s32 0, %v1283
        %v1285 = vrot.slane %v1280, %v1284
        %v1291 = vunpack.c.l.b16 %v1274
        %v1292 = vunpack.c.l.b16 %v1275
        %v1293 = vunpack.c.l.b16 %v1276
        %v1294 = vunpack.c.l.b16 %v1277
        %v1295 = vpack.c.b16 %v1292, %v1291
        %v1296 = vpack.c.b16 %v1294, %v1293
        %v1300 = vsel %vm626, %v1278, 0
        %v1303 = vsel %vm626, %v1279, 0
        %1305 = vmatprep.subr.bf16.mxu0 0
        %1306 = vmatpush1.bf16.msra.mxu0 %v1295
        %1307 = vmatprep.subr.bf16.mxu0 0
        %1308 = vmatpush1.bf16.msra.mxu0 %v1296
        %1309 = vmatprep.subr.bf16.mxu0 0
        %1310 = vmatpush1.bf16.msra.mxu0 0
        %1311 = vmatprep.subr.bf16.mxu0 0
        %1312 = vmatpush1.bf16.msra.mxu0 0
        %1313 = vmatprep.subr.bf16.mxu0 0
        %1314 = vmatpush1.bf16.msra.mxu0 0
        %1315 = vmatprep.subr.bf16.mxu0 0
        %1316 = vmatpush1.bf16.msra.mxu0 0
        %1317 = vmatprep.subr.bf16.mxu0 0
        %1318 = vmatpush1.bf16.msra.mxu0 0
        %1319 = vmatprep.subr.bf16.mxu0 0
        %1320 = vmatpush1.bf16.msra.mxu0 0
        %1321 = vmatprep.subr.bf16.mxu0 0
        %1322 = vmatpush1.bf16.msra.mxu0 0
        %1323 = vmatprep.subr.bf16.mxu0 0
        %1324 = vmatpush1.bf16.msra.mxu0 0
        %1325 = vmatprep.subr.bf16.mxu0 0
        %1326 = vmatpush1.bf16.msra.mxu0 0
        %1327 = vmatprep.subr.bf16.mxu0 0
        %1328 = vmatpush1.bf16.msra.mxu0 0
        %1329 = vmatprep.subr.bf16.mxu0 0
        %1330 = vmatpush1.bf16.msra.mxu0 0
        %1331 = vmatprep.subr.bf16.mxu0 0
        %1332 = vmatpush1.bf16.msra.mxu0 0
        %1333 = vmatprep.subr.bf16.mxu0 0
        %1334 = vmatpush1.bf16.msra.mxu0 0
        %1335 = vmatprep.subr.bf16.mxu0 0
        %1336 = vmatpush1.bf16.msra.mxu0 0
        %1337 = vmatprep.mubr.bf16.mxu0 0
        %1338 = vmatmul.mubr.bf16.gmra.mrb[0].mxu0 %v1300
        %v1339 = vpop.f32.mrb[0].mxu0
        %v1340 = vadd.f32 %v1285, %v1339
        %v1341 = vpop.f32.mrb[0].mxu0
        %v1342 = vpop.f32.mrb[0].mxu0
        %v1343 = vadd.f32 %v1285, %v1342
        %v1344 = vpop.f32.mrb[0].mxu0
        %1345 = vmatprep.mubr.bf16.mxu0 0
        %1346 = vmatmul.mubr.bf16.gmra.mrb[0].mxu0 %v1303
        %v1347 = vpop.f32.mrb[0].mxu0
        %v1348 = vadd.f32 %v1285, %v1347
        %v1349 = vpop.f32.mrb[0].mxu0
        %v1350 = vpop.f32.mrb[0].mxu0
        %v1351 = vpop.f32.mrb[0].mxu0
        %1352 = vdwg.mxu0
        %v1353 = vmul.f32 %v1340, %v1340
        %v1354 = vmul.f32 %v1343, %v1343
        %v1355 = vmul.f32 %v1348, %v1348
        %v1356 = vmul.f32 %v1340, %v1353
        %v1357 = vmul.f32 %v1343, %v1354
        %v1358 = vmul.f32 %v1348, %v1355
        %v1359 = vmul.f32 %v1356, 0.044715
        %v1360 = vmul.f32 %v1357, 0.044715
        %v1361 = vmul.f32 %v1358, 0.044715
        %v1362 = vadd.f32 %v1340, %v1359
        %v1363 = vadd.f32 %v1343, %v1360
        %v1364 = vadd.f32 %v1348, %v1361
        %v1365 = vmul.f32 %v1362, 0.7978846
        %v1366 = vmul.f32 %v1363, 0.7978846
        %v1367 = vmul.f32 %v1364, 0.7978846
        %v1368 = vtanh.pop %v1365
        %v1369 = vtanh.pop %v1366
        %v1370 = vtanh.pop %v1367
        %v1371 = vadd.f32 %v1368, 1.0
        %v1372 = vadd.f32 %v1369, 1.0
        %v1373 = vadd.f32 %v1370, 1.0
        %v1374 = vmul.f32 %v1371, 0.5
        %v1375 = vmul.f32 %v1372, 0.5
        %v1376 = vmul.f32 %v1373, 0.5
        %v1377 = vmul.f32 %v1340, %v1374
        %v1378 = vmul.f32 %v1343, %v1375
        %v1379 = vmul.f32 %v1348, %v1376
        %v1380 = vld [vmem:[#allocation20] sm:$0xf]
        %v1381 = vld [vmem:[#allocation20 + $0x4] sm:$0xf]
        %v1382 = vld [vmem:[#allocation20 + $0x8] sm:$0xf]
        %v1383 = vld [vmem:[#allocation20 + $0xc] sm:$0xf]
        %v1384 = vld [vmem:[#allocation20 + $0x10] sm:$0xf]
        %v1385 = vld [vmem:[#allocation20 + $0x14] sm:$0xf]
        %v1386 = vld [vmem:[#allocation20 + $0x18] sm:$0xf]
        %v1387 = vld [vmem:[#allocation20 + $0x1c] sm:$0xf]
        %v1388 = vld [vmem:[#allocation20 + $0x20] sm:$0xf]
        %v1389 = vld [vmem:[#allocation20 + $0x24] sm:$0xf]
        %v1390 = vld [vmem:[#allocation20 + $0x28] sm:$0xf]
        %v1391 = vld [vmem:[#allocation20 + $0x2c] sm:$0xf]
        %v1392 = vld [vmem:[#allocation20 + $0x30] sm:$0xf]
        %v1393 = vld [vmem:[#allocation20 + $0x34] sm:$0xf]
        %v1394 = vld [vmem:[#allocation20 + $0x38] sm:$0xf]
        %v1395 = vld [vmem:[#allocation20 + $0x3c] sm:$0xf]
        %v1396 = vpack.c.bf16 %v1378, %v1377
        %v1397 = vpack.c.bf16 %v1379, %v1379
        %v1398 = vld [vmem:[#allocation22] sm:$0x1]
        %v1400 = vlaneseq
        %v1401 = vshrl.u32 %v1400, 7
        %v1402 = vsub.s32 0, %v1401
        %v1403 = vrot.slane %v1398, %v1402
        %v1421 = vunpack.c.l.b16 %v1380
        %v1422 = vunpack.c.l.b16 %v1381
        %v1423 = vunpack.c.l.b16 %v1382
        %v1424 = vunpack.c.l.b16 %v1383
        %v1425 = vunpack.c.l.b16 %v1384
        %v1426 = vunpack.c.l.b16 %v1385
        %v1427 = vunpack.c.l.b16 %v1386
        %v1428 = vunpack.c.l.b16 %v1387
        %v1429 = vunpack.c.l.b16 %v1388
        %v1430 = vunpack.c.l.b16 %v1389
        %v1431 = vunpack.c.l.b16 %v1390
        %v1432 = vunpack.c.l.b16 %v1391
        %v1433 = vunpack.c.l.b16 %v1392
        %v1434 = vunpack.c.l.b16 %v1393
        %v1435 = vunpack.c.l.b16 %v1394
        %v1436 = vunpack.c.l.b16 %v1395
        %v1437 = vpack.c.b16 %v1422, %v1421
        %v1438 = vpack.c.b16 %v1424, %v1423
        %v1439 = vpack.c.b16 %v1426, %v1425
        %v1440 = vpack.c.b16 %v1428, %v1427
        %v1441 = vpack.c.b16 %v1430, %v1429
        %v1442 = vpack.c.b16 %v1432, %v1431
        %v1443 = vpack.c.b16 %v1434, %v1433
        %v1444 = vpack.c.b16 %v1436, %v1435
        %1453 = vmatprep.subr.bf16.mxu0 0
        %1454 = vmatpush1.bf16.msra.mxu0 %v1437
        %1455 = vmatprep.subr.bf16.mxu0 0
        %1456 = vmatpush1.bf16.msra.mxu0 %v1438
        %1457 = vmatprep.subr.bf16.mxu0 0
        %1458 = vmatpush1.bf16.msra.mxu0 %v1439
        %1459 = vmatprep.subr.bf16.mxu0 0
        %1460 = vmatpush1.bf16.msra.mxu0 %v1440
        %1461 = vmatprep.subr.bf16.mxu0 0
        %1462 = vmatpush1.bf16.msra.mxu0 %v1441
        %1463 = vmatprep.subr.bf16.mxu0 0
        %1464 = vmatpush1.bf16.msra.mxu0 %v1442
        %1465 = vmatprep.subr.bf16.mxu0 0
        %1466 = vmatpush1.bf16.msra.mxu0 %v1443
        %1467 = vmatprep.subr.bf16.mxu0 0
        %1468 = vmatpush1.bf16.msra.mxu0 %v1444
        %1469 = vmatprep.subr.bf16.mxu0 0
        %1470 = vmatpush1.bf16.msra.mxu0 0
        %1471 = vmatprep.subr.bf16.mxu0 0
        %1472 = vmatpush1.bf16.msra.mxu0 0
        %1473 = vmatprep.subr.bf16.mxu0 0
        %1474 = vmatpush1.bf16.msra.mxu0 0
        %1475 = vmatprep.subr.bf16.mxu0 0
        %1476 = vmatpush1.bf16.msra.mxu0 0
        %1477 = vmatprep.subr.bf16.mxu0 0
        %1478 = vmatpush1.bf16.msra.mxu0 0
        %1479 = vmatprep.subr.bf16.mxu0 0
        %1480 = vmatpush1.bf16.msra.mxu0 0
        %1481 = vmatprep.subr.bf16.mxu0 0
        %1482 = vmatpush1.bf16.msra.mxu0 0
        %1483 = vmatprep.subr.bf16.mxu0 0
        %1484 = vmatpush1.bf16.msra.mxu0 0
        %1485 = vmatprep.mubr.bf16.mxu0 0
        %1486 = vmatmul.mubr.bf16.gmra.mrb[0].mxu0 %v1396
        %v1487 = vpop.f32.mrb[0].mxu0
        %v1488 = vadd.f32 %v1403, %v1487
        %v1489 = vpop.f32.mrb[0].mxu0
        %v1490 = vpop.f32.mrb[0].mxu0
        %v1491 = vadd.f32 %v1403, %v1490
        %v1492 = vpop.f32.mrb[0].mxu0
        %1493 = vmatprep.mubr.bf16.mxu0 0
        %1494 = vmatmul.mubr.bf16.gmra.mrb[0].mxu0 %v1397
        %v1495 = vpop.f32.mrb[0].mxu0
        %v1496 = vadd.f32 %v1403, %v1495
        %v1497 = vpop.f32.mrb[0].mxu0
        %v1498 = vpop.f32.mrb[0].mxu0
        %v1499 = vpop.f32.mrb[0].mxu0
        %1500 = vdwg.mxu0
        %v1501 = vadd.f32 %v1212, %v1488
        %v1502 = vadd.f32 %v1213, %v1491
        %v1503 = vadd.f32 %v1214, %v1496
        %v1504 = vpack.c.bf16 %v1502, %v1501
        %v1505 = vpack.c.bf16 %v1503, %v1503
        %v1508 = vunpack.c.l.b16 %v1504
        %v1509 = vunpack.c.h.b16 %v1504
        %v1510 = vunpack.c.l.b16 %v1505
        %v1511 = vpack.c.b16 %v1508, %v1508
        %v1512 = vpack.c.b16 %v1509, %v1509
        %v1513 = vpack.c.b16 %v1510, %v1510
        %vm1517 = vcmask 257024
        %1518 = vst.msk [vmem:[%s616] sm:$0xf] %vm1517, %v1511
        %1519 = vst.msk [vmem:[%s616 + $0x4] sm:$0xf] %vm1517, %v1512
        %1520 = vst.msk [vmem:[%s616 + $0x8] sm:$0xf] %vm1517, %v1513
        %s1521 = sand.u32 %s322, 1
        %s1522 = scalar_lea.sflag [#allocation4], %s1521
        %s1523 = sand.u32 %s322, 1
        %s1524 = smul.addr %s1523, 12
        %s1525 = scalar_lea.vmem [#allocation23], %s1524
        // Predicated region
        $region125: #{vit_lightweight_head_forward.7} parent=71 // pred_check
          %p1526 = pneg %p332
        $region126: #{vit_lightweight_head_forward.7} parent=71 // pred_check_branch
          %1528 = sbr.rel (%p1526) target = $region128
        $region127: #{vit_lightweight_head_forward.7} parent=71 // pred_region
          %s1530 = ssub.s32 192, 192
          %1531 = vsyncadd %s1522, %s1530
          %s1532 = smul.addr %s36, 3
          %s1533 = smul.addr %s1532, 64
          %s1534 = scalar_lea.hbm %s13, %s1533
          %s1535 = sshll.u32 %s1525, 4
          %s1536 = int_to_ptr.vmem [resolvable:$true] %s1535
          %1541 = dma.vmem_to_hbm [thread:$0]  %s1536, 192, %s1534, %s1522, 64, 64, 4
        $region128: #{vit_lightweight_head_forward.7} parent=71 // pred_fallthru
          _
      $region72: #{vit_lightweight_head_forward.7} parent=5 // pred_fallthru
        _
      %p1542 = scmp.le.s32.totalorder 2, %s31
      // Predicated region
      $region129: #{vit_lightweight_head_forward.7} parent=5 // pred_check
        %p1543 = pneg %p1542
      $region130: #{vit_lightweight_head_forward.7} parent=5 // pred_check_branch
        %1545 = sbr.rel (%p1543) target = $region132
      $region131: #{vit_lightweight_head_forward.7} parent=5 // pred_region
        %s1546 = ssub.s32 %s31, 2
        // Predicated region
        $region133: #{vit_lightweight_head_forward.7} parent=131 // pred_check
          %p1547 = pneg %p338
        $region134: #{vit_lightweight_head_forward.7} parent=131 // pred_check_branch
          %1549 = sbr.rel (%p1547) target = $region136
        $region135: #{vit_lightweight_head_forward.7} parent=131 // pred_region
          %s1550 = sand.u32 %s323, 1
          %s1551 = scalar_lea.sflag [#allocation4], %s1550
          %s1552 = sand.u32 %s323, 1
          %s1553 = smul.addr %s1552, 12
          %s1554 = scalar_lea.vmem [#allocation23], %s1553
          %1555 = dma.done %s1551, 192
        $region136: #{vit_lightweight_head_forward.7} parent=131 // pred_fallthru
          _
      $region132: #{vit_lightweight_head_forward.7} parent=5 // pred_fallthru
        _
    $region6: #{vit_lightweight_head_forward.7} parent=1 // loop_footer
      %s35 = sadd.s32 1, %s31
    $region7: #{vit_lightweight_head_forward.7} parent=1 // loop_footer_branch
      %30 = sbr.rel target = $region3
    $region8: #{vit_lightweight_head_forward.7} parent=1 // loop_exit
      _
    %1556 = vsyncpa [#allocation3], 1
    %s1557 = scalar_lea.sflag [#allocation3], 1
    %1558 = vsyncpa %s1557, 1
    %1559 = vsyncpa [#allocation6], 1
    %1560 = vsyncpa [#allocation9], 1
    %1561 = vsyncpa [#allocation12], 1
    %1562 = vsyncpa [#allocation15], 1
    %1563 = vsyncpa [#allocation18], 1
    %1564 = vsyncpa [#allocation21], 1
    %1565 = vsyncpa [#allocation4], 1
    %s1566 = scalar_lea.sflag [#allocation4], 1
    %1567 = vsyncpa %s1566, 1

// kernel: vit_lightweight_head_forward.10
$region0: #{vit_lightweight_head_forward.10}
  #allocation0 [shape = 'u32[]', space=smem, size = 0x4, offset = 0x4, fixed_abs, tag = 'smem constant byte address 0x4 - core index']
  #allocation1 [shape = 'u32[144,128]{1,0:T(1,128)}', space=vmem, size = 0x12000, scoped, tag = 'internal scratch']
  %s0 = inlined_call_operand.hbm [shape: bf16[32,64], index: 0, kind: input, shape index: {}]
  %s1 = inlined_call_operand.hbm [shape: bf16[16,32], index: 1, kind: input, shape index: {}]
  %s2 = inlined_call_operand.hbm [shape: f32[1,8], index: 2, kind: input, shape index: {}]
  %s3 = inlined_call_operand.hbm [shape: f32[1,8], index: 3, kind: input, shape index: {}]
  %s4 = inlined_call_operand.hbm [shape: bf16[32,128], index: 4, kind: output, shape index: {}]
  %s5 = sld [smem:[#allocation0]]
  $region65: #{vit_lightweight_head_forward.10} parent=0
    _
  %s7 = ssub.s32 1, %s5
  %s8 = scalar_select 0, %s7, %s5
  $region1: #{vit_lightweight_head_forward.10} parent=0
    #allocation2 [shape = 'u8[8192]{0}', space=vmem, size = 0x2000, scoped, tag = 'input window, operand 0']
    #allocation3 [shape = 's32[2]{0}', space=sflag, size = 0x8, scoped, tag = 'scoped memory for vit_lightweight_head_forward.10']
    #allocation4 [shape = 's32[2]{0}', space=sflag, size = 0x8, scoped, tag = 'scoped memory for vit_lightweight_head_forward.10']
    #allocation5 [shape = 'u8[4096]{0}', space=vmem, size = 0x1000, scoped, tag = 'input window, operand 1, single buffered']
    #allocation6 [shape = 's32[1]{0}', space=sflag, size = 0x4, scoped, tag = 'scoped memory for vit_lightweight_head_forward.10']
    #allocation7 [shape = 'u8[512]{0}', space=vmem, size = 0x400, scoped, tag = 'input window, operand 2, single buffered']
    #allocation8 [shape = 'u8[512]{0}', space=vmem, size = 0x400, scoped, tag = 'input window, operand 3, single buffered']
    #allocation9 [shape = 's32[1]{0}', space=sflag, size = 0x4, scoped, tag = 'scoped memory for vit_lightweight_head_forward.10']
    #allocation10 [shape = 'u8[8192]{0}', space=vmem, size = 0x2000, scoped, tag = 'output window, operand 0']
    %9 = vsyncpa [#allocation3], 0
    %s10 = scalar_lea.sflag [#allocation3], 1
    %11 = vsyncpa %s10, 0
    %12 = vsyncpa [#allocation6], 0
    %13 = vsyncpa [#allocation9], 0
    %14 = vsyncpa [#allocation4], 0
    %s15 = scalar_lea.sflag [#allocation4], 1
    %16 = vsyncpa %s15, 0
    loop: start=0, step=1, limit=4
    $region2: #{vit_lightweight_head_forward.10} parent=1 // loop_pre_header
      _
    $region3: #{vit_lightweight_head_forward.10} parent=1 // loop_header
      %s18 = sphi 0, %s22
      %p19 = scmp.ge.s32.totalorder %s18, 4
      %s28 = sphi 0, %s30
      %s31 = sphi 0, %s28
      %s32 = sphi 0, %s31
      %s48 = sphi 0, %s32
      %s52 = sphi 0, %s52
      %s54 = sphi 0, %s52
      %s55 = sphi 0, %s54
      %s69 = sphi 0, %s55
      %s73 = sphi 0, %s73
      %s75 = sphi 0, %s73
      %s76 = sphi 0, %s75
      %s90 = sphi 0, %s76
      %s94 = sphi 0, %s94
      %s96 = sphi 0, %s94
      %s97 = sphi 0, %s96
      %s111 = sphi 0, %s97
      %s117 = sphi 0, %s119
      %s120 = sphi 0, %s117
      %s121 = sphi 0, %s120
      %s137 = sphi 0, %s121
    $region4: #{vit_lightweight_head_forward.10} parent=1 // loop_header_branch
      %21 = sbr.rel (%p19) target = $region8
    $region5: #{vit_lightweight_head_forward.10} parent=1 // loop_body
      %s23 = ssub.s32 %s18, 1
      %s24 = ssub.s32 %s18, 2
      %s25 = sadd.s32 %s18, 1
      %s26 = ssub.s32 %s18, %s25
      %p27 = scmp.eq.s32.totalorder %s26, 0
      %s29 = sadd.s32 %s28, 1
      %s30 = scalar_select %p27, %s28, %s29
      %p33 = pneg %p27
      %p34 = scmp.eq.s32.totalorder %s18, 1
      %p35 = por %p33, %p34
      %p36 = scmp.ne.s32.totalorder %s28, %s31
      %p37 = scmp.eq.s32.totalorder %s18, 0
      %p38 = por %p36, %p37
      %p39 = scmp.ne.s32.totalorder %s28, %s31
      %p40 = scmp.eq.s32.totalorder %s23, 1
      %p41 = por %p39, %p40
      %p42 = scmp.ne.s32.totalorder %s31, %s32
      %p43 = scmp.eq.s32.totalorder %s23, 0
      %p44 = por %p42, %p43
      %p45 = scmp.ne.s32.totalorder %s31, %s32
      %p46 = scmp.eq.s32.totalorder %s24, 1
      %p47 = por %p45, %p46
      %p49 = scmp.ne.s32.totalorder %s32, %s48
      %p50 = scmp.eq.s32.totalorder %s24, 0
      %p51 = por %p49, %p50
      %s53 = sadd.s32 %s52, 1
      %p56 = scmp.eq.s32.totalorder %s18, 1
      %p57 = scmp.ne.s32.totalorder %s52, %s54
      %p58 = scmp.eq.s32.totalorder %s18, 0
      %p59 = por %p57, %p58
      %p60 = scmp.ne.s32.totalorder %s52, %s54
      %p61 = scmp.eq.s32.totalorder %s23, 1
      %p62 = por %p60, %p61
      %p63 = scmp.ne.s32.totalorder %s54, %s55
      %p64 = scmp.eq.s32.totalorder %s23, 0
      %p65 = por %p63, %p64
      %p66 = scmp.ne.s32.totalorder %s54, %s55
      %p67 = scmp.eq.s32.totalorder %s24, 1
      %p68 = por %p66, %p67
      %p70 = scmp.ne.s32.totalorder %s55, %s69
      %p71 = scmp.eq.s32.totalorder %s24, 0
      %p72 = por %p70, %p71
      %s74 = sadd.s32 %s73, 1
      %p77 = scmp.eq.s32.totalorder %s18, 1
      %p78 = scmp.ne.s32.totalorder %s73, %s75
      %p79 = scmp.eq.s32.totalorder %s18, 0
      %p80 = por %p78, %p79
      %p81 = scmp.ne.s32.totalorder %s73, %s75
      %p82 = scmp.eq.s32.totalorder %s23, 1
      %p83 = por %p81, %p82
      %p84 = scmp.ne.s32.totalorder %s75, %s76
      %p85 = scmp.eq.s32.totalorder %s23, 0
      %p86 = por %p84, %p85
      %p87 = scmp.ne.s32.totalorder %s75, %s76
      %p88 = scmp.eq.s32.totalorder %s24, 1
      %p89 = por %p87, %p88
      %p91 = scmp.ne.s32.totalorder %s76, %s90
      %p92 = scmp.eq.s32.totalorder %s24, 0
      %p93 = por %p91, %p92
      %s95 = sadd.s32 %s94, 1
      %p98 = scmp.eq.s32.totalorder %s18, 1
      %p99 = scmp.ne.s32.totalorder %s94, %s96
      %p100 = scmp.eq.s32.totalorder %s18, 0
      %p101 = por %p99, %p100
      %p102 = scmp.ne.s32.totalorder %s94, %s96
      %p103 = scmp.eq.s32.totalorder %s23, 1
      %p104 = por %p102, %p103
      %p105 = scmp.ne.s32.totalorder %s96, %s97
      %p106 = scmp.eq.s32.totalorder %s23, 0
      %p107 = por %p105, %p106
      %p108 = scmp.ne.s32.totalorder %s96, %s97
      %p109 = scmp.eq.s32.totalorder %s24, 1
      %p110 = por %p108, %p109
      %p112 = scmp.ne.s32.totalorder %s97, %s111
      %p113 = scmp.eq.s32.totalorder %s24, 0
      %p114 = por %p112, %p113
      %s115 = ssub.s32 %s18, %s25
      %p116 = scmp.eq.s32.totalorder %s115, 0
      %s118 = sadd.s32 %s117, 1
      %s119 = scalar_select %p116, %s117, %s118
      %p122 = pneg %p116
      %p123 = scmp.eq.s32.totalorder %s18, 1
      %p124 = por %p122, %p123
      %p125 = scmp.ne.s32.totalorder %s117, %s120
      %p126 = scmp.eq.s32.totalorder %s18, 0
      %p127 = por %p125, %p126
      %p128 = scmp.ne.s32.totalorder %s117, %s120
      %p129 = scmp.eq.s32.totalorder %s23, 1
      %p130 = por %p128, %p129
      %p131 = scmp.ne.s32.totalorder %s120, %s121
      %p132 = scmp.eq.s32.totalorder %s23, 0
      %p133 = por %p131, %p132
      %p134 = scmp.ne.s32.totalorder %s120, %s121
      %p135 = scmp.eq.s32.totalorder %s24, 1
      %p136 = por %p134, %p135
      %p138 = scmp.ne.s32.totalorder %s121, %s137
      %p139 = scmp.eq.s32.totalorder %s24, 0
      %p140 = por %p138, %p139
      %p141 = scmp.le.s32.totalorder 1, %s18
      %p142 = scmp.lt.s32.totalorder %s18, 3
      %p143 = pnand %p141, %p142
      %p144 = pneg %p143
      // Predicated region
      $region9: #{vit_lightweight_head_forward.10} parent=5 // pred_check
        _
      $region10: #{vit_lightweight_head_forward.10} parent=5 // pred_check_branch
        %146 = sbr.rel (%p143) target = $region12
      $region11: #{vit_lightweight_head_forward.10} parent=5 // pred_region
        %s147 = ssub.s32 %s18, 1
        // Predicated region
        $region13: #{vit_lightweight_head_forward.10} parent=11 // pred_check
          %p148 = pneg %p65
        $region14: #{vit_lightweight_head_forward.10} parent=11 // pred_check_branch
          %150 = sbr.rel (%p148) target = $region16
        $region15: #{vit_lightweight_head_forward.10} parent=11 // pred_region
          %s152 = ssub.s32 128, 128
          %153 = vsyncadd [#allocation6], %s152
          %s154 = sshll.u32 [#allocation5], 4
          %s155 = int_to_ptr.vmem [resolvable:$true] %s154
          %160 = dma.hbm_to_vmem [thread:$0]  %s1, 128, %s155, [#allocation6], 64, 64, 4
        $region16: #{vit_lightweight_head_forward.10} parent=11 // pred_fallthru
          _
        // Predicated region
        $region17: #{vit_lightweight_head_forward.10} parent=11 // pred_check
          %p161 = pneg %p86
        $region18: #{vit_lightweight_head_forward.10} parent=11 // pred_check_branch
          %163 = sbr.rel (%p161) target = $region20
        $region19: #{vit_lightweight_head_forward.10} parent=11 // pred_region
          %s165 = ssub.s32 16, 16
          %166 = vsyncadd [#allocation6], %s165
          %s168 = sshll.u32 [#allocation7], 4
          %s169 = int_to_ptr.vmem [resolvable:$true] %s168
          %171 = dma.hbm_to_vmem [thread:$0]  %s2, 16, %s169, [#allocation6]
        $region20: #{vit_lightweight_head_forward.10} parent=11 // pred_fallthru
          _
        // Predicated region
        $region21: #{vit_lightweight_head_forward.10} parent=11 // pred_check
          %p172 = pneg %p107
        $region22: #{vit_lightweight_head_forward.10} parent=11 // pred_check_branch
          %174 = sbr.rel (%p172) target = $region24
        $region23: #{vit_lightweight_head_forward.10} parent=11 // pred_region
          %s176 = ssub.s32 16, 16
          %177 = vsyncadd [#allocation9], %s176
          %s179 = sshll.u32 [#allocation8], 4
          %s180 = int_to_ptr.vmem [resolvable:$true] %s179
          %182 = dma.hbm_to_vmem [thread:$0]  %s3, 16, %s180, [#allocation9]
        $region24: #{vit_lightweight_head_forward.10} parent=11 // pred_fallthru
          _
      $region12: #{vit_lightweight_head_forward.10} parent=5 // pred_fallthru
        _
      %p183 = scmp.lt.s32.totalorder %s18, 2
      // Predicated region
      $region25: #{vit_lightweight_head_forward.10} parent=5 // pred_check
        %p184 = pneg %p183
      $region26: #{vit_lightweight_head_forward.10} parent=5 // pred_check_branch
        %186 = sbr.rel (%p184) target = $region28
      $region27: #{vit_lightweight_head_forward.10} parent=5 // pred_region
        // Predicated region
        $region29: #{vit_lightweight_head_forward.10} parent=27 // pred_check
          %p187 = pneg %p38
        $region30: #{vit_lightweight_head_forward.10} parent=27 // pred_check_branch
          %189 = sbr.rel (%p187) target = $region32
        $region31: #{vit_lightweight_head_forward.10} parent=27 // pred_region
          %s190 = sand.u32 %s28, 1
          %s191 = scalar_lea.sflag [#allocation3], %s190
          %s192 = sand.u32 %s28, 1
          %s193 = smul.addr %s192, 8
          %s194 = scalar_lea.vmem [#allocation2], %s193
          %s195 = smul.u32 2, %s18
          %s197 = ssub.s32 128, 128
          %198 = vsyncadd %s191, %s197
          %s199 = smul.addr %s195, 64
          %s200 = scalar_lea.hbm %s0, %s199
          %s201 = sshll.u32 %s194, 4
          %s202 = int_to_ptr.vmem [resolvable:$true] %s201
          %207 = dma.hbm_to_vmem [thread:$0]  %s200, 128, %s202, %s191, 64, 64, 4
        $region32: #{vit_lightweight_head_forward.10} parent=27 // pred_fallthru
          _
      $region28: #{vit_lightweight_head_forward.10} parent=5 // pred_fallthru
        _
      %p208 = scmp.le.s32.totalorder 1, %s18
      %p209 = scmp.lt.s32.totalorder %s18, 3
      %p210 = pnand %p208, %p209
      %p211 = pneg %p210
      // Predicated region
      $region33: #{vit_lightweight_head_forward.10} parent=5 // pred_check
        _
      $region34: #{vit_lightweight_head_forward.10} parent=5 // pred_check_branch
        %213 = sbr.rel (%p210) target = $region36
      $region35: #{vit_lightweight_head_forward.10} parent=5 // pred_region
        %s214 = ssub.s32 %s18, 1
        %s215 = sand.u32 %s31, 1
        %s216 = scalar_lea.sflag [#allocation3], %s215
        %s217 = sand.u32 %s31, 1
        %s218 = smul.addr %s217, 8
        %s219 = scalar_lea.vmem [#allocation2], %s218
        // Predicated region
        $region37: #{vit_lightweight_head_forward.10} parent=35 // pred_check
          %p220 = pneg %p44
        $region38: #{vit_lightweight_head_forward.10} parent=35 // pred_check_branch
          %222 = sbr.rel (%p220) target = $region40
        $region39: #{vit_lightweight_head_forward.10} parent=35 // pred_region
          %223 = dma.done %s216, 128
        $region40: #{vit_lightweight_head_forward.10} parent=35 // pred_fallthru
          _
        // Predicated region
        $region41: #{vit_lightweight_head_forward.10} parent=35 // pred_check
          %p224 = pneg %p65
        $region42: #{vit_lightweight_head_forward.10} parent=35 // pred_check_branch
          %226 = sbr.rel (%p224) target = $region44
        $region43: #{vit_lightweight_head_forward.10} parent=35 // pred_region
          %227 = dma.done [#allocation6], 128
        $region44: #{vit_lightweight_head_forward.10} parent=35 // pred_fallthru
          _
        // Predicated region
        $region45: #{vit_lightweight_head_forward.10} parent=35 // pred_check
          %p228 = pneg %p86
        $region46: #{vit_lightweight_head_forward.10} parent=35 // pred_check_branch
          %230 = sbr.rel (%p228) target = $region48
        $region47: #{vit_lightweight_head_forward.10} parent=35 // pred_region
          %231 = dma.done [#allocation6], 16
        $region48: #{vit_lightweight_head_forward.10} parent=35 // pred_fallthru
          _
        // Predicated region
        $region49: #{vit_lightweight_head_forward.10} parent=35 // pred_check
          %p232 = pneg %p107
        $region50: #{vit_lightweight_head_forward.10} parent=35 // pred_check_branch
          %234 = sbr.rel (%p232) target = $region52
        $region51: #{vit_lightweight_head_forward.10} parent=35 // pred_region
          %235 = dma.done [#allocation9], 16
        $region52: #{vit_lightweight_head_forward.10} parent=35 // pred_fallthru
          _
        %s236 = sand.u32 %s31, 1
        %s237 = scalar_lea.sflag [#allocation3], %s236
        %s238 = sand.u32 %s31, 1
        %s239 = smul.addr %s238, 8
        %s240 = scalar_lea.vmem [#allocation2], %s239
        %p241 = pneg %p44
        %p242 = pneg %p41
        %p243 = pneg %p65
        %p244 = pneg %p62
        %p245 = pneg %p86
        %p246 = pneg %p83
        %p247 = pneg %p107
        %p248 = pneg %p104
        %p249 = pneg %p133
        %p250 = pneg %p130
        %s251 = sand.u32 %s120, 1
        %s252 = scalar_lea.sflag [#allocation4], %s251
        %s253 = sand.u32 %s120, 1
        %s254 = smul.addr %s253, 8
        %s255 = scalar_lea.vmem [#allocation10], %s254
        %s256 = smul.u32 2, %s23
        %s257 = smul.u32 2, %s23
        %v259 = vld [vmem:[%s219] sm:$0xf]
        %v260 = vld [vmem:[%s219 + $0x4] sm:$0xf]
        %v261 = vld [vmem:[#allocation7] sm:$0x1]
        %v262 = vld [vmem:[#allocation8] sm:$0x1]
        %v263 = vld [vmem:[#allocation5] sm:$0xf]
        %v264 = vld [vmem:[#allocation5 + $0x4] sm:$0xf]
        %v267 = vunpack.c.l.b16 %v259
        %v268 = vunpack.c.l.b16 %v260
        %v269 = vpack.c.b16 %v268, %v267
        %v272 = vunpack.c.l.b16 %v263
        %v273 = vunpack.c.l.b16 %v264
        %v274 = vpack.c.b16 %v273, %v272
        %vm276 = vcmask 130048
        %v278 = vsel %vm276, %v269, 0
        %280 = vmatprep.subr.bf16.mxu0 0
        %281 = vmatpush1.bf16.msra.mxu0 %v274
        %282 = vmatprep.subr.bf16.mxu0 0
        %283 = vmatpush1.bf16.msra.mxu0 0
        %284 = vmatprep.subr.bf16.mxu0 0
        %285 = vmatpush1.bf16.msra.mxu0 0
        %286 = vmatprep.subr.bf16.mxu0 0
        %287 = vmatpush1.bf16.msra.mxu0 0
        %288 = vmatprep.subr.bf16.mxu0 0
        %289 = vmatpush1.bf16.msra.mxu0 0
        %290 = vmatprep.subr.bf16.mxu0 0
        %291 = vmatpush1.bf16.msra.mxu0 0
        %292 = vmatprep.subr.bf16.mxu0 0
        %293 = vmatpush1.bf16.msra.mxu0 0
        %294 = vmatprep.subr.bf16.mxu0 0
        %295 = vmatpush1.bf16.msra.mxu0 0
        %296 = vmatprep.subr.bf16.mxu0 0
        %297 = vmatpush1.bf16.msra.mxu0 0
        %298 = vmatprep.subr.bf16.mxu0 0
        %299 = vmatpush1.bf16.msra.mxu0 0
        %300 = vmatprep.subr.bf16.mxu0 0
        %301 = vmatpush1.bf16.msra.mxu0 0
        %302 = vmatprep.subr.bf16.mxu0 0
        %303 = vmatpush1.bf16.msra.mxu0 0
        %304 = vmatprep.subr.bf16.mxu0 0
        %305 = vmatpush1.bf16.msra.mxu0 0
        %306 = vmatprep.subr.bf16.mxu0 0
        %307 = vmatpush1.bf16.msra.mxu0 0
        %308 = vmatprep.subr.bf16.mxu0 0
        %309 = vmatpush1.bf16.msra.mxu0 0
        %310 = vmatprep.subr.bf16.mxu0 0
        %311 = vmatpush1.bf16.msra.mxu0 0
        %312 = vmatprep.mubr.bf16.mxu0 0
        %313 = vmatmul.mubr.bf16.gmra.mrb[0].mxu0 %v278
        %v314 = vpop.f32.mrb[0].mxu0
        %v315 = vadd.f32 0.0, %v314
        %v316 = vpop.f32.mrb[0].mxu0
        %v317 = vpop.f32.mrb[0].mxu0
        %v318 = vadd.f32 0.0, %v317
        %v319 = vpop.f32.mrb[0].mxu0
        %320 = vdwg.mxu0
        %vm321 = vcmask 64512
        %v322 = vsel %vm321, %v315, 0.0
        %323 = vadd.xlane.f32.xlu0 %v322
        %v324 = vpop.xlane.xlu0 %323
        %v325 = vsel %vm321, %v318, 0.0
        %326 = vadd.xlane.f32.xlu0 %v325
        %v327 = vpop.xlane.xlu0 %326
        %v328 = vrcp.pop 8.0
        %v329 = vmul.f32 %v324, %v328
        %v330 = vmul.f32 %v327, %v328
        %v331 = vsub.f32 %v315, %v329
        %v332 = vsub.f32 %v318, %v330
        %v333 = vmul.f32 %v331, %v331
        %v334 = vmul.f32 %v332, %v332
        %v335 = vsel %vm321, %v333, 0.0
        %336 = vadd.xlane.f32.xlu0 %v335
        %v337 = vpop.xlane.xlu0 %336
        %v338 = vsel %vm321, %v334, 0.0
        %339 = vadd.xlane.f32.xlu0 %v338
        %v340 = vpop.xlane.xlu0 %339
        %v341 = vmul.f32 %v337, %v328
        %v342 = vmul.f32 %v340, %v328
        %v343 = vadd.f32 %v341, 1e-05
        %v344 = vadd.f32 %v342, 1e-05
        %v345 = vrsqrt.pop %v343
        %v346 = vrsqrt.pop %v344
        %v347 = vmul.f32 %v331, %v345
        %v348 = vmul.f32 %v332, %v346
        %v350 = vlaneseq
        %v351 = vshrl.u32 %v350, 7
        %v352 = vsub.s32 0, %v351
        %v353 = vrot.slane %v261, %v352
        %v355 = vmul.f32 %v347, %v353
        %v356 = vmul.f32 %v348, %v353
        %v358 = vlaneseq
        %v359 = vshrl.u32 %v358, 7
        %v360 = vsub.s32 0, %v359
        %v361 = vrot.slane %v262, %v360
        %v363 = vadd.f32 %v355, %v361
        %v364 = vadd.f32 %v356, %v361
        %v365 = vpack.c.bf16 %v364, %v363
        %v367 = vunpack.c.l.b16 %v365
        %v368 = vunpack.c.h.b16 %v365
        %v369 = vpack.c.b16 %v367, %v367
        %v370 = vpack.c.b16 %v368, %v368
        %vm373 = vcmask 60416
        %374 = vst.msk [vmem:[%s255] sm:$0xf] %vm373, %v369
        %375 = vst.msk [vmem:[%s255 + $0x4] sm:$0xf] %vm373, %v370
        %378 = vrot.lane.b32.xlu0 %v315, 120
        %v379 = vpop.permute.xlu0 %378
        %380 = vrot.lane.b32.xlu0 %v318, 120
        %v381 = vpop.permute.xlu0 %380
        %v384 = vsel %vm321, %v379, 0.0
        %385 = vadd.xlane.f32.xlu0 %v384
        %v386 = vpop.xlane.xlu0 %385
        %v387 = vsel %vm321, %v381, 0.0
        %388 = vadd.xlane.f32.xlu0 %v387
        %v389 = vpop.xlane.xlu0 %388
        %v390 = vmul.f32 %v386, %v328
        %v391 = vmul.f32 %v389, %v328
        %v392 = vsub.f32 %v315, %v390
        %v393 = vsub.f32 %v318, %v391
        %v394 = vmul.f32 %v392, %v392
        %v395 = vmul.f32 %v393, %v393
        %398 = vrot.lane.b32.xlu0 %v394, 120
        %v399 = vpop.permute.xlu0 %398
        %400 = vrot.lane.b32.xlu0 %v395, 120
        %v401 = vpop.permute.xlu0 %400
        %v404 = vsel %vm321, %v399, 0.0
        %405 = vadd.xlane.f32.xlu0 %v404
        %v406 = vpop.xlane.xlu0 %405
        %v407 = vsel %vm321, %v401, 0.0
        %408 = vadd.xlane.f32.xlu0 %v407
        %v409 = vpop.xlane.xlu0 %408
        %v410 = vmul.f32 %v406, %v328
        %v411 = vmul.f32 %v409, %v328
        %v412 = vadd.f32 %v410, 1e-05
        %v413 = vadd.f32 %v411, 1e-05
        %v414 = vrsqrt.pop %v412
        %v415 = vrsqrt.pop %v413
        %v416 = vmul.f32 %v392, %v414
        %v417 = vmul.f32 %v393, %v415
        %418 = vrot.lane.b32.xlu0 %v353, 8
        %v419 = vpop.permute.xlu0 %418
        %v421 = vmul.f32 %v416, %v419
        %v422 = vmul.f32 %v417, %v419
        %423 = vrot.lane.b32.xlu0 %v361, 8
        %v424 = vpop.permute.xlu0 %423
        %v426 = vadd.f32 %v421, %v424
        %v427 = vadd.f32 %v422, %v424
        %v428 = vpack.c.bf16 %v427, %v426
        %v430 = vunpack.c.l.b16 %v428
        %v431 = vunpack.c.h.b16 %v428
        %v432 = vpack.c.b16 %v430, %v430
        %v433 = vpack.c.b16 %v431, %v431
        %vm436 = vcmask 126016
        %437 = vst.msk [vmem:[%s255] sm:$0xf] %vm436, %v432
        %438 = vst.msk [vmem:[%s255 + $0x4] sm:$0xf] %vm436, %v433
        %439 = vrot.lane.b32.xlu0 %v315, 112
        %v440 = vpop.permute.xlu0 %439
        %441 = vrot.lane.b32.xlu0 %v318, 112
        %v442 = vpop.permute.xlu0 %441
        %v445 = vsel %vm321, %v440, 0.0
        %446 = vadd.xlane.f32.xlu0 %v445
        %v447 = vpop.xlane.xlu0 %446
        %v448 = vsel %vm321, %v442, 0.0
        %449 = vadd.xlane.f32.xlu0 %v448
        %v450 = vpop.xlane.xlu0 %449
        %v451 = vmul.f32 %v447, %v328
        %v452 = vmul.f32 %v450, %v328
        %v453 = vsub.f32 %v315, %v451
        %v454 = vsub.f32 %v318, %v452
        %v455 = vmul.f32 %v453, %v453
        %v456 = vmul.f32 %v454, %v454
        %459 = vrot.lane.b32.xlu0 %v455, 112
        %v460 = vpop.permute.xlu0 %459
        %461 = vrot.lane.b32.xlu0 %v456, 112
        %v462 = vpop.permute.xlu0 %461
        %v465 = vsel %vm321, %v460, 0.0
        %466 = vadd.xlane.f32.xlu0 %v465
        %v467 = vpop.xlane.xlu0 %466
        %v468 = vsel %vm321, %v462, 0.0
        %469 = vadd.xlane.f32.xlu0 %v468
        %v470 = vpop.xlane.xlu0 %469
        %v471 = vmul.f32 %v467, %v328
        %v472 = vmul.f32 %v470, %v328
        %v473 = vadd.f32 %v471, 1e-05
        %v474 = vadd.f32 %v472, 1e-05
        %v475 = vrsqrt.pop %v473
        %v476 = vrsqrt.pop %v474
        %v477 = vmul.f32 %v453, %v475
        %v478 = vmul.f32 %v454, %v476
        %479 = vrot.lane.b32.xlu0 %v353, 16
        %v480 = vpop.permute.xlu0 %479
        %v482 = vmul.f32 %v477, %v480
        %v483 = vmul.f32 %v478, %v480
        %484 = vrot.lane.b32.xlu0 %v361, 16
        %v485 = vpop.permute.xlu0 %484
        %v487 = vadd.f32 %v482, %v485
        %v488 = vadd.f32 %v483, %v485
        %v489 = vpack.c.bf16 %v488, %v487
        %v491 = vunpack.c.l.b16 %v489
        %v492 = vunpack.c.h.b16 %v489
        %v493 = vpack.c.b16 %v491, %v491
        %v494 = vpack.c.b16 %v492, %v492
        %vm497 = vcmask 191616
        %498 = vst.msk [vmem:[%s255] sm:$0xf] %vm497, %v493
        %499 = vst.msk [vmem:[%s255 + $0x4] sm:$0xf] %vm497, %v494
        %500 = vrot.lane.b32.xlu0 %v315, 104
        %v501 = vpop.permute.xlu0 %500
        %502 = vrot.lane.b32.xlu0 %v318, 104
        %v503 = vpop.permute.xlu0 %502
        %v506 = vsel %vm321, %v501, 0.0
        %507 = vadd.xlane.f32.xlu0 %v506
        %v508 = vpop.xlane.xlu0 %507
        %v509 = vsel %vm321, %v503, 0.0
        %510 = vadd.xlane.f32.xlu0 %v509
        %v511 = vpop.xlane.xlu0 %510
        %v512 = vmul.f32 %v508, %v328
        %v513 = vmul.f32 %v511, %v328
        %v514 = vsub.f32 %v315, %v512
        %v515 = vsub.f32 %v318, %v513
        %v516 = vmul.f32 %v514, %v514
        %v517 = vmul.f32 %v515, %v515
        %520 = vrot.lane.b32.xlu0 %v516, 104
        %v521 = vpop.permute.xlu0 %520
        %522 = vrot.lane.b32.xlu0 %v517, 104
        %v523 = vpop.permute.xlu0 %522
        %v526 = vsel %vm321, %v521, 0.0
        %527 = vadd.xlane.f32.xlu0 %v526
        %v528 = vpop.xlane.xlu0 %527
        %v529 = vsel %vm321, %v523, 0.0
        %530 = vadd.xlane.f32.xlu0 %v529
        %v531 = vpop.xlane.xlu0 %530
        %v532 = vmul.f32 %v528, %v328
        %v533 = vmul.f32 %v531, %v328
        %v534 = vadd.f32 %v532, 1e-05
        %v535 = vadd.f32 %v533, 1e-05
        %v536 = vrsqrt.pop %v534
        %v537 = vrsqrt.pop %v535
        %v538 = vmul.f32 %v514, %v536
        %v539 = vmul.f32 %v515, %v537
        %540 = vrot.lane.b32.xlu0 %v353, 24
        %v541 = vpop.permute.xlu0 %540
        %v543 = vmul.f32 %v538, %v541
        %v544 = vmul.f32 %v539, %v541
        %545 = vrot.lane.b32.xlu0 %v361, 24
        %v546 = vpop.permute.xlu0 %545
        %v548 = vadd.f32 %v543, %v546
        %v549 = vadd.f32 %v544, %v546
        %v550 = vpack.c.bf16 %v549, %v548
        %v552 = vunpack.c.l.b16 %v550
        %v553 = vunpack.c.h.b16 %v550
        %v554 = vpack.c.b16 %v552, %v552
        %v555 = vpack.c.b16 %v553, %v553
        %vm558 = vcmask 257216
        %559 = vst.msk [vmem:[%s255] sm:$0xf] %vm558, %v554
        %560 = vst.msk [vmem:[%s255 + $0x4] sm:$0xf] %vm558, %v555
        %v561 = vld [vmem:[#allocation5] sm:$0xf]
        %v562 = vld [vmem:[#allocation5 + $0x4] sm:$0xf]
        %563 = vrot.lane.b32.xlu0 %v269, 112
        %v564 = vpop.permute.xlu0 %563
        %v567 = vunpack.c.l.b16 %v561
        %v568 = vunpack.c.l.b16 %v562
        %v569 = vpack.c.b16 %v568, %v567
        %v572 = vsel %vm276, %v564, 0
        %574 = vmatprep.subr.bf16.mxu0 0
        %575 = vmatpush1.bf16.msra.mxu0 %v569
        %576 = vmatprep.subr.bf16.mxu0 0
        %577 = vmatpush1.bf16.msra.mxu0 0
        %578 = vmatprep.subr.bf16.mxu0 0
        %579 = vmatpush1.bf16.msra.mxu0 0
        %580 = vmatprep.subr.bf16.mxu0 0
        %581 = vmatpush1.bf16.msra.mxu0 0
        %582 = vmatprep.subr.bf16.mxu0 0
        %583 = vmatpush1.bf16.msra.mxu0 0
        %584 = vmatprep.subr.bf16.mxu0 0
        %585 = vmatpush1.bf16.msra.mxu0 0
        %586 = vmatprep.subr.bf16.mxu0 0
        %587 = vmatpush1.bf16.msra.mxu0 0
        %588 = vmatprep.subr.bf16.mxu0 0
        %589 = vmatpush1.bf16.msra.mxu0 0
        %590 = vmatprep.subr.bf16.mxu0 0
        %591 = vmatpush1.bf16.msra.mxu0 0
        %592 = vmatprep.subr.bf16.mxu0 0
        %593 = vmatpush1.bf16.msra.mxu0 0
        %594 = vmatprep.subr.bf16.mxu0 0
        %595 = vmatpush1.bf16.msra.mxu0 0
        %596 = vmatprep.subr.bf16.mxu0 0
        %597 = vmatpush1.bf16.msra.mxu0 0
        %598 = vmatprep.subr.bf16.mxu0 0
        %599 = vmatpush1.bf16.msra.mxu0 0
        %600 = vmatprep.subr.bf16.mxu0 0
        %601 = vmatpush1.bf16.msra.mxu0 0
        %602 = vmatprep.subr.bf16.mxu0 0
        %603 = vmatpush1.bf16.msra.mxu0 0
        %604 = vmatprep.subr.bf16.mxu0 0
        %605 = vmatpush1.bf16.msra.mxu0 0
        %606 = vmatprep.mubr.bf16.mxu0 0
        %607 = vmatmul.mubr.bf16.gmra.mrb[0].mxu0 %v572
        %v608 = vpop.f32.mrb[0].mxu0
        %v609 = vadd.f32 0.0, %v608
        %v610 = vpop.f32.mrb[0].mxu0
        %v611 = vpop.f32.mrb[0].mxu0
        %v612 = vadd.f32 0.0, %v611
        %v613 = vpop.f32.mrb[0].mxu0
        %614 = vdwg.mxu0
        %v615 = vsel %vm321, %v609, 0.0
        %616 = vadd.xlane.f32.xlu0 %v615
        %v617 = vpop.xlane.xlu0 %616
        %v618 = vsel %vm321, %v612, 0.0
        %619 = vadd.xlane.f32.xlu0 %v618
        %v620 = vpop.xlane.xlu0 %619
        %v621 = vmul.f32 %v617, %v328
        %v622 = vmul.f32 %v620, %v328
        %v623 = vsub.f32 %v609, %v621
        %v624 = vsub.f32 %v612, %v622
        %v625 = vmul.f32 %v623, %v623
        %v626 = vmul.f32 %v624, %v624
        %v627 = vsel %vm321, %v625, 0.0
        %628 = vadd.xlane.f32.xlu0 %v627
        %v629 = vpop.xlane.xlu0 %628
        %v630 = vsel %vm321, %v626, 0.0
        %631 = vadd.xlane.f32.xlu0 %v630
        %v632 = vpop.xlane.xlu0 %631
        %v633 = vmul.f32 %v629, %v328
        %v634 = vmul.f32 %v632, %v328
        %v635 = vadd.f32 %v633, 1e-05
        %v636 = vadd.f32 %v634, 1e-05
        %v637 = vrsqrt.pop %v635
        %v638 = vrsqrt.pop %v636
        %v639 = vmul.f32 %v623, %v637
        %v640 = vmul.f32 %v624, %v638
        %v641 = vmul.f32 %v639, %v353
        %v642 = vmul.f32 %v640, %v353
        %v643 = vadd.f32 %v641, %v361
        %v644 = vadd.f32 %v642, %v361
        %v645 = vpack.c.bf16 %v644, %v643
        %v647 = vunpack.c.l.b16 %v645
        %v648 = vunpack.c.h.b16 %v645
        %v649 = vpack.c.b16 %v647, %v647
        %v650 = vpack.c.b16 %v648, %v648
        %651 = vrot.lane.b32.xlu0 %v649, 32
        %v652 = vpop.permute.xlu0 %651
        %653 = vrot.lane.b32.xlu0 %v650, 32
        %v654 = vpop.permute.xlu0 %653
        %vm657 = vcmask 322816
        %658 = vst.msk [vmem:[%s255] sm:$0xf] %vm657, %v652
        %659 = vst.msk [vmem:[%s255 + $0x4] sm:$0xf] %vm657, %v654
        %662 = vrot.lane.b32.xlu0 %v609, 120
        %v663 = vpop.permute.xlu0 %662
        %664 = vrot.lane.b32.xlu0 %v612, 120
        %v665 = vpop.permute.xlu0 %664
        %v668 = vsel %vm321, %v663, 0.0
        %669 = vadd.xlane.f32.xlu0 %v668
        %v670 = vpop.xlane.xlu0 %669
        %v671 = vsel %vm321, %v665, 0.0
        %672 = vadd.xlane.f32.xlu0 %v671
        %v673 = vpop.xlane.xlu0 %672
        %v674 = vmul.f32 %v670, %v328
        %v675 = vmul.f32 %v673, %v328
        %v676 = vsub.f32 %v609, %v674
        %v677 = vsub.f32 %v612, %v675
        %v678 = vmul.f32 %v676, %v676
        %v679 = vmul.f32 %v677, %v677
        %682 = vrot.lane.b32.xlu0 %v678, 120
        %v683 = vpop.permute.xlu0 %682
        %684 = vrot.lane.b32.xlu0 %v679, 120
        %v685 = vpop.permute.xlu0 %684
        %v688 = vsel %vm321, %v683, 0.0
        %689 = vadd.xlane.f32.xlu0 %v688
        %v690 = vpop.xlane.xlu0 %689
        %v691 = vsel %vm321, %v685, 0.0
        %692 = vadd.xlane.f32.xlu0 %v691
        %v693 = vpop.xlane.xlu0 %692
        %v694 = vmul.f32 %v690, %v328
        %v695 = vmul.f32 %v693, %v328
        %v696 = vadd.f32 %v694, 1e-05
        %v697 = vadd.f32 %v695, 1e-05
        %v698 = vrsqrt.pop %v696
        %v699 = vrsqrt.pop %v697
        %v700 = vmul.f32 %v676, %v698
        %v701 = vmul.f32 %v677, %v699
        %v702 = vmul.f32 %v700, %v419
        %v703 = vmul.f32 %v701, %v419
        %v704 = vadd.f32 %v702, %v424
        %v705 = vadd.f32 %v703, %v424
        %v706 = vpack.c.bf16 %v705, %v704
        %v708 = vunpack.c.l.b16 %v706
        %v709 = vunpack.c.h.b16 %v706
        %v710 = vpack.c.b16 %v708, %v708
        %v711 = vpack.c.b16 %v709, %v709
        %712 = vrot.lane.b32.xlu0 %v710, 32
        %v713 = vpop.permute.xlu0 %712
        %714 = vrot.lane.b32.xlu0 %v711, 32
        %v715 = vpop.permute.xlu0 %714
        %vm718 = vcmask 388416
        %719 = vst.msk [vmem:[%s255] sm:$0xf] %vm718, %v713
        %720 = vst.msk [vmem:[%s255 + $0x4] sm:$0xf] %vm718, %v715
        %721 = vrot.lane.b32.xlu0 %v609, 112
        %v722 = vpop.permute.xlu0 %721
        %723 = vrot.lane.b32.xlu0 %v612, 112
        %v724 = vpop.permute.xlu0 %723
        %v727 = vsel %vm321, %v722, 0.0
        %728 = vadd.xlane.f32.xlu0 %v727
        %v729 = vpop.xlane.xlu0 %728
        %v730 = vsel %vm321, %v724, 0.0
        %731 = vadd.xlane.f32.xlu0 %v730
        %v732 = vpop.xlane.xlu0 %731
        %v733 = vmul.f32 %v729, %v328
        %v734 = vmul.f32 %v732, %v328
        %v735 = vsub.f32 %v609, %v733
        %v736 = vsub.f32 %v612, %v734
        %v737 = vmul.f32 %v735, %v735
        %v738 = vmul.f32 %v736, %v736
        %741 = vrot.lane.b32.xlu0 %v737, 112
        %v742 = vpop.permute.xlu0 %741
        %743 = vrot.lane.b32.xlu0 %v738, 112
        %v744 = vpop.permute.xlu0 %743
        %v747 = vsel %vm321, %v742, 0.0
        %748 = vadd.xlane.f32.xlu0 %v747
        %v749 = vpop.xlane.xlu0 %748
        %v750 = vsel %vm321, %v744, 0.0
        %751 = vadd.xlane.f32.xlu0 %v750
        %v752 = vpop.xlane.xlu0 %751
        %v753 = vmul.f32 %v749, %v328
        %v754 = vmul.f32 %v752, %v328
        %v755 = vadd.f32 %v753, 1e-05
        %v756 = vadd.f32 %v754, 1e-05
        %v757 = vrsqrt.pop %v755
        %v758 = vrsqrt.pop %v756
        %v759 = vmul.f32 %v735, %v757
        %v760 = vmul.f32 %v736, %v758
        %v761 = vmul.f32 %v759, %v480
        %v762 = vmul.f32 %v760, %v480
        %v763 = vadd.f32 %v761, %v485
        %v764 = vadd.f32 %v762, %v485
        %v765 = vpack.c.bf16 %v764, %v763
        %v767 = vunpack.c.l.b16 %v765
        %v768 = vunpack.c.h.b16 %v765
        %v769 = vpack.c.b16 %v767, %v767
        %v770 = vpack.c.b16 %v768, %v768
        %771 = vrot.lane.b32.xlu0 %v769, 32
        %v772 = vpop.permute.xlu0 %771
        %773 = vrot.lane.b32.xlu0 %v770, 32
        %v774 = vpop.permute.xlu0 %773
        %vm777 = vcmask 454016
        %778 = vst.msk [vmem:[%s255] sm:$0xf] %vm777, %v772
        %779 = vst.msk [vmem:[%s255 + $0x4] sm:$0xf] %vm777, %v774
        %780 = vrot.lane.b32.xlu0 %v609, 104
        %v781 = vpop.permute.xlu0 %780
        %782 = vrot.lane.b32.xlu0 %v612, 104
        %v783 = vpop.permute.xlu0 %782
        %v786 = vsel %vm321, %v781, 0.0
        %787 = vadd.xlane.f32.xlu0 %v786
        %v788 = vpop.xlane.xlu0 %787
        %v789 = vsel %vm321, %v783, 0.0
        %790 = vadd.xlane.f32.xlu0 %v789
        %v791 = vpop.xlane.xlu0 %790
        %v792 = vmul.f32 %v788, %v328
        %v793 = vmul.f32 %v791, %v328
        %v794 = vsub.f32 %v609, %v792
        %v795 = vsub.f32 %v612, %v793
        %v796 = vmul.f32 %v794, %v794
        %v797 = vmul.f32 %v795, %v795
        %800 = vrot.lane.b32.xlu0 %v796, 104
        %v801 = vpop.permute.xlu0 %800
        %802 = vrot.lane.b32.xlu0 %v797, 104
        %v803 = vpop.permute.xlu0 %802
        %v806 = vsel %vm321, %v801, 0.0
        %807 = vadd.xlane.f32.xlu0 %v806
        %v808 = vpop.xlane.xlu0 %807
        %v809 = vsel %vm321, %v803, 0.0
        %810 = vadd.xlane.f32.xlu0 %v809
        %v811 = vpop.xlane.xlu0 %810
        %v812 = vmul.f32 %v808, %v328
        %v813 = vmul.f32 %v811, %v328
        %v814 = vadd.f32 %v812, 1e-05
        %v815 = vadd.f32 %v813, 1e-05
        %v816 = vrsqrt.pop %v814
        %v817 = vrsqrt.pop %v815
        %v818 = vmul.f32 %v794, %v816
        %v819 = vmul.f32 %v795, %v817
        %v820 = vmul.f32 %v818, %v541
        %v821 = vmul.f32 %v819, %v541
        %v822 = vadd.f32 %v820, %v546
        %v823 = vadd.f32 %v821, %v546
        %v824 = vpack.c.bf16 %v823, %v822
        %v826 = vunpack.c.l.b16 %v824
        %v827 = vunpack.c.h.b16 %v824
        %v828 = vpack.c.b16 %v826, %v826
        %v829 = vpack.c.b16 %v827, %v827
        %830 = vrot.lane.b32.xlu0 %v828, 32
        %v831 = vpop.permute.xlu0 %830
        %832 = vrot.lane.b32.xlu0 %v829, 32
        %v833 = vpop.permute.xlu0 %832
        %vm836 = vcmask 519616
        %837 = vst.msk [vmem:[%s255] sm:$0xf] %vm836, %v831
        %838 = vst.msk [vmem:[%s255 + $0x4] sm:$0xf] %vm836, %v833
        %v839 = vld [vmem:[#allocation5] sm:$0xf]
        %v840 = vld [vmem:[#allocation5 + $0x4] sm:$0xf]
        %841 = vrot.lane.b32.xlu0 %v269, 96
        %v842 = vpop.permute.xlu0 %841
        %v845 = vunpack.c.l.b16 %v839
        %v846 = vunpack.c.l.b16 %v840
        %v847 = vpack.c.b16 %v846, %v845
        %v850 = vsel %vm276, %v842, 0
        %852 = vmatprep.subr.bf16.mxu0 0
        %853 = vmatpush1.bf16.msra.mxu0 %v847
        %854 = vmatprep.subr.bf16.mxu0 0
        %855 = vmatpush1.bf16.msra.mxu0 0
        %856 = vmatprep.subr.bf16.mxu0 0
        %857 = vmatpush1.bf16.msra.mxu0 0
        %858 = vmatprep.subr.bf16.mxu0 0
        %859 = vmatpush1.bf16.msra.mxu0 0
        %860 = vmatprep.subr.bf16.mxu0 0
        %861 = vmatpush1.bf16.msra.mxu0 0
        %862 = vmatprep.subr.bf16.mxu0 0
        %863 = vmatpush1.bf16.msra.mxu0 0
        %864 = vmatprep.subr.bf16.mxu0 0
        %865 = vmatpush1.bf16.msra.mxu0 0
        %866 = vmatprep.subr.bf16.mxu0 0
        %867 = vmatpush1.bf16.msra.mxu0 0
        %868 = vmatprep.subr.bf16.mxu0 0
        %869 = vmatpush1.bf16.msra.mxu0 0
        %870 = vmatprep.subr.bf16.mxu0 0
        %871 = vmatpush1.bf16.msra.mxu0 0
        %872 = vmatprep.subr.bf16.mxu0 0
        %873 = vmatpush1.bf16.msra.mxu0 0
        %874 = vmatprep.subr.bf16.mxu0 0
        %875 = vmatpush1.bf16.msra.mxu0 0
        %876 = vmatprep.subr.bf16.mxu0 0
        %877 = vmatpush1.bf16.msra.mxu0 0
        %878 = vmatprep.subr.bf16.mxu0 0
        %879 = vmatpush1.bf16.msra.mxu0 0
        %880 = vmatprep.subr.bf16.mxu0 0
        %881 = vmatpush1.bf16.msra.mxu0 0
        %882 = vmatprep.subr.bf16.mxu0 0
        %883 = vmatpush1.bf16.msra.mxu0 0
        %884 = vmatprep.mubr.bf16.mxu0 0
        %885 = vmatmul.mubr.bf16.gmra.mrb[0].mxu0 %v850
        %v886 = vpop.f32.mrb[0].mxu0
        %v887 = vadd.f32 0.0, %v886
        %v888 = vpop.f32.mrb[0].mxu0
        %v889 = vpop.f32.mrb[0].mxu0
        %v890 = vadd.f32 0.0, %v889
        %v891 = vpop.f32.mrb[0].mxu0
        %892 = vdwg.mxu0
        %v893 = vsel %vm321, %v887, 0.0
        %894 = vadd.xlane.f32.xlu0 %v893
        %v895 = vpop.xlane.xlu0 %894
        %v896 = vsel %vm321, %v890, 0.0
        %897 = vadd.xlane.f32.xlu0 %v896
        %v898 = vpop.xlane.xlu0 %897
        %v899 = vmul.f32 %v895, %v328
        %v900 = vmul.f32 %v898, %v328
        %v901 = vsub.f32 %v887, %v899
        %v902 = vsub.f32 %v890, %v900
        %v903 = vmul.f32 %v901, %v901
        %v904 = vmul.f32 %v902, %v902
        %v905 = vsel %vm321, %v903, 0.0
        %906 = vadd.xlane.f32.xlu0 %v905
        %v907 = vpop.xlane.xlu0 %906
        %v908 = vsel %vm321, %v904, 0.0
        %909 = vadd.xlane.f32.xlu0 %v908
        %v910 = vpop.xlane.xlu0 %909
        %v911 = vmul.f32 %v907, %v328
        %v912 = vmul.f32 %v910, %v328
        %v913 = vadd.f32 %v911, 1e-05
        %v914 = vadd.f32 %v912, 1e-05
        %v915 = vrsqrt.pop %v913
        %v916 = vrsqrt.pop %v914
        %v917 = vmul.f32 %v901, %v915
        %v918 = vmul.f32 %v902, %v916
        %v919 = vmul.f32 %v917, %v353
        %v920 = vmul.f32 %v918, %v353
        %v921 = vadd.f32 %v919, %v361
        %v922 = vadd.f32 %v920, %v361
        %v923 = vpack.c.bf16 %v922, %v921
        %v925 = vunpack.c.l.b16 %v923
        %v926 = vunpack.c.h.b16 %v923
        %v927 = vpack.c.b16 %v925, %v925
        %v928 = vpack.c.b16 %v926, %v926
        %929 = vrot.lane.b32.xlu0 %v927, 64
        %v930 = vpop.permute.xlu0 %929
        %931 = vrot.lane.b32.xlu0 %v928, 64
        %v932 = vpop.permute.xlu0 %931
        %vm935 = vcmask 585216
        %936 = vst.msk [vmem:[%s255] sm:$0xf] %vm935, %v930
        %937 = vst.msk [vmem:[%s255 + $0x4] sm:$0xf] %vm935, %v932
        %940 = vrot.lane.b32.xlu0 %v887, 120
        %v941 = vpop.permute.xlu0 %940
        %942 = vrot.lane.b32.xlu0 %v890, 120
        %v943 = vpop.permute.xlu0 %942
        %v946 = vsel %vm321, %v941, 0.0
        %947 = vadd.xlane.f32.xlu0 %v946
        %v948 = vpop.xlane.xlu0 %947
        %v949 = vsel %vm321, %v943, 0.0
        %950 = vadd.xlane.f32.xlu0 %v949
        %v951 = vpop.xlane.xlu0 %950
        %v952 = vmul.f32 %v948, %v328
        %v953 = vmul.f32 %v951, %v328
        %v954 = vsub.f32 %v887, %v952
        %v955 = vsub.f32 %v890, %v953
        %v956 = vmul.f32 %v954, %v954
        %v957 = vmul.f32 %v955, %v955
        %960 = vrot.lane.b32.xlu0 %v956, 120
        %v961 = vpop.permute.xlu0 %960
        %962 = vrot.lane.b32.xlu0 %v957, 120
        %v963 = vpop.permute.xlu0 %962
        %v966 = vsel %vm321, %v961, 0.0
        %967 = vadd.xlane.f32.xlu0 %v966
        %v968 = vpop.xlane.xlu0 %967
        %v969 = vsel %vm321, %v963, 0.0
        %970 = vadd.xlane.f32.xlu0 %v969
        %v971 = vpop.xlane.xlu0 %970
        %v972 = vmul.f32 %v968, %v328
        %v973 = vmul.f32 %v971, %v328
        %v974 = vadd.f32 %v972, 1e-05
        %v975 = vadd.f32 %v973, 1e-05
        %v976 = vrsqrt.pop %v974
        %v977 = vrsqrt.pop %v975
        %v978 = vmul.f32 %v954, %v976
        %v979 = vmul.f32 %v955, %v977
        %v980 = vmul.f32 %v978, %v419
        %v981 = vmul.f32 %v979, %v419
        %v982 = vadd.f32 %v980, %v424
        %v983 = vadd.f32 %v981, %v424
        %v984 = vpack.c.bf16 %v983, %v982
        %v986 = vunpack.c.l.b16 %v984
        %v987 = vunpack.c.h.b16 %v984
        %v988 = vpack.c.b16 %v986, %v986
        %v989 = vpack.c.b16 %v987, %v987
        %990 = vrot.lane.b32.xlu0 %v988, 64
        %v991 = vpop.permute.xlu0 %990
        %992 = vrot.lane.b32.xlu0 %v989, 64
        %v993 = vpop.permute.xlu0 %992
        %vm996 = vcmask 650816
        %997 = vst.msk [vmem:[%s255] sm:$0xf] %vm996, %v991
        %998 = vst.msk [vmem:[%s255 + $0x4] sm:$0xf] %vm996, %v993
        %999 = vrot.lane.b32.xlu0 %v887, 112
        %v1000 = vpop.permute.xlu0 %999
        %1001 = vrot.lane.b32.xlu0 %v890, 112
        %v1002 = vpop.permute.xlu0 %1001
        %v1005 = vsel %vm321, %v1000, 0.0
        %1006 = vadd.xlane.f32.xlu0 %v1005
        %v1007 = vpop.xlane.xlu0 %1006
        %v1008 = vsel %vm321, %v1002, 0.0
        %1009 = vadd.xlane.f32.xlu0 %v1008
        %v1010 = vpop.xlane.xlu0 %1009
        %v1011 = vmul.f32 %v1007, %v328
        %v1012 = vmul.f32 %v1010, %v328
        %v1013 = vsub.f32 %v887, %v1011
        %v1014 = vsub.f32 %v890, %v1012
        %v1015 = vmul.f32 %v1013, %v1013
        %v1016 = vmul.f32 %v1014, %v1014
        %1019 = vrot.lane.b32.xlu0 %v1015, 112
        %v1020 = vpop.permute.xlu0 %1019
        %1021 = vrot.lane.b32.xlu0 %v1016, 112
        %v1022 = vpop.permute.xlu0 %1021
        %v1025 = vsel %vm321, %v1020, 0.0
        %1026 = vadd.xlane.f32.xlu0 %v1025
        %v1027 = vpop.xlane.xlu0 %1026
        %v1028 = vsel %vm321, %v1022, 0.0
        %1029 = vadd.xlane.f32.xlu0 %v1028
        %v1030 = vpop.xlane.xlu0 %1029
        %v1031 = vmul.f32 %v1027, %v328
        %v1032 = vmul.f32 %v1030, %v328
        %v1033 = vadd.f32 %v1031, 1e-05
        %v1034 = vadd.f32 %v1032, 1e-05
        %v1035 = vrsqrt.pop %v1033
        %v1036 = vrsqrt.pop %v1034
        %v1037 = vmul.f32 %v1013, %v1035
        %v1038 = vmul.f32 %v1014, %v1036
        %v1039 = vmul.f32 %v1037, %v480
        %v1040 = vmul.f32 %v1038, %v480
        %v1041 = vadd.f32 %v1039, %v485
        %v1042 = vadd.f32 %v1040, %v485
        %v1043 = vpack.c.bf16 %v1042, %v1041
        %v1045 = vunpack.c.l.b16 %v1043
        %v1046 = vunpack.c.h.b16 %v1043
        %v1047 = vpack.c.b16 %v1045, %v1045
        %v1048 = vpack.c.b16 %v1046, %v1046
        %1049 = vrot.lane.b32.xlu0 %v1047, 64
        %v1050 = vpop.permute.xlu0 %1049
        %1051 = vrot.lane.b32.xlu0 %v1048, 64
        %v1052 = vpop.permute.xlu0 %1051
        %vm1055 = vcmask 716416
        %1056 = vst.msk [vmem:[%s255] sm:$0xf] %vm1055, %v1050
        %1057 = vst.msk [vmem:[%s255 + $0x4] sm:$0xf] %vm1055, %v1052
        %1058 = vrot.lane.b32.xlu0 %v887, 104
        %v1059 = vpop.permute.xlu0 %1058
        %1060 = vrot.lane.b32.xlu0 %v890, 104
        %v1061 = vpop.permute.xlu0 %1060
        %v1064 = vsel %vm321, %v1059, 0.0
        %1065 = vadd.xlane.f32.xlu0 %v1064
        %v1066 = vpop.xlane.xlu0 %1065
        %v1067 = vsel %vm321, %v1061, 0.0
        %1068 = vadd.xlane.f32.xlu0 %v1067
        %v1069 = vpop.xlane.xlu0 %1068
        %v1070 = vmul.f32 %v1066, %v328
        %v1071 = vmul.f32 %v1069, %v328
        %v1072 = vsub.f32 %v887, %v1070
        %v1073 = vsub.f32 %v890, %v1071
        %v1074 = vmul.f32 %v1072, %v1072
        %v1075 = vmul.f32 %v1073, %v1073
        %1078 = vrot.lane.b32.xlu0 %v1074, 104
        %v1079 = vpop.permute.xlu0 %1078
        %1080 = vrot.lane.b32.xlu0 %v1075, 104
        %v1081 = vpop.permute.xlu0 %1080
        %v1084 = vsel %vm321, %v1079, 0.0
        %1085 = vadd.xlane.f32.xlu0 %v1084
        %v1086 = vpop.xlane.xlu0 %1085
        %v1087 = vsel %vm321, %v1081, 0.0
        %1088 = vadd.xlane.f32.xlu0 %v1087
        %v1089 = vpop.xlane.xlu0 %1088
        %v1090 = vmul.f32 %v1086, %v328
        %v1091 = vmul.f32 %v1089, %v328
        %v1092 = vadd.f32 %v1090, 1e-05
        %v1093 = vadd.f32 %v1091, 1e-05
        %v1094 = vrsqrt.pop %v1092
        %v1095 = vrsqrt.pop %v1093
        %v1096 = vmul.f32 %v1072, %v1094
        %v1097 = vmul.f32 %v1073, %v1095
        %v1098 = vmul.f32 %v1096, %v541
        %v1099 = vmul.f32 %v1097, %v541
        %v1100 = vadd.f32 %v1098, %v546
        %v1101 = vadd.f32 %v1099, %v546
        %v1102 = vpack.c.bf16 %v1101, %v1100
        %v1104 = vunpack.c.l.b16 %v1102
        %v1105 = vunpack.c.h.b16 %v1102
        %v1106 = vpack.c.b16 %v1104, %v1104
        %v1107 = vpack.c.b16 %v1105, %v1105
        %1108 = vrot.lane.b32.xlu0 %v1106, 64
        %v1109 = vpop.permute.xlu0 %1108
        %1110 = vrot.lane.b32.xlu0 %v1107, 64
        %v1111 = vpop.permute.xlu0 %1110
        %vm1114 = vcmask 782016
        %1115 = vst.msk [vmem:[%s255] sm:$0xf] %vm1114, %v1109
        %1116 = vst.msk [vmem:[%s255 + $0x4] sm:$0xf] %vm1114, %v1111
        %v1117 = vld [vmem:[#allocation5] sm:$0xf]
        %v1118 = vld [vmem:[#allocation5 + $0x4] sm:$0xf]
        %1119 = vrot.lane.b32.xlu0 %v269, 80
        %v1120 = vpop.permute.xlu0 %1119
        %v1123 = vunpack.c.l.b16 %v1117
        %v1124 = vunpack.c.l.b16 %v1118
        %v1125 = vpack.c.b16 %v1124, %v1123
        %v1128 = vsel %vm276, %v1120, 0
        %1130 = vmatprep.subr.bf16.mxu0 0
        %1131 = vmatpush1.bf16.msra.mxu0 %v1125
        %1132 = vmatprep.subr.bf16.mxu0 0
        %1133 = vmatpush1.bf16.msra.mxu0 0
        %1134 = vmatprep.subr.bf16.mxu0 0
        %1135 = vmatpush1.bf16.msra.mxu0 0
        %1136 = vmatprep.subr.bf16.mxu0 0
        %1137 = vmatpush1.bf16.msra.mxu0 0
        %1138 = vmatprep.subr.bf16.mxu0 0
        %1139 = vmatpush1.bf16.msra.mxu0 0
        %1140 = vmatprep.subr.bf16.mxu0 0
        %1141 = vmatpush1.bf16.msra.mxu0 0
        %1142 = vmatprep.subr.bf16.mxu0 0
        %1143 = vmatpush1.bf16.msra.mxu0 0
        %1144 = vmatprep.subr.bf16.mxu0 0
        %1145 = vmatpush1.bf16.msra.mxu0 0
        %1146 = vmatprep.subr.bf16.mxu0 0
        %1147 = vmatpush1.bf16.msra.mxu0 0
        %1148 = vmatprep.subr.bf16.mxu0 0
        %1149 = vmatpush1.bf16.msra.mxu0 0
        %1150 = vmatprep.subr.bf16.mxu0 0
        %1151 = vmatpush1.bf16.msra.mxu0 0
        %1152 = vmatprep.subr.bf16.mxu0 0
        %1153 = vmatpush1.bf16.msra.mxu0 0
        %1154 = vmatprep.subr.bf16.mxu0 0
        %1155 = vmatpush1.bf16.msra.mxu0 0
        %1156 = vmatprep.subr.bf16.mxu0 0
        %1157 = vmatpush1.bf16.msra.mxu0 0
        %1158 = vmatprep.subr.bf16.mxu0 0
        %1159 = vmatpush1.bf16.msra.mxu0 0
        %1160 = vmatprep.subr.bf16.mxu0 0
        %1161 = vmatpush1.bf16.msra.mxu0 0
        %1162 = vmatprep.mubr.bf16.mxu0 0
        %1163 = vmatmul.mubr.bf16.gmra.mrb[0].mxu0 %v1128
        %v1164 = vpop.f32.mrb[0].mxu0
        %v1165 = vadd.f32 0.0, %v1164
        %v1166 = vpop.f32.mrb[0].mxu0
        %v1167 = vpop.f32.mrb[0].mxu0
        %v1168 = vadd.f32 0.0, %v1167
        %v1169 = vpop.f32.mrb[0].mxu0
        %1170 = vdwg.mxu0
        %v1171 = vsel %vm321, %v1165, 0.0
        %1172 = vadd.xlane.f32.xlu0 %v1171
        %v1173 = vpop.xlane.xlu0 %1172
        %v1174 = vsel %vm321, %v1168, 0.0
        %1175 = vadd.xlane.f32.xlu0 %v1174
        %v1176 = vpop.xlane.xlu0 %1175
        %v1177 = vmul.f32 %v1173, %v328
        %v1178 = vmul.f32 %v1176, %v328
        %v1179 = vsub.f32 %v1165, %v1177
        %v1180 = vsub.f32 %v1168, %v1178
        %v1181 = vmul.f32 %v1179, %v1179
        %v1182 = vmul.f32 %v1180, %v1180
        %v1183 = vsel %vm321, %v1181, 0.0
        %1184 = vadd.xlane.f32.xlu0 %v1183
        %v1185 = vpop.xlane.xlu0 %1184
        %v1186 = vsel %vm321, %v1182, 0.0
        %1187 = vadd.xlane.f32.xlu0 %v1186
        %v1188 = vpop.xlane.xlu0 %1187
        %v1189 = vmul.f32 %v1185, %v328
        %v1190 = vmul.f32 %v1188, %v328
        %v1191 = vadd.f32 %v1189, 1e-05
        %v1192 = vadd.f32 %v1190, 1e-05
        %v1193 = vrsqrt.pop %v1191
        %v1194 = vrsqrt.pop %v1192
        %v1195 = vmul.f32 %v1179, %v1193
        %v1196 = vmul.f32 %v1180, %v1194
        %v1197 = vmul.f32 %v1195, %v353
        %v1198 = vmul.f32 %v1196, %v353
        %v1199 = vadd.f32 %v1197, %v361
        %v1200 = vadd.f32 %v1198, %v361
        %v1201 = vpack.c.bf16 %v1200, %v1199
        %v1203 = vunpack.c.l.b16 %v1201
        %v1204 = vunpack.c.h.b16 %v1201
        %v1205 = vpack.c.b16 %v1203, %v1203
        %v1206 = vpack.c.b16 %v1204, %v1204
        %1207 = vrot.lane.b32.xlu0 %v1205, 96
        %v1208 = vpop.permute.xlu0 %1207
        %1209 = vrot.lane.b32.xlu0 %v1206, 96
        %v1210 = vpop.permute.xlu0 %1209
        %vm1213 = vcmask 847616
        %1214 = vst.msk [vmem:[%s255] sm:$0xf] %vm1213, %v1208
        %1215 = vst.msk [vmem:[%s255 + $0x4] sm:$0xf] %vm1213, %v1210
        %1218 = vrot.lane.b32.xlu0 %v1165, 120
        %v1219 = vpop.permute.xlu0 %1218
        %1220 = vrot.lane.b32.xlu0 %v1168, 120
        %v1221 = vpop.permute.xlu0 %1220
        %v1224 = vsel %vm321, %v1219, 0.0
        %1225 = vadd.xlane.f32.xlu0 %v1224
        %v1226 = vpop.xlane.xlu0 %1225
        %v1227 = vsel %vm321, %v1221, 0.0
        %1228 = vadd.xlane.f32.xlu0 %v1227
        %v1229 = vpop.xlane.xlu0 %1228
        %v1230 = vmul.f32 %v1226, %v328
        %v1231 = vmul.f32 %v1229, %v328
        %v1232 = vsub.f32 %v1165, %v1230
        %v1233 = vsub.f32 %v1168, %v1231
        %v1234 = vmul.f32 %v1232, %v1232
        %v1235 = vmul.f32 %v1233, %v1233
        %1238 = vrot.lane.b32.xlu0 %v1234, 120
        %v1239 = vpop.permute.xlu0 %1238
        %1240 = vrot.lane.b32.xlu0 %v1235, 120
        %v1241 = vpop.permute.xlu0 %1240
        %v1244 = vsel %vm321, %v1239, 0.0
        %1245 = vadd.xlane.f32.xlu0 %v1244
        %v1246 = vpop.xlane.xlu0 %1245
        %v1247 = vsel %vm321, %v1241, 0.0
        %1248 = vadd.xlane.f32.xlu0 %v1247
        %v1249 = vpop.xlane.xlu0 %1248
        %v1250 = vmul.f32 %v1246, %v328
        %v1251 = vmul.f32 %v1249, %v328
        %v1252 = vadd.f32 %v1250, 1e-05
        %v1253 = vadd.f32 %v1251, 1e-05
        %v1254 = vrsqrt.pop %v1252
        %v1255 = vrsqrt.pop %v1253
        %v1256 = vmul.f32 %v1232, %v1254
        %v1257 = vmul.f32 %v1233, %v1255
        %v1258 = vmul.f32 %v1256, %v419
        %v1259 = vmul.f32 %v1257, %v419
        %v1260 = vadd.f32 %v1258, %v424
        %v1261 = vadd.f32 %v1259, %v424
        %v1262 = vpack.c.bf16 %v1261, %v1260
        %v1264 = vunpack.c.l.b16 %v1262
        %v1265 = vunpack.c.h.b16 %v1262
        %v1266 = vpack.c.b16 %v1264, %v1264
        %v1267 = vpack.c.b16 %v1265, %v1265
        %1268 = vrot.lane.b32.xlu0 %v1266, 96
        %v1269 = vpop.permute.xlu0 %1268
        %1270 = vrot.lane.b32.xlu0 %v1267, 96
        %v1271 = vpop.permute.xlu0 %1270
        %vm1274 = vcmask 913216
        %1275 = vst.msk [vmem:[%s255] sm:$0xf] %vm1274, %v1269
        %1276 = vst.msk [vmem:[%s255 + $0x4] sm:$0xf] %vm1274, %v1271
        %1277 = vrot.lane.b32.xlu0 %v1165, 112
        %v1278 = vpop.permute.xlu0 %1277
        %1279 = vrot.lane.b32.xlu0 %v1168, 112
        %v1280 = vpop.permute.xlu0 %1279
        %v1283 = vsel %vm321, %v1278, 0.0
        %1284 = vadd.xlane.f32.xlu0 %v1283
        %v1285 = vpop.xlane.xlu0 %1284
        %v1286 = vsel %vm321, %v1280, 0.0
        %1287 = vadd.xlane.f32.xlu0 %v1286
        %v1288 = vpop.xlane.xlu0 %1287
        %v1289 = vmul.f32 %v1285, %v328
        %v1290 = vmul.f32 %v1288, %v328
        %v1291 = vsub.f32 %v1165, %v1289
        %v1292 = vsub.f32 %v1168, %v1290
        %v1293 = vmul.f32 %v1291, %v1291
        %v1294 = vmul.f32 %v1292, %v1292
        %1297 = vrot.lane.b32.xlu0 %v1293, 112
        %v1298 = vpop.permute.xlu0 %1297
        %1299 = vrot.lane.b32.xlu0 %v1294, 112
        %v1300 = vpop.permute.xlu0 %1299
        %v1303 = vsel %vm321, %v1298, 0.0
        %1304 = vadd.xlane.f32.xlu0 %v1303
        %v1305 = vpop.xlane.xlu0 %1304
        %v1306 = vsel %vm321, %v1300, 0.0
        %1307 = vadd.xlane.f32.xlu0 %v1306
        %v1308 = vpop.xlane.xlu0 %1307
        %v1309 = vmul.f32 %v1305, %v328
        %v1310 = vmul.f32 %v1308, %v328
        %v1311 = vadd.f32 %v1309, 1e-05
        %v1312 = vadd.f32 %v1310, 1e-05
        %v1313 = vrsqrt.pop %v1311
        %v1314 = vrsqrt.pop %v1312
        %v1315 = vmul.f32 %v1291, %v1313
        %v1316 = vmul.f32 %v1292, %v1314
        %v1317 = vmul.f32 %v1315, %v480
        %v1318 = vmul.f32 %v1316, %v480
        %v1319 = vadd.f32 %v1317, %v485
        %v1320 = vadd.f32 %v1318, %v485
        %v1321 = vpack.c.bf16 %v1320, %v1319
        %v1323 = vunpack.c.l.b16 %v1321
        %v1324 = vunpack.c.h.b16 %v1321
        %v1325 = vpack.c.b16 %v1323, %v1323
        %v1326 = vpack.c.b16 %v1324, %v1324
        %1327 = vrot.lane.b32.xlu0 %v1325, 96
        %v1328 = vpop.permute.xlu0 %1327
        %1329 = vrot.lane.b32.xlu0 %v1326, 96
        %v1330 = vpop.permute.xlu0 %1329
        %vm1333 = vcmask 978816
        %1334 = vst.msk [vmem:[%s255] sm:$0xf] %vm1333, %v1328
        %1335 = vst.msk [vmem:[%s255 + $0x4] sm:$0xf] %vm1333, %v1330
        %1336 = vrot.lane.b32.xlu0 %v1165, 104
        %v1337 = vpop.permute.xlu0 %1336
        %1338 = vrot.lane.b32.xlu0 %v1168, 104
        %v1339 = vpop.permute.xlu0 %1338
        %v1342 = vsel %vm321, %v1337, 0.0
        %1343 = vadd.xlane.f32.xlu0 %v1342
        %v1344 = vpop.xlane.xlu0 %1343
        %v1345 = vsel %vm321, %v1339, 0.0
        %1346 = vadd.xlane.f32.xlu0 %v1345
        %v1347 = vpop.xlane.xlu0 %1346
        %v1348 = vmul.f32 %v1344, %v328
        %v1349 = vmul.f32 %v1347, %v328
        %v1350 = vsub.f32 %v1165, %v1348
        %v1351 = vsub.f32 %v1168, %v1349
        %v1352 = vmul.f32 %v1350, %v1350
        %v1353 = vmul.f32 %v1351, %v1351
        %1356 = vrot.lane.b32.xlu0 %v1352, 104
        %v1357 = vpop.permute.xlu0 %1356
        %1358 = vrot.lane.b32.xlu0 %v1353, 104
        %v1359 = vpop.permute.xlu0 %1358
        %v1362 = vsel %vm321, %v1357, 0.0
        %1363 = vadd.xlane.f32.xlu0 %v1362
        %v1364 = vpop.xlane.xlu0 %1363
        %v1365 = vsel %vm321, %v1359, 0.0
        %1366 = vadd.xlane.f32.xlu0 %v1365
        %v1367 = vpop.xlane.xlu0 %1366
        %v1368 = vmul.f32 %v1364, %v328
        %v1369 = vmul.f32 %v1367, %v328
        %v1370 = vadd.f32 %v1368, 1e-05
        %v1371 = vadd.f32 %v1369, 1e-05
        %v1372 = vrsqrt.pop %v1370
        %v1373 = vrsqrt.pop %v1371
        %v1374 = vmul.f32 %v1350, %v1372
        %v1375 = vmul.f32 %v1351, %v1373
        %v1376 = vmul.f32 %v1374, %v541
        %v1377 = vmul.f32 %v1375, %v541
        %v1378 = vadd.f32 %v1376, %v546
        %v1379 = vadd.f32 %v1377, %v546
        %v1380 = vpack.c.bf16 %v1379, %v1378
        %v1382 = vunpack.c.l.b16 %v1380
        %v1383 = vunpack.c.h.b16 %v1380
        %v1384 = vpack.c.b16 %v1382, %v1382
        %v1385 = vpack.c.b16 %v1383, %v1383
        %1386 = vrot.lane.b32.xlu0 %v1384, 96
        %v1387 = vpop.permute.xlu0 %1386
        %1388 = vrot.lane.b32.xlu0 %v1385, 96
        %v1389 = vpop.permute.xlu0 %1388
        %vm1392 = vcmask 1044416
        %1393 = vst.msk [vmem:[%s255] sm:$0xf] %vm1392, %v1387
        %1394 = vst.msk [vmem:[%s255 + $0x4] sm:$0xf] %vm1392, %v1389
        %s1395 = sand.u32 %s120, 1
        %s1396 = scalar_lea.sflag [#allocation4], %s1395
        %s1397 = sand.u32 %s120, 1
        %s1398 = smul.addr %s1397, 8
        %s1399 = scalar_lea.vmem [#allocation10], %s1398
        // Predicated region
        $region53: #{vit_lightweight_head_forward.10} parent=35 // pred_check
          %p1400 = pneg %p130
        $region54: #{vit_lightweight_head_forward.10} parent=35 // pred_check_branch
          %1402 = sbr.rel (%p1400) target = $region56
        $region55: #{vit_lightweight_head_forward.10} parent=35 // pred_region
          %s1403 = smul.u32 2, %s23
          %s1405 = ssub.s32 128, 128
          %1406 = vsyncadd %s1396, %s1405
          %s1407 = smul.addr %s1403, 64
          %s1408 = scalar_lea.hbm %s4, %s1407
          %s1409 = sshll.u32 %s1399, 4
          %s1410 = int_to_ptr.vmem [resolvable:$true] %s1409
          %1415 = dma.vmem_to_hbm [thread:$0]  %s1410, 128, %s1408, %s1396, 64, 64, 4
        $region56: #{vit_lightweight_head_forward.10} parent=35 // pred_fallthru
          _
      $region36: #{vit_lightweight_head_forward.10} parent=5 // pred_fallthru
        _
      %p1416 = scmp.le.s32.totalorder 2, %s18
      // Predicated region
      $region57: #{vit_lightweight_head_forward.10} parent=5 // pred_check
        %p1417 = pneg %p1416
      $region58: #{vit_lightweight_head_forward.10} parent=5 // pred_check_branch
        %1419 = sbr.rel (%p1417) target = $region60
      $region59: #{vit_lightweight_head_forward.10} parent=5 // pred_region
        %s1420 = ssub.s32 %s18, 2
        // Predicated region
        $region61: #{vit_lightweight_head_forward.10} parent=59 // pred_check
          %p1421 = pneg %p136
        $region62: #{vit_lightweight_head_forward.10} parent=59 // pred_check_branch
          %1423 = sbr.rel (%p1421) target = $region64
        $region63: #{vit_lightweight_head_forward.10} parent=59 // pred_region
          %s1424 = sand.u32 %s121, 1
          %s1425 = scalar_lea.sflag [#allocation4], %s1424
          %s1426 = sand.u32 %s121, 1
          %s1427 = smul.addr %s1426, 8
          %s1428 = scalar_lea.vmem [#allocation10], %s1427
          %1429 = dma.done %s1425, 128
        $region64: #{vit_lightweight_head_forward.10} parent=59 // pred_fallthru
          _
      $region60: #{vit_lightweight_head_forward.10} parent=5 // pred_fallthru
        _
    $region6: #{vit_lightweight_head_forward.10} parent=1 // loop_footer
      %s22 = sadd.s32 1, %s18
    $region7: #{vit_lightweight_head_forward.10} parent=1 // loop_footer_branch
      %17 = sbr.rel target = $region3
    $region8: #{vit_lightweight_head_forward.10} parent=1 // loop_exit
      _
    %1430 = vsyncpa [#allocation3], 1
    %s1431 = scalar_lea.sflag [#allocation3], 1
    %1432 = vsyncpa %s1431, 1
    %1433 = vsyncpa [#allocation6], 1
    %1434 = vsyncpa [#allocation9], 1
    %1435 = vsyncpa [#allocation4], 1
    %s1436 = scalar_lea.sflag [#allocation4], 1
    %1437 = vsyncpa %s1436, 1

// kernel: vit_lightweight_head_forward.11
$region0: #{vit_lightweight_head_forward.11}
  #allocation0 [shape = 'u32[]', space=smem, size = 0x4, offset = 0x4, fixed_abs, tag = 'smem constant byte address 0x4 - core index']
  #allocation1 [shape = 'u32[144,128]{1,0:T(1,128)}', space=vmem, size = 0x12000, scoped, tag = 'internal scratch']
  %s0 = inlined_call_operand.hbm [shape: bf16[2,18,18,8], index: 0, kind: input, shape index: {}]
  %s1 = inlined_call_operand.hbm [shape: bf16[72,8], index: 1, kind: input, shape index: {}]
  %s2 = inlined_call_operand.hbm [shape: f32[1,8], index: 2, kind: input, shape index: {}]
  %s3 = inlined_call_operand.hbm [shape: f32[1,8], index: 3, kind: input, shape index: {}]
  %s4 = inlined_call_operand.hbm [shape: bf16[8,128], index: 4, kind: input, shape index: {}]
  %s5 = inlined_call_operand.hbm [shape: f32[2,16,16,128], index: 5, kind: output, shape index: {}]
  %s6 = sld [smem:[#allocation0]]
  $region73: #{vit_lightweight_head_forward.11} parent=0
    _
  %s8 = ssub.s32 1, %s6
  %s9 = scalar_select 0, %s8, %s6
  $region1: #{vit_lightweight_head_forward.11} parent=0
    #allocation2 [shape = 'u8[221184]{0}', space=vmem, size = 0x36000, scoped, tag = 'input window, operand 0']
    #allocation3 [shape = 's32[2]{0}', space=sflag, size = 0x8, scoped, tag = 'scoped memory for vit_lightweight_head_forward.11']
    #allocation4 [shape = 's32[2]{0}', space=sflag, size = 0x8, scoped, tag = 'scoped memory for vit_lightweight_head_forward.11']
    #allocation5 [shape = 'u8[18432]{0}', space=vmem, size = 0x4800, scoped, tag = 'input window, operand 1, single buffered']
    #allocation6 [shape = 's32[1]{0}', space=sflag, size = 0x4, scoped, tag = 'scoped memory for vit_lightweight_head_forward.11']
    #allocation7 [shape = 'u8[512]{0}', space=vmem, size = 0x400, scoped, tag = 'input window, operand 2, single buffered']
    #allocation8 [shape = 'u8[512]{0}', space=vmem, size = 0x400, scoped, tag = 'input window, operand 3, single buffered']
    #allocation9 [shape = 's32[1]{0}', space=sflag, size = 0x4, scoped, tag = 'scoped memory for vit_lightweight_head_forward.11']
    #allocation10 [shape = 'u8[2048]{0}', space=vmem, size = 0x800, scoped, tag = 'input window, operand 4, single buffered']
    #allocation11 [shape = 'u8[262144]{0}', space=vmem, size = 0x40000, scoped, tag = 'output window, operand 0']
    %10 = vsyncpa [#allocation3], 0
    %s11 = scalar_lea.sflag [#allocation3], 1
    %12 = vsyncpa %s11, 0
    %13 = vsyncpa [#allocation6], 0
    %14 = vsyncpa [#allocation9], 0
    %15 = vsyncpa [#allocation4], 0
    %s16 = scalar_lea.sflag [#allocation4], 1
    %17 = vsyncpa %s16, 0
    loop: start=0, step=1, limit=4
    $region2: #{vit_lightweight_head_forward.11} parent=1 // loop_pre_header
      _
    $region3: #{vit_lightweight_head_forward.11} parent=1 // loop_header
      %s19 = sphi 0, %s23
      %p20 = scmp.ge.s32.totalorder %s19, 4
      %s29 = sphi 0, %s31
      %s32 = sphi 0, %s29
      %s33 = sphi 0, %s32
      %s49 = sphi 0, %s33
      %s53 = sphi 0, %s53
      %s55 = sphi 0, %s53
      %s56 = sphi 0, %s55
      %s70 = sphi 0, %s56
      %s74 = sphi 0, %s74
      %s76 = sphi 0, %s74
      %s77 = sphi 0, %s76
      %s91 = sphi 0, %s77
      %s95 = sphi 0, %s95
      %s97 = sphi 0, %s95
      %s98 = sphi 0, %s97
      %s112 = sphi 0, %s98
      %s116 = sphi 0, %s116
      %s118 = sphi 0, %s116
      %s119 = sphi 0, %s118
      %s133 = sphi 0, %s119
      %s139 = sphi 0, %s141
      %s142 = sphi 0, %s139
      %s143 = sphi 0, %s142
      %s159 = sphi 0, %s143
    $region4: #{vit_lightweight_head_forward.11} parent=1 // loop_header_branch
      %22 = sbr.rel (%p20) target = $region8
    $region5: #{vit_lightweight_head_forward.11} parent=1 // loop_body
      %s24 = ssub.s32 %s19, 1
      %s25 = ssub.s32 %s19, 2
      %s26 = sadd.s32 %s19, 1
      %s27 = ssub.s32 %s19, %s26
      %p28 = scmp.eq.s32.totalorder %s27, 0
      %s30 = sadd.s32 %s29, 1
      %s31 = scalar_select %p28, %s29, %s30
      %p34 = pneg %p28
      %p35 = scmp.eq.s32.totalorder %s19, 1
      %p36 = por %p34, %p35
      %p37 = scmp.ne.s32.totalorder %s29, %s32
      %p38 = scmp.eq.s32.totalorder %s19, 0
      %p39 = por %p37, %p38
      %p40 = scmp.ne.s32.totalorder %s29, %s32
      %p41 = scmp.eq.s32.totalorder %s24, 1
      %p42 = por %p40, %p41
      %p43 = scmp.ne.s32.totalorder %s32, %s33
      %p44 = scmp.eq.s32.totalorder %s24, 0
      %p45 = por %p43, %p44
      %p46 = scmp.ne.s32.totalorder %s32, %s33
      %p47 = scmp.eq.s32.totalorder %s25, 1
      %p48 = por %p46, %p47
      %p50 = scmp.ne.s32.totalorder %s33, %s49
      %p51 = scmp.eq.s32.totalorder %s25, 0
      %p52 = por %p50, %p51
      %s54 = sadd.s32 %s53, 1
      %p57 = scmp.eq.s32.totalorder %s19, 1
      %p58 = scmp.ne.s32.totalorder %s53, %s55
      %p59 = scmp.eq.s32.totalorder %s19, 0
      %p60 = por %p58, %p59
      %p61 = scmp.ne.s32.totalorder %s53, %s55
      %p62 = scmp.eq.s32.totalorder %s24, 1
      %p63 = por %p61, %p62
      %p64 = scmp.ne.s32.totalorder %s55, %s56
      %p65 = scmp.eq.s32.totalorder %s24, 0
      %p66 = por %p64, %p65
      %p67 = scmp.ne.s32.totalorder %s55, %s56
      %p68 = scmp.eq.s32.totalorder %s25, 1
      %p69 = por %p67, %p68
      %p71 = scmp.ne.s32.totalorder %s56, %s70
      %p72 = scmp.eq.s32.totalorder %s25, 0
      %p73 = por %p71, %p72
      %s75 = sadd.s32 %s74, 1
      %p78 = scmp.eq.s32.totalorder %s19, 1
      %p79 = scmp.ne.s32.totalorder %s74, %s76
      %p80 = scmp.eq.s32.totalorder %s19, 0
      %p81 = por %p79, %p80
      %p82 = scmp.ne.s32.totalorder %s74, %s76
      %p83 = scmp.eq.s32.totalorder %s24, 1
      %p84 = por %p82, %p83
      %p85 = scmp.ne.s32.totalorder %s76, %s77
      %p86 = scmp.eq.s32.totalorder %s24, 0
      %p87 = por %p85, %p86
      %p88 = scmp.ne.s32.totalorder %s76, %s77
      %p89 = scmp.eq.s32.totalorder %s25, 1
      %p90 = por %p88, %p89
      %p92 = scmp.ne.s32.totalorder %s77, %s91
      %p93 = scmp.eq.s32.totalorder %s25, 0
      %p94 = por %p92, %p93
      %s96 = sadd.s32 %s95, 1
      %p99 = scmp.eq.s32.totalorder %s19, 1
      %p100 = scmp.ne.s32.totalorder %s95, %s97
      %p101 = scmp.eq.s32.totalorder %s19, 0
      %p102 = por %p100, %p101
      %p103 = scmp.ne.s32.totalorder %s95, %s97
      %p104 = scmp.eq.s32.totalorder %s24, 1
      %p105 = por %p103, %p104
      %p106 = scmp.ne.s32.totalorder %s97, %s98
      %p107 = scmp.eq.s32.totalorder %s24, 0
      %p108 = por %p106, %p107
      %p109 = scmp.ne.s32.totalorder %s97, %s98
      %p110 = scmp.eq.s32.totalorder %s25, 1
      %p111 = por %p109, %p110
      %p113 = scmp.ne.s32.totalorder %s98, %s112
      %p114 = scmp.eq.s32.totalorder %s25, 0
      %p115 = por %p113, %p114
      %s117 = sadd.s32 %s116, 1
      %p120 = scmp.eq.s32.totalorder %s19, 1
      %p121 = scmp.ne.s32.totalorder %s116, %s118
      %p122 = scmp.eq.s32.totalorder %s19, 0
      %p123 = por %p121, %p122
      %p124 = scmp.ne.s32.totalorder %s116, %s118
      %p125 = scmp.eq.s32.totalorder %s24, 1
      %p126 = por %p124, %p125
      %p127 = scmp.ne.s32.totalorder %s118, %s119
      %p128 = scmp.eq.s32.totalorder %s24, 0
      %p129 = por %p127, %p128
      %p130 = scmp.ne.s32.totalorder %s118, %s119
      %p131 = scmp.eq.s32.totalorder %s25, 1
      %p132 = por %p130, %p131
      %p134 = scmp.ne.s32.totalorder %s119, %s133
      %p135 = scmp.eq.s32.totalorder %s25, 0
      %p136 = por %p134, %p135
      %s137 = ssub.s32 %s19, %s26
      %p138 = scmp.eq.s32.totalorder %s137, 0
      %s140 = sadd.s32 %s139, 1
      %s141 = scalar_select %p138, %s139, %s140
      %p144 = pneg %p138
      %p145 = scmp.eq.s32.totalorder %s19, 1
      %p146 = por %p144, %p145
      %p147 = scmp.ne.s32.totalorder %s139, %s142
      %p148 = scmp.eq.s32.totalorder %s19, 0
      %p149 = por %p147, %p148
      %p150 = scmp.ne.s32.totalorder %s139, %s142
      %p151 = scmp.eq.s32.totalorder %s24, 1
      %p152 = por %p150, %p151
      %p153 = scmp.ne.s32.totalorder %s142, %s143
      %p154 = scmp.eq.s32.totalorder %s24, 0
      %p155 = por %p153, %p154
      %p156 = scmp.ne.s32.totalorder %s142, %s143
      %p157 = scmp.eq.s32.totalorder %s25, 1
      %p158 = por %p156, %p157
      %p160 = scmp.ne.s32.totalorder %s143, %s159
      %p161 = scmp.eq.s32.totalorder %s25, 0
      %p162 = por %p160, %p161
      %p163 = scmp.le.s32.totalorder 1, %s19
      %p164 = scmp.lt.s32.totalorder %s19, 3
      %p165 = pnand %p163, %p164
      %p166 = pneg %p165
      // Predicated region
      $region9: #{vit_lightweight_head_forward.11} parent=5 // pred_check
        _
      $region10: #{vit_lightweight_head_forward.11} parent=5 // pred_check_branch
        %168 = sbr.rel (%p165) target = $region12
      $region11: #{vit_lightweight_head_forward.11} parent=5 // pred_region
        %s169 = ssub.s32 %s19, 1
        // Predicated region
        $region13: #{vit_lightweight_head_forward.11} parent=11 // pred_check
          %p170 = pneg %p66
        $region14: #{vit_lightweight_head_forward.11} parent=11 // pred_check_branch
          %172 = sbr.rel (%p170) target = $region16
        $region15: #{vit_lightweight_head_forward.11} parent=11 // pred_region
          %s174 = ssub.s32 576, 576
          %175 = vsyncadd [#allocation6], %s174
          %s176 = sshll.u32 [#allocation5], 4
          %s177 = int_to_ptr.vmem [resolvable:$true] %s176
          %182 = dma.hbm_to_vmem [thread:$0]  %s1, 576, %s177, [#allocation6], 64, 64, 4
        $region16: #{vit_lightweight_head_forward.11} parent=11 // pred_fallthru
          _
        // Predicated region
        $region17: #{vit_lightweight_head_forward.11} parent=11 // pred_check
          %p183 = pneg %p87
        $region18: #{vit_lightweight_head_forward.11} parent=11 // pred_check_branch
          %185 = sbr.rel (%p183) target = $region20
        $region19: #{vit_lightweight_head_forward.11} parent=11 // pred_region
          %s187 = ssub.s32 16, 16
          %188 = vsyncadd [#allocation6], %s187
          %s190 = sshll.u32 [#allocation7], 4
          %s191 = int_to_ptr.vmem [resolvable:$true] %s190
          %193 = dma.hbm_to_vmem [thread:$0]  %s2, 16, %s191, [#allocation6]
        $region20: #{vit_lightweight_head_forward.11} parent=11 // pred_fallthru
          _
        // Predicated region
        $region21: #{vit_lightweight_head_forward.11} parent=11 // pred_check
          %p194 = pneg %p108
        $region22: #{vit_lightweight_head_forward.11} parent=11 // pred_check_branch
          %196 = sbr.rel (%p194) target = $region24
        $region23: #{vit_lightweight_head_forward.11} parent=11 // pred_region
          %s198 = ssub.s32 16, 16
          %199 = vsyncadd [#allocation9], %s198
          %s201 = sshll.u32 [#allocation8], 4
          %s202 = int_to_ptr.vmem [resolvable:$true] %s201
          %204 = dma.hbm_to_vmem [thread:$0]  %s3, 16, %s202, [#allocation9]
        $region24: #{vit_lightweight_head_forward.11} parent=11 // pred_fallthru
          _
        // Predicated region
        $region25: #{vit_lightweight_head_forward.11} parent=11 // pred_check
          %p205 = pneg %p129
        $region26: #{vit_lightweight_head_forward.11} parent=11 // pred_check_branch
          %207 = sbr.rel (%p205) target = $region28
        $region27: #{vit_lightweight_head_forward.11} parent=11 // pred_region
          %s209 = ssub.s32 64, 64
          %210 = vsyncadd [#allocation9], %s209
          %s212 = sshll.u32 [#allocation10], 4
          %s213 = int_to_ptr.vmem [resolvable:$true] %s212
          %215 = dma.hbm_to_vmem [thread:$0]  %s4, 64, %s213, [#allocation9]
        $region28: #{vit_lightweight_head_forward.11} parent=11 // pred_fallthru
          _
      $region12: #{vit_lightweight_head_forward.11} parent=5 // pred_fallthru
        _
      %p216 = scmp.lt.s32.totalorder %s19, 2
      // Predicated region
      $region29: #{vit_lightweight_head_forward.11} parent=5 // pred_check
        %p217 = pneg %p216
      $region30: #{vit_lightweight_head_forward.11} parent=5 // pred_check_branch
        %219 = sbr.rel (%p217) target = $region32
      $region31: #{vit_lightweight_head_forward.11} parent=5 // pred_region
        // Predicated region
        $region33: #{vit_lightweight_head_forward.11} parent=31 // pred_check
          %p220 = pneg %p39
        $region34: #{vit_lightweight_head_forward.11} parent=31 // pred_check_branch
          %222 = sbr.rel (%p220) target = $region36
        $region35: #{vit_lightweight_head_forward.11} parent=31 // pred_region
          %s223 = sand.u32 %s29, 1
          %s224 = scalar_lea.sflag [#allocation3], %s223
          %s225 = sand.u32 %s29, 1
          %s226 = smul.addr %s225, 216
          %s227 = scalar_lea.vmem [#allocation2], %s226
          %s229 = ssub.s32 3456, 3456
          %230 = vsyncadd %s224, %s229
          %s231 = smul.addr %s19, 54
          %s232 = smul.addr %s231, 64
          %s233 = scalar_lea.hbm %s0, %s232
          %s234 = sshll.u32 %s227, 4
          %s235 = int_to_ptr.vmem [resolvable:$true] %s234
          %240 = dma.hbm_to_vmem [thread:$0]  %s233, 3456, %s235, %s224, 64, 64, 4
        $region36: #{vit_lightweight_head_forward.11} parent=31 // pred_fallthru
          _
      $region32: #{vit_lightweight_head_forward.11} parent=5 // pred_fallthru
        _
      %p241 = scmp.le.s32.totalorder 1, %s19
      %p242 = scmp.lt.s32.totalorder %s19, 3
      %p243 = pnand %p241, %p242
      %p244 = pneg %p243
      // Predicated region
      $region37: #{vit_lightweight_head_forward.11} parent=5 // pred_check
        _
      $region38: #{vit_lightweight_head_forward.11} parent=5 // pred_check_branch
        %246 = sbr.rel (%p243) target = $region40
      $region39: #{vit_lightweight_head_forward.11} parent=5 // pred_region
        %s247 = ssub.s32 %s19, 1
        %s248 = sand.u32 %s32, 1
        %s249 = scalar_lea.sflag [#allocation3], %s248
        %s250 = sand.u32 %s32, 1
        %s251 = smul.addr %s250, 216
        %s252 = scalar_lea.vmem [#allocation2], %s251
        // Predicated region
        $region41: #{vit_lightweight_head_forward.11} parent=39 // pred_check
          %p253 = pneg %p45
        $region42: #{vit_lightweight_head_forward.11} parent=39 // pred_check_branch
          %255 = sbr.rel (%p253) target = $region44
        $region43: #{vit_lightweight_head_forward.11} parent=39 // pred_region
          %256 = dma.done %s249, 3456
        $region44: #{vit_lightweight_head_forward.11} parent=39 // pred_fallthru
          _
        // Predicated region
        $region45: #{vit_lightweight_head_forward.11} parent=39 // pred_check
          %p257 = pneg %p66
        $region46: #{vit_lightweight_head_forward.11} parent=39 // pred_check_branch
          %259 = sbr.rel (%p257) target = $region48
        $region47: #{vit_lightweight_head_forward.11} parent=39 // pred_region
          %260 = dma.done [#allocation6], 576
        $region48: #{vit_lightweight_head_forward.11} parent=39 // pred_fallthru
          _
        // Predicated region
        $region49: #{vit_lightweight_head_forward.11} parent=39 // pred_check
          %p261 = pneg %p87
        $region50: #{vit_lightweight_head_forward.11} parent=39 // pred_check_branch
          %263 = sbr.rel (%p261) target = $region52
        $region51: #{vit_lightweight_head_forward.11} parent=39 // pred_region
          %264 = dma.done [#allocation6], 16
        $region52: #{vit_lightweight_head_forward.11} parent=39 // pred_fallthru
          _
        // Predicated region
        $region53: #{vit_lightweight_head_forward.11} parent=39 // pred_check
          %p265 = pneg %p108
        $region54: #{vit_lightweight_head_forward.11} parent=39 // pred_check_branch
          %267 = sbr.rel (%p265) target = $region56
        $region55: #{vit_lightweight_head_forward.11} parent=39 // pred_region
          %268 = dma.done [#allocation9], 16
        $region56: #{vit_lightweight_head_forward.11} parent=39 // pred_fallthru
          _
        // Predicated region
        $region57: #{vit_lightweight_head_forward.11} parent=39 // pred_check
          %p269 = pneg %p129
        $region58: #{vit_lightweight_head_forward.11} parent=39 // pred_check_branch
          %271 = sbr.rel (%p269) target = $region60
        $region59: #{vit_lightweight_head_forward.11} parent=39 // pred_region
          %272 = dma.done [#allocation9], 64
        $region60: #{vit_lightweight_head_forward.11} parent=39 // pred_fallthru
          _
        %s273 = sand.u32 %s32, 1
        %s274 = scalar_lea.sflag [#allocation3], %s273
        %s275 = sand.u32 %s32, 1
        %s276 = smul.addr %s275, 216
        %s277 = scalar_lea.vmem [#allocation2], %s276
        %p278 = pneg %p45
        %p279 = pneg %p42
        %p280 = pneg %p66
        %p281 = pneg %p63
        %p282 = pneg %p87
        %p283 = pneg %p84
        %p284 = pneg %p108
        %p285 = pneg %p105
        %p286 = pneg %p129
        %p287 = pneg %p126
        %p288 = pneg %p155
        %p289 = pneg %p152
        %s290 = sand.u32 %s142, 1
        %s291 = scalar_lea.sflag [#allocation4], %s290
        %s292 = sand.u32 %s142, 1
        %s293 = smul.addr %s292, 256
        %s294 = scalar_lea.vmem [#allocation11], %s293
        %v296 = vld [vmem:[%s252] sm:$0xf]
        %v297 = vld [vmem:[%s252 + $0x4] sm:$0xf]
        %v298 = vld [vmem:[%s252 + $0x8] sm:$0x1]
        %v299 = vld [vmem:[%s252 + $0xc] sm:$0xf]
        %v300 = vld [vmem:[%s252 + $0x10] sm:$0xf]
        %v301 = vld [vmem:[%s252 + $0x14] sm:$0x1]
        %v302 = vld [vmem:[%s252 + $0x18] sm:$0xf]
        %v303 = vld [vmem:[%s252 + $0x1c] sm:$0xf]
        %v304 = vld [vmem:[%s252 + $0x20] sm:$0x1]
        %v305 = vld [vmem:[%s252 + $0x24] sm:$0xf]
        %v306 = vld [vmem:[%s252 + $0x28] sm:$0xf]
        %v307 = vld [vmem:[%s252 + $0x2c] sm:$0x1]
        %v308 = vld [vmem:[%s252 + $0x30] sm:$0xf]
        %v309 = vld [vmem:[%s252 + $0x34] sm:$0xf]
        %v310 = vld [vmem:[%s252 + $0x38] sm:$0x1]
        %v311 = vld [vmem:[%s252 + $0x3c] sm:$0xf]
        %v312 = vld [vmem:[%s252 + $0x40] sm:$0xf]
        %v313 = vld [vmem:[%s252 + $0x44] sm:$0x1]
        %v314 = vld [vmem:[%s252 + $0x48] sm:$0xf]
        %v315 = vld [vmem:[%s252 + $0x4c] sm:$0xf]
        %v316 = vld [vmem:[%s252 + $0x50] sm:$0x1]
        %v317 = vld [vmem:[%s252 + $0x54] sm:$0xf]
        %v318 = vld [vmem:[%s252 + $0x58] sm:$0xf]
        %v319 = vld [vmem:[%s252 + $0x5c] sm:$0x1]
        %v320 = vld [vmem:[%s252 + $0x60] sm:$0xf]
        %v321 = vld [vmem:[%s252 + $0x64] sm:$0xf]
        %v322 = vld [vmem:[%s252 + $0x68] sm:$0x1]
        %v323 = vld [vmem:[%s252 + $0x6c] sm:$0xf]
        %v324 = vld [vmem:[%s252 + $0x70] sm:$0xf]
        %v325 = vld [vmem:[%s252 + $0x74] sm:$0x1]
        %v326 = vld [vmem:[%s252 + $0x78] sm:$0xf]
        %v327 = vld [vmem:[%s252 + $0x7c] sm:$0xf]
        %v328 = vld [vmem:[%s252 + $0x80] sm:$0x1]
        %v329 = vld [vmem:[%s252 + $0x84] sm:$0xf]
        %v330 = vld [vmem:[%s252 + $0x88] sm:$0xf]
        %v331 = vld [vmem:[%s252 + $0x8c] sm:$0x1]
        %v332 = vld [vmem:[%s252 + $0x90] sm:$0xf]
        %v333 = vld [vmem:[%s252 + $0x94] sm:$0xf]
        %v334 = vld [vmem:[%s252 + $0x98] sm:$0x1]
        %v335 = vld [vmem:[%s252 + $0x9c] sm:$0xf]
        %v336 = vld [vmem:[%s252 + $0xa0] sm:$0xf]
        %v337 = vld [vmem:[%s252 + $0xa4] sm:$0x1]
        %v338 = vld [vmem:[%s252 + $0xa8] sm:$0xf]
        %v339 = vld [vmem:[%s252 + $0xac] sm:$0xf]
        %v340 = vld [vmem:[%s252 + $0xb0] sm:$0x1]
        %v341 = vld [vmem:[%s252 + $0xb4] sm:$0xf]
        %v342 = vld [vmem:[%s252 + $0xb8] sm:$0xf]
        %v343 = vld [vmem:[%s252 + $0xbc] sm:$0x1]
        %v344 = vld [vmem:[%s252 + $0xc0] sm:$0xf]
        %v345 = vld [vmem:[%s252 + $0xc4] sm:$0xf]
        %v346 = vld [vmem:[%s252 + $0xc8] sm:$0x1]
        %v347 = vld [vmem:[%s252 + $0xcc] sm:$0xf]
        %v348 = vld [vmem:[%s252 + $0xd0] sm:$0xf]
        %v349 = vld [vmem:[%s252 + $0xd4] sm:$0x1]
        %v350 = vld [vmem:[#allocation5] sm:$0xf]
        %vm351 = vsmask.f32 3328
        %vm352 = vsmask.f32 7440
        %vm353 = vmor %vm351, %vm352
        %v355 = vshrl.u32 %v296, 16
        %v357 = vrot.slane %v355, 4
        %v358 = vshll.u32 %v296, 16
        %v360 = vrot.slane %v358, 5
        %v361 = vor.u32 %v357, %v360
        %v362 = vrot.slane %v361, 4
        %v364 = vshll.u32 %v297, 16
        %v366 = vrot.slane %v364, 5
        %v367 = vsel %vm353, %v362, %v366
        %v368 = vshrl.u32 %v297, 16
        %v370 = vrot.slane %v368, 4
        %v371 = vor.u32 %v370, %v366
        %v372 = vrot.slane %v371, 4
        %v374 = vshll.u32 %v298, 16
        %v376 = vrot.slane %v374, 5
        %v377 = vsel %vm353, %v372, %v376
        %v379 = vshrl.u32 %v299, 16
        %v381 = vrot.slane %v379, 4
        %v382 = vshll.u32 %v299, 16
        %v384 = vrot.slane %v382, 5
        %v385 = vor.u32 %v381, %v384
        %v386 = vrot.slane %v385, 4
        %v388 = vshll.u32 %v300, 16
        %v390 = vrot.slane %v388, 5
        %v391 = vsel %vm353, %v386, %v390
        %v392 = vshrl.u32 %v300, 16
        %v394 = vrot.slane %v392, 4
        %v395 = vor.u32 %v394, %v390
        %v396 = vrot.slane %v395, 4
        %v398 = vshll.u32 %v301, 16
        %v400 = vrot.slane %v398, 5
        %v401 = vsel %vm353, %v396, %v400
        %v403 = vshrl.u32 %v302, 16
        %v405 = vrot.slane %v403, 4
        %v406 = vshll.u32 %v302, 16
        %v408 = vrot.slane %v406, 5
        %v409 = vor.u32 %v405, %v408
        %v410 = vrot.slane %v409, 4
        %v412 = vshll.u32 %v303, 16
        %v414 = vrot.slane %v412, 5
        %v415 = vsel %vm353, %v410, %v414
        %v416 = vshrl.u32 %v303, 16
        %v418 = vrot.slane %v416, 4
        %v419 = vor.u32 %v418, %v414
        %v420 = vrot.slane %v419, 4
        %v422 = vshll.u32 %v304, 16
        %v424 = vrot.slane %v422, 5
        %v425 = vsel %vm353, %v420, %v424
        %v427 = vshrl.u32 %v305, 16
        %v429 = vrot.slane %v427, 4
        %v430 = vshll.u32 %v305, 16
        %v432 = vrot.slane %v430, 5
        %v433 = vor.u32 %v429, %v432
        %v434 = vrot.slane %v433, 4
        %v436 = vshll.u32 %v306, 16
        %v438 = vrot.slane %v436, 5
        %v439 = vsel %vm353, %v434, %v438
        %v440 = vshrl.u32 %v306, 16
        %v442 = vrot.slane %v440, 4
        %v443 = vor.u32 %v442, %v438
        %v444 = vrot.slane %v443, 4
        %v446 = vshll.u32 %v307, 16
        %v448 = vrot.slane %v446, 5
        %v449 = vsel %vm353, %v444, %v448
        %v451 = vshrl.u32 %v308, 16
        %v453 = vrot.slane %v451, 4
        %v454 = vshll.u32 %v308, 16
        %v456 = vrot.slane %v454, 5
        %v457 = vor.u32 %v453, %v456
        %v458 = vrot.slane %v457, 4
        %v460 = vshll.u32 %v309, 16
        %v462 = vrot.slane %v460, 5
        %v463 = vsel %vm353, %v458, %v462
        %v464 = vshrl.u32 %v309, 16
        %v466 = vrot.slane %v464, 4
        %v467 = vor.u32 %v466, %v462
        %v468 = vrot.slane %v467, 4
        %v470 = vshll.u32 %v310, 16
        %v472 = vrot.slane %v470, 5
        %v473 = vsel %vm353, %v468, %v472
        %v475 = vshrl.u32 %v311, 16
        %v477 = vrot.slane %v475, 4
        %v478 = vshll.u32 %v311, 16
        %v480 = vrot.slane %v478, 5
        %v481 = vor.u32 %v477, %v480
        %v482 = vrot.slane %v481, 4
        %v484 = vshll.u32 %v312, 16
        %v486 = vrot.slane %v484, 5
        %v487 = vsel %vm353, %v482, %v486
        %v488 = vshrl.u32 %v312, 16
        %v490 = vrot.slane %v488, 4
        %v491 = vor.u32 %v490, %v486
        %v492 = vrot.slane %v491, 4
        %v494 = vshll.u32 %v313, 16
        %v496 = vrot.slane %v494, 5
        %v497 = vsel %vm353, %v492, %v496
        %v499 = vshrl.u32 %v314, 16
        %v501 = vrot.slane %v499, 4
        %v502 = vshll.u32 %v314, 16
        %v504 = vrot.slane %v502, 5
        %v505 = vor.u32 %v501, %v504
        %v506 = vrot.slane %v505, 4
        %v508 = vshll.u32 %v315, 16
        %v510 = vrot.slane %v508, 5
        %v511 = vsel %vm353, %v506, %v510
        %v512 = vshrl.u32 %v315, 16
        %v514 = vrot.slane %v512, 4
        %v515 = vor.u32 %v514, %v510
        %v516 = vrot.slane %v515, 4
        %v518 = vshll.u32 %v316, 16
        %v520 = vrot.slane %v518, 5
        %v521 = vsel %vm353, %v516, %v520
        %v523 = vshrl.u32 %v317, 16
        %v525 = vrot.slane %v523, 4
        %v526 = vshll.u32 %v317, 16
        %v528 = vrot.slane %v526, 5
        %v529 = vor.u32 %v525, %v528
        %v530 = vrot.slane %v529, 4
        %v532 = vshll.u32 %v318, 16
        %v534 = vrot.slane %v532, 5
        %v535 = vsel %vm353, %v530, %v534
        %v536 = vshrl.u32 %v318, 16
        %v538 = vrot.slane %v536, 4
        %v539 = vor.u32 %v538, %v534
        %v540 = vrot.slane %v539, 4
        %v542 = vshll.u32 %v319, 16
        %v544 = vrot.slane %v542, 5
        %v545 = vsel %vm353, %v540, %v544
        %v547 = vshrl.u32 %v320, 16
        %v549 = vrot.slane %v547, 4
        %v550 = vshll.u32 %v320, 16
        %v552 = vrot.slane %v550, 5
        %v553 = vor.u32 %v549, %v552
        %v554 = vrot.slane %v553, 4
        %v556 = vshll.u32 %v321, 16
        %v558 = vrot.slane %v556, 5
        %v559 = vsel %vm353, %v554, %v558
        %v560 = vshrl.u32 %v321, 16
        %v562 = vrot.slane %v560, 4
        %v563 = vor.u32 %v562, %v558
        %v564 = vrot.slane %v563, 4
        %v566 = vshll.u32 %v322, 16
        %v568 = vrot.slane %v566, 5
        %v569 = vsel %vm353, %v564, %v568
        %v571 = vshrl.u32 %v323, 16
        %v573 = vrot.slane %v571, 4
        %v574 = vshll.u32 %v323, 16
        %v576 = vrot.slane %v574, 5
        %v577 = vor.u32 %v573, %v576
        %v578 = vrot.slane %v577, 4
        %v580 = vshll.u32 %v324, 16
        %v582 = vrot.slane %v580, 5
        %v583 = vsel %vm353, %v578, %v582
        %v584 = vshrl.u32 %v324, 16
        %v586 = vrot.slane %v584, 4
        %v587 = vor.u32 %v586, %v582
        %v588 = vrot.slane %v587, 4
        %v590 = vshll.u32 %v325, 16
        %v592 = vrot.slane %v590, 5
        %v593 = vsel %vm353, %v588, %v592
        %v595 = vshrl.u32 %v326, 16
        %v597 = vrot.slane %v595, 4
        %v598 = vshll.u32 %v326, 16
        %v600 = vrot.slane %v598, 5
        %v601 = vor.u32 %v597, %v600
        %v602 = vrot.slane %v601, 4
        %v604 = vshll.u32 %v327, 16
        %v606 = vrot.slane %v604, 5
        %v607 = vsel %vm353, %v602, %v606
        %v608 = vshrl.u32 %v327, 16
        %v610 = vrot.slane %v608, 4
        %v611 = vor.u32 %v610, %v606
        %v612 = vrot.slane %v611, 4
        %v614 = vshll.u32 %v328, 16
        %v616 = vrot.slane %v614, 5
        %v617 = vsel %vm353, %v612, %v616
        %v619 = vshrl.u32 %v329, 16
        %v621 = vrot.slane %v619, 4
        %v622 = vshll.u32 %v329, 16
        %v624 = vrot.slane %v622, 5
        %v625 = vor.u32 %v621, %v624
        %v626 = vrot.slane %v625, 4
        %v628 = vshll.u32 %v330, 16
        %v630 = vrot.slane %v628, 5
        %v631 = vsel %vm353, %v626, %v630
        %v632 = vshrl.u32 %v330, 16
        %v634 = vrot.slane %v632, 4
        %v635 = vor.u32 %v634, %v630
        %v636 = vrot.slane %v635, 4
        %v638 = vshll.u32 %v331, 16
        %v640 = vrot.slane %v638, 5
        %v641 = vsel %vm353, %v636, %v640
        %v643 = vshrl.u32 %v332, 16
        %v645 = vrot.slane %v643, 4
        %v646 = vshll.u32 %v332, 16
        %v648 = vrot.slane %v646, 5
        %v649 = vor.u32 %v645, %v648
        %v650 = vrot.slane %v649, 4
        %v652 = vshll.u32 %v333, 16
        %v654 = vrot.slane %v652, 5
        %v655 = vsel %vm353, %v650, %v654
        %v656 = vshrl.u32 %v333, 16
        %v658 = vrot.slane %v656, 4
        %v659 = vor.u32 %v658, %v654
        %v660 = vrot.slane %v659, 4
        %v662 = vshll.u32 %v334, 16
        %v664 = vrot.slane %v662, 5
        %v665 = vsel %vm353, %v660, %v664
        %v667 = vshrl.u32 %v335, 16
        %v669 = vrot.slane %v667, 4
        %v670 = vshll.u32 %v335, 16
        %v672 = vrot.slane %v670, 5
        %v673 = vor.u32 %v669, %v672
        %v674 = vrot.slane %v673, 4
        %v676 = vshll.u32 %v336, 16
        %v678 = vrot.slane %v676, 5
        %v679 = vsel %vm353, %v674, %v678
        %v680 = vshrl.u32 %v336, 16
        %v682 = vrot.slane %v680, 4
        %v683 = vor.u32 %v682, %v678
        %v684 = vrot.slane %v683, 4
        %v686 = vshll.u32 %v337, 16
        %v688 = vrot.slane %v686, 5
        %v689 = vsel %vm353, %v684, %v688
        %v691 = vshrl.u32 %v338, 16
        %v693 = vrot.slane %v691, 4
        %v694 = vshll.u32 %v338, 16
        %v696 = vrot.slane %v694, 5
        %v697 = vor.u32 %v693, %v696
        %v698 = vrot.slane %v697, 4
        %v700 = vshll.u32 %v339, 16
        %v702 = vrot.slane %v700, 5
        %v703 = vsel %vm353, %v698, %v702
        %v704 = vshrl.u32 %v339, 16
        %v706 = vrot.slane %v704, 4
        %v707 = vor.u32 %v706, %v702
        %v708 = vrot.slane %v707, 4
        %v710 = vshll.u32 %v340, 16
        %v712 = vrot.slane %v710, 5
        %v713 = vsel %vm353, %v708, %v712
        %v715 = vshrl.u32 %v341, 16
        %v717 = vrot.slane %v715, 4
        %v718 = vshll.u32 %v341, 16
        %v720 = vrot.slane %v718, 5
        %v721 = vor.u32 %v717, %v720
        %v722 = vrot.slane %v721, 4
        %v724 = vshll.u32 %v342, 16
        %v726 = vrot.slane %v724, 5
        %v727 = vsel %vm353, %v722, %v726
        %v728 = vshrl.u32 %v342, 16
        %v730 = vrot.slane %v728, 4
        %v731 = vor.u32 %v730, %v726
        %v732 = vrot.slane %v731, 4
        %v734 = vshll.u32 %v343, 16
        %v736 = vrot.slane %v734, 5
        %v737 = vsel %vm353, %v732, %v736
        %v738 = vld [vmem:[#allocation5 + $0x4] sm:$0xf]
        %v739 = vunpack.c.l.b16 %v367
        %v740 = vunpack.c.l.b16 %v377
        %v741 = vunpack.c.l.b16 %v391
        %v742 = vunpack.c.l.b16 %v401
        %v743 = vunpack.c.l.b16 %v415
        %v744 = vunpack.c.l.b16 %v425
        %v745 = vunpack.c.l.b16 %v439
        %v746 = vunpack.c.l.b16 %v449
        %v747 = vunpack.c.l.b16 %v463
        %v748 = vunpack.c.l.b16 %v473
        %v749 = vunpack.c.l.b16 %v487
        %v750 = vunpack.c.l.b16 %v497
        %v751 = vunpack.c.l.b16 %v511
        %v752 = vunpack.c.l.b16 %v521
        %v753 = vunpack.c.l.b16 %v535
        %v754 = vunpack.c.l.b16 %v545
        %v755 = vunpack.c.l.b16 %v559
        %v756 = vunpack.c.l.b16 %v569
        %v757 = vunpack.c.l.b16 %v583
        %v758 = vunpack.c.l.b16 %v593
        %v759 = vunpack.c.l.b16 %v607
        %v760 = vunpack.c.l.b16 %v617
        %v761 = vunpack.c.l.b16 %v631
        %v762 = vunpack.c.l.b16 %v641
        %v763 = vunpack.c.l.b16 %v655
        %v764 = vunpack.c.l.b16 %v665
        %v765 = vunpack.c.l.b16 %v679
        %v766 = vunpack.c.l.b16 %v689
        %v767 = vunpack.c.l.b16 %v703
        %v768 = vunpack.c.l.b16 %v713
        %v769 = vunpack.c.l.b16 %v727
        %v770 = vunpack.c.l.b16 %v737
        %v771 = vpack.c.b16 %v740, %v739
        %v772 = vpack.c.b16 %v742, %v741
        %v773 = vpack.c.b16 %v744, %v743
        %v774 = vpack.c.b16 %v746, %v745
        %v775 = vpack.c.b16 %v748, %v747
        %v776 = vpack.c.b16 %v750, %v749
        %v777 = vpack.c.b16 %v752, %v751
        %v778 = vpack.c.b16 %v754, %v753
        %v779 = vpack.c.b16 %v756, %v755
        %v780 = vpack.c.b16 %v758, %v757
        %v781 = vpack.c.b16 %v760, %v759
        %v782 = vpack.c.b16 %v762, %v761
        %v783 = vpack.c.b16 %v764, %v763
        %v784 = vpack.c.b16 %v766, %v765
        %v785 = vpack.c.b16 %v768, %v767
        %v786 = vpack.c.b16 %v770, %v769
        %vm787 = vcmask 64512
        %v789 = vsel %vm787, %v771, 0
        %v792 = vsel %vm787, %v772, 0
        %v795 = vsel %vm787, %v773, 0
        %v798 = vsel %vm787, %v774, 0
        %v801 = vsel %vm787, %v775, 0
        %v804 = vsel %vm787, %v776, 0
        %v807 = vsel %vm787, %v777, 0
        %v810 = vsel %vm787, %v778, 0
        %v813 = vsel %vm787, %v779, 0
        %v816 = vsel %vm787, %v780, 0
        %v819 = vsel %vm787, %v781, 0
        %v822 = vsel %vm787, %v782, 0
        %v825 = vsel %vm787, %v783, 0
        %v828 = vsel %vm787, %v784, 0
        %v831 = vsel %vm787, %v785, 0
        %v834 = vsel %vm787, %v786, 0
        %vm836 = vcmask 1043456
        %v838 = vsel %vm836, %v738, 0
        %840 = vmatprep.subr.bf16.mxu0 0
        %841 = vmatpush1.bf16.msra.mxu0 %v838
        %842 = vmatprep.subr.bf16.mxu0 0
        %843 = vmatpush1.bf16.msra.mxu0 0
        %844 = vmatprep.subr.bf16.mxu0 0
        %845 = vmatpush1.bf16.msra.mxu0 0
        %846 = vmatprep.subr.bf16.mxu0 0
        %847 = vmatpush1.bf16.msra.mxu0 0
        %848 = vmatprep.subr.bf16.mxu0 0
        %849 = vmatpush1.bf16.msra.mxu0 0
        %850 = vmatprep.subr.bf16.mxu0 0
        %851 = vmatpush1.bf16.msra.mxu0 0
        %852 = vmatprep.subr.bf16.mxu0 0
        %853 = vmatpush1.bf16.msra.mxu0 0
        %854 = vmatprep.subr.bf16.mxu0 0
        %855 = vmatpush1.bf16.msra.mxu0 0
        %856 = vmatprep.subr.bf16.mxu0 0
        %857 = vmatpush1.bf16.msra.mxu0 0
        %858 = vmatprep.subr.bf16.mxu0 0
        %859 = vmatpush1.bf16.msra.mxu0 0
        %860 = vmatprep.subr.bf16.mxu0 0
        %861 = vmatpush1.bf16.msra.mxu0 0
        %862 = vmatprep.subr.bf16.mxu0 0
        %863 = vmatpush1.bf16.msra.mxu0 0
        %864 = vmatprep.subr.bf16.mxu0 0
        %865 = vmatpush1.bf16.msra.mxu0 0
        %866 = vmatprep.subr.bf16.mxu0 0
        %867 = vmatpush1.bf16.msra.mxu0 0
        %868 = vmatprep.subr.bf16.mxu0 0
        %869 = vmatpush1.bf16.msra.mxu0 0
        %870 = vmatprep.subr.bf16.mxu0 0
        %871 = vmatpush1.bf16.msra.mxu0 0
        %872 = vmatprep.mubr.bf16.mxu0 0
        %873 = vmatmul.mubr.bf16.gmra.mrb[0].mxu0 %v789
        %v874 = vpop.f32.mrb[0].mxu0
        %v875 = vadd.f32 0.0, %v874
        %v876 = vpop.f32.mrb[0].mxu0
        %v877 = vpop.f32.mrb[0].mxu0
        %v878 = vadd.f32 0.0, %v877
        %v879 = vpop.f32.mrb[0].mxu0
        %880 = vmatprep.mubr.bf16.mxu0 0
        %881 = vmatmul.mubr.bf16.gmra.mrb[0].mxu0 %v792
        %v882 = vpop.f32.mrb[0].mxu0
        %v883 = vadd.f32 0.0, %v882
        %v884 = vpop.f32.mrb[0].mxu0
        %v885 = vpop.f32.mrb[0].mxu0
        %v886 = vadd.f32 0.0, %v885
        %v887 = vpop.f32.mrb[0].mxu0
        %888 = vmatprep.mubr.bf16.mxu0 0
        %889 = vmatmul.mubr.bf16.gmra.mrb[0].mxu0 %v795
        %v890 = vpop.f32.mrb[0].mxu0
        %v891 = vadd.f32 0.0, %v890
        %v892 = vpop.f32.mrb[0].mxu0
        %v893 = vpop.f32.mrb[0].mxu0
        %v894 = vadd.f32 0.0, %v893
        %v895 = vpop.f32.mrb[0].mxu0
        %896 = vmatprep.mubr.bf16.mxu0 0
        %897 = vmatmul.mubr.bf16.gmra.mrb[0].mxu0 %v798
        %v898 = vpop.f32.mrb[0].mxu0
        %v899 = vadd.f32 0.0, %v898
        %v900 = vpop.f32.mrb[0].mxu0
        %v901 = vpop.f32.mrb[0].mxu0
        %v902 = vadd.f32 0.0, %v901
        %v903 = vpop.f32.mrb[0].mxu0
        %904 = vmatprep.mubr.bf16.mxu0 0
        %905 = vmatmul.mubr.bf16.gmra.mrb[0].mxu0 %v801
        %v906 = vpop.f32.mrb[0].mxu0
        %v907 = vadd.f32 0.0, %v906
        %v908 = vpop.f32.mrb[0].mxu0
        %v909 = vpop.f32.mrb[0].mxu0
        %v910 = vadd.f32 0.0, %v909
        %v911 = vpop.f32.mrb[0].mxu0
        %912 = vmatprep.mubr.bf16.mxu0 0
        %913 = vmatmul.mubr.bf16.gmra.mrb[0].mxu0 %v804
        %v914 = vpop.f32.mrb[0].mxu0
        %v915 = vadd.f32 0.0, %v914
        %v916 = vpop.f32.mrb[0].mxu0
        %v917 = vpop.f32.mrb[0].mxu0
        %v918 = vadd.f32 0.0, %v917
        %v919 = vpop.f32.mrb[0].mxu0
        %920 = vmatprep.mubr.bf16.mxu0 0
        %921 = vmatmul.mubr.bf16.gmra.mrb[0].mxu0 %v807
        %v922 = vpop.f32.mrb[0].mxu0
        %v923 = vadd.f32 0.0, %v922
        %v924 = vpop.f32.mrb[0].mxu0
        %v925 = vpop.f32.mrb[0].mxu0
        %v926 = vadd.f32 0.0, %v925
        %v927 = vpop.f32.mrb[0].mxu0
        %928 = vmatprep.mubr.bf16.mxu0 0
        %929 = vmatmul.mubr.bf16.gmra.mrb[0].mxu0 %v810
        %v930 = vpop.f32.mrb[0].mxu0
        %v931 = vadd.f32 0.0, %v930
        %v932 = vpop.f32.mrb[0].mxu0
        %v933 = vpop.f32.mrb[0].mxu0
        %v934 = vadd.f32 0.0, %v933
        %v935 = vpop.f32.mrb[0].mxu0
        %936 = vmatprep.mubr.bf16.mxu0 0
        %937 = vmatmul.mubr.bf16.gmra.mrb[0].mxu0 %v813
        %v938 = vpop.f32.mrb[0].mxu0
        %v939 = vadd.f32 0.0, %v938
        %v940 = vpop.f32.mrb[0].mxu0
        %v941 = vpop.f32.mrb[0].mxu0
        %v942 = vadd.f32 0.0, %v941
        %v943 = vpop.f32.mrb[0].mxu0
        %944 = vmatprep.mubr.bf16.mxu0 0
        %945 = vmatmul.mubr.bf16.gmra.mrb[0].mxu0 %v816
        %v946 = vpop.f32.mrb[0].mxu0
        %v947 = vadd.f32 0.0, %v946
        %v948 = vpop.f32.mrb[0].mxu0
        %v949 = vpop.f32.mrb[0].mxu0
        %v950 = vadd.f32 0.0, %v949
        %v951 = vpop.f32.mrb[0].mxu0
        %952 = vmatprep.mubr.bf16.mxu0 0
        %953 = vmatmul.mubr.bf16.gmra.mrb[0].mxu0 %v819
        %v954 = vpop.f32.mrb[0].mxu0
        %v955 = vadd.f32 0.0, %v954
        %v956 = vpop.f32.mrb[0].mxu0
        %v957 = vpop.f32.mrb[0].mxu0
        %v958 = vadd.f32 0.0, %v957
        %v959 = vpop.f32.mrb[0].mxu0
        %960 = vmatprep.mubr.bf16.mxu0 0
        %961 = vmatmul.mubr.bf16.gmra.mrb[0].mxu0 %v822
        %v962 = vpop.f32.mrb[0].mxu0
        %v963 = vadd.f32 0.0, %v962
        %v964 = vpop.f32.mrb[0].mxu0
        %v965 = vpop.f32.mrb[0].mxu0
        %v966 = vadd.f32 0.0, %v965
        %v967 = vpop.f32.mrb[0].mxu0
        %968 = vmatprep.mubr.bf16.mxu0 0
        %969 = vmatmul.mubr.bf16.gmra.mrb[0].mxu0 %v825
        %v970 = vpop.f32.mrb[0].mxu0
        %v971 = vadd.f32 0.0, %v970
        %v972 = vpop.f32.mrb[0].mxu0
        %v973 = vpop.f32.mrb[0].mxu0
        %v974 = vadd.f32 0.0, %v973
        %v975 = vpop.f32.mrb[0].mxu0
        %976 = vmatprep.mubr.bf16.mxu0 0
        %977 = vmatmul.mubr.bf16.gmra.mrb[0].mxu0 %v828
        %v978 = vpop.f32.mrb[0].mxu0
        %v979 = vadd.f32 0.0, %v978
        %v980 = vpop.f32.mrb[0].mxu0
        %v981 = vpop.f32.mrb[0].mxu0
        %v982 = vadd.f32 0.0, %v981
        %v983 = vpop.f32.mrb[0].mxu0
        %984 = vmatprep.mubr.bf16.mxu0 0
        %985 = vmatmul.mubr.bf16.gmra.mrb[0].mxu0 %v831
        %v986 = vpop.f32.mrb[0].mxu0
        %v987 = vadd.f32 0.0, %v986
        %v988 = vpop.f32.mrb[0].mxu0
        %v989 = vpop.f32.mrb[0].mxu0
        %v990 = vadd.f32 0.0, %v989
        %v991 = vpop.f32.mrb[0].mxu0
        %992 = vmatprep.mubr.bf16.mxu0 0
        %993 = vmatmul.mubr.bf16.gmra.mrb[0].mxu0 %v834
        %v994 = vpop.f32.mrb[0].mxu0
        %v995 = vadd.f32 0.0, %v994
        %v996 = vpop.f32.mrb[0].mxu0
        %v997 = vpop.f32.mrb[0].mxu0
        %v998 = vadd.f32 0.0, %v997
        %v999 = vpop.f32.mrb[0].mxu0
        %1000 = vdwg.mxu0
        %v1033 = vunpack.c.l.b16 %v296
        %v1034 = vunpack.c.l.b16 %v297
        %v1035 = vunpack.c.l.b16 %v299
        %v1036 = vunpack.c.l.b16 %v300
        %v1037 = vunpack.c.l.b16 %v302
        %v1038 = vunpack.c.l.b16 %v303
        %v1039 = vunpack.c.l.b16 %v305
        %v1040 = vunpack.c.l.b16 %v306
        %v1041 = vunpack.c.l.b16 %v308
        %v1042 = vunpack.c.l.b16 %v309
        %v1043 = vunpack.c.l.b16 %v311
        %v1044 = vunpack.c.l.b16 %v312
        %v1045 = vunpack.c.l.b16 %v314
        %v1046 = vunpack.c.l.b16 %v315
        %v1047 = vunpack.c.l.b16 %v317
        %v1048 = vunpack.c.l.b16 %v318
        %v1049 = vunpack.c.l.b16 %v320
        %v1050 = vunpack.c.l.b16 %v321
        %v1051 = vunpack.c.l.b16 %v323
        %v1052 = vunpack.c.l.b16 %v324
        %v1053 = vunpack.c.l.b16 %v326
        %v1054 = vunpack.c.l.b16 %v327
        %v1055 = vunpack.c.l.b16 %v329
        %v1056 = vunpack.c.l.b16 %v330
        %v1057 = vunpack.c.l.b16 %v332
        %v1058 = vunpack.c.l.b16 %v333
        %v1059 = vunpack.c.l.b16 %v335
        %v1060 = vunpack.c.l.b16 %v336
        %v1061 = vunpack.c.l.b16 %v338
        %v1062 = vunpack.c.l.b16 %v339
        %v1063 = vunpack.c.l.b16 %v341
        %v1064 = vunpack.c.l.b16 %v342
        %v1065 = vpack.c.b16 %v1034, %v1033
        %v1066 = vpack.c.b16 %v1036, %v1035
        %v1067 = vpack.c.b16 %v1038, %v1037
        %v1068 = vpack.c.b16 %v1040, %v1039
        %v1069 = vpack.c.b16 %v1042, %v1041
        %v1070 = vpack.c.b16 %v1044, %v1043
        %v1071 = vpack.c.b16 %v1046, %v1045
        %v1072 = vpack.c.b16 %v1048, %v1047
        %v1073 = vpack.c.b16 %v1050, %v1049
        %v1074 = vpack.c.b16 %v1052, %v1051
        %v1075 = vpack.c.b16 %v1054, %v1053
        %v1076 = vpack.c.b16 %v1056, %v1055
        %v1077 = vpack.c.b16 %v1058, %v1057
        %v1078 = vpack.c.b16 %v1060, %v1059
        %v1079 = vpack.c.b16 %v1062, %v1061
        %v1080 = vpack.c.b16 %v1064, %v1063
        %v1082 = vsel %vm787, %v1065, 0
        %v1085 = vsel %vm787, %v1066, 0
        %v1088 = vsel %vm787, %v1067, 0
        %v1091 = vsel %vm787, %v1068, 0
        %v1094 = vsel %vm787, %v1069, 0
        %v1097 = vsel %vm787, %v1070, 0
        %v1100 = vsel %vm787, %v1071, 0
        %v1103 = vsel %vm787, %v1072, 0
        %v1106 = vsel %vm787, %v1073, 0
        %v1109 = vsel %vm787, %v1074, 0
        %v1112 = vsel %vm787, %v1075, 0
        %v1115 = vsel %vm787, %v1076, 0
        %v1118 = vsel %vm787, %v1077, 0
        %v1121 = vsel %vm787, %v1078, 0
        %v1124 = vsel %vm787, %v1079, 0
        %v1127 = vsel %vm787, %v1080, 0
        %v1130 = vsel %vm836, %v350, 0
        %1132 = vmatprep.subr.bf16.mxu0 0
        %1133 = vmatpush1.bf16.msra.mxu0 %v1130
        %1134 = vmatprep.subr.bf16.mxu0 0
        %1135 = vmatpush1.bf16.msra.mxu0 0
        %1136 = vmatprep.subr.bf16.mxu0 0
        %1137 = vmatpush1.bf16.msra.mxu0 0
        %1138 = vmatprep.subr.bf16.mxu0 0
        %1139 = vmatpush1.bf16.msra.mxu0 0
        %1140 = vmatprep.subr.bf16.mxu0 0
        %1141 = vmatpush1.bf16.msra.mxu0 0
        %1142 = vmatprep.subr.bf16.mxu0 0
        %1143 = vmatpush1.bf16.msra.mxu0 0
        %1144 = vmatprep.subr.bf16.mxu0 0
        %1145 = vmatpush1.bf16.msra.mxu0 0
        %1146 = vmatprep.subr.bf16.mxu0 0
        %1147 = vmatpush1.bf16.msra.mxu0 0
        %1148 = vmatprep.subr.bf16.mxu0 0
        %1149 = vmatpush1.bf16.msra.mxu0 0
        %1150 = vmatprep.subr.bf16.mxu0 0
        %1151 = vmatpush1.bf16.msra.mxu0 0
        %1152 = vmatprep.subr.bf16.mxu0 0
        %1153 = vmatpush1.bf16.msra.mxu0 0
        %1154 = vmatprep.subr.bf16.mxu0 0
        %1155 = vmatpush1.bf16.msra.mxu0 0
        %1156 = vmatprep.subr.bf16.mxu0 0
        %1157 = vmatpush1.bf16.msra.mxu0 0
        %1158 = vmatprep.subr.bf16.mxu0 0
        %1159 = vmatpush1.bf16.msra.mxu0 0
        %1160 = vmatprep.subr.bf16.mxu0 0
        %1161 = vmatpush1.bf16.msra.mxu0 0
        %1162 = vmatprep.subr.bf16.mxu0 0
        %1163 = vmatpush1.bf16.msra.mxu0 0
        %1164 = vmatprep.mubr.bf16.mxu0 0
        %1165 = vmatmul.mubr.bf16.gmra.mrb[0].mxu0 %v1082
        %v1166 = vpop.f32.mrb[0].mxu0
        %v1167 = vadd.f32 %v875, %v1166
        %v1168 = vpop.f32.mrb[0].mxu0
        %v1169 = vpop.f32.mrb[0].mxu0
        %v1170 = vadd.f32 %v878, %v1169
        %v1171 = vpop.f32.mrb[0].mxu0
        %1172 = vmatprep.mubr.bf16.mxu0 0
        %1173 = vmatmul.mubr.bf16.gmra.mrb[0].mxu0 %v1085
        %v1174 = vpop.f32.mrb[0].mxu0
        %v1175 = vadd.f32 %v883, %v1174
        %v1176 = vpop.f32.mrb[0].mxu0
        %v1177 = vpop.f32.mrb[0].mxu0
        %v1178 = vadd.f32 %v886, %v1177
        %v1179 = vpop.f32.mrb[0].mxu0
        %1180 = vmatprep.mubr.bf16.mxu0 0
        %1181 = vmatmul.mubr.bf16.gmra.mrb[0].mxu0 %v1088
        %v1182 = vpop.f32.mrb[0].mxu0
        %v1183 = vadd.f32 %v891, %v1182
        %v1184 = vpop.f32.mrb[0].mxu0
        %v1185 = vpop.f32.mrb[0].mxu0
        %v1186 = vadd.f32 %v894, %v1185
        %v1187 = vpop.f32.mrb[0].mxu0
        %1188 = vmatprep.mubr.bf16.mxu0 0
        %1189 = vmatmul.mubr.bf16.gmra.mrb[0].mxu0 %v1091
        %v1190 = vpop.f32.mrb[0].mxu0
        %v1191 = vadd.f32 %v899, %v1190
        %v1192 = vpop.f32.mrb[0].mxu0
        %v1193 = vpop.f32.mrb[0].mxu0
        %v1194 = vadd.f32 %v902, %v1193
        %v1195 = vpop.f32.mrb[0].mxu0
        %1196 = vmatprep.mubr.bf16.mxu0 0
        %1197 = vmatmul.mubr.bf16.gmra.mrb[0].mxu0 %v1094
        %v1198 = vpop.f32.mrb[0].mxu0
        %v1199 = vadd.f32 %v907, %v1198
        %v1200 = vpop.f32.mrb[0].mxu0
        %v1201 = vpop.f32.mrb[0].mxu0
        %v1202 = vadd.f32 %v910, %v1201
        %v1203 = vpop.f32.mrb[0].mxu0
        %1204 = vmatprep.mubr.bf16.mxu0 0
        %1205 = vmatmul.mubr.bf16.gmra.mrb[0].mxu0 %v1097
        %v1206 = vpop.f32.mrb[0].mxu0
        %v1207 = vadd.f32 %v915, %v1206
        %v1208 = vpop.f32.mrb[0].mxu0
        %v1209 = vpop.f32.mrb[0].mxu0
        %v1210 = vadd.f32 %v918, %v1209
        %v1211 = vpop.f32.mrb[0].mxu0
        %1212 = vmatprep.mubr.bf16.mxu0 0
        %1213 = vmatmul.mubr.bf16.gmra.mrb[0].mxu0 %v1100
        %v1214 = vpop.f32.mrb[0].mxu0
        %v1215 = vadd.f32 %v923, %v1214
        %v1216 = vpop.f32.mrb[0].mxu0
        %v1217 = vpop.f32.mrb[0].mxu0
        %v1218 = vadd.f32 %v926, %v1217
        %v1219 = vpop.f32.mrb[0].mxu0
        %1220 = vmatprep.mubr.bf16.mxu0 0
        %1221 = vmatmul.mubr.bf16.gmra.mrb[0].mxu0 %v1103
        %v1222 = vpop.f32.mrb[0].mxu0
        %v1223 = vadd.f32 %v931, %v1222
        %v1224 = vpop.f32.mrb[0].mxu0
        %v1225 = vpop.f32.mrb[0].mxu0
        %v1226 = vadd.f32 %v934, %v1225
        %v1227 = vpop.f32.mrb[0].mxu0
        %1228 = vmatprep.mubr.bf16.mxu0 0
        %1229 = vmatmul.mubr.bf16.gmra.mrb[0].mxu0 %v1106
        %v1230 = vpop.f32.mrb[0].mxu0
        %v1231 = vadd.f32 %v939, %v1230
        %v1232 = vpop.f32.mrb[0].mxu0
        %v1233 = vpop.f32.mrb[0].mxu0
        %v1234 = vadd.f32 %v942, %v1233
        %v1235 = vpop.f32.mrb[0].mxu0
        %1236 = vmatprep.mubr.bf16.mxu0 0
        %1237 = vmatmul.mubr.bf16.gmra.mrb[0].mxu0 %v1109
        %v1238 = vpop.f32.mrb[0].mxu0
        %v1239 = vadd.f32 %v947, %v1238
        %v1240 = vpop.f32.mrb[0].mxu0
        %v1241 = vpop.f32.mrb[0].mxu0
        %v1242 = vadd.f32 %v950, %v1241
        %v1243 = vpop.f32.mrb[0].mxu0
        %1244 = vmatprep.mubr.bf16.mxu0 0
        %1245 = vmatmul.mubr.bf16.gmra.mrb[0].mxu0 %v1112
        %v1246 = vpop.f32.mrb[0].mxu0
        %v1247 = vadd.f32 %v955, %v1246
        %v1248 = vpop.f32.mrb[0].mxu0
        %v1249 = vpop.f32.mrb[0].mxu0
        %v1250 = vadd.f32 %v958, %v1249
        %v1251 = vpop.f32.mrb[0].mxu0
        %1252 = vmatprep.mubr.bf16.mxu0 0
        %1253 = vmatmul.mubr.bf16.gmra.mrb[0].mxu0 %v1115
        %v1254 = vpop.f32.mrb[0].mxu0
        %v1255 = vadd.f32 %v963, %v1254
        %v1256 = vpop.f32.mrb[0].mxu0
        %v1257 = vpop.f32.mrb[0].mxu0
        %v1258 = vadd.f32 %v966, %v1257
        %v1259 = vpop.f32.mrb[0].mxu0
        %1260 = vmatprep.mubr.bf16.mxu0 0
        %1261 = vmatmul.mubr.bf16.gmra.mrb[0].mxu0 %v1118
        %v1262 = vpop.f32.mrb[0].mxu0
        %v1263 = vadd.f32 %v971, %v1262
        %v1264 = vpop.f32.mrb[0].mxu0
        %v1265 = vpop.f32.mrb[0].mxu0
        %v1266 = vadd.f32 %v974, %v1265
        %v1267 = vpop.f32.mrb[0].mxu0
        %1268 = vmatprep.mubr.bf16.mxu0 0
        %1269 = vmatmul.mubr.bf16.gmra.mrb[0].mxu0 %v1121
        %v1270 = vpop.f32.mrb[0].mxu0
        %v1271 = vadd.f32 %v979, %v1270
        %v1272 = vpop.f32.mrb[0].mxu0
        %v1273 = vpop.f32.mrb[0].mxu0
        %v1274 = vadd.f32 %v982, %v1273
        %v1275 = vpop.f32.mrb[0].mxu0
        %1276 = vmatprep.mubr.bf16.mxu0 0
        %1277 = vmatmul.mubr.bf16.gmra.mrb[0].mxu0 %v1124
        %v1278 = vpop.f32.mrb[0].mxu0
        %v1279 = vadd.f32 %v987, %v1278
        %v1280 = vpop.f32.mrb[0].mxu0
        %v1281 = vpop.f32.mrb[0].mxu0
        %v1282 = vadd.f32 %v990, %v1281
        %v1283 = vpop.f32.mrb[0].mxu0
        %1284 = vmatprep.mubr.bf16.mxu0 0
        %1285 = vmatmul.mubr.bf16.gmra.mrb[0].mxu0 %v1127
        %v1286 = vpop.f32.mrb[0].mxu0
        %v1287 = vadd.f32 %v995, %v1286
        %v1288 = vpop.f32.mrb[0].mxu0
        %v1289 = vpop.f32.mrb[0].mxu0
        %v1290 = vadd.f32 %v998, %v1289
        %v1291 = vpop.f32.mrb[0].mxu0
        %1292 = vdwg.mxu0
        %vm1309 = vcmask 1042432
        %vm1310 = vcmask 1046532
        %vm1311 = vmor %vm1309, %vm1310
        %v1312 = vrot.slane %v296, 5
        %v1313 = vrot.slane %v1312, 4
        %v1314 = vrot.slane %v297, 5
        %v1315 = vsel %vm1311, %v1313, %v1314
        %v1316 = vrot.slane %v1314, 4
        %v1317 = vrot.slane %v298, 5
        %v1318 = vsel %vm1311, %v1316, %v1317
        %v1319 = vrot.slane %v299, 5
        %v1320 = vrot.slane %v1319, 4
        %v1321 = vrot.slane %v300, 5
        %v1322 = vsel %vm1311, %v1320, %v1321
        %v1323 = vrot.slane %v1321, 4
        %v1324 = vrot.slane %v301, 5
        %v1325 = vsel %vm1311, %v1323, %v1324
        %v1326 = vrot.slane %v302, 5
        %v1327 = vrot.slane %v1326, 4
        %v1328 = vrot.slane %v303, 5
        %v1329 = vsel %vm1311, %v1327, %v1328
        %v1330 = vrot.slane %v1328, 4
        %v1331 = vrot.slane %v304, 5
        %v1332 = vsel %vm1311, %v1330, %v1331
        %v1333 = vrot.slane %v305, 5
        %v1334 = vrot.slane %v1333, 4
        %v1335 = vrot.slane %v306, 5
        %v1336 = vsel %vm1311, %v1334, %v1335
        %v1337 = vrot.slane %v1335, 4
        %v1338 = vrot.slane %v307, 5
        %v1339 = vsel %vm1311, %v1337, %v1338
        %v1340 = vrot.slane %v308, 5
        %v1341 = vrot.slane %v1340, 4
        %v1342 = vrot.slane %v309, 5
        %v1343 = vsel %vm1311, %v1341, %v1342
        %v1344 = vrot.slane %v1342, 4
        %v1345 = vrot.slane %v310, 5
        %v1346 = vsel %vm1311, %v1344, %v1345
        %v1347 = vrot.slane %v311, 5
        %v1348 = vrot.slane %v1347, 4
        %v1349 = vrot.slane %v312, 5
        %v1350 = vsel %vm1311, %v1348, %v1349
        %v1351 = vrot.slane %v1349, 4
        %v1352 = vrot.slane %v313, 5
        %v1353 = vsel %vm1311, %v1351, %v1352
        %v1354 = vrot.slane %v314, 5
        %v1355 = vrot.slane %v1354, 4
        %v1356 = vrot.slane %v315, 5
        %v1357 = vsel %vm1311, %v1355, %v1356
        %v1358 = vrot.slane %v1356, 4
        %v1359 = vrot.slane %v316, 5
        %v1360 = vsel %vm1311, %v1358, %v1359
        %v1361 = vrot.slane %v317, 5
        %v1362 = vrot.slane %v1361, 4
        %v1363 = vrot.slane %v318, 5
        %v1364 = vsel %vm1311, %v1362, %v1363
        %v1365 = vrot.slane %v1363, 4
        %v1366 = vrot.slane %v319, 5
        %v1367 = vsel %vm1311, %v1365, %v1366
        %v1368 = vrot.slane %v320, 5
        %v1369 = vrot.slane %v1368, 4
        %v1370 = vrot.slane %v321, 5
        %v1371 = vsel %vm1311, %v1369, %v1370
        %v1372 = vrot.slane %v1370, 4
        %v1373 = vrot.slane %v322, 5
        %v1374 = vsel %vm1311, %v1372, %v1373
        %v1375 = vrot.slane %v323, 5
        %v1376 = vrot.slane %v1375, 4
        %v1377 = vrot.slane %v324, 5
        %v1378 = vsel %vm1311, %v1376, %v1377
        %v1379 = vrot.slane %v1377, 4
        %v1380 = vrot.slane %v325, 5
        %v1381 = vsel %vm1311, %v1379, %v1380
        %v1382 = vrot.slane %v326, 5
        %v1383 = vrot.slane %v1382, 4
        %v1384 = vrot.slane %v327, 5
        %v1385 = vsel %vm1311, %v1383, %v1384
        %v1386 = vrot.slane %v1384, 4
        %v1387 = vrot.slane %v328, 5
        %v1388 = vsel %vm1311, %v1386, %v1387
        %v1389 = vrot.slane %v329, 5
        %v1390 = vrot.slane %v1389, 4
        %v1391 = vrot.slane %v330, 5
        %v1392 = vsel %vm1311, %v1390, %v1391
        %v1393 = vrot.slane %v1391, 4
        %v1394 = vrot.slane %v331, 5
        %v1395 = vsel %vm1311, %v1393, %v1394
        %v1396 = vrot.slane %v332, 5
        %v1397 = vrot.slane %v1396, 4
        %v1398 = vrot.slane %v333, 5
        %v1399 = vsel %vm1311, %v1397, %v1398
        %v1400 = vrot.slane %v1398, 4
        %v1401 = vrot.slane %v334, 5
        %v1402 = vsel %vm1311, %v1400, %v1401
        %v1403 = vrot.slane %v335, 5
        %v1404 = vrot.slane %v1403, 4
        %v1405 = vrot.slane %v336, 5
        %v1406 = vsel %vm1311, %v1404, %v1405
        %v1407 = vrot.slane %v1405, 4
        %v1408 = vrot.slane %v337, 5
        %v1409 = vsel %vm1311, %v1407, %v1408
        %v1410 = vrot.slane %v338, 5
        %v1411 = vrot.slane %v1410, 4
        %v1412 = vrot.slane %v339, 5
        %v1413 = vsel %vm1311, %v1411, %v1412
        %v1414 = vrot.slane %v1412, 4
        %v1415 = vrot.slane %v340, 5
        %v1416 = vsel %vm1311, %v1414, %v1415
        %v1417 = vrot.slane %v341, 5
        %v1418 = vrot.slane %v1417, 4
        %v1419 = vrot.slane %v342, 5
        %v1420 = vsel %vm1311, %v1418, %v1419
        %v1421 = vrot.slane %v1419, 4
        %v1422 = vrot.slane %v343, 5
        %v1423 = vsel %vm1311, %v1421, %v1422
        %v1424 = vld [vmem:[#allocation5 + $0x8] sm:$0xf]
        %v1425 = vunpack.c.l.b16 %v1315
        %v1426 = vunpack.c.l.b16 %v1318
        %v1427 = vunpack.c.l.b16 %v1322
        %v1428 = vunpack.c.l.b16 %v1325
        %v1429 = vunpack.c.l.b16 %v1329
        %v1430 = vunpack.c.l.b16 %v1332
        %v1431 = vunpack.c.l.b16 %v1336
        %v1432 = vunpack.c.l.b16 %v1339
        %v1433 = vunpack.c.l.b16 %v1343
        %v1434 = vunpack.c.l.b16 %v1346
        %v1435 = vunpack.c.l.b16 %v1350
        %v1436 = vunpack.c.l.b16 %v1353
        %v1437 = vunpack.c.l.b16 %v1357
        %v1438 = vunpack.c.l.b16 %v1360
        %v1439 = vunpack.c.l.b16 %v1364
        %v1440 = vunpack.c.l.b16 %v1367
        %v1441 = vunpack.c.l.b16 %v1371
        %v1442 = vunpack.c.l.b16 %v1374
        %v1443 = vunpack.c.l.b16 %v1378
        %v1444 = vunpack.c.l.b16 %v1381
        %v1445 = vunpack.c.l.b16 %v1385
        %v1446 = vunpack.c.l.b16 %v1388
        %v1447 = vunpack.c.l.b16 %v1392
        %v1448 = vunpack.c.l.b16 %v1395
        %v1449 = vunpack.c.l.b16 %v1399
        %v1450 = vunpack.c.l.b16 %v1402
        %v1451 = vunpack.c.l.b16 %v1406
        %v1452 = vunpack.c.l.b16 %v1409
        %v1453 = vunpack.c.l.b16 %v1413
        %v1454 = vunpack.c.l.b16 %v1416
        %v1455 = vunpack.c.l.b16 %v1420
        %v1456 = vunpack.c.l.b16 %v1423
        %v1457 = vpack.c.b16 %v1426, %v1425
        %v1458 = vpack.c.b16 %v1428, %v1427
        %v1459 = vpack.c.b16 %v1430, %v1429
        %v1460 = vpack.c.b16 %v1432, %v1431
        %v1461 = vpack.c.b16 %v1434, %v1433
        %v1462 = vpack.c.b16 %v1436, %v1435
        %v1463 = vpack.c.b16 %v1438, %v1437
        %v1464 = vpack.c.b16 %v1440, %v1439
        %v1465 = vpack.c.b16 %v1442, %v1441
        %v1466 = vpack.c.b16 %v1444, %v1443
        %v1467 = vpack.c.b16 %v1446, %v1445
        %v1468 = vpack.c.b16 %v1448, %v1447
        %v1469 = vpack.c.b16 %v1450, %v1449
        %v1470 = vpack.c.b16 %v1452, %v1451
        %v1471 = vpack.c.b16 %v1454, %v1453
        %v1472 = vpack.c.b16 %v1456, %v1455
        %v1474 = vsel %vm787, %v1457, 0
        %v1477 = vsel %vm787, %v1458, 0
        %v1480 = vsel %vm787, %v1459, 0
        %v1483 = vsel %vm787, %v1460, 0
        %v1486 = vsel %vm787, %v1461, 0
        %v1489 = vsel %vm787, %v1462, 0
        %v1492 = vsel %vm787, %v1463, 0
        %v1495 = vsel %vm787, %v1464, 0
        %v1498 = vsel %vm787, %v1465, 0
        %v1501 = vsel %vm787, %v1466, 0
        %v1504 = vsel %vm787, %v1467, 0
        %v1507 = vsel %vm787, %v1468, 0
        %v1510 = vsel %vm787, %v1469, 0
        %v1513 = vsel %vm787, %v1470, 0
        %v1516 = vsel %vm787, %v1471, 0
        %v1519 = vsel %vm787, %v1472, 0
        %v1522 = vsel %vm836, %v1424, 0
        %1524 = vmatprep.subr.bf16.mxu0 0
        %1525 = vmatpush1.bf16.msra.mxu0 %v1522
        %1526 = vmatprep.subr.bf16.mxu0 0
        %1527 = vmatpush1.bf16.msra.mxu0 0
        %1528 = vmatprep.subr.bf16.mxu0 0
        %1529 = vmatpush1.bf16.msra.mxu0 0
        %1530 = vmatprep.subr.bf16.mxu0 0
        %1531 = vmatpush1.bf16.msra.mxu0 0
        %1532 = vmatprep.subr.bf16.mxu0 0
        %1533 = vmatpush1.bf16.msra.mxu0 0
        %1534 = vmatprep.subr.bf16.mxu0 0
        %1535 = vmatpush1.bf16.msra.mxu0 0
        %1536 = vmatprep.subr.bf16.mxu0 0
        %1537 = vmatpush1.bf16.msra.mxu0 0
        %1538 = vmatprep.subr.bf16.mxu0 0
        %1539 = vmatpush1.bf16.msra.mxu0 0
        %1540 = vmatprep.subr.bf16.mxu0 0
        %1541 = vmatpush1.bf16.msra.mxu0 0
        %1542 = vmatprep.subr.bf16.mxu0 0
        %1543 = vmatpush1.bf16.msra.mxu0 0
        %1544 = vmatprep.subr.bf16.mxu0 0
        %1545 = vmatpush1.bf16.msra.mxu0 0
        %1546 = vmatprep.subr.bf16.mxu0 0
        %1547 = vmatpush1.bf16.msra.mxu0 0
        %1548 = vmatprep.subr.bf16.mxu0 0
        %1549 = vmatpush1.bf16.msra.mxu0 0
        %1550 = vmatprep.subr.bf16.mxu0 0
        %1551 = vmatpush1.bf16.msra.mxu0 0
        %1552 = vmatprep.subr.bf16.mxu0 0
        %1553 = vmatpush1.bf16.msra.mxu0 0
        %1554 = vmatprep.subr.bf16.mxu0 0
        %1555 = vmatpush1.bf16.msra.mxu0 0
        %1556 = vmatprep.mubr.bf16.mxu0 0
        %1557 = vmatmul.mubr.bf16.gmra.mrb[0].mxu0 %v1474
        %v1558 = vpop.f32.mrb[0].mxu0
        %v1559 = vadd.f32 0.0, %v1558
        %v1560 = vpop.f32.mrb[0].mxu0
        %v1561 = vpop.f32.mrb[0].mxu0
        %v1562 = vadd.f32 0.0, %v1561
        %v1563 = vpop.f32.mrb[0].mxu0
        %1564 = vmatprep.mubr.bf16.mxu0 0
        %1565 = vmatmul.mubr.bf16.gmra.mrb[0].mxu0 %v1477
        %v1566 = vpop.f32.mrb[0].mxu0
        %v1567 = vadd.f32 0.0, %v1566
        %v1568 = vpop.f32.mrb[0].mxu0
        %v1569 = vpop.f32.mrb[0].mxu0
        %v1570 = vadd.f32 0.0, %v1569
        %v1571 = vpop.f32.mrb[0].mxu0
        %1572 = vmatprep.mubr.bf16.mxu0 0
        %1573 = vmatmul.mubr.bf16.gmra.mrb[0].mxu0 %v1480
        %v1574 = vpop.f32.mrb[0].mxu0
        %v1575 = vadd.f32 0.0, %v1574
        %v1576 = vpop.f32.mrb[0].mxu0
        %v1577 = vpop.f32.mrb[0].mxu0
        %v1578 = vadd.f32 0.0, %v1577
        %v1579 = vpop.f32.mrb[0].mxu0
        %1580 = vmatprep.mubr.bf16.mxu0 0
        %1581 = vmatmul.mubr.bf16.gmra.mrb[0].mxu0 %v1483
        %v1582 = vpop.f32.mrb[0].mxu0
        %v1583 = vadd.f32 0.0, %v1582
        %v1584 = vpop.f32.mrb[0].mxu0
        %v1585 = vpop.f32.mrb[0].mxu0
        %v1586 = vadd.f32 0.0, %v1585
        %v1587 = vpop.f32.mrb[0].mxu0
        %1588 = vmatprep.mubr.bf16.mxu0 0
        %1589 = vmatmul.mubr.bf16.gmra.mrb[0].mxu0 %v1486
        %v1590 = vpop.f32.mrb[0].mxu0
        %v1591 = vadd.f32 0.0, %v1590
        %v1592 = vpop.f32.mrb[0].mxu0
        %v1593 = vpop.f32.mrb[0].mxu0
        %v1594 = vadd.f32 0.0, %v1593
        %v1595 = vpop.f32.mrb[0].mxu0
        %1596 = vmatprep.mubr.bf16.mxu0 0
        %1597 = vmatmul.mubr.bf16.gmra.mrb[0].mxu0 %v1489
        %v1598 = vpop.f32.mrb[0].mxu0
        %v1599 = vadd.f32 0.0, %v1598
        %v1600 = vpop.f32.mrb[0].mxu0
        %v1601 = vpop.f32.mrb[0].mxu0
        %v1602 = vadd.f32 0.0, %v1601
        %v1603 = vpop.f32.mrb[0].mxu0
        %1604 = vmatprep.mubr.bf16.mxu0 0
        %1605 = vmatmul.mubr.bf16.gmra.mrb[0].mxu0 %v1492
        %v1606 = vpop.f32.mrb[0].mxu0
        %v1607 = vadd.f32 0.0, %v1606
        %v1608 = vpop.f32.mrb[0].mxu0
        %v1609 = vpop.f32.mrb[0].mxu0
        %v1610 = vadd.f32 0.0, %v1609
        %v1611 = vpop.f32.mrb[0].mxu0
        %1612 = vmatprep.mubr.bf16.mxu0 0
        %1613 = vmatmul.mubr.bf16.gmra.mrb[0].mxu0 %v1495
        %v1614 = vpop.f32.mrb[0].mxu0
        %v1615 = vadd.f32 0.0, %v1614
        %v1616 = vpop.f32.mrb[0].mxu0
        %v1617 = vpop.f32.mrb[0].mxu0
        %v1618 = vadd.f32 0.0, %v1617
        %v1619 = vpop.f32.mrb[0].mxu0
        %1620 = vmatprep.mubr.bf16.mxu0 0
        %1621 = vmatmul.mubr.bf16.gmra.mrb[0].mxu0 %v1498
        %v1622 = vpop.f32.mrb[0].mxu0
        %v1623 = vadd.f32 0.0, %v1622
        %v1624 = vpop.f32.mrb[0].mxu0
        %v1625 = vpop.f32.mrb[0].mxu0
        %v1626 = vadd.f32 0.0, %v1625
        %v1627 = vpop.f32.mrb[0].mxu0
        %1628 = vmatprep.mubr.bf16.mxu0 0
        %1629 = vmatmul.mubr.bf16.gmra.mrb[0].mxu0 %v1501
        %v1630 = vpop.f32.mrb[0].mxu0
        %v1631 = vadd.f32 0.0, %v1630
        %v1632 = vpop.f32.mrb[0].mxu0
        %v1633 = vpop.f32.mrb[0].mxu0
        %v1634 = vadd.f32 0.0, %v1633
        %v1635 = vpop.f32.mrb[0].mxu0
        %1636 = vmatprep.mubr.bf16.mxu0 0
        %1637 = vmatmul.mubr.bf16.gmra.mrb[0].mxu0 %v1504
        %v1638 = vpop.f32.mrb[0].mxu0
        %v1639 = vadd.f32 0.0, %v1638
        %v1640 = vpop.f32.mrb[0].mxu0
        %v1641 = vpop.f32.mrb[0].mxu0
        %v1642 = vadd.f32 0.0, %v1641
        %v1643 = vpop.f32.mrb[0].mxu0
        %1644 = vmatprep.mubr.bf16.mxu0 0
        %1645 = vmatmul.mubr.bf16.gmra.mrb[0].mxu0 %v1507
        %v1646 = vpop.f32.mrb[0].mxu0
        %v1647 = vadd.f32 0.0, %v1646
        %v1648 = vpop.f32.mrb[0].mxu0
        %v1649 = vpop.f32.mrb[0].mxu0
        %v1650 = vadd.f32 0.0, %v1649
        %v1651 = vpop.f32.mrb[0].mxu0
        %1652 = vmatprep.mubr.bf16.mxu0 0
        %1653 = vmatmul.mubr.bf16.gmra.mrb[0].mxu0 %v1510
        %v1654 = vpop.f32.mrb[0].mxu0
        %v1655 = vadd.f32 0.0, %v1654
        %v1656 = vpop.f32.mrb[0].mxu0
        %v1657 = vpop.f32.mrb[0].mxu0
        %v1658 = vadd.f32 0.0, %v1657
        %v1659 = vpop.f32.mrb[0].mxu0
        %1660 = vmatprep.mubr.bf16.mxu0 0
        %1661 = vmatmul.mubr.bf16.gmra.mrb[0].mxu0 %v1513
        %v1662 = vpop.f32.mrb[0].mxu0
        %v1663 = vadd.f32 0.0, %v1662
        %v1664 = vpop.f32.mrb[0].mxu0
        %v1665 = vpop.f32.mrb[0].mxu0
        %v1666 = vadd.f32 0.0, %v1665
        %v1667 = vpop.f32.mrb[0].mxu0
        %1668 = vmatprep.mubr.bf16.mxu0 0
        %1669 = vmatmul.mubr.bf16.gmra.mrb[0].mxu0 %v1516
        %v1670 = vpop.f32.mrb[0].mxu0
        %v1671 = vadd.f32 0.0, %v1670
        %v1672 = vpop.f32.mrb[0].mxu0
        %v1673 = vpop.f32.mrb[0].mxu0
        %v1674 = vadd.f32 0.0, %v1673
        %v1675 = vpop.f32.mrb[0].mxu0
        %1676 = vmatprep.mubr.bf16.mxu0 0
        %1677 = vmatmul.mubr.bf16.gmra.mrb[0].mxu0 %v1519
        %v1678 = vpop.f32.mrb[0].mxu0
        %v1679 = vadd.f32 0.0, %v1678
        %v1680 = vpop.f32.mrb[0].mxu0
        %v1681 = vpop.f32.mrb[0].mxu0
        %v1682 = vadd.f32 0.0, %v1681
        %v1683 = vpop.f32.mrb[0].mxu0
        %1684 = vdwg.mxu0
        %v1685 = vadd.f32 %v1167, %v1559
        %v1686 = vadd.f32 %v1170, %v1562
        %v1687 = vadd.f32 %v1175, %v1567
        %v1688 = vadd.f32 %v1178, %v1570
        %v1689 = vadd.f32 %v1183, %v1575
        %v1690 = vadd.f32 %v1186, %v1578
        %v1691 = vadd.f32 %v1191, %v1583
        %v1692 = vadd.f32 %v1194, %v1586
        %v1693 = vadd.f32 %v1199, %v1591
        %v1694 = vadd.f32 %v1202, %v1594
        %v1695 = vadd.f32 %v1207, %v1599
        %v1696 = vadd.f32 %v1210, %v1602
        %v1697 = vadd.f32 %v1215, %v1607
        %v1698 = vadd.f32 %v1218, %v1610
        %v1699 = vadd.f32 %v1223, %v1615
        %v1700 = vadd.f32 %v1226, %v1618
        %v1701 = vadd.f32 %v1231, %v1623
        %v1702 = vadd.f32 %v1234, %v1626
        %v1703 = vadd.f32 %v1239, %v1631
        %v1704 = vadd.f32 %v1242, %v1634
        %v1705 = vadd.f32 %v1247, %v1639
        %v1706 = vadd.f32 %v1250, %v1642
        %v1707 = vadd.f32 %v1255, %v1647
        %v1708 = vadd.f32 %v1258, %v1650
        %v1709 = vadd.f32 %v1263, %v1655
        %v1710 = vadd.f32 %v1266, %v1658
        %v1711 = vadd.f32 %v1271, %v1663
        %v1712 = vadd.f32 %v1274, %v1666
        %v1713 = vadd.f32 %v1279, %v1671
        %v1714 = vadd.f32 %v1282, %v1674
        %v1715 = vadd.f32 %v1287, %v1679
        %v1716 = vadd.f32 %v1290, %v1682
        %v1717 = vld [vmem:[#allocation5 + $0xc] sm:$0xf]
        %v1720 = vunpack.c.l.b16 %v344
        %v1721 = vunpack.c.l.b16 %v345
        %v1722 = vpack.c.b16 %v1721, %v1720
        %v1724 = vsel %vm787, %v1722, 0
        %v1727 = vsel %vm836, %v1717, 0
        %1729 = vmatprep.subr.bf16.mxu0 0
        %1730 = vmatpush1.bf16.msra.mxu0 %v1727
        %1731 = vmatprep.subr.bf16.mxu0 0
        %1732 = vmatpush1.bf16.msra.mxu0 0
        %1733 = vmatprep.subr.bf16.mxu0 0
        %1734 = vmatpush1.bf16.msra.mxu0 0
        %1735 = vmatprep.subr.bf16.mxu0 0
        %1736 = vmatpush1.bf16.msra.mxu0 0
        %1737 = vmatprep.subr.bf16.mxu0 0
        %1738 = vmatpush1.bf16.msra.mxu0 0
        %1739 = vmatprep.subr.bf16.mxu0 0
        %1740 = vmatpush1.bf16.msra.mxu0 0
        %1741 = vmatprep.subr.bf16.mxu0 0
        %1742 = vmatpush1.bf16.msra.mxu0 0
        %1743 = vmatprep.subr.bf16.mxu0 0
        %1744 = vmatpush1.bf16.msra.mxu0 0
        %1745 = vmatprep.subr.bf16.mxu0 0
        %1746 = vmatpush1.bf16.msra.mxu0 0
        %1747 = vmatprep.subr.bf16.mxu0 0
        %1748 = vmatpush1.bf16.msra.mxu0 0
        %1749 = vmatprep.subr.bf16.mxu0 0
        %1750 = vmatpush1.bf16.msra.mxu0 0
        %1751 = vmatprep.subr.bf16.mxu0 0
        %1752 = vmatpush1.bf16.msra.mxu0 0
        %1753 = vmatprep.subr.bf16.mxu0 0
        %1754 = vmatpush1.bf16.msra.mxu0 0
        %1755 = vmatprep.subr.bf16.mxu0 0
        %1756 = vmatpush1.bf16.msra.mxu0 0
        %1757 = vmatprep.subr.bf16.mxu0 0
        %1758 = vmatpush1.bf16.msra.mxu0 0
        %1759 = vmatprep.subr.bf16.mxu0 0
        %1760 = vmatpush1.bf16.msra.mxu0 0
        %1761 = vmatprep.mubr.bf16.mxu0 0
        %1762 = vmatmul.mubr.bf16.gmra.mrb[0].mxu0 %v1085
        %v1763 = vpop.f32.mrb[0].mxu0
        %v1764 = vadd.f32 0.0, %v1763
        %v1765 = vpop.f32.mrb[0].mxu0
        %v1766 = vpop.f32.mrb[0].mxu0
        %v1767 = vadd.f32 0.0, %v1766
        %v1768 = vpop.f32.mrb[0].mxu0
        %1769 = vmatprep.mubr.bf16.mxu0 0
        %1770 = vmatmul.mubr.bf16.gmra.mrb[0].mxu0 %v1088
        %v1771 = vpop.f32.mrb[0].mxu0
        %v1772 = vadd.f32 0.0, %v1771
        %v1773 = vpop.f32.mrb[0].mxu0
        %v1774 = vpop.f32.mrb[0].mxu0
        %v1775 = vadd.f32 0.0, %v1774
        %v1776 = vpop.f32.mrb[0].mxu0
        %1777 = vmatprep.mubr.bf16.mxu0 0
        %1778 = vmatmul.mubr.bf16.gmra.mrb[0].mxu0 %v1091
        %v1779 = vpop.f32.mrb[0].mxu0
        %v1780 = vadd.f32 0.0, %v1779
        %v1781 = vpop.f32.mrb[0].mxu0
        %v1782 = vpop.f32.mrb[0].mxu0
        %v1783 = vadd.f32 0.0, %v1782
        %v1784 = vpop.f32.mrb[0].mxu0
        %1785 = vmatprep.mubr.bf16.mxu0 0
        %1786 = vmatmul.mubr.bf16.gmra.mrb[0].mxu0 %v1094
        %v1787 = vpop.f32.mrb[0].mxu0
        %v1788 = vadd.f32 0.0, %v1787
        %v1789 = vpop.f32.mrb[0].mxu0
        %v1790 = vpop.f32.mrb[0].mxu0
        %v1791 = vadd.f32 0.0, %v1790
        %v1792 = vpop.f32.mrb[0].mxu0
        %1793 = vmatprep.mubr.bf16.mxu0 0
        %1794 = vmatmul.mubr.bf16.gmra.mrb[0].mxu0 %v1097
        %v1795 = vpop.f32.mrb[0].mxu0
        %v1796 = vadd.f32 0.0, %v1795
        %v1797 = vpop.f32.mrb[0].mxu0
        %v1798 = vpop.f32.mrb[0].mxu0
        %v1799 = vadd.f32 0.0, %v1798
        %v1800 = vpop.f32.mrb[0].mxu0
        %1801 = vmatprep.mubr.bf16.mxu0 0
        %1802 = vmatmul.mubr.bf16.gmra.mrb[0].mxu0 %v1100
        %v1803 = vpop.f32.mrb[0].mxu0
        %v1804 = vadd.f32 0.0, %v1803
        %v1805 = vpop.f32.mrb[0].mxu0
        %v1806 = vpop.f32.mrb[0].mxu0
        %v1807 = vadd.f32 0.0, %v1806
        %v1808 = vpop.f32.mrb[0].mxu0
        %1809 = vmatprep.mubr.bf16.mxu0 0
        %1810 = vmatmul.mubr.bf16.gmra.mrb[0].mxu0 %v1103
        %v1811 = vpop.f32.mrb[0].mxu0
        %v1812 = vadd.f32 0.0, %v1811
        %v1813 = vpop.f32.mrb[0].mxu0
        %v1814 = vpop.f32.mrb[0].mxu0
        %v1815 = vadd.f32 0.0, %v1814
        %v1816 = vpop.f32.mrb[0].mxu0
        %1817 = vmatprep.mubr.bf16.mxu0 0
        %1818 = vmatmul.mubr.bf16.gmra.mrb[0].mxu0 %v1106
        %v1819 = vpop.f32.mrb[0].mxu0
        %v1820 = vadd.f32 0.0, %v1819
        %v1821 = vpop.f32.mrb[0].mxu0
        %v1822 = vpop.f32.mrb[0].mxu0
        %v1823 = vadd.f32 0.0, %v1822
        %v1824 = vpop.f32.mrb[0].mxu0
        %1825 = vmatprep.mubr.bf16.mxu0 0
        %1826 = vmatmul.mubr.bf16.gmra.mrb[0].mxu0 %v1109
        %v1827 = vpop.f32.mrb[0].mxu0
        %v1828 = vadd.f32 0.0, %v1827
        %v1829 = vpop.f32.mrb[0].mxu0
        %v1830 = vpop.f32.mrb[0].mxu0
        %v1831 = vadd.f32 0.0, %v1830
        %v1832 = vpop.f32.mrb[0].mxu0
        %1833 = vmatprep.mubr.bf16.mxu0 0
        %1834 = vmatmul.mubr.bf16.gmra.mrb[0].mxu0 %v1112
        %v1835 = vpop.f32.mrb[0].mxu0
        %v1836 = vadd.f32 0.0, %v1835
        %v1837 = vpop.f32.mrb[0].mxu0
        %v1838 = vpop.f32.mrb[0].mxu0
        %v1839 = vadd.f32 0.0, %v1838
        %v1840 = vpop.f32.mrb[0].mxu0
        %1841 = vmatprep.mubr.bf16.mxu0 0
        %1842 = vmatmul.mubr.bf16.gmra.mrb[0].mxu0 %v1115
        %v1843 = vpop.f32.mrb[0].mxu0
        %v1844 = vadd.f32 0.0, %v1843
        %v1845 = vpop.f32.mrb[0].mxu0
        %v1846 = vpop.f32.mrb[0].mxu0
        %v1847 = vadd.f32 0.0, %v1846
        %v1848 = vpop.f32.mrb[0].mxu0
        %1849 = vmatprep.mubr.bf16.mxu0 0
        %1850 = vmatmul.mubr.bf16.gmra.mrb[0].mxu0 %v1118
        %v1851 = vpop.f32.mrb[0].mxu0
        %v1852 = vadd.f32 0.0, %v1851
        %v1853 = vpop.f32.mrb[0].mxu0
        %v1854 = vpop.f32.mrb[0].mxu0
        %v1855 = vadd.f32 0.0, %v1854
        %v1856 = vpop.f32.mrb[0].mxu0
        %1857 = vmatprep.mubr.bf16.mxu0 0
        %1858 = vmatmul.mubr.bf16.gmra.mrb[0].mxu0 %v1121
        %v1859 = vpop.f32.mrb[0].mxu0
        %v1860 = vadd.f32 0.0, %v1859
        %v1861 = vpop.f32.mrb[0].mxu0
        %v1862 = vpop.f32.mrb[0].mxu0
        %v1863 = vadd.f32 0.0, %v1862
        %v1864 = vpop.f32.mrb[0].mxu0
        %1865 = vmatprep.mubr.bf16.mxu0 0
        %1866 = vmatmul.mubr.bf16.gmra.mrb[0].mxu0 %v1124
        %v1867 = vpop.f32.mrb[0].mxu0
        %v1868 = vadd.f32 0.0, %v1867
        %v1869 = vpop.f32.mrb[0].mxu0
        %v1870 = vpop.f32.mrb[0].mxu0
        %v1871 = vadd.f32 0.0, %v1870
        %v1872 = vpop.f32.mrb[0].mxu0
        %1873 = vmatprep.mubr.bf16.mxu0 0
        %1874 = vmatmul.mubr.bf16.gmra.mrb[0].mxu0 %v1127
        %v1875 = vpop.f32.mrb[0].mxu0
        %v1876 = vadd.f32 0.0, %v1875
        %v1877 = vpop.f32.mrb[0].mxu0
        %v1878 = vpop.f32.mrb[0].mxu0
        %v1879 = vadd.f32 0.0, %v1878
        %v1880 = vpop.f32.mrb[0].mxu0
        %1881 = vmatprep.mubr.bf16.mxu0 0
        %1882 = vmatmul.mubr.bf16.gmra.mrb[0].mxu0 %v1724
        %v1883 = vpop.f32.mrb[0].mxu0
        %v1884 = vadd.f32 0.0, %v1883
        %v1885 = vpop.f32.mrb[0].mxu0
        %v1886 = vpop.f32.mrb[0].mxu0
        %v1887 = vadd.f32 0.0, %v1886
        %v1888 = vpop.f32.mrb[0].mxu0
        %1889 = vdwg.mxu0
        %v1890 = vadd.f32 %v1685, %v1764
        %v1891 = vadd.f32 %v1686, %v1767
        %v1892 = vadd.f32 %v1687, %v1772
        %v1893 = vadd.f32 %v1688, %v1775
        %v1894 = vadd.f32 %v1689, %v1780
        %v1895 = vadd.f32 %v1690, %v1783
        %v1896 = vadd.f32 %v1691, %v1788
        %v1897 = vadd.f32 %v1692, %v1791
        %v1898 = vadd.f32 %v1693, %v1796
        %v1899 = vadd.f32 %v1694, %v1799
        %v1900 = vadd.f32 %v1695, %v1804
        %v1901 = vadd.f32 %v1696, %v1807
        %v1902 = vadd.f32 %v1697, %v1812
        %v1903 = vadd.f32 %v1698, %v1815
        %v1904 = vadd.f32 %v1699, %v1820
        %v1905 = vadd.f32 %v1700, %v1823
        %v1906 = vadd.f32 %v1701, %v1828
        %v1907 = vadd.f32 %v1702, %v1831
        %v1908 = vadd.f32 %v1703, %v1836
        %v1909 = vadd.f32 %v1704, %v1839
        %v1910 = vadd.f32 %v1705, %v1844
        %v1911 = vadd.f32 %v1706, %v1847
        %v1912 = vadd.f32 %v1707, %v1852
        %v1913 = vadd.f32 %v1708, %v1855
        %v1914 = vadd.f32 %v1709, %v1860
        %v1915 = vadd.f32 %v1710, %v1863
        %v1916 = vadd.f32 %v1711, %v1868
        %v1917 = vadd.f32 %v1712, %v1871
        %v1918 = vadd.f32 %v1713, %v1876
        %v1919 = vadd.f32 %v1714, %v1879
        %v1920 = vadd.f32 %v1715, %v1884
        %v1921 = vadd.f32 %v1716, %v1887
        %v1923 = vshrl.u32 %v344, 16
        %v1925 = vrot.slane %v1923, 4
        %v1926 = vshll.u32 %v344, 16
        %v1928 = vrot.slane %v1926, 5
        %v1929 = vor.u32 %v1925, %v1928
        %v1930 = vrot.slane %v1929, 4
        %v1932 = vshll.u32 %v345, 16
        %v1934 = vrot.slane %v1932, 5
        %v1935 = vsel %vm353, %v1930, %v1934
        %v1936 = vshrl.u32 %v345, 16
        %v1938 = vrot.slane %v1936, 4
        %v1939 = vor.u32 %v1938, %v1934
        %v1940 = vrot.slane %v1939, 4
        %v1942 = vshll.u32 %v346, 16
        %v1944 = vrot.slane %v1942, 5
        %v1945 = vsel %vm353, %v1940, %v1944
        %v1946 = vld [vmem:[#allocation5 + $0x10] sm:$0xf]
        %v1947 = vunpack.c.l.b16 %v1935
        %v1948 = vunpack.c.l.b16 %v1945
        %v1949 = vpack.c.b16 %v1948, %v1947
        %v1951 = vsel %vm787, %v1949, 0
        %v1954 = vsel %vm836, %v1946, 0
        %1956 = vmatprep.subr.bf16.mxu0 0
        %1957 = vmatpush1.bf16.msra.mxu0 %v1954
        %1958 = vmatprep.subr.bf16.mxu0 0
        %1959 = vmatpush1.bf16.msra.mxu0 0
        %1960 = vmatprep.subr.bf16.mxu0 0
        %1961 = vmatpush1.bf16.msra.mxu0 0
        %1962 = vmatprep.subr.bf16.mxu0 0
        %1963 = vmatpush1.bf16.msra.mxu0 0
        %1964 = vmatprep.subr.bf16.mxu0 0
        %1965 = vmatpush1.bf16.msra.mxu0 0
        %1966 = vmatprep.subr.bf16.mxu0 0
        %1967 = vmatpush1.bf16.msra.mxu0 0
        %1968 = vmatprep.subr.bf16.mxu0 0
        %1969 = vmatpush1.bf16.msra.mxu0 0
        %1970 = vmatprep.subr.bf16.mxu0 0
        %1971 = vmatpush1.bf16.msra.mxu0 0
        %1972 = vmatprep.subr.bf16.mxu0 0
        %1973 = vmatpush1.bf16.msra.mxu0 0
        %1974 = vmatprep.subr.bf16.mxu0 0
        %1975 = vmatpush1.bf16.msra.mxu0 0
        %1976 = vmatprep.subr.bf16.mxu0 0
        %1977 = vmatpush1.bf16.msra.mxu0 0
        %1978 = vmatprep.subr.bf16.mxu0 0
        %1979 = vmatpush1.bf16.msra.mxu0 0
        %1980 = vmatprep.subr.bf16.mxu0 0
        %1981 = vmatpush1.bf16.msra.mxu0 0
        %1982 = vmatprep.subr.bf16.mxu0 0
        %1983 = vmatpush1.bf16.msra.mxu0 0
        %1984 = vmatprep.subr.bf16.mxu0 0
        %1985 = vmatpush1.bf16.msra.mxu0 0
        %1986 = vmatprep.subr.bf16.mxu0 0
        %1987 = vmatpush1.bf16.msra.mxu0 0
        %1988 = vmatprep.mubr.bf16.mxu0 0
        %1989 = vmatmul.mubr.bf16.gmra.mrb[0].mxu0 %v792
        %v1990 = vpop.f32.mrb[0].mxu0
        %v1991 = vadd.f32 0.0, %v1990
        %v1992 = vpop.f32.mrb[0].mxu0
        %v1993 = vpop.f32.mrb[0].mxu0
        %v1994 = vadd.f32 0.0, %v1993
        %v1995 = vpop.f32.mrb[0].mxu0
        %1996 = vmatprep.mubr.bf16.mxu0 0
        %1997 = vmatmul.mubr.bf16.gmra.mrb[0].mxu0 %v795
        %v1998 = vpop.f32.mrb[0].mxu0
        %v1999 = vadd.f32 0.0, %v1998
        %v2000 = vpop.f32.mrb[0].mxu0
        %v2001 = vpop.f32.mrb[0].mxu0
        %v2002 = vadd.f32 0.0, %v2001
        %v2003 = vpop.f32.mrb[0].mxu0
        %2004 = vmatprep.mubr.bf16.mxu0 0
        %2005 = vmatmul.mubr.bf16.gmra.mrb[0].mxu0 %v798
        %v2006 = vpop.f32.mrb[0].mxu0
        %v2007 = vadd.f32 0.0, %v2006
        %v2008 = vpop.f32.mrb[0].mxu0
        %v2009 = vpop.f32.mrb[0].mxu0
        %v2010 = vadd.f32 0.0, %v2009
        %v2011 = vpop.f32.mrb[0].mxu0
        %2012 = vmatprep.mubr.bf16.mxu0 0
        %2013 = vmatmul.mubr.bf16.gmra.mrb[0].mxu0 %v801
        %v2014 = vpop.f32.mrb[0].mxu0
        %v2015 = vadd.f32 0.0, %v2014
        %v2016 = vpop.f32.mrb[0].mxu0
        %v2017 = vpop.f32.mrb[0].mxu0
        %v2018 = vadd.f32 0.0, %v2017
        %v2019 = vpop.f32.mrb[0].mxu0
        %2020 = vmatprep.mubr.bf16.mxu0 0
        %2021 = vmatmul.mubr.bf16.gmra.mrb[0].mxu0 %v804
        %v2022 = vpop.f32.mrb[0].mxu0
        %v2023 = vadd.f32 0.0, %v2022
        %v2024 = vpop.f32.mrb[0].mxu0
        %v2025 = vpop.f32.mrb[0].mxu0
        %v2026 = vadd.f32 0.0, %v2025
        %v2027 = vpop.f32.mrb[0].mxu0
        %2028 = vmatprep.mubr.bf16.mxu0 0
        %2029 = vmatmul.mubr.bf16.gmra.mrb[0].mxu0 %v807
        %v2030 = vpop.f32.mrb[0].mxu0
        %v2031 = vadd.f32 0.0, %v2030
        %v2032 = vpop.f32.mrb[0].mxu0
        %v2033 = vpop.f32.mrb[0].mxu0
        %v2034 = vadd.f32 0.0, %v2033
        %v2035 = vpop.f32.mrb[0].mxu0
        %2036 = vmatprep.mubr.bf16.mxu0 0
        %2037 = vmatmul.mubr.bf16.gmra.mrb[0].mxu0 %v810
        %v2038 = vpop.f32.mrb[0].mxu0
        %v2039 = vadd.f32 0.0, %v2038
        %v2040 = vpop.f32.mrb[0].mxu0
        %v2041 = vpop.f32.mrb[0].mxu0
        %v2042 = vadd.f32 0.0, %v2041
        %v2043 = vpop.f32.mrb[0].mxu0
        %2044 = vmatprep.mubr.bf16.mxu0 0
        %2045 = vmatmul.mubr.bf16.gmra.mrb[0].mxu0 %v813
        %v2046 = vpop.f32.mrb[0].mxu0
        %v2047 = vadd.f32 0.0, %v2046
        %v2048 = vpop.f32.mrb[0].mxu0
        %v2049 = vpop.f32.mrb[0].mxu0
        %v2050 = vadd.f32 0.0, %v2049
        %v2051 = vpop.f32.mrb[0].mxu0
        %2052 = vmatprep.mubr.bf16.mxu0 0
        %2053 = vmatmul.mubr.bf16.gmra.mrb[0].mxu0 %v816
        %v2054 = vpop.f32.mrb[0].mxu0
        %v2055 = vadd.f32 0.0, %v2054
        %v2056 = vpop.f32.mrb[0].mxu0
        %v2057 = vpop.f32.mrb[0].mxu0
        %v2058 = vadd.f32 0.0, %v2057
        %v2059 = vpop.f32.mrb[0].mxu0
        %2060 = vmatprep.mubr.bf16.mxu0 0
        %2061 = vmatmul.mubr.bf16.gmra.mrb[0].mxu0 %v819
        %v2062 = vpop.f32.mrb[0].mxu0
        %v2063 = vadd.f32 0.0, %v2062
        %v2064 = vpop.f32.mrb[0].mxu0
        %v2065 = vpop.f32.mrb[0].mxu0
        %v2066 = vadd.f32 0.0, %v2065
        %v2067 = vpop.f32.mrb[0].mxu0
        %2068 = vmatprep.mubr.bf16.mxu0 0
        %2069 = vmatmul.mubr.bf16.gmra.mrb[0].mxu0 %v822
        %v2070 = vpop.f32.mrb[0].mxu0
        %v2071 = vadd.f32 0.0, %v2070
        %v2072 = vpop.f32.mrb[0].mxu0
        %v2073 = vpop.f32.mrb[0].mxu0
        %v2074 = vadd.f32 0.0, %v2073
        %v2075 = vpop.f32.mrb[0].mxu0
        %2076 = vmatprep.mubr.bf16.mxu0 0
        %2077 = vmatmul.mubr.bf16.gmra.mrb[0].mxu0 %v825
        %v2078 = vpop.f32.mrb[0].mxu0
        %v2079 = vadd.f32 0.0, %v2078
        %v2080 = vpop.f32.mrb[0].mxu0
        %v2081 = vpop.f32.mrb[0].mxu0
        %v2082 = vadd.f32 0.0, %v2081
        %v2083 = vpop.f32.mrb[0].mxu0
        %2084 = vmatprep.mubr.bf16.mxu0 0
        %2085 = vmatmul.mubr.bf16.gmra.mrb[0].mxu0 %v828
        %v2086 = vpop.f32.mrb[0].mxu0
        %v2087 = vadd.f32 0.0, %v2086
        %v2088 = vpop.f32.mrb[0].mxu0
        %v2089 = vpop.f32.mrb[0].mxu0
        %v2090 = vadd.f32 0.0, %v2089
        %v2091 = vpop.f32.mrb[0].mxu0
        %2092 = vmatprep.mubr.bf16.mxu0 0
        %2093 = vmatmul.mubr.bf16.gmra.mrb[0].mxu0 %v831
        %v2094 = vpop.f32.mrb[0].mxu0
        %v2095 = vadd.f32 0.0, %v2094
        %v2096 = vpop.f32.mrb[0].mxu0
        %v2097 = vpop.f32.mrb[0].mxu0
        %v2098 = vadd.f32 0.0, %v2097
        %v2099 = vpop.f32.mrb[0].mxu0
        %2100 = vmatprep.mubr.bf16.mxu0 0
        %2101 = vmatmul.mubr.bf16.gmra.mrb[0].mxu0 %v834
        %v2102 = vpop.f32.mrb[0].mxu0
        %v2103 = vadd.f32 0.0, %v2102
        %v2104 = vpop.f32.mrb[0].mxu0
        %v2105 = vpop.f32.mrb[0].mxu0
        %v2106 = vadd.f32 0.0, %v2105
        %v2107 = vpop.f32.mrb[0].mxu0
        %2108 = vmatprep.mubr.bf16.mxu0 0
        %2109 = vmatmul.mubr.bf16.gmra.mrb[0].mxu0 %v1951
        %v2110 = vpop.f32.mrb[0].mxu0
        %v2111 = vadd.f32 0.0, %v2110
        %v2112 = vpop.f32.mrb[0].mxu0
        %v2113 = vpop.f32.mrb[0].mxu0
        %v2114 = vadd.f32 0.0, %v2113
        %v2115 = vpop.f32.mrb[0].mxu0
        %2116 = vdwg.mxu0
        %v2117 = vadd.f32 %v1890, %v1991
        %v2118 = vadd.f32 %v1891, %v1994
        %v2119 = vadd.f32 %v1892, %v1999
        %v2120 = vadd.f32 %v1893, %v2002
        %v2121 = vadd.f32 %v1894, %v2007
        %v2122 = vadd.f32 %v1895, %v2010
        %v2123 = vadd.f32 %v1896, %v2015
        %v2124 = vadd.f32 %v1897, %v2018
        %v2125 = vadd.f32 %v1898, %v2023
        %v2126 = vadd.f32 %v1899, %v2026
        %v2127 = vadd.f32 %v1900, %v2031
        %v2128 = vadd.f32 %v1901, %v2034
        %v2129 = vadd.f32 %v1902, %v2039
        %v2130 = vadd.f32 %v1903, %v2042
        %v2131 = vadd.f32 %v1904, %v2047
        %v2132 = vadd.f32 %v1905, %v2050
        %v2133 = vadd.f32 %v1906, %v2055
        %v2134 = vadd.f32 %v1907, %v2058
        %v2135 = vadd.f32 %v1908, %v2063
        %v2136 = vadd.f32 %v1909, %v2066
        %v2137 = vadd.f32 %v1910, %v2071
        %v2138 = vadd.f32 %v1911, %v2074
        %v2139 = vadd.f32 %v1912, %v2079
        %v2140 = vadd.f32 %v1913, %v2082
        %v2141 = vadd.f32 %v1914, %v2087
        %v2142 = vadd.f32 %v1915, %v2090
        %v2143 = vadd.f32 %v1916, %v2095
        %v2144 = vadd.f32 %v1917, %v2098
        %v2145 = vadd.f32 %v1918, %v2103
        %v2146 = vadd.f32 %v1919, %v2106
        %v2147 = vadd.f32 %v1920, %v2111
        %v2148 = vadd.f32 %v1921, %v2114
        %v2150 = vrot.slane %v344, 5
        %v2151 = vrot.slane %v2150, 4
        %v2152 = vrot.slane %v345, 5
        %v2153 = vsel %vm1311, %v2151, %v2152
        %v2154 = vrot.slane %v2152, 4
        %v2155 = vrot.slane %v346, 5
        %v2156 = vsel %vm1311, %v2154, %v2155
        %v2157 = vld [vmem:[#allocation5 + $0x14] sm:$0xf]
        %v2158 = vunpack.c.l.b16 %v2153
        %v2159 = vunpack.c.l.b16 %v2156
        %v2160 = vpack.c.b16 %v2159, %v2158
        %v2162 = vsel %vm787, %v2160, 0
        %v2165 = vsel %vm836, %v2157, 0
        %2167 = vmatprep.subr.bf16.mxu0 0
        %2168 = vmatpush1.bf16.msra.mxu0 %v2165
        %2169 = vmatprep.subr.bf16.mxu0 0
        %2170 = vmatpush1.bf16.msra.mxu0 0
        %2171 = vmatprep.subr.bf16.mxu0 0
        %2172 = vmatpush1.bf16.msra.mxu0 0
        %2173 = vmatprep.subr.bf16.mxu0 0
        %2174 = vmatpush1.bf16.msra.mxu0 0
        %2175 = vmatprep.subr.bf16.mxu0 0
        %2176 = vmatpush1.bf16.msra.mxu0 0
        %2177 = vmatprep.subr.bf16.mxu0 0
        %2178 = vmatpush1.bf16.msra.mxu0 0
        %2179 = vmatprep.subr.bf16.mxu0 0
        %2180 = vmatpush1.bf16.msra.mxu0 0
        %2181 = vmatprep.subr.bf16.mxu0 0
        %2182 = vmatpush1.bf16.msra.mxu0 0
        %2183 = vmatprep.subr.bf16.mxu0 0
        %2184 = vmatpush1.bf16.msra.mxu0 0
        %2185 = vmatprep.subr.bf16.mxu0 0
        %2186 = vmatpush1.bf16.msra.mxu0 0
        %2187 = vmatprep.subr.bf16.mxu0 0
        %2188 = vmatpush1.bf16.msra.mxu0 0
        %2189 = vmatprep.subr.bf16.mxu0 0
        %2190 = vmatpush1.bf16.msra.mxu0 0
        %2191 = vmatprep.subr.bf16.mxu0 0
        %2192 = vmatpush1.bf16.msra.mxu0 0
        %2193 = vmatprep.subr.bf16.mxu0 0
        %2194 = vmatpush1.bf16.msra.mxu0 0
        %2195 = vmatprep.subr.bf16.mxu0 0
        %2196 = vmatpush1.bf16.msra.mxu0 0
        %2197 = vmatprep.subr.bf16.mxu0 0
        %2198 = vmatpush1.bf16.msra.mxu0 0
        %2199 = vmatprep.mubr.bf16.mxu0 0
        %2200 = vmatmul.mubr.bf16.gmra.mrb[0].mxu0 %v1477
        %v2201 = vpop.f32.mrb[0].mxu0
        %v2202 = vadd.f32 0.0, %v2201
        %v2203 = vpop.f32.mrb[0].mxu0
        %v2204 = vpop.f32.mrb[0].mxu0
        %v2205 = vadd.f32 0.0, %v2204
        %v2206 = vpop.f32.mrb[0].mxu0
        %2207 = vmatprep.mubr.bf16.mxu0 0
        %2208 = vmatmul.mubr.bf16.gmra.mrb[0].mxu0 %v1480
        %v2209 = vpop.f32.mrb[0].mxu0
        %v2210 = vadd.f32 0.0, %v2209
        %v2211 = vpop.f32.mrb[0].mxu0
        %v2212 = vpop.f32.mrb[0].mxu0
        %v2213 = vadd.f32 0.0, %v2212
        %v2214 = vpop.f32.mrb[0].mxu0
        %2215 = vmatprep.mubr.bf16.mxu0 0
        %2216 = vmatmul.mubr.bf16.gmra.mrb[0].mxu0 %v1483
        %v2217 = vpop.f32.mrb[0].mxu0
        %v2218 = vadd.f32 0.0, %v2217
        %v2219 = vpop.f32.mrb[0].mxu0
        %v2220 = vpop.f32.mrb[0].mxu0
        %v2221 = vadd.f32 0.0, %v2220
        %v2222 = vpop.f32.mrb[0].mxu0
        %2223 = vmatprep.mubr.bf16.mxu0 0
        %2224 = vmatmul.mubr.bf16.gmra.mrb[0].mxu0 %v1486
        %v2225 = vpop.f32.mrb[0].mxu0
        %v2226 = vadd.f32 0.0, %v2225
        %v2227 = vpop.f32.mrb[0].mxu0
        %v2228 = vpop.f32.mrb[0].mxu0
        %v2229 = vadd.f32 0.0, %v2228
        %v2230 = vpop.f32.mrb[0].mxu0
        %2231 = vmatprep.mubr.bf16.mxu0 0
        %2232 = vmatmul.mubr.bf16.gmra.mrb[0].mxu0 %v1489
        %v2233 = vpop.f32.mrb[0].mxu0
        %v2234 = vadd.f32 0.0, %v2233
        %v2235 = vpop.f32.mrb[0].mxu0
        %v2236 = vpop.f32.mrb[0].mxu0
        %v2237 = vadd.f32 0.0, %v2236
        %v2238 = vpop.f32.mrb[0].mxu0
        %2239 = vmatprep.mubr.bf16.mxu0 0
        %2240 = vmatmul.mubr.bf16.gmra.mrb[0].mxu0 %v1492
        %v2241 = vpop.f32.mrb[0].mxu0
        %v2242 = vadd.f32 0.0, %v2241
        %v2243 = vpop.f32.mrb[0].mxu0
        %v2244 = vpop.f32.mrb[0].mxu0
        %v2245 = vadd.f32 0.0, %v2244
        %v2246 = vpop.f32.mrb[0].mxu0
        %2247 = vmatprep.mubr.bf16.mxu0 0
        %2248 = vmatmul.mubr.bf16.gmra.mrb[0].mxu0 %v1495
        %v2249 = vpop.f32.mrb[0].mxu0
        %v2250 = vadd.f32 0.0, %v2249
        %v2251 = vpop.f32.mrb[0].mxu0
        %v2252 = vpop.f32.mrb[0].mxu0
        %v2253 = vadd.f32 0.0, %v2252
        %v2254 = vpop.f32.mrb[0].mxu0
        %2255 = vmatprep.mubr.bf16.mxu0 0
        %2256 = vmatmul.mubr.bf16.gmra.mrb[0].mxu0 %v1498
        %v2257 = vpop.f32.mrb[0].mxu0
        %v2258 = vadd.f32 0.0, %v2257
        %v2259 = vpop.f32.mrb[0].mxu0
        %v2260 = vpop.f32.mrb[0].mxu0
        %v2261 = vadd.f32 0.0, %v2260
        %v2262 = vpop.f32.mrb[0].mxu0
        %2263 = vmatprep.mubr.bf16.mxu0 0
        %2264 = vmatmul.mubr.bf16.gmra.mrb[0].mxu0 %v1501
        %v2265 = vpop.f32.mrb[0].mxu0
        %v2266 = vadd.f32 0.0, %v2265
        %v2267 = vpop.f32.mrb[0].mxu0
        %v2268 = vpop.f32.mrb[0].mxu0
        %v2269 = vadd.f32 0.0, %v2268
        %v2270 = vpop.f32.mrb[0].mxu0
        %2271 = vmatprep.mubr.bf16.mxu0 0
        %2272 = vmatmul.mubr.bf16.gmra.mrb[0].mxu0 %v1504
        %v2273 = vpop.f32.mrb[0].mxu0
        %v2274 = vadd.f32 0.0, %v2273
        %v2275 = vpop.f32.mrb[0].mxu0
        %v2276 = vpop.f32.mrb[0].mxu0
        %v2277 = vadd.f32 0.0, %v2276
        %v2278 = vpop.f32.mrb[0].mxu0
        %2279 = vmatprep.mubr.bf16.mxu0 0
        %2280 = vmatmul.mubr.bf16.gmra.mrb[0].mxu0 %v1507
        %v2281 = vpop.f32.mrb[0].mxu0
        %v2282 = vadd.f32 0.0, %v2281
        %v2283 = vpop.f32.mrb[0].mxu0
        %v2284 = vpop.f32.mrb[0].mxu0
        %v2285 = vadd.f32 0.0, %v2284
        %v2286 = vpop.f32.mrb[0].mxu0
        %2287 = vmatprep.mubr.bf16.mxu0 0
        %2288 = vmatmul.mubr.bf16.gmra.mrb[0].mxu0 %v1510
        %v2289 = vpop.f32.mrb[0].mxu0
        %v2290 = vadd.f32 0.0, %v2289
        %v2291 = vpop.f32.mrb[0].mxu0
        %v2292 = vpop.f32.mrb[0].mxu0
        %v2293 = vadd.f32 0.0, %v2292
        %v2294 = vpop.f32.mrb[0].mxu0
        %2295 = vmatprep.mubr.bf16.mxu0 0
        %2296 = vmatmul.mubr.bf16.gmra.mrb[0].mxu0 %v1513
        %v2297 = vpop.f32.mrb[0].mxu0
        %v2298 = vadd.f32 0.0, %v2297
        %v2299 = vpop.f32.mrb[0].mxu0
        %v2300 = vpop.f32.mrb[0].mxu0
        %v2301 = vadd.f32 0.0, %v2300
        %v2302 = vpop.f32.mrb[0].mxu0
        %2303 = vmatprep.mubr.bf16.mxu0 0
        %2304 = vmatmul.mubr.bf16.gmra.mrb[0].mxu0 %v1516
        %v2305 = vpop.f32.mrb[0].mxu0
        %v2306 = vadd.f32 0.0, %v2305
        %v2307 = vpop.f32.mrb[0].mxu0
        %v2308 = vpop.f32.mrb[0].mxu0
        %v2309 = vadd.f32 0.0, %v2308
        %v2310 = vpop.f32.mrb[0].mxu0
        %2311 = vmatprep.mubr.bf16.mxu0 0
        %2312 = vmatmul.mubr.bf16.gmra.mrb[0].mxu0 %v1519
        %v2313 = vpop.f32.mrb[0].mxu0
        %v2314 = vadd.f32 0.0, %v2313
        %v2315 = vpop.f32.mrb[0].mxu0
        %v2316 = vpop.f32.mrb[0].mxu0
        %v2317 = vadd.f32 0.0, %v2316
        %v2318 = vpop.f32.mrb[0].mxu0
        %2319 = vmatprep.mubr.bf16.mxu0 0
        %2320 = vmatmul.mubr.bf16.gmra.mrb[0].mxu0 %v2162
        %v2321 = vpop.f32.mrb[0].mxu0
        %v2322 = vadd.f32 0.0, %v2321
        %v2323 = vpop.f32.mrb[0].mxu0
        %v2324 = vpop.f32.mrb[0].mxu0
        %v2325 = vadd.f32 0.0, %v2324
        %v2326 = vpop.f32.mrb[0].mxu0
        %2327 = vdwg.mxu0
        %v2328 = vadd.f32 %v2117, %v2202
        %v2329 = vadd.f32 %v2118, %v2205
        %v2330 = vadd.f32 %v2119, %v2210
        %v2331 = vadd.f32 %v2120, %v2213
        %v2332 = vadd.f32 %v2121, %v2218
        %v2333 = vadd.f32 %v2122, %v2221
        %v2334 = vadd.f32 %v2123, %v2226
        %v2335 = vadd.f32 %v2124, %v2229
        %v2336 = vadd.f32 %v2125, %v2234
        %v2337 = vadd.f32 %v2126, %v2237
        %v2338 = vadd.f32 %v2127, %v2242
        %v2339 = vadd.f32 %v2128, %v2245
        %v2340 = vadd.f32 %v2129, %v2250
        %v2341 = vadd.f32 %v2130, %v2253
        %v2342 = vadd.f32 %v2131, %v2258
        %v2343 = vadd.f32 %v2132, %v2261
        %v2344 = vadd.f32 %v2133, %v2266
        %v2345 = vadd.f32 %v2134, %v2269
        %v2346 = vadd.f32 %v2135, %v2274
        %v2347 = vadd.f32 %v2136, %v2277
        %v2348 = vadd.f32 %v2137, %v2282
        %v2349 = vadd.f32 %v2138, %v2285
        %v2350 = vadd.f32 %v2139, %v2290
        %v2351 = vadd.f32 %v2140, %v2293
        %v2352 = vadd.f32 %v2141, %v2298
        %v2353 = vadd.f32 %v2142, %v2301
        %v2354 = vadd.f32 %v2143, %v2306
        %v2355 = vadd.f32 %v2144, %v2309
        %v2356 = vadd.f32 %v2145, %v2314
        %v2357 = vadd.f32 %v2146, %v2317
        %v2358 = vadd.f32 %v2147, %v2322
        %v2359 = vadd.f32 %v2148, %v2325
        %v2360 = vld [vmem:[#allocation5 + $0x18] sm:$0xf]
        %v2363 = vunpack.c.l.b16 %v347
        %v2364 = vunpack.c.l.b16 %v348
        %v2365 = vpack.c.b16 %v2364, %v2363
        %v2367 = vsel %vm787, %v2365, 0
        %v2370 = vsel %vm836, %v2360, 0
        %2372 = vmatprep.subr.bf16.mxu0 0
        %2373 = vmatpush1.bf16.msra.mxu0 %v2370
        %2374 = vmatprep.subr.bf16.mxu0 0
        %2375 = vmatpush1.bf16.msra.mxu0 0
        %2376 = vmatprep.subr.bf16.mxu0 0
        %2377 = vmatpush1.bf16.msra.mxu0 0
        %2378 = vmatprep.subr.bf16.mxu0 0
        %2379 = vmatpush1.bf16.msra.mxu0 0
        %2380 = vmatprep.subr.bf16.mxu0 0
        %2381 = vmatpush1.bf16.msra.mxu0 0
        %2382 = vmatprep.subr.bf16.mxu0 0
        %2383 = vmatpush1.bf16.msra.mxu0 0
        %2384 = vmatprep.subr.bf16.mxu0 0
        %2385 = vmatpush1.bf16.msra.mxu0 0
        %2386 = vmatprep.subr.bf16.mxu0 0
        %2387 = vmatpush1.bf16.msra.mxu0 0
        %2388 = vmatprep.subr.bf16.mxu0 0
        %2389 = vmatpush1.bf16.msra.mxu0 0
        %2390 = vmatprep.subr.bf16.mxu0 0
        %2391 = vmatpush1.bf16.msra.mxu0 0
        %2392 = vmatprep.subr.bf16.mxu0 0
        %2393 = vmatpush1.bf16.msra.mxu0 0
        %2394 = vmatprep.subr.bf16.mxu0 0
        %2395 = vmatpush1.bf16.msra.mxu0 0
        %2396 = vmatprep.subr.bf16.mxu0 0
        %2397 = vmatpush1.bf16.msra.mxu0 0
        %2398 = vmatprep.subr.bf16.mxu0 0
        %2399 = vmatpush1.bf16.msra.mxu0 0
        %2400 = vmatprep.subr.bf16.mxu0 0
        %2401 = vmatpush1.bf16.msra.mxu0 0
        %2402 = vmatprep.subr.bf16.mxu0 0
        %2403 = vmatpush1.bf16.msra.mxu0 0
        %2404 = vmatprep.mubr.bf16.mxu0 0
        %2405 = vmatmul.mubr.bf16.gmra.mrb[0].mxu0 %v1088
        %v2406 = vpop.f32.mrb[0].mxu0
        %v2407 = vadd.f32 0.0, %v2406
        %v2408 = vpop.f32.mrb[0].mxu0
        %v2409 = vpop.f32.mrb[0].mxu0
        %v2410 = vadd.f32 0.0, %v2409
        %v2411 = vpop.f32.mrb[0].mxu0
        %2412 = vmatprep.mubr.bf16.mxu0 0
        %2413 = vmatmul.mubr.bf16.gmra.mrb[0].mxu0 %v1091
        %v2414 = vpop.f32.mrb[0].mxu0
        %v2415 = vadd.f32 0.0, %v2414
        %v2416 = vpop.f32.mrb[0].mxu0
        %v2417 = vpop.f32.mrb[0].mxu0
        %v2418 = vadd.f32 0.0, %v2417
        %v2419 = vpop.f32.mrb[0].mxu0
        %2420 = vmatprep.mubr.bf16.mxu0 0
        %2421 = vmatmul.mubr.bf16.gmra.mrb[0].mxu0 %v1094
        %v2422 = vpop.f32.mrb[0].mxu0
        %v2423 = vadd.f32 0.0, %v2422
        %v2424 = vpop.f32.mrb[0].mxu0
        %v2425 = vpop.f32.mrb[0].mxu0
        %v2426 = vadd.f32 0.0, %v2425
        %v2427 = vpop.f32.mrb[0].mxu0
        %2428 = vmatprep.mubr.bf16.mxu0 0
        %2429 = vmatmul.mubr.bf16.gmra.mrb[0].mxu0 %v1097
        %v2430 = vpop.f32.mrb[0].mxu0
        %v2431 = vadd.f32 0.0, %v2430
        %v2432 = vpop.f32.mrb[0].mxu0
        %v2433 = vpop.f32.mrb[0].mxu0
        %v2434 = vadd.f32 0.0, %v2433
        %v2435 = vpop.f32.mrb[0].mxu0
        %2436 = vmatprep.mubr.bf16.mxu0 0
        %2437 = vmatmul.mubr.bf16.gmra.mrb[0].mxu0 %v1100
        %v2438 = vpop.f32.mrb[0].mxu0
        %v2439 = vadd.f32 0.0, %v2438
        %v2440 = vpop.f32.mrb[0].mxu0
        %v2441 = vpop.f32.mrb[0].mxu0
        %v2442 = vadd.f32 0.0, %v2441
        %v2443 = vpop.f32.mrb[0].mxu0
        %2444 = vmatprep.mubr.bf16.mxu0 0
        %2445 = vmatmul.mubr.bf16.gmra.mrb[0].mxu0 %v1103
        %v2446 = vpop.f32.mrb[0].mxu0
        %v2447 = vadd.f32 0.0, %v2446
        %v2448 = vpop.f32.mrb[0].mxu0
        %v2449 = vpop.f32.mrb[0].mxu0
        %v2450 = vadd.f32 0.0, %v2449
        %v2451 = vpop.f32.mrb[0].mxu0
        %2452 = vmatprep.mubr.bf16.mxu0 0
        %2453 = vmatmul.mubr.bf16.gmra.mrb[0].mxu0 %v1106
        %v2454 = vpop.f32.mrb[0].mxu0
        %v2455 = vadd.f32 0.0, %v2454
        %v2456 = vpop.f32.mrb[0].mxu0
        %v2457 = vpop.f32.mrb[0].mxu0
        %v2458 = vadd.f32 0.0, %v2457
        %v2459 = vpop.f32.mrb[0].mxu0
        %2460 = vmatprep.mubr.bf16.mxu0 0
        %2461 = vmatmul.mubr.bf16.gmra.mrb[0].mxu0 %v1109
        %v2462 = vpop.f32.mrb[0].mxu0
        %v2463 = vadd.f32 0.0, %v2462
        %v2464 = vpop.f32.mrb[0].mxu0
        %v2465 = vpop.f32.mrb[0].mxu0
        %v2466 = vadd.f32 0.0, %v2465
        %v2467 = vpop.f32.mrb[0].mxu0
        %2468 = vmatprep.mubr.bf16.mxu0 0
        %2469 = vmatmul.mubr.bf16.gmra.mrb[0].mxu0 %v1112
        %v2470 = vpop.f32.mrb[0].mxu0
        %v2471 = vadd.f32 0.0, %v2470
        %v2472 = vpop.f32.mrb[0].mxu0
        %v2473 = vpop.f32.mrb[0].mxu0
        %v2474 = vadd.f32 0.0, %v2473
        %v2475 = vpop.f32.mrb[0].mxu0
        %2476 = vmatprep.mubr.bf16.mxu0 0
        %2477 = vmatmul.mubr.bf16.gmra.mrb[0].mxu0 %v1115
        %v2478 = vpop.f32.mrb[0].mxu0
        %v2479 = vadd.f32 0.0, %v2478
        %v2480 = vpop.f32.mrb[0].mxu0
        %v2481 = vpop.f32.mrb[0].mxu0
        %v2482 = vadd.f32 0.0, %v2481
        %v2483 = vpop.f32.mrb[0].mxu0
        %2484 = vmatprep.mubr.bf16.mxu0 0
        %2485 = vmatmul.mubr.bf16.gmra.mrb[0].mxu0 %v1118
        %v2486 = vpop.f32.mrb[0].mxu0
        %v2487 = vadd.f32 0.0, %v2486
        %v2488 = vpop.f32.mrb[0].mxu0
        %v2489 = vpop.f32.mrb[0].mxu0
        %v2490 = vadd.f32 0.0, %v2489
        %v2491 = vpop.f32.mrb[0].mxu0
        %2492 = vmatprep.mubr.bf16.mxu0 0
        %2493 = vmatmul.mubr.bf16.gmra.mrb[0].mxu0 %v1121
        %v2494 = vpop.f32.mrb[0].mxu0
        %v2495 = vadd.f32 0.0, %v2494
        %v2496 = vpop.f32.mrb[0].mxu0
        %v2497 = vpop.f32.mrb[0].mxu0
        %v2498 = vadd.f32 0.0, %v2497
        %v2499 = vpop.f32.mrb[0].mxu0
        %2500 = vmatprep.mubr.bf16.mxu0 0
        %2501 = vmatmul.mubr.bf16.gmra.mrb[0].mxu0 %v1124
        %v2502 = vpop.f32.mrb[0].mxu0
        %v2503 = vadd.f32 0.0, %v2502
        %v2504 = vpop.f32.mrb[0].mxu0
        %v2505 = vpop.f32.mrb[0].mxu0
        %v2506 = vadd.f32 0.0, %v2505
        %v2507 = vpop.f32.mrb[0].mxu0
        %2508 = vmatprep.mubr.bf16.mxu0 0
        %2509 = vmatmul.mubr.bf16.gmra.mrb[0].mxu0 %v1127
        %v2510 = vpop.f32.mrb[0].mxu0
        %v2511 = vadd.f32 0.0, %v2510
        %v2512 = vpop.f32.mrb[0].mxu0
        %v2513 = vpop.f32.mrb[0].mxu0
        %v2514 = vadd.f32 0.0, %v2513
        %v2515 = vpop.f32.mrb[0].mxu0
        %2516 = vmatprep.mubr.bf16.mxu0 0
        %2517 = vmatmul.mubr.bf16.gmra.mrb[0].mxu0 %v1724
        %v2518 = vpop.f32.mrb[0].mxu0
        %v2519 = vadd.f32 0.0, %v2518
        %v2520 = vpop.f32.mrb[0].mxu0
        %v2521 = vpop.f32.mrb[0].mxu0
        %v2522 = vadd.f32 0.0, %v2521
        %v2523 = vpop.f32.mrb[0].mxu0
        %2524 = vmatprep.mubr.bf16.mxu0 0
        %2525 = vmatmul.mubr.bf16.gmra.mrb[0].mxu0 %v2367
        %v2526 = vpop.f32.mrb[0].mxu0
        %v2527 = vadd.f32 0.0, %v2526
        %v2528 = vpop.f32.mrb[0].mxu0
        %v2529 = vpop.f32.mrb[0].mxu0
        %v2530 = vadd.f32 0.0, %v2529
        %v2531 = vpop.f32.mrb[0].mxu0
        %2532 = vdwg.mxu0
        %v2533 = vadd.f32 %v2328, %v2407
        %v2534 = vadd.f32 %v2329, %v2410
        %v2535 = vadd.f32 %v2330, %v2415
        %v2536 = vadd.f32 %v2331, %v2418
        %v2537 = vadd.f32 %v2332, %v2423
        %v2538 = vadd.f32 %v2333, %v2426
        %v2539 = vadd.f32 %v2334, %v2431
        %v2540 = vadd.f32 %v2335, %v2434
        %v2541 = vadd.f32 %v2336, %v2439
        %v2542 = vadd.f32 %v2337, %v2442
        %v2543 = vadd.f32 %v2338, %v2447
        %v2544 = vadd.f32 %v2339, %v2450
        %v2545 = vadd.f32 %v2340, %v2455
        %v2546 = vadd.f32 %v2341, %v2458
        %v2547 = vadd.f32 %v2342, %v2463
        %v2548 = vadd.f32 %v2343, %v2466
        %v2549 = vadd.f32 %v2344, %v2471
        %v2550 = vadd.f32 %v2345, %v2474
        %v2551 = vadd.f32 %v2346, %v2479
        %v2552 = vadd.f32 %v2347, %v2482
        %v2553 = vadd.f32 %v2348, %v2487
        %v2554 = vadd.f32 %v2349, %v2490
        %v2555 = vadd.f32 %v2350, %v2495
        %v2556 = vadd.f32 %v2351, %v2498
        %v2557 = vadd.f32 %v2352, %v2503
        %v2558 = vadd.f32 %v2353, %v2506
        %v2559 = vadd.f32 %v2354, %v2511
        %v2560 = vadd.f32 %v2355, %v2514
        %v2561 = vadd.f32 %v2356, %v2519
        %v2562 = vadd.f32 %v2357, %v2522
        %v2563 = vadd.f32 %v2358, %v2527
        %v2564 = vadd.f32 %v2359, %v2530
        %v2566 = vshrl.u32 %v347, 16
        %v2568 = vrot.slane %v2566, 4
        %v2569 = vshll.u32 %v347, 16
        %v2571 = vrot.slane %v2569, 5
        %v2572 = vor.u32 %v2568, %v2571
        %v2573 = vrot.slane %v2572, 4
        %v2575 = vshll.u32 %v348, 16
        %v2577 = vrot.slane %v2575, 5
        %v2578 = vsel %vm353, %v2573, %v2577
        %v2579 = vshrl.u32 %v348, 16
        %v2581 = vrot.slane %v2579, 4
        %v2582 = vor.u32 %v2581, %v2577
        %v2583 = vrot.slane %v2582, 4
        %v2585 = vshll.u32 %v349, 16
        %v2587 = vrot.slane %v2585, 5
        %v2588 = vsel %vm353, %v2583, %v2587
        %v2589 = vld [vmem:[#allocation5 + $0x1c] sm:$0xf]
        %v2590 = vunpack.c.l.b16 %v2578
        %v2591 = vunpack.c.l.b16 %v2588
        %v2592 = vpack.c.b16 %v2591, %v2590
        %v2594 = vsel %vm787, %v2592, 0
        %v2597 = vsel %vm836, %v2589, 0
        %2599 = vmatprep.subr.bf16.mxu0 0
        %2600 = vmatpush1.bf16.msra.mxu0 %v2597
        %2601 = vmatprep.subr.bf16.mxu0 0
        %2602 = vmatpush1.bf16.msra.mxu0 0
        %2603 = vmatprep.subr.bf16.mxu0 0
        %2604 = vmatpush1.bf16.msra.mxu0 0
        %2605 = vmatprep.subr.bf16.mxu0 0
        %2606 = vmatpush1.bf16.msra.mxu0 0
        %2607 = vmatprep.subr.bf16.mxu0 0
        %2608 = vmatpush1.bf16.msra.mxu0 0
        %2609 = vmatprep.subr.bf16.mxu0 0
        %2610 = vmatpush1.bf16.msra.mxu0 0
        %2611 = vmatprep.subr.bf16.mxu0 0
        %2612 = vmatpush1.bf16.msra.mxu0 0
        %2613 = vmatprep.subr.bf16.mxu0 0
        %2614 = vmatpush1.bf16.msra.mxu0 0
        %2615 = vmatprep.subr.bf16.mxu0 0
        %2616 = vmatpush1.bf16.msra.mxu0 0
        %2617 = vmatprep.subr.bf16.mxu0 0
        %2618 = vmatpush1.bf16.msra.mxu0 0
        %2619 = vmatprep.subr.bf16.mxu0 0
        %2620 = vmatpush1.bf16.msra.mxu0 0
        %2621 = vmatprep.subr.bf16.mxu0 0
        %2622 = vmatpush1.bf16.msra.mxu0 0
        %2623 = vmatprep.subr.bf16.mxu0 0
        %2624 = vmatpush1.bf16.msra.mxu0 0
        %2625 = vmatprep.subr.bf16.mxu0 0
        %2626 = vmatpush1.bf16.msra.mxu0 0
        %2627 = vmatprep.subr.bf16.mxu0 0
        %2628 = vmatpush1.bf16.msra.mxu0 0
        %2629 = vmatprep.subr.bf16.mxu0 0
        %2630 = vmatpush1.bf16.msra.mxu0 0
        %2631 = vmatprep.mubr.bf16.mxu0 0
        %2632 = vmatmul.mubr.bf16.gmra.mrb[0].mxu0 %v795
        %v2633 = vpop.f32.mrb[0].mxu0
        %v2634 = vadd.f32 0.0, %v2633
        %v2635 = vpop.f32.mrb[0].mxu0
        %v2636 = vpop.f32.mrb[0].mxu0
        %v2637 = vadd.f32 0.0, %v2636
        %v2638 = vpop.f32.mrb[0].mxu0
        %2639 = vmatprep.mubr.bf16.mxu0 0
        %2640 = vmatmul.mubr.bf16.gmra.mrb[0].mxu0 %v798
        %v2641 = vpop.f32.mrb[0].mxu0
        %v2642 = vadd.f32 0.0, %v2641
        %v2643 = vpop.f32.mrb[0].mxu0
        %v2644 = vpop.f32.mrb[0].mxu0
        %v2645 = vadd.f32 0.0, %v2644
        %v2646 = vpop.f32.mrb[0].mxu0
        %2647 = vmatprep.mubr.bf16.mxu0 0
        %2648 = vmatmul.mubr.bf16.gmra.mrb[0].mxu0 %v801
        %v2649 = vpop.f32.mrb[0].mxu0
        %v2650 = vadd.f32 0.0, %v2649
        %v2651 = vpop.f32.mrb[0].mxu0
        %v2652 = vpop.f32.mrb[0].mxu0
        %v2653 = vadd.f32 0.0, %v2652
        %v2654 = vpop.f32.mrb[0].mxu0
        %2655 = vmatprep.mubr.bf16.mxu0 0
        %2656 = vmatmul.mubr.bf16.gmra.mrb[0].mxu0 %v804
        %v2657 = vpop.f32.mrb[0].mxu0
        %v2658 = vadd.f32 0.0, %v2657
        %v2659 = vpop.f32.mrb[0].mxu0
        %v2660 = vpop.f32.mrb[0].mxu0
        %v2661 = vadd.f32 0.0, %v2660
        %v2662 = vpop.f32.mrb[0].mxu0
        %2663 = vmatprep.mubr.bf16.mxu0 0
        %2664 = vmatmul.mubr.bf16.gmra.mrb[0].mxu0 %v807
        %v2665 = vpop.f32.mrb[0].mxu0
        %v2666 = vadd.f32 0.0, %v2665
        %v2667 = vpop.f32.mrb[0].mxu0
        %v2668 = vpop.f32.mrb[0].mxu0
        %v2669 = vadd.f32 0.0, %v2668
        %v2670 = vpop.f32.mrb[0].mxu0
        %2671 = vmatprep.mubr.bf16.mxu0 0
        %2672 = vmatmul.mubr.bf16.gmra.mrb[0].mxu0 %v810
        %v2673 = vpop.f32.mrb[0].mxu0
        %v2674 = vadd.f32 0.0, %v2673
        %v2675 = vpop.f32.mrb[0].mxu0
        %v2676 = vpop.f32.mrb[0].mxu0
        %v2677 = vadd.f32 0.0, %v2676
        %v2678 = vpop.f32.mrb[0].mxu0
        %2679 = vmatprep.mubr.bf16.mxu0 0
        %2680 = vmatmul.mubr.bf16.gmra.mrb[0].mxu0 %v813
        %v2681 = vpop.f32.mrb[0].mxu0
        %v2682 = vadd.f32 0.0, %v2681
        %v2683 = vpop.f32.mrb[0].mxu0
        %v2684 = vpop.f32.mrb[0].mxu0
        %v2685 = vadd.f32 0.0, %v2684
        %v2686 = vpop.f32.mrb[0].mxu0
        %2687 = vmatprep.mubr.bf16.mxu0 0
        %2688 = vmatmul.mubr.bf16.gmra.mrb[0].mxu0 %v816
        %v2689 = vpop.f32.mrb[0].mxu0
        %v2690 = vadd.f32 0.0, %v2689
        %v2691 = vpop.f32.mrb[0].mxu0
        %v2692 = vpop.f32.mrb[0].mxu0
        %v2693 = vadd.f32 0.0, %v2692
        %v2694 = vpop.f32.mrb[0].mxu0
        %2695 = vmatprep.mubr.bf16.mxu0 0
        %2696 = vmatmul.mubr.bf16.gmra.mrb[0].mxu0 %v819
        %v2697 = vpop.f32.mrb[0].mxu0
        %v2698 = vadd.f32 0.0, %v2697
        %v2699 = vpop.f32.mrb[0].mxu0
        %v2700 = vpop.f32.mrb[0].mxu0
        %v2701 = vadd.f32 0.0, %v2700
        %v2702 = vpop.f32.mrb[0].mxu0
        %2703 = vmatprep.mubr.bf16.mxu0 0
        %2704 = vmatmul.mubr.bf16.gmra.mrb[0].mxu0 %v822
        %v2705 = vpop.f32.mrb[0].mxu0
        %v2706 = vadd.f32 0.0, %v2705
        %v2707 = vpop.f32.mrb[0].mxu0
        %v2708 = vpop.f32.mrb[0].mxu0
        %v2709 = vadd.f32 0.0, %v2708
        %v2710 = vpop.f32.mrb[0].mxu0
        %2711 = vmatprep.mubr.bf16.mxu0 0
        %2712 = vmatmul.mubr.bf16.gmra.mrb[0].mxu0 %v825
        %v2713 = vpop.f32.mrb[0].mxu0
        %v2714 = vadd.f32 0.0, %v2713
        %v2715 = vpop.f32.mrb[0].mxu0
        %v2716 = vpop.f32.mrb[0].mxu0
        %v2717 = vadd.f32 0.0, %v2716
        %v2718 = vpop.f32.mrb[0].mxu0
        %2719 = vmatprep.mubr.bf16.mxu0 0
        %2720 = vmatmul.mubr.bf16.gmra.mrb[0].mxu0 %v828
        %v2721 = vpop.f32.mrb[0].mxu0
        %v2722 = vadd.f32 0.0, %v2721
        %v2723 = vpop.f32.mrb[0].mxu0
        %v2724 = vpop.f32.mrb[0].mxu0
        %v2725 = vadd.f32 0.0, %v2724
        %v2726 = vpop.f32.mrb[0].mxu0
        %2727 = vmatprep.mubr.bf16.mxu0 0
        %2728 = vmatmul.mubr.bf16.gmra.mrb[0].mxu0 %v831
        %v2729 = vpop.f32.mrb[0].mxu0
        %v2730 = vadd.f32 0.0, %v2729
        %v2731 = vpop.f32.mrb[0].mxu0
        %v2732 = vpop.f32.mrb[0].mxu0
        %v2733 = vadd.f32 0.0, %v2732
        %v2734 = vpop.f32.mrb[0].mxu0
        %2735 = vmatprep.mubr.bf16.mxu0 0
        %2736 = vmatmul.mubr.bf16.gmra.mrb[0].mxu0 %v834
        %v2737 = vpop.f32.mrb[0].mxu0
        %v2738 = vadd.f32 0.0, %v2737
        %v2739 = vpop.f32.mrb[0].mxu0
        %v2740 = vpop.f32.mrb[0].mxu0
        %v2741 = vadd.f32 0.0, %v2740
        %v2742 = vpop.f32.mrb[0].mxu0
        %2743 = vmatprep.mubr.bf16.mxu0 0
        %2744 = vmatmul.mubr.bf16.gmra.mrb[0].mxu0 %v1951
        %v2745 = vpop.f32.mrb[0].mxu0
        %v2746 = vadd.f32 0.0, %v2745
        %v2747 = vpop.f32.mrb[0].mxu0
        %v2748 = vpop.f32.mrb[0].mxu0
        %v2749 = vadd.f32 0.0, %v2748
        %v2750 = vpop.f32.mrb[0].mxu0
        %2751 = vmatprep.mubr.bf16.mxu0 0
        %2752 = vmatmul.mubr.bf16.gmra.mrb[0].mxu0 %v2594
        %v2753 = vpop.f32.mrb[0].mxu0
        %v2754 = vadd.f32 0.0, %v2753
        %v2755 = vpop.f32.mrb[0].mxu0
        %v2756 = vpop.f32.mrb[0].mxu0
        %v2757 = vadd.f32 0.0, %v2756
        %v2758 = vpop.f32.mrb[0].mxu0
        %2759 = vdwg.mxu0
        %v2760 = vadd.f32 %v2533, %v2634
        %v2761 = vadd.f32 %v2534, %v2637
        %v2762 = vadd.f32 %v2535, %v2642
        %v2763 = vadd.f32 %v2536, %v2645
        %v2764 = vadd.f32 %v2537, %v2650
        %v2765 = vadd.f32 %v2538, %v2653
        %v2766 = vadd.f32 %v2539, %v2658
        %v2767 = vadd.f32 %v2540, %v2661
        %v2768 = vadd.f32 %v2541, %v2666
        %v2769 = vadd.f32 %v2542, %v2669
        %v2770 = vadd.f32 %v2543, %v2674
        %v2771 = vadd.f32 %v2544, %v2677
        %v2772 = vadd.f32 %v2545, %v2682
        %v2773 = vadd.f32 %v2546, %v2685
        %v2774 = vadd.f32 %v2547, %v2690
        %v2775 = vadd.f32 %v2548, %v2693
        %v2776 = vadd.f32 %v2549, %v2698
        %v2777 = vadd.f32 %v2550, %v2701
        %v2778 = vadd.f32 %v2551, %v2706
        %v2779 = vadd.f32 %v2552, %v2709
        %v2780 = vadd.f32 %v2553, %v2714
        %v2781 = vadd.f32 %v2554, %v2717
        %v2782 = vadd.f32 %v2555, %v2722
        %v2783 = vadd.f32 %v2556, %v2725
        %v2784 = vadd.f32 %v2557, %v2730
        %v2785 = vadd.f32 %v2558, %v2733
        %v2786 = vadd.f32 %v2559, %v2738
        %v2787 = vadd.f32 %v2560, %v2741
        %v2788 = vadd.f32 %v2561, %v2746
        %v2789 = vadd.f32 %v2562, %v2749
        %v2790 = vadd.f32 %v2563, %v2754
        %v2791 = vadd.f32 %v2564, %v2757
        %v2793 = vrot.slane %v347, 5
        %v2794 = vrot.slane %v2793, 4
        %v2795 = vrot.slane %v348, 5
        %v2796 = vsel %vm1311, %v2794, %v2795
        %v2797 = vrot.slane %v2795, 4
        %v2798 = vrot.slane %v349, 5
        %v2799 = vsel %vm1311, %v2797, %v2798
        %v2800 = vld [vmem:[#allocation5 + $0x20] sm:$0xf]
        %v2801 = vunpack.c.l.b16 %v2796
        %v2802 = vunpack.c.l.b16 %v2799
        %v2803 = vpack.c.b16 %v2802, %v2801
        %v2805 = vsel %vm787, %v2803, 0
        %v2808 = vsel %vm836, %v2800, 0
        %2810 = vmatprep.subr.bf16.mxu0 0
        %2811 = vmatpush1.bf16.msra.mxu0 %v2808
        %2812 = vmatprep.subr.bf16.mxu0 0
        %2813 = vmatpush1.bf16.msra.mxu0 0
        %2814 = vmatprep.subr.bf16.mxu0 0
        %2815 = vmatpush1.bf16.msra.mxu0 0
        %2816 = vmatprep.subr.bf16.mxu0 0
        %2817 = vmatpush1.bf16.msra.mxu0 0
        %2818 = vmatprep.subr.bf16.mxu0 0
        %2819 = vmatpush1.bf16.msra.mxu0 0
        %2820 = vmatprep.subr.bf16.mxu0 0
        %2821 = vmatpush1.bf16.msra.mxu0 0
        %2822 = vmatprep.subr.bf16.mxu0 0
        %2823 = vmatpush1.bf16.msra.mxu0 0
        %2824 = vmatprep.subr.bf16.mxu0 0
        %2825 = vmatpush1.bf16.msra.mxu0 0
        %2826 = vmatprep.subr.bf16.mxu0 0
        %2827 = vmatpush1.bf16.msra.mxu0 0
        %2828 = vmatprep.subr.bf16.mxu0 0
        %2829 = vmatpush1.bf16.msra.mxu0 0
        %2830 = vmatprep.subr.bf16.mxu0 0
        %2831 = vmatpush1.bf16.msra.mxu0 0
        %2832 = vmatprep.subr.bf16.mxu0 0
        %2833 = vmatpush1.bf16.msra.mxu0 0
        %2834 = vmatprep.subr.bf16.mxu0 0
        %2835 = vmatpush1.bf16.msra.mxu0 0
        %2836 = vmatprep.subr.bf16.mxu0 0
        %2837 = vmatpush1.bf16.msra.mxu0 0
        %2838 = vmatprep.subr.bf16.mxu0 0
        %2839 = vmatpush1.bf16.msra.mxu0 0
        %2840 = vmatprep.subr.bf16.mxu0 0
        %2841 = vmatpush1.bf16.msra.mxu0 0
        %2842 = vmatprep.mubr.bf16.mxu0 0
        %2843 = vmatmul.mubr.bf16.gmra.mrb[0].mxu0 %v1480
        %v2844 = vpop.f32.mrb[0].mxu0
        %v2845 = vadd.f32 0.0, %v2844
        %v2846 = vpop.f32.mrb[0].mxu0
        %v2847 = vpop.f32.mrb[0].mxu0
        %v2848 = vadd.f32 0.0, %v2847
        %v2849 = vpop.f32.mrb[0].mxu0
        %2850 = vmatprep.mubr.bf16.mxu0 0
        %2851 = vmatmul.mubr.bf16.gmra.mrb[0].mxu0 %v1483
        %v2852 = vpop.f32.mrb[0].mxu0
        %v2853 = vadd.f32 0.0, %v2852
        %v2854 = vpop.f32.mrb[0].mxu0
        %v2855 = vpop.f32.mrb[0].mxu0
        %v2856 = vadd.f32 0.0, %v2855
        %v2857 = vpop.f32.mrb[0].mxu0
        %2858 = vmatprep.mubr.bf16.mxu0 0
        %2859 = vmatmul.mubr.bf16.gmra.mrb[0].mxu0 %v1486
        %v2860 = vpop.f32.mrb[0].mxu0
        %v2861 = vadd.f32 0.0, %v2860
        %v2862 = vpop.f32.mrb[0].mxu0
        %v2863 = vpop.f32.mrb[0].mxu0
        %v2864 = vadd.f32 0.0, %v2863
        %v2865 = vpop.f32.mrb[0].mxu0
        %2866 = vmatprep.mubr.bf16.mxu0 0
        %2867 = vmatmul.mubr.bf16.gmra.mrb[0].mxu0 %v1489
        %v2868 = vpop.f32.mrb[0].mxu0
        %v2869 = vadd.f32 0.0, %v2868
        %v2870 = vpop.f32.mrb[0].mxu0
        %v2871 = vpop.f32.mrb[0].mxu0
        %v2872 = vadd.f32 0.0, %v2871
        %v2873 = vpop.f32.mrb[0].mxu0
        %2874 = vmatprep.mubr.bf16.mxu0 0
        %2875 = vmatmul.mubr.bf16.gmra.mrb[0].mxu0 %v1492
        %v2876 = vpop.f32.mrb[0].mxu0
        %v2877 = vadd.f32 0.0, %v2876
        %v2878 = vpop.f32.mrb[0].mxu0
        %v2879 = vpop.f32.mrb[0].mxu0
        %v2880 = vadd.f32 0.0, %v2879
        %v2881 = vpop.f32.mrb[0].mxu0
        %2882 = vmatprep.mubr.bf16.mxu0 0
        %2883 = vmatmul.mubr.bf16.gmra.mrb[0].mxu0 %v1495
        %v2884 = vpop.f32.mrb[0].mxu0
        %v2885 = vadd.f32 0.0, %v2884
        %v2886 = vpop.f32.mrb[0].mxu0
        %v2887 = vpop.f32.mrb[0].mxu0
        %v2888 = vadd.f32 0.0, %v2887
        %v2889 = vpop.f32.mrb[0].mxu0
        %2890 = vmatprep.mubr.bf16.mxu0 0
        %2891 = vmatmul.mubr.bf16.gmra.mrb[0].mxu0 %v1498
        %v2892 = vpop.f32.mrb[0].mxu0
        %v2893 = vadd.f32 0.0, %v2892
        %v2894 = vpop.f32.mrb[0].mxu0
        %v2895 = vpop.f32.mrb[0].mxu0
        %v2896 = vadd.f32 0.0, %v2895
        %v2897 = vpop.f32.mrb[0].mxu0
        %2898 = vmatprep.mubr.bf16.mxu0 0
        %2899 = vmatmul.mubr.bf16.gmra.mrb[0].mxu0 %v1501
        %v2900 = vpop.f32.mrb[0].mxu0
        %v2901 = vadd.f32 0.0, %v2900
        %v2902 = vpop.f32.mrb[0].mxu0
        %v2903 = vpop.f32.mrb[0].mxu0
        %v2904 = vadd.f32 0.0, %v2903
        %v2905 = vpop.f32.mrb[0].mxu0
        %2906 = vmatprep.mubr.bf16.mxu0 0
        %2907 = vmatmul.mubr.bf16.gmra.mrb[0].mxu0 %v1504
        %v2908 = vpop.f32.mrb[0].mxu0
        %v2909 = vadd.f32 0.0, %v2908
        %v2910 = vpop.f32.mrb[0].mxu0
        %v2911 = vpop.f32.mrb[0].mxu0
        %v2912 = vadd.f32 0.0, %v2911
        %v2913 = vpop.f32.mrb[0].mxu0
        %2914 = vmatprep.mubr.bf16.mxu0 0
        %2915 = vmatmul.mubr.bf16.gmra.mrb[0].mxu0 %v1507
        %v2916 = vpop.f32.mrb[0].mxu0
        %v2917 = vadd.f32 0.0, %v2916
        %v2918 = vpop.f32.mrb[0].mxu0
        %v2919 = vpop.f32.mrb[0].mxu0
        %v2920 = vadd.f32 0.0, %v2919
        %v2921 = vpop.f32.mrb[0].mxu0
        %2922 = vmatprep.mubr.bf16.mxu0 0
        %2923 = vmatmul.mubr.bf16.gmra.mrb[0].mxu0 %v1510
        %v2924 = vpop.f32.mrb[0].mxu0
        %v2925 = vadd.f32 0.0, %v2924
        %v2926 = vpop.f32.mrb[0].mxu0
        %v2927 = vpop.f32.mrb[0].mxu0
        %v2928 = vadd.f32 0.0, %v2927
        %v2929 = vpop.f32.mrb[0].mxu0
        %2930 = vmatprep.mubr.bf16.mxu0 0
        %2931 = vmatmul.mubr.bf16.gmra.mrb[0].mxu0 %v1513
        %v2932 = vpop.f32.mrb[0].mxu0
        %v2933 = vadd.f32 0.0, %v2932
        %v2934 = vpop.f32.mrb[0].mxu0
        %v2935 = vpop.f32.mrb[0].mxu0
        %v2936 = vadd.f32 0.0, %v2935
        %v2937 = vpop.f32.mrb[0].mxu0
        %2938 = vmatprep.mubr.bf16.mxu0 0
        %2939 = vmatmul.mubr.bf16.gmra.mrb[0].mxu0 %v1516
        %v2940 = vpop.f32.mrb[0].mxu0
        %v2941 = vadd.f32 0.0, %v2940
        %v2942 = vpop.f32.mrb[0].mxu0
        %v2943 = vpop.f32.mrb[0].mxu0
        %v2944 = vadd.f32 0.0, %v2943
        %v2945 = vpop.f32.mrb[0].mxu0
        %2946 = vmatprep.mubr.bf16.mxu0 0
        %2947 = vmatmul.mubr.bf16.gmra.mrb[0].mxu0 %v1519
        %v2948 = vpop.f32.mrb[0].mxu0
        %v2949 = vadd.f32 0.0, %v2948
        %v2950 = vpop.f32.mrb[0].mxu0
        %v2951 = vpop.f32.mrb[0].mxu0
        %v2952 = vadd.f32 0.0, %v2951
        %v2953 = vpop.f32.mrb[0].mxu0
        %2954 = vmatprep.mubr.bf16.mxu0 0
        %2955 = vmatmul.mubr.bf16.gmra.mrb[0].mxu0 %v2162
        %v2956 = vpop.f32.mrb[0].mxu0
        %v2957 = vadd.f32 0.0, %v2956
        %v2958 = vpop.f32.mrb[0].mxu0
        %v2959 = vpop.f32.mrb[0].mxu0
        %v2960 = vadd.f32 0.0, %v2959
        %v2961 = vpop.f32.mrb[0].mxu0
        %2962 = vmatprep.mubr.bf16.mxu0 0
        %2963 = vmatmul.mubr.bf16.gmra.mrb[0].mxu0 %v2805
        %v2964 = vpop.f32.mrb[0].mxu0
        %v2965 = vadd.f32 0.0, %v2964
        %v2966 = vpop.f32.mrb[0].mxu0
        %v2967 = vpop.f32.mrb[0].mxu0
        %v2968 = vadd.f32 0.0, %v2967
        %v2969 = vpop.f32.mrb[0].mxu0
        %2970 = vdwg.mxu0
        %v2971 = vadd.f32 %v2760, %v2845
        %v2972 = vadd.f32 %v2761, %v2848
        %v2973 = vadd.f32 %v2762, %v2853
        %v2974 = vadd.f32 %v2763, %v2856
        %v2975 = vadd.f32 %v2764, %v2861
        %v2976 = vadd.f32 %v2765, %v2864
        %v2977 = vadd.f32 %v2766, %v2869
        %v2978 = vadd.f32 %v2767, %v2872
        %v2979 = vadd.f32 %v2768, %v2877
        %v2980 = vadd.f32 %v2769, %v2880
        %v2981 = vadd.f32 %v2770, %v2885
        %v2982 = vadd.f32 %v2771, %v2888
        %v2983 = vadd.f32 %v2772, %v2893
        %v2984 = vadd.f32 %v2773, %v2896
        %v2985 = vadd.f32 %v2774, %v2901
        %v2986 = vadd.f32 %v2775, %v2904
        %v2987 = vadd.f32 %v2776, %v2909
        %v2988 = vadd.f32 %v2777, %v2912
        %v2989 = vadd.f32 %v2778, %v2917
        %v2990 = vadd.f32 %v2779, %v2920
        %v2991 = vadd.f32 %v2780, %v2925
        %v2992 = vadd.f32 %v2781, %v2928
        %v2993 = vadd.f32 %v2782, %v2933
        %v2994 = vadd.f32 %v2783, %v2936
        %v2995 = vadd.f32 %v2784, %v2941
        %v2996 = vadd.f32 %v2785, %v2944
        %v2997 = vadd.f32 %v2786, %v2949
        %v2998 = vadd.f32 %v2787, %v2952
        %v2999 = vadd.f32 %v2788, %v2957
        %v3000 = vadd.f32 %v2789, %v2960
        %v3001 = vadd.f32 %v2790, %v2965
        %v3002 = vadd.f32 %v2791, %v2968
        %v3003 = vld [vmem:[#allocation7] sm:$0x1]
        %v3004 = vld [vmem:[#allocation8] sm:$0x1]
        %v3005 = vsel %vm787, %v2971, 0.0
        %3006 = vadd.xlane.f32.xlu0 %v3005
        %v3007 = vpop.xlane.xlu0 %3006
        %v3008 = vsel %vm787, %v2972, 0.0
        %3009 = vadd.xlane.f32.xlu0 %v3008
        %v3010 = vpop.xlane.xlu0 %3009
        %v3011 = vsel %vm787, %v2973, 0.0
        %3012 = vadd.xlane.f32.xlu0 %v3011
        %v3013 = vpop.xlane.xlu0 %3012
        %v3014 = vsel %vm787, %v2974, 0.0
        %3015 = vadd.xlane.f32.xlu0 %v3014
        %v3016 = vpop.xlane.xlu0 %3015
        %v3017 = vsel %vm787, %v2975, 0.0
        %3018 = vadd.xlane.f32.xlu0 %v3017
        %v3019 = vpop.xlane.xlu0 %3018
        %v3020 = vsel %vm787, %v2976, 0.0
        %3021 = vadd.xlane.f32.xlu0 %v3020
        %v3022 = vpop.xlane.xlu0 %3021
        %v3023 = vsel %vm787, %v2977, 0.0
        %3024 = vadd.xlane.f32.xlu0 %v3023
        %v3025 = vpop.xlane.xlu0 %3024
        %v3026 = vsel %vm787, %v2978, 0.0
        %3027 = vadd.xlane.f32.xlu0 %v3026
        %v3028 = vpop.xlane.xlu0 %3027
        %v3029 = vsel %vm787, %v2979, 0.0
        %3030 = vadd.xlane.f32.xlu0 %v3029
        %v3031 = vpop.xlane.xlu0 %3030
        %v3032 = vsel %vm787, %v2980, 0.0
        %3033 = vadd.xlane.f32.xlu0 %v3032
        %v3034 = vpop.xlane.xlu0 %3033
        %v3035 = vsel %vm787, %v2981, 0.0
        %3036 = vadd.xlane.f32.xlu0 %v3035
        %v3037 = vpop.xlane.xlu0 %3036
        %v3038 = vsel %vm787, %v2982, 0.0
        %3039 = vadd.xlane.f32.xlu0 %v3038
        %v3040 = vpop.xlane.xlu0 %3039
        %v3041 = vsel %vm787, %v2983, 0.0
        %3042 = vadd.xlane.f32.xlu0 %v3041
        %v3043 = vpop.xlane.xlu0 %3042
        %v3044 = vsel %vm787, %v2984, 0.0
        %3045 = vadd.xlane.f32.xlu0 %v3044
        %v3046 = vpop.xlane.xlu0 %3045
        %v3047 = vsel %vm787, %v2985, 0.0
        %3048 = vadd.xlane.f32.xlu0 %v3047
        %v3049 = vpop.xlane.xlu0 %3048
        %v3050 = vsel %vm787, %v2986, 0.0
        %3051 = vadd.xlane.f32.xlu0 %v3050
        %v3052 = vpop.xlane.xlu0 %3051
        %v3053 = vsel %vm787, %v2987, 0.0
        %3054 = vadd.xlane.f32.xlu0 %v3053
        %v3055 = vpop.xlane.xlu0 %3054
        %v3056 = vsel %vm787, %v2988, 0.0
        %3057 = vadd.xlane.f32.xlu0 %v3056
        %v3058 = vpop.xlane.xlu0 %3057
        %v3059 = vsel %vm787, %v2989, 0.0
        %3060 = vadd.xlane.f32.xlu0 %v3059
        %v3061 = vpop.xlane.xlu0 %3060
        %v3062 = vsel %vm787, %v2990, 0.0
        %3063 = vadd.xlane.f32.xlu0 %v3062
        %v3064 = vpop.xlane.xlu0 %3063
        %v3065 = vsel %vm787, %v2991, 0.0
        %3066 = vadd.xlane.f32.xlu0 %v3065
        %v3067 = vpop.xlane.xlu0 %3066
        %v3068 = vsel %vm787, %v2992, 0.0
        %3069 = vadd.xlane.f32.xlu0 %v3068
        %v3070 = vpop.xlane.xlu0 %3069
        %v3071 = vsel %vm787, %v2993, 0.0
        %3072 = vadd.xlane.f32.xlu0 %v3071
        %v3073 = vpop.xlane.xlu0 %3072
        %v3074 = vsel %vm787, %v2994, 0.0
        %3075 = vadd.xlane.f32.xlu0 %v3074
        %v3076 = vpop.xlane.xlu0 %3075
        %v3077 = vsel %vm787, %v2995, 0.0
        %3078 = vadd.xlane.f32.xlu0 %v3077
        %v3079 = vpop.xlane.xlu0 %3078
        %v3080 = vsel %vm787, %v2996, 0.0
        %3081 = vadd.xlane.f32.xlu0 %v3080
        %v3082 = vpop.xlane.xlu0 %3081
        %v3083 = vsel %vm787, %v2997, 0.0
        %3084 = vadd.xlane.f32.xlu0 %v3083
        %v3085 = vpop.xlane.xlu0 %3084
        %v3086 = vsel %vm787, %v2998, 0.0
        %3087 = vadd.xlane.f32.xlu0 %v3086
        %v3088 = vpop.xlane.xlu0 %3087
        %v3089 = vsel %vm787, %v2999, 0.0
        %3090 = vadd.xlane.f32.xlu0 %v3089
        %v3091 = vpop.xlane.xlu0 %3090
        %v3092 = vsel %vm787, %v3000, 0.0
        %3093 = vadd.xlane.f32.xlu0 %v3092
        %v3094 = vpop.xlane.xlu0 %3093
        %v3095 = vsel %vm787, %v3001, 0.0
        %3096 = vadd.xlane.f32.xlu0 %v3095
        %v3097 = vpop.xlane.xlu0 %3096
        %v3098 = vsel %vm787, %v3002, 0.0
        %3099 = vadd.xlane.f32.xlu0 %v3098
        %v3100 = vpop.xlane.xlu0 %3099
        %v3101 = vrcp.pop 8.0
        %v3102 = vmul.f32 %v3007, %v3101
        %v3103 = vmul.f32 %v3010, %v3101
        %v3104 = vmul.f32 %v3013, %v3101
        %v3105 = vmul.f32 %v3016, %v3101
        %v3106 = vmul.f32 %v3019, %v3101
        %v3107 = vmul.f32 %v3022, %v3101
        %v3108 = vmul.f32 %v3025, %v3101
        %v3109 = vmul.f32 %v3028, %v3101
        %v3110 = vmul.f32 %v3031, %v3101
        %v3111 = vmul.f32 %v3034, %v3101
        %v3112 = vmul.f32 %v3037, %v3101
        %v3113 = vmul.f32 %v3040, %v3101
        %v3114 = vmul.f32 %v3043, %v3101
        %v3115 = vmul.f32 %v3046, %v3101
        %v3116 = vmul.f32 %v3049, %v3101
        %v3117 = vmul.f32 %v3052, %v3101
        %v3118 = vmul.f32 %v3055, %v3101
        %v3119 = vmul.f32 %v3058, %v3101
        %v3120 = vmul.f32 %v3061, %v3101
        %v3121 = vmul.f32 %v3064, %v3101
        %v3122 = vmul.f32 %v3067, %v3101
        %v3123 = vmul.f32 %v3070, %v3101
        %v3124 = vmul.f32 %v3073, %v3101
        %v3125 = vmul.f32 %v3076, %v3101
        %v3126 = vmul.f32 %v3079, %v3101
        %v3127 = vmul.f32 %v3082, %v3101
        %v3128 = vmul.f32 %v3085, %v3101
        %v3129 = vmul.f32 %v3088, %v3101
        %v3130 = vmul.f32 %v3091, %v3101
        %v3131 = vmul.f32 %v3094, %v3101
        %v3132 = vmul.f32 %v3097, %v3101
        %v3133 = vmul.f32 %v3100, %v3101
        %v3134 = vsub.f32 %v2971, %v3102
        %v3135 = vsub.f32 %v2972, %v3103
        %v3136 = vsub.f32 %v2973, %v3104
        %v3137 = vsub.f32 %v2974, %v3105
        %v3138 = vsub.f32 %v2975, %v3106
        %v3139 = vsub.f32 %v2976, %v3107
        %v3140 = vsub.f32 %v2977, %v3108
        %v3141 = vsub.f32 %v2978, %v3109
        %v3142 = vsub.f32 %v2979, %v3110
        %v3143 = vsub.f32 %v2980, %v3111
        %v3144 = vsub.f32 %v2981, %v3112
        %v3145 = vsub.f32 %v2982, %v3113
        %v3146 = vsub.f32 %v2983, %v3114
        %v3147 = vsub.f32 %v2984, %v3115
        %v3148 = vsub.f32 %v2985, %v3116
        %v3149 = vsub.f32 %v2986, %v3117
        %v3150 = vsub.f32 %v2987, %v3118
        %v3151 = vsub.f32 %v2988, %v3119
        %v3152 = vsub.f32 %v2989, %v3120
        %v3153 = vsub.f32 %v2990, %v3121
        %v3154 = vsub.f32 %v2991, %v3122
        %v3155 = vsub.f32 %v2992, %v3123
        %v3156 = vsub.f32 %v2993, %v3124
        %v3157 = vsub.f32 %v2994, %v3125
        %v3158 = vsub.f32 %v2995, %v3126
        %v3159 = vsub.f32 %v2996, %v3127
        %v3160 = vsub.f32 %v2997, %v3128
        %v3161 = vsub.f32 %v2998, %v3129
        %v3162 = vsub.f32 %v2999, %v3130
        %v3163 = vsub.f32 %v3000, %v3131
        %v3164 = vsub.f32 %v3001, %v3132
        %v3165 = vsub.f32 %v3002, %v3133
        %v3166 = vmul.f32 %v3134, %v3134
        %v3167 = vmul.f32 %v3135, %v3135
        %v3168 = vmul.f32 %v3136, %v3136
        %v3169 = vmul.f32 %v3137, %v3137
        %v3170 = vmul.f32 %v3138, %v3138
        %v3171 = vmul.f32 %v3139, %v3139
        %v3172 = vmul.f32 %v3140, %v3140
        %v3173 = vmul.f32 %v3141, %v3141
        %v3174 = vmul.f32 %v3142, %v3142
        %v3175 = vmul.f32 %v3143, %v3143
        %v3176 = vmul.f32 %v3144, %v3144
        %v3177 = vmul.f32 %v3145, %v3145
        %v3178 = vmul.f32 %v3146, %v3146
        %v3179 = vmul.f32 %v3147, %v3147
        %v3180 = vmul.f32 %v3148, %v3148
        %v3181 = vmul.f32 %v3149, %v3149
        %v3182 = vmul.f32 %v3150, %v3150
        %v3183 = vmul.f32 %v3151, %v3151
        %v3184 = vmul.f32 %v3152, %v3152
        %v3185 = vmul.f32 %v3153, %v3153
        %v3186 = vmul.f32 %v3154, %v3154
        %v3187 = vmul.f32 %v3155, %v3155
        %v3188 = vmul.f32 %v3156, %v3156
        %v3189 = vmul.f32 %v3157, %v3157
        %v3190 = vmul.f32 %v3158, %v3158
        %v3191 = vmul.f32 %v3159, %v3159
        %v3192 = vmul.f32 %v3160, %v3160
        %v3193 = vmul.f32 %v3161, %v3161
        %v3194 = vmul.f32 %v3162, %v3162
        %v3195 = vmul.f32 %v3163, %v3163
        %v3196 = vmul.f32 %v3164, %v3164
        %v3197 = vmul.f32 %v3165, %v3165
        %v3198 = vsel %vm787, %v3166, 0.0
        %3199 = vadd.xlane.f32.xlu0 %v3198
        %v3200 = vpop.xlane.xlu0 %3199
        %v3201 = vsel %vm787, %v3167, 0.0
        %3202 = vadd.xlane.f32.xlu0 %v3201
        %v3203 = vpop.xlane.xlu0 %3202
        %v3204 = vsel %vm787, %v3168, 0.0
        %3205 = vadd.xlane.f32.xlu0 %v3204
        %v3206 = vpop.xlane.xlu0 %3205
        %v3207 = vsel %vm787, %v3169, 0.0
        %3208 = vadd.xlane.f32.xlu0 %v3207
        %v3209 = vpop.xlane.xlu0 %3208
        %v3210 = vsel %vm787, %v3170, 0.0
        %3211 = vadd.xlane.f32.xlu0 %v3210
        %v3212 = vpop.xlane.xlu0 %3211
        %v3213 = vsel %vm787, %v3171, 0.0
        %3214 = vadd.xlane.f32.xlu0 %v3213
        %v3215 = vpop.xlane.xlu0 %3214
        %v3216 = vsel %vm787, %v3172, 0.0
        %3217 = vadd.xlane.f32.xlu0 %v3216
        %v3218 = vpop.xlane.xlu0 %3217
        %v3219 = vsel %vm787, %v3173, 0.0
        %3220 = vadd.xlane.f32.xlu0 %v3219
        %v3221 = vpop.xlane.xlu0 %3220
        %v3222 = vsel %vm787, %v3174, 0.0
        %3223 = vadd.xlane.f32.xlu0 %v3222
        %v3224 = vpop.xlane.xlu0 %3223
        %v3225 = vsel %vm787, %v3175, 0.0
        %3226 = vadd.xlane.f32.xlu0 %v3225
        %v3227 = vpop.xlane.xlu0 %3226
        %v3228 = vsel %vm787, %v3176, 0.0
        %3229 = vadd.xlane.f32.xlu0 %v3228
        %v3230 = vpop.xlane.xlu0 %3229
        %v3231 = vsel %vm787, %v3177, 0.0
        %3232 = vadd.xlane.f32.xlu0 %v3231
        %v3233 = vpop.xlane.xlu0 %3232
        %v3234 = vsel %vm787, %v3178, 0.0
        %3235 = vadd.xlane.f32.xlu0 %v3234
        %v3236 = vpop.xlane.xlu0 %3235
        %v3237 = vsel %vm787, %v3179, 0.0
        %3238 = vadd.xlane.f32.xlu0 %v3237
        %v3239 = vpop.xlane.xlu0 %3238
        %v3240 = vsel %vm787, %v3180, 0.0
        %3241 = vadd.xlane.f32.xlu0 %v3240
        %v3242 = vpop.xlane.xlu0 %3241
        %v3243 = vsel %vm787, %v3181, 0.0
        %3244 = vadd.xlane.f32.xlu0 %v3243
        %v3245 = vpop.xlane.xlu0 %3244
        %v3246 = vsel %vm787, %v3182, 0.0
        %3247 = vadd.xlane.f32.xlu0 %v3246
        %v3248 = vpop.xlane.xlu0 %3247
        %v3249 = vsel %vm787, %v3183, 0.0
        %3250 = vadd.xlane.f32.xlu0 %v3249
        %v3251 = vpop.xlane.xlu0 %3250
        %v3252 = vsel %vm787, %v3184, 0.0
        %3253 = vadd.xlane.f32.xlu0 %v3252
        %v3254 = vpop.xlane.xlu0 %3253
        %v3255 = vsel %vm787, %v3185, 0.0
        %3256 = vadd.xlane.f32.xlu0 %v3255
        %v3257 = vpop.xlane.xlu0 %3256
        %v3258 = vsel %vm787, %v3186, 0.0
        %3259 = vadd.xlane.f32.xlu0 %v3258
        %v3260 = vpop.xlane.xlu0 %3259
        %v3261 = vsel %vm787, %v3187, 0.0
        %3262 = vadd.xlane.f32.xlu0 %v3261
        %v3263 = vpop.xlane.xlu0 %3262
        %v3264 = vsel %vm787, %v3188, 0.0
        %3265 = vadd.xlane.f32.xlu0 %v3264
        %v3266 = vpop.xlane.xlu0 %3265
        %v3267 = vsel %vm787, %v3189, 0.0
        %3268 = vadd.xlane.f32.xlu0 %v3267
        %v3269 = vpop.xlane.xlu0 %3268
        %v3270 = vsel %vm787, %v3190, 0.0
        %3271 = vadd.xlane.f32.xlu0 %v3270
        %v3272 = vpop.xlane.xlu0 %3271
        %v3273 = vsel %vm787, %v3191, 0.0
        %3274 = vadd.xlane.f32.xlu0 %v3273
        %v3275 = vpop.xlane.xlu0 %3274
        %v3276 = vsel %vm787, %v3192, 0.0
        %3277 = vadd.xlane.f32.xlu0 %v3276
        %v3278 = vpop.xlane.xlu0 %3277
        %v3279 = vsel %vm787, %v3193, 0.0
        %3280 = vadd.xlane.f32.xlu0 %v3279
        %v3281 = vpop.xlane.xlu0 %3280
        %v3282 = vsel %vm787, %v3194, 0.0
        %3283 = vadd.xlane.f32.xlu0 %v3282
        %v3284 = vpop.xlane.xlu0 %3283
        %v3285 = vsel %vm787, %v3195, 0.0
        %3286 = vadd.xlane.f32.xlu0 %v3285
        %v3287 = vpop.xlane.xlu0 %3286
        %v3288 = vsel %vm787, %v3196, 0.0
        %3289 = vadd.xlane.f32.xlu0 %v3288
        %v3290 = vpop.xlane.xlu0 %3289
        %v3291 = vsel %vm787, %v3197, 0.0
        %3292 = vadd.xlane.f32.xlu0 %v3291
        %v3293 = vpop.xlane.xlu0 %3292
        %v3294 = vmul.f32 %v3200, %v3101
        %v3295 = vmul.f32 %v3203, %v3101
        %v3296 = vmul.f32 %v3206, %v3101
        %v3297 = vmul.f32 %v3209, %v3101
        %v3298 = vmul.f32 %v3212, %v3101
        %v3299 = vmul.f32 %v3215, %v3101
        %v3300 = vmul.f32 %v3218, %v3101
        %v3301 = vmul.f32 %v3221, %v3101
        %v3302 = vmul.f32 %v3224, %v3101
        %v3303 = vmul.f32 %v3227, %v3101
        %v3304 = vmul.f32 %v3230, %v3101
        %v3305 = vmul.f32 %v3233, %v3101
        %v3306 = vmul.f32 %v3236, %v3101
        %v3307 = vmul.f32 %v3239, %v3101
        %v3308 = vmul.f32 %v3242, %v3101
        %v3309 = vmul.f32 %v3245, %v3101
        %v3310 = vmul.f32 %v3248, %v3101
        %v3311 = vmul.f32 %v3251, %v3101
        %v3312 = vmul.f32 %v3254, %v3101
        %v3313 = vmul.f32 %v3257, %v3101
        %v3314 = vmul.f32 %v3260, %v3101
        %v3315 = vmul.f32 %v3263, %v3101
        %v3316 = vmul.f32 %v3266, %v3101
        %v3317 = vmul.f32 %v3269, %v3101
        %v3318 = vmul.f32 %v3272, %v3101
        %v3319 = vmul.f32 %v3275, %v3101
        %v3320 = vmul.f32 %v3278, %v3101
        %v3321 = vmul.f32 %v3281, %v3101
        %v3322 = vmul.f32 %v3284, %v3101
        %v3323 = vmul.f32 %v3287, %v3101
        %v3324 = vmul.f32 %v3290, %v3101
        %v3325 = vmul.f32 %v3293, %v3101
        %v3326 = vadd.f32 %v3294, 1e-05
        %v3327 = vadd.f32 %v3295, 1e-05
        %v3328 = vadd.f32 %v3296, 1e-05
        %v3329 = vadd.f32 %v3297, 1e-05
        %v3330 = vadd.f32 %v3298, 1e-05
        %v3331 = vadd.f32 %v3299, 1e-05
        %v3332 = vadd.f32 %v3300, 1e-05
        %v3333 = vadd.f32 %v3301, 1e-05
        %v3334 = vadd.f32 %v3302, 1e-05
        %v3335 = vadd.f32 %v3303, 1e-05
        %v3336 = vadd.f32 %v3304, 1e-05
        %v3337 = vadd.f32 %v3305, 1e-05
        %v3338 = vadd.f32 %v3306, 1e-05
        %v3339 = vadd.f32 %v3307, 1e-05
        %v3340 = vadd.f32 %v3308, 1e-05
        %v3341 = vadd.f32 %v3309, 1e-05
        %v3342 = vadd.f32 %v3310, 1e-05
        %v3343 = vadd.f32 %v3311, 1e-05
        %v3344 = vadd.f32 %v3312, 1e-05
        %v3345 = vadd.f32 %v3313, 1e-05
        %v3346 = vadd.f32 %v3314, 1e-05
        %v3347 = vadd.f32 %v3315, 1e-05
        %v3348 = vadd.f32 %v3316, 1e-05
        %v3349 = vadd.f32 %v3317, 1e-05
        %v3350 = vadd.f32 %v3318, 1e-05
        %v3351 = vadd.f32 %v3319, 1e-05
        %v3352 = vadd.f32 %v3320, 1e-05
        %v3353 = vadd.f32 %v3321, 1e-05
        %v3354 = vadd.f32 %v3322, 1e-05
        %v3355 = vadd.f32 %v3323, 1e-05
        %v3356 = vadd.f32 %v3324, 1e-05
        %v3357 = vadd.f32 %v3325, 1e-05
        %v3358 = vrsqrt.pop %v3326
        %v3359 = vrsqrt.pop %v3327
        %v3360 = vrsqrt.pop %v3328
        %v3361 = vrsqrt.pop %v3329
        %v3362 = vrsqrt.pop %v3330
        %v3363 = vrsqrt.pop %v3331
        %v3364 = vrsqrt.pop %v3332
        %v3365 = vrsqrt.pop %v3333
        %v3366 = vrsqrt.pop %v3334
        %v3367 = vrsqrt.pop %v3335
        %v3368 = vrsqrt.pop %v3336
        %v3369 = vrsqrt.pop %v3337
        %v3370 = vrsqrt.pop %v3338
        %v3371 = vrsqrt.pop %v3339
        %v3372 = vrsqrt.pop %v3340
        %v3373 = vrsqrt.pop %v3341
        %v3374 = vrsqrt.pop %v3342
        %v3375 = vrsqrt.pop %v3343
        %v3376 = vrsqrt.pop %v3344
        %v3377 = vrsqrt.pop %v3345
        %v3378 = vrsqrt.pop %v3346
        %v3379 = vrsqrt.pop %v3347
        %v3380 = vrsqrt.pop %v3348
        %v3381 = vrsqrt.pop %v3349
        %v3382 = vrsqrt.pop %v3350
        %v3383 = vrsqrt.pop %v3351
        %v3384 = vrsqrt.pop %v3352
        %v3385 = vrsqrt.pop %v3353
        %v3386 = vrsqrt.pop %v3354
        %v3387 = vrsqrt.pop %v3355
        %v3388 = vrsqrt.pop %v3356
        %v3389 = vrsqrt.pop %v3357
        %v3390 = vmul.f32 %v3134, %v3358
        %v3391 = vmul.f32 %v3135, %v3359
        %v3392 = vmul.f32 %v3136, %v3360
        %v3393 = vmul.f32 %v3137, %v3361
        %v3394 = vmul.f32 %v3138, %v3362
        %v3395 = vmul.f32 %v3139, %v3363
        %v3396 = vmul.f32 %v3140, %v3364
        %v3397 = vmul.f32 %v3141, %v3365
        %v3398 = vmul.f32 %v3142, %v3366
        %v3399 = vmul.f32 %v3143, %v3367
        %v3400 = vmul.f32 %v3144, %v3368
        %v3401 = vmul.f32 %v3145, %v3369
        %v3402 = vmul.f32 %v3146, %v3370
        %v3403 = vmul.f32 %v3147, %v3371
        %v3404 = vmul.f32 %v3148, %v3372
        %v3405 = vmul.f32 %v3149, %v3373
        %v3406 = vmul.f32 %v3150, %v3374
        %v3407 = vmul.f32 %v3151, %v3375
        %v3408 = vmul.f32 %v3152, %v3376
        %v3409 = vmul.f32 %v3153, %v3377
        %v3410 = vmul.f32 %v3154, %v3378
        %v3411 = vmul.f32 %v3155, %v3379
        %v3412 = vmul.f32 %v3156, %v3380
        %v3413 = vmul.f32 %v3157, %v3381
        %v3414 = vmul.f32 %v3158, %v3382
        %v3415 = vmul.f32 %v3159, %v3383
        %v3416 = vmul.f32 %v3160, %v3384
        %v3417 = vmul.f32 %v3161, %v3385
        %v3418 = vmul.f32 %v3162, %v3386
        %v3419 = vmul.f32 %v3163, %v3387
        %v3420 = vmul.f32 %v3164, %v3388
        %v3421 = vmul.f32 %v3165, %v3389
        %v3423 = vlaneseq
        %v3424 = vshrl.u32 %v3423, 7
        %v3425 = vsub.s32 0, %v3424
        %v3426 = vrot.slane %v3003, %v3425
        %v3428 = vmul.f32 %v3390, %v3426
        %v3429 = vmul.f32 %v3391, %v3426
        %v3430 = vmul.f32 %v3392, %v3426
        %v3431 = vmul.f32 %v3393, %v3426
        %v3432 = vmul.f32 %v3394, %v3426
        %v3433 = vmul.f32 %v3395, %v3426
        %v3434 = vmul.f32 %v3396, %v3426
        %v3435 = vmul.f32 %v3397, %v3426
        %v3436 = vmul.f32 %v3398, %v3426
        %v3437 = vmul.f32 %v3399, %v3426
        %v3438 = vmul.f32 %v3400, %v3426
        %v3439 = vmul.f32 %v3401, %v3426
        %v3440 = vmul.f32 %v3402, %v3426
        %v3441 = vmul.f32 %v3403, %v3426
        %v3442 = vmul.f32 %v3404, %v3426
        %v3443 = vmul.f32 %v3405, %v3426
        %v3444 = vmul.f32 %v3406, %v3426
        %v3445 = vmul.f32 %v3407, %v3426
        %v3446 = vmul.f32 %v3408, %v3426
        %v3447 = vmul.f32 %v3409, %v3426
        %v3448 = vmul.f32 %v3410, %v3426
        %v3449 = vmul.f32 %v3411, %v3426
        %v3450 = vmul.f32 %v3412, %v3426
        %v3451 = vmul.f32 %v3413, %v3426
        %v3452 = vmul.f32 %v3414, %v3426
        %v3453 = vmul.f32 %v3415, %v3426
        %v3454 = vmul.f32 %v3416, %v3426
        %v3455 = vmul.f32 %v3417, %v3426
        %v3456 = vmul.f32 %v3418, %v3426
        %v3457 = vmul.f32 %v3419, %v3426
        %v3458 = vmul.f32 %v3420, %v3426
        %v3459 = vmul.f32 %v3421, %v3426
        %v3461 = vlaneseq
        %v3462 = vshrl.u32 %v3461, 7
        %v3463 = vsub.s32 0, %v3462
        %v3464 = vrot.slane %v3004, %v3463
        %v3466 = vadd.f32 %v3428, %v3464
        %v3467 = vadd.f32 %v3429, %v3464
        %v3468 = vadd.f32 %v3430, %v3464
        %v3469 = vadd.f32 %v3431, %v3464
        %v3470 = vadd.f32 %v3432, %v3464
        %v3471 = vadd.f32 %v3433, %v3464
        %v3472 = vadd.f32 %v3434, %v3464
        %v3473 = vadd.f32 %v3435, %v3464
        %v3474 = vadd.f32 %v3436, %v3464
        %v3475 = vadd.f32 %v3437, %v3464
        %v3476 = vadd.f32 %v3438, %v3464
        %v3477 = vadd.f32 %v3439, %v3464
        %v3478 = vadd.f32 %v3440, %v3464
        %v3479 = vadd.f32 %v3441, %v3464
        %v3480 = vadd.f32 %v3442, %v3464
        %v3481 = vadd.f32 %v3443, %v3464
        %v3482 = vadd.f32 %v3444, %v3464
        %v3483 = vadd.f32 %v3445, %v3464
        %v3484 = vadd.f32 %v3446, %v3464
        %v3485 = vadd.f32 %v3447, %v3464
        %v3486 = vadd.f32 %v3448, %v3464
        %v3487 = vadd.f32 %v3449, %v3464
        %v3488 = vadd.f32 %v3450, %v3464
        %v3489 = vadd.f32 %v3451, %v3464
        %v3490 = vadd.f32 %v3452, %v3464
        %v3491 = vadd.f32 %v3453, %v3464
        %v3492 = vadd.f32 %v3454, %v3464
        %v3493 = vadd.f32 %v3455, %v3464
        %v3494 = vadd.f32 %v3456, %v3464
        %v3495 = vadd.f32 %v3457, %v3464
        %v3496 = vadd.f32 %v3458, %v3464
        %v3497 = vadd.f32 %v3459, %v3464
        %v3498 = vld [vmem:[#allocation10] sm:$0xf]
        %v3499 = vpack.c.bf16 %v3467, %v3466
        %v3500 = vpack.c.bf16 %v3469, %v3468
        %v3501 = vpack.c.bf16 %v3471, %v3470
        %v3502 = vpack.c.bf16 %v3473, %v3472
        %v3503 = vpack.c.bf16 %v3475, %v3474
        %v3504 = vpack.c.bf16 %v3477, %v3476
        %v3505 = vpack.c.bf16 %v3479, %v3478
        %v3506 = vpack.c.bf16 %v3481, %v3480
        %v3507 = vpack.c.bf16 %v3483, %v3482
        %v3508 = vpack.c.bf16 %v3485, %v3484
        %v3509 = vpack.c.bf16 %v3487, %v3486
        %v3510 = vpack.c.bf16 %v3489, %v3488
        %v3511 = vpack.c.bf16 %v3491, %v3490
        %v3512 = vpack.c.bf16 %v3493, %v3492
        %v3513 = vpack.c.bf16 %v3495, %v3494
        %v3514 = vpack.c.bf16 %v3497, %v3496
        %v3516 = vsel %vm787, %v3499, 0
        %v3519 = vsel %vm787, %v3500, 0
        %v3522 = vsel %vm787, %v3501, 0
        %v3525 = vsel %vm787, %v3502, 0
        %v3528 = vsel %vm787, %v3503, 0
        %v3531 = vsel %vm787, %v3504, 0
        %v3534 = vsel %vm787, %v3505, 0
        %v3537 = vsel %vm787, %v3506, 0
        %v3540 = vsel %vm787, %v3507, 0
        %v3543 = vsel %vm787, %v3508, 0
        %v3546 = vsel %vm787, %v3509, 0
        %v3549 = vsel %vm787, %v3510, 0
        %v3552 = vsel %vm787, %v3511, 0
        %v3555 = vsel %vm787, %v3512, 0
        %v3558 = vsel %vm787, %v3513, 0
        %v3561 = vsel %vm787, %v3514, 0
        %v3564 = vsel %vm836, %v3498, 0
        %3566 = vmatprep.subr.bf16.mxu0 0
        %3567 = vmatpush1.bf16.msra.mxu0 %v3564
        %3568 = vmatprep.subr.bf16.mxu0 0
        %3569 = vmatpush1.bf16.msra.mxu0 0
        %3570 = vmatprep.subr.bf16.mxu0 0
        %3571 = vmatpush1.bf16.msra.mxu0 0
        %3572 = vmatprep.subr.bf16.mxu0 0
        %3573 = vmatpush1.bf16.msra.mxu0 0
        %3574 = vmatprep.subr.bf16.mxu0 0
        %3575 = vmatpush1.bf16.msra.mxu0 0
        %3576 = vmatprep.subr.bf16.mxu0 0
        %3577 = vmatpush1.bf16.msra.mxu0 0
        %3578 = vmatprep.subr.bf16.mxu0 0
        %3579 = vmatpush1.bf16.msra.mxu0 0
        %3580 = vmatprep.subr.bf16.mxu0 0
        %3581 = vmatpush1.bf16.msra.mxu0 0
        %3582 = vmatprep.subr.bf16.mxu0 0
        %3583 = vmatpush1.bf16.msra.mxu0 0
        %3584 = vmatprep.subr.bf16.mxu0 0
        %3585 = vmatpush1.bf16.msra.mxu0 0
        %3586 = vmatprep.subr.bf16.mxu0 0
        %3587 = vmatpush1.bf16.msra.mxu0 0
        %3588 = vmatprep.subr.bf16.mxu0 0
        %3589 = vmatpush1.bf16.msra.mxu0 0
        %3590 = vmatprep.subr.bf16.mxu0 0
        %3591 = vmatpush1.bf16.msra.mxu0 0
        %3592 = vmatprep.subr.bf16.mxu0 0
        %3593 = vmatpush1.bf16.msra.mxu0 0
        %3594 = vmatprep.subr.bf16.mxu0 0
        %3595 = vmatpush1.bf16.msra.mxu0 0
        %3596 = vmatprep.subr.bf16.mxu0 0
        %3597 = vmatpush1.bf16.msra.mxu0 0
        %3598 = vmatprep.mubr.bf16.mxu0 0
        %3599 = vmatmul.mubr.bf16.gmra.mrb[0].mxu0 %v3516
        %v3600 = vpop.f32.mrb[0].mxu0
        %v3601 = vadd.f32 0.0, %v3600
        %v3602 = vpop.f32.mrb[0].mxu0
        %v3603 = vpop.f32.mrb[0].mxu0
        %v3604 = vadd.f32 0.0, %v3603
        %v3605 = vpop.f32.mrb[0].mxu0
        %3606 = vmatprep.mubr.bf16.mxu0 0
        %3607 = vmatmul.mubr.bf16.gmra.mrb[0].mxu0 %v3519
        %v3608 = vpop.f32.mrb[0].mxu0
        %v3609 = vadd.f32 0.0, %v3608
        %v3610 = vpop.f32.mrb[0].mxu0
        %v3611 = vpop.f32.mrb[0].mxu0
        %v3612 = vadd.f32 0.0, %v3611
        %v3613 = vpop.f32.mrb[0].mxu0
        %3614 = vmatprep.mubr.bf16.mxu0 0
        %3615 = vmatmul.mubr.bf16.gmra.mrb[0].mxu0 %v3522
        %v3616 = vpop.f32.mrb[0].mxu0
        %v3617 = vadd.f32 0.0, %v3616
        %v3618 = vpop.f32.mrb[0].mxu0
        %v3619 = vpop.f32.mrb[0].mxu0
        %v3620 = vadd.f32 0.0, %v3619
        %v3621 = vpop.f32.mrb[0].mxu0
        %3622 = vmatprep.mubr.bf16.mxu0 0
        %3623 = vmatmul.mubr.bf16.gmra.mrb[0].mxu0 %v3525
        %v3624 = vpop.f32.mrb[0].mxu0
        %v3625 = vadd.f32 0.0, %v3624
        %v3626 = vpop.f32.mrb[0].mxu0
        %v3627 = vpop.f32.mrb[0].mxu0
        %v3628 = vadd.f32 0.0, %v3627
        %v3629 = vpop.f32.mrb[0].mxu0
        %3630 = vmatprep.mubr.bf16.mxu0 0
        %3631 = vmatmul.mubr.bf16.gmra.mrb[0].mxu0 %v3528
        %v3632 = vpop.f32.mrb[0].mxu0
        %v3633 = vadd.f32 0.0, %v3632
        %v3634 = vpop.f32.mrb[0].mxu0
        %v3635 = vpop.f32.mrb[0].mxu0
        %v3636 = vadd.f32 0.0, %v3635
        %v3637 = vpop.f32.mrb[0].mxu0
        %3638 = vmatprep.mubr.bf16.mxu0 0
        %3639 = vmatmul.mubr.bf16.gmra.mrb[0].mxu0 %v3531
        %v3640 = vpop.f32.mrb[0].mxu0
        %v3641 = vadd.f32 0.0, %v3640
        %v3642 = vpop.f32.mrb[0].mxu0
        %v3643 = vpop.f32.mrb[0].mxu0
        %v3644 = vadd.f32 0.0, %v3643
        %v3645 = vpop.f32.mrb[0].mxu0
        %3646 = vmatprep.mubr.bf16.mxu0 0
        %3647 = vmatmul.mubr.bf16.gmra.mrb[0].mxu0 %v3534
        %v3648 = vpop.f32.mrb[0].mxu0
        %v3649 = vadd.f32 0.0, %v3648
        %v3650 = vpop.f32.mrb[0].mxu0
        %v3651 = vpop.f32.mrb[0].mxu0
        %v3652 = vadd.f32 0.0, %v3651
        %v3653 = vpop.f32.mrb[0].mxu0
        %3654 = vmatprep.mubr.bf16.mxu0 0
        %3655 = vmatmul.mubr.bf16.gmra.mrb[0].mxu0 %v3537
        %v3656 = vpop.f32.mrb[0].mxu0
        %v3657 = vadd.f32 0.0, %v3656
        %v3658 = vpop.f32.mrb[0].mxu0
        %v3659 = vpop.f32.mrb[0].mxu0
        %v3660 = vadd.f32 0.0, %v3659
        %v3661 = vpop.f32.mrb[0].mxu0
        %3662 = vmatprep.mubr.bf16.mxu0 0
        %3663 = vmatmul.mubr.bf16.gmra.mrb[0].mxu0 %v3540
        %v3664 = vpop.f32.mrb[0].mxu0
        %v3665 = vadd.f32 0.0, %v3664
        %v3666 = vpop.f32.mrb[0].mxu0
        %v3667 = vpop.f32.mrb[0].mxu0
        %v3668 = vadd.f32 0.0, %v3667
        %v3669 = vpop.f32.mrb[0].mxu0
        %3670 = vmatprep.mubr.bf16.mxu0 0
        %3671 = vmatmul.mubr.bf16.gmra.mrb[0].mxu0 %v3543
        %v3672 = vpop.f32.mrb[0].mxu0
        %v3673 = vadd.f32 0.0, %v3672
        %v3674 = vpop.f32.mrb[0].mxu0
        %v3675 = vpop.f32.mrb[0].mxu0
        %v3676 = vadd.f32 0.0, %v3675
        %v3677 = vpop.f32.mrb[0].mxu0
        %3678 = vmatprep.mubr.bf16.mxu0 0
        %3679 = vmatmul.mubr.bf16.gmra.mrb[0].mxu0 %v3546
        %v3680 = vpop.f32.mrb[0].mxu0
        %v3681 = vadd.f32 0.0, %v3680
        %v3682 = vpop.f32.mrb[0].mxu0
        %v3683 = vpop.f32.mrb[0].mxu0
        %v3684 = vadd.f32 0.0, %v3683
        %v3685 = vpop.f32.mrb[0].mxu0
        %3686 = vmatprep.mubr.bf16.mxu0 0
        %3687 = vmatmul.mubr.bf16.gmra.mrb[0].mxu0 %v3549
        %v3688 = vpop.f32.mrb[0].mxu0
        %v3689 = vadd.f32 0.0, %v3688
        %v3690 = vpop.f32.mrb[0].mxu0
        %v3691 = vpop.f32.mrb[0].mxu0
        %v3692 = vadd.f32 0.0, %v3691
        %v3693 = vpop.f32.mrb[0].mxu0
        %3694 = vmatprep.mubr.bf16.mxu0 0
        %3695 = vmatmul.mubr.bf16.gmra.mrb[0].mxu0 %v3552
        %v3696 = vpop.f32.mrb[0].mxu0
        %v3697 = vadd.f32 0.0, %v3696
        %v3698 = vpop.f32.mrb[0].mxu0
        %v3699 = vpop.f32.mrb[0].mxu0
        %v3700 = vadd.f32 0.0, %v3699
        %v3701 = vpop.f32.mrb[0].mxu0
        %3702 = vmatprep.mubr.bf16.mxu0 0
        %3703 = vmatmul.mubr.bf16.gmra.mrb[0].mxu0 %v3555
        %v3704 = vpop.f32.mrb[0].mxu0
        %v3705 = vadd.f32 0.0, %v3704
        %v3706 = vpop.f32.mrb[0].mxu0
        %v3707 = vpop.f32.mrb[0].mxu0
        %v3708 = vadd.f32 0.0, %v3707
        %v3709 = vpop.f32.mrb[0].mxu0
        %3710 = vmatprep.mubr.bf16.mxu0 0
        %3711 = vmatmul.mubr.bf16.gmra.mrb[0].mxu0 %v3558
        %v3712 = vpop.f32.mrb[0].mxu0
        %v3713 = vadd.f32 0.0, %v3712
        %v3714 = vpop.f32.mrb[0].mxu0
        %v3715 = vpop.f32.mrb[0].mxu0
        %v3716 = vadd.f32 0.0, %v3715
        %v3717 = vpop.f32.mrb[0].mxu0
        %3718 = vmatprep.mubr.bf16.mxu0 0
        %3719 = vmatmul.mubr.bf16.gmra.mrb[0].mxu0 %v3561
        %v3720 = vpop.f32.mrb[0].mxu0
        %v3721 = vadd.f32 0.0, %v3720
        %v3722 = vpop.f32.mrb[0].mxu0
        %v3723 = vpop.f32.mrb[0].mxu0
        %v3724 = vadd.f32 0.0, %v3723
        %v3725 = vpop.f32.mrb[0].mxu0
        %3726 = vdwg.mxu0
        %3727 = vst [vmem:[%s294] sm:$0xff] %v3601
        %3728 = vst [vmem:[%s294 + $0x8] sm:$0xff] %v3604
        %3729 = vst [vmem:[%s294 + $0x10] sm:$0xff] %v3609
        %3730 = vst [vmem:[%s294 + $0x18] sm:$0xff] %v3612
        %3731 = vst [vmem:[%s294 + $0x20] sm:$0xff] %v3617
        %3732 = vst [vmem:[%s294 + $0x28] sm:$0xff] %v3620
        %3733 = vst [vmem:[%s294 + $0x30] sm:$0xff] %v3625
        %3734 = vst [vmem:[%s294 + $0x38] sm:$0xff] %v3628
        %3735 = vst [vmem:[%s294 + $0x40] sm:$0xff] %v3633
        %3736 = vst [vmem:[%s294 + $0x48] sm:$0xff] %v3636
        %3737 = vst [vmem:[%s294 + $0x50] sm:$0xff] %v3641
        %3738 = vst [vmem:[%s294 + $0x58] sm:$0xff] %v3644
        %3739 = vst [vmem:[%s294 + $0x60] sm:$0xff] %v3649
        %3740 = vst [vmem:[%s294 + $0x68] sm:$0xff] %v3652
        %3741 = vst [vmem:[%s294 + $0x70] sm:$0xff] %v3657
        %3742 = vst [vmem:[%s294 + $0x78] sm:$0xff] %v3660
        %3743 = vst [vmem:[%s294 + $0x80] sm:$0xff] %v3665
        %3744 = vst [vmem:[%s294 + $0x88] sm:$0xff] %v3668
        %3745 = vst [vmem:[%s294 + $0x90] sm:$0xff] %v3673
        %3746 = vst [vmem:[%s294 + $0x98] sm:$0xff] %v3676
        %3747 = vst [vmem:[%s294 + $0xa0] sm:$0xff] %v3681
        %3748 = vst [vmem:[%s294 + $0xa8] sm:$0xff] %v3684
        %3749 = vst [vmem:[%s294 + $0xb0] sm:$0xff] %v3689
        %3750 = vst [vmem:[%s294 + $0xb8] sm:$0xff] %v3692
        %3751 = vst [vmem:[%s294 + $0xc0] sm:$0xff] %v3697
        %3752 = vst [vmem:[%s294 + $0xc8] sm:$0xff] %v3700
        %3753 = vst [vmem:[%s294 + $0xd0] sm:$0xff] %v3705
        %3754 = vst [vmem:[%s294 + $0xd8] sm:$0xff] %v3708
        %3755 = vst [vmem:[%s294 + $0xe0] sm:$0xff] %v3713
        %3756 = vst [vmem:[%s294 + $0xe8] sm:$0xff] %v3716
        %3757 = vst [vmem:[%s294 + $0xf0] sm:$0xff] %v3721
        %3758 = vst [vmem:[%s294 + $0xf8] sm:$0xff] %v3724
        %s3759 = sand.u32 %s142, 1
        %s3760 = scalar_lea.sflag [#allocation4], %s3759
        %s3761 = sand.u32 %s142, 1
        %s3762 = smul.addr %s3761, 256
        %s3763 = scalar_lea.vmem [#allocation11], %s3762
        // Predicated region
        $region61: #{vit_lightweight_head_forward.11} parent=39 // pred_check
          %p3764 = pneg %p152
        $region62: #{vit_lightweight_head_forward.11} parent=39 // pred_check_branch
          %3766 = sbr.rel (%p3764) target = $region64
        $region63: #{vit_lightweight_head_forward.11} parent=39 // pred_region
          %s3768 = ssub.s32 4096, 4096
          %3769 = vsyncadd %s3760, %s3768
          %s3770 = smul.addr %s24, 32
          %s3771 = smul.addr %s3770, 128
          %s3772 = scalar_lea.hbm %s5, %s3771
          %s3773 = sshll.u32 %s3763, 4
          %s3774 = int_to_ptr.vmem [resolvable:$true] %s3773
          %3779 = dma.vmem_to_hbm [thread:$0]  %s3774, 4096, %s3772, %s3760, 128, 128, 8
        $region64: #{vit_lightweight_head_forward.11} parent=39 // pred_fallthru
          _
      $region40: #{vit_lightweight_head_forward.11} parent=5 // pred_fallthru
        _
      %p3780 = scmp.le.s32.totalorder 2, %s19
      // Predicated region
      $region65: #{vit_lightweight_head_forward.11} parent=5 // pred_check
        %p3781 = pneg %p3780
      $region66: #{vit_lightweight_head_forward.11} parent=5 // pred_check_branch
        %3783 = sbr.rel (%p3781) target = $region68
      $region67: #{vit_lightweight_head_forward.11} parent=5 // pred_region
        %s3784 = ssub.s32 %s19, 2
        // Predicated region
        $region69: #{vit_lightweight_head_forward.11} parent=67 // pred_check
          %p3785 = pneg %p158
        $region70: #{vit_lightweight_head_forward.11} parent=67 // pred_check_branch
          %3787 = sbr.rel (%p3785) target = $region72
        $region71: #{vit_lightweight_head_forward.11} parent=67 // pred_region
          %s3788 = sand.u32 %s143, 1
          %s3789 = scalar_lea.sflag [#allocation4], %s3788
          %s3790 = sand.u32 %s143, 1
          %s3791 = smul.addr %s3790, 256
          %s3792 = scalar_lea.vmem [#allocation11], %s3791
          %3793 = dma.done %s3789, 4096
        $region72: #{vit_lightweight_head_forward.11} parent=67 // pred_fallthru
          _
      $region68: #{vit_lightweight_head_forward.11} parent=5 // pred_fallthru
        _
    $region6: #{vit_lightweight_head_forward.11} parent=1 // loop_footer
      %s23 = sadd.s32 1, %s19
    $region7: #{vit_lightweight_head_forward.11} parent=1 // loop_footer_branch
      %18 = sbr.rel target = $region3
    $region8: #{vit_lightweight_head_forward.11} parent=1 // loop_exit
      _
    %3794 = vsyncpa [#allocation3], 1
    %s3795 = scalar_lea.sflag [#allocation3], 1
    %3796 = vsyncpa %s3795, 1
    %3797 = vsyncpa [#allocation6], 1
    %3798 = vsyncpa [#allocation9], 1
    %3799 = vsyncpa [#allocation4], 1
    %s3800 = scalar_lea.sflag [#allocation4], 1
    %3801 = vsyncpa %s3800, 1

</llo_original>
